<compile_context>
chip_gen: v6e
topology: v6e:2x2x1
jax: 0.10.0
libtpu: 0.0.40
codegen_flags: <defaults>
</compile_context>

<pallas_src>
import functools

import jax
import jax.numpy as jnp
from jax.experimental import pallas as pl
from jax.experimental.pallas import tpu as pltpu

LANES = 128  # lane-padded channel width used by every conv kernel


def _apply_act(y, act):
    if act == "relu":
        return jnp.maximum(y, 0.0)
    if act == "sigmoid":
        return jax.nn.sigmoid(y)
    return y


# ----------------------------------------------------------------------------
# Kernels
# ----------------------------------------------------------------------------
def _fc_fused_kernel(z_ref, w1_ref, b1_ref, w2_ref, b2_ref, o_ref):
    """o = relu(relu(z @ w1 + b1) @ w2 + b2); bf16 matmuls, f32 accumulate."""
    h = jnp.dot(z_ref[...], w1_ref[...], preferred_element_type=jnp.float32)
    h = jnp.maximum(h + b1_ref[...], 0.0)
    h = jnp.dot(h.astype(w2_ref.dtype), w2_ref[...],
                preferred_element_type=jnp.float32)
    h = jnp.maximum(h + b2_ref[...], 0.0)
    o_ref[...] = h.astype(o_ref.dtype)


def _conv3x3_kernel(x_ref, w_ref, b_ref, o_ref, *, H, W, act):
    """3x3 stride-1 'same' conv for one batch element (flattened-row form).

    x_ref : (1, (H+2)*(W+2) + 2, C)  zero-padded input, rows flattened with
            pitch Wp = W+2 (+2 rows keep the largest tap slice in bounds).
    w_ref : (9*C, C)  tap-major im2col weight (lane-padded channels).
    o_ref : (1, H*(W+2), C)  output with the same row pitch; the wrapper
            drops the 2 junk columns per row.
    """
    C = x_ref.shape[-1]
    Wp = W + 2
    M = H * Wp
    x = x_ref[0]                                          # (rows, C)
    taps = [x[dy * Wp + dx: dy * Wp + dx + M, :]
            for dy in range(3) for dx in range(3)]
    patches = jnp.concatenate(taps, axis=-1)              # (M, 9*C)
    y = jnp.dot(patches, w_ref[...], preferred_element_type=jnp.float32)
    y = _apply_act(y + b_ref[...], act)
    o_ref[0] = y.astype(o_ref.dtype)


def _convt3x3_kernel(x_ref, w00_ref, w01_ref, w10_ref, w11_ref, b_ref, o_ref,
                     *, H, W, act):
    """ConvTranspose2d(k=3, s=2, p=1, output_padding=1) for one batch element
    via 4-phase (sub-pixel) decomposition (no multiplications by dilation
    zeros), flattened-row form.

    x_ref : (1, (H+1)*(W+1) + 1, C)  input zero-padded by one row/col at the
            bottom/right, rows flattened with pitch Wp = W+1.
    o_ref : (1, 4, H*(W+1), C); phase p = 2*ry + rx holds out[2i+ry, 2j+rx]
            at pitched row i*(W+1) + j (wrapper drops the junk column).
    """
    C = x_ref.shape[-1]
    Wp = W + 1
    M = H * Wp
    x = x_ref[0]
    x00 = x[0:M, :]                     # x[i,   j  ]
    x01 = x[1:M + 1, :]                 # x[i,   j+1]
    x10 = x[Wp:Wp + M, :]               # x[i+1, j  ]
    x11 = x[Wp + 1:Wp + 1 + M, :]       # x[i+1, j+1]
    b = b_ref[...]

    p00 = _apply_act(
        jnp.dot(x00, w00_ref[...], preferred_element_type=jnp.float32) + b, act)
    p01 = _apply_act(
        jnp.dot(jnp.concatenate([x00, x01], axis=-1), w01_ref[...],
                preferred_element_type=jnp.float32) + b, act)
    p10 = _apply_act(
        jnp.dot(jnp.concatenate([x00, x10], axis=-1), w10_ref[...],
                preferred_element_type=jnp.float32) + b, act)
    p11 = _apply_act(
        jnp.dot(jnp.concatenate([x00, x01, x10, x11], axis=-1), w11_ref[...],
                preferred_element_type=jnp.float32) + b, act)

    o_ref[0, 0] = p00.astype(o_ref.dtype)
    o_ref[0, 1] = p01.astype(o_ref.dtype)
    o_ref[0, 2] = p10.astype(o_ref.dtype)
    o_ref[0, 3] = p11.astype(o_ref.dtype)


# ----------------------------------------------------------------------------
# Wrappers
# ----------------------------------------------------------------------------
def fc_fused(z, w1, b1, w2, b2):
    B = z.shape[0]
    N = w2.shape[1]
    return pl.pallas_call(
        _fc_fused_kernel,
        out_shape=jax.ShapeDtypeStruct((B, N), jnp.bfloat16),
    )(z.astype(jnp.bfloat16), w1, b1, w2, b2)


def conv3x3(x, w2d, bias, act):
    """x: (B, H, W, 128) bf16 -> (B, H, W, 128) bf16, 3x3 stride-1 conv."""
    B, H, W, C = x.shape
    Wp = W + 2
    xp = jnp.pad(x, ((0, 0), (1, 1), (1, 1), (0, 0)))            # (B, H+2, Wp, C)
    xf = jnp.pad(xp.reshape(B, (H + 2) * Wp, C), ((0, 0), (0, 2), (0, 0)))
    kernel = functools.partial(_conv3x3_kernel, H=H, W=W, act=act)
    y = pl.pallas_call(
        kernel,
        out_shape=jax.ShapeDtypeStruct((B, H * Wp, C), jnp.bfloat16),
        grid=(B,),
        in_specs=[
            pl.BlockSpec((1, (H + 2) * Wp + 2, C), lambda i: (i, 0, 0)),
            pl.BlockSpec(w2d.shape, lambda i: (0, 0)),
            pl.BlockSpec(bias.shape, lambda i: (0, 0)),
        ],
        out_specs=pl.BlockSpec((1, H * Wp, C), lambda i: (i, 0, 0)),
        compiler_params=pltpu.CompilerParams(
            dimension_semantics=("parallel",)),
    )(xf, w2d, bias)
    return y.reshape(B, H, Wp, C)[:, :, :W, :]


def convt3x3(x, w_phases, bias, act, out_dtype=jnp.bfloat16):
    """x: (B, H, W, 128) -> (B, 2H, 2W, 128); ConvTranspose2d k3 s2 p1 op1."""
    B, H, W, C = x.shape
    Wp = W + 1
    w00, w01, w10, w11 = w_phases
    xe = jnp.pad(x, ((0, 0), (0, 1), (0, 1), (0, 0)))            # (B, H+1, Wp, C)
    xf = jnp.pad(xe.reshape(B, (H + 1) * Wp, C), ((0, 0), (0, 1), (0, 0)))
    kernel = functools.partial(_convt3x3_kernel, H=H, W=W, act=act)
    ph = pl.pallas_call(
        kernel,
        out_shape=jax.ShapeDtypeStruct((B, 4, H * Wp, C), out_dtype),
        grid=(B,),
        in_specs=[
            pl.BlockSpec((1, (H + 1) * Wp + 1, C), lambda i: (i, 0, 0)),
            pl.BlockSpec(w00.shape, lambda i: (0, 0)),
            pl.BlockSpec(w01.shape, lambda i: (0, 0)),
            pl.BlockSpec(w10.shape, lambda i: (0, 0)),
            pl.BlockSpec(w11.shape, lambda i: (0, 0)),
            pl.BlockSpec(bias.shape, lambda i: (0, 0)),
        ],
        out_specs=pl.BlockSpec((1, 4, H * Wp, C), lambda i: (i, 0, 0, 0)),
        compiler_params=pltpu.CompilerParams(
            dimension_semantics=("parallel",)),
    )(xf, w00, w01, w10, w11, bias)
    # drop the junk column (pitch Wp -> W) and interleave the 4 phases:
    # out[b, 2i+ry, 2j+rx, :] = ph[b, 2*ry+rx, i*Wp + j, :]
    ph = ph.reshape(B, 2, 2, H, Wp, C)[:, :, :, :, :W, :]
    return jnp.transpose(ph, (0, 3, 1, 4, 2, 5)).reshape(B, 2 * H, 2 * W, C)


# ----------------------------------------------------------------------------
# Parameter preprocessing (done ONCE, outside the jitted forward)
# ----------------------------------------------------------------------------
def prepare_params(params, cpad=LANES):
    bf16 = jnp.bfloat16

    def pad_bias(b):
        return jnp.zeros((1, cpad), jnp.float32).at[0, :b.shape[0]].set(b)

    def conv_w(w_pt):                       # Conv2d weight (Cout, Cin, 3, 3)
        cout, cin = w_pt.shape[0], w_pt.shape[1]
        w = jnp.transpose(w_pt, (2, 3, 1, 0))                 # (3,3,cin,cout)
        wp = jnp.zeros((3, 3, cpad, cpad), jnp.float32)
        wp = wp.at[:, :, :cin, :cout].set(w)
        return wp.reshape(9 * cpad, cpad).astype(bf16)        # tap-major

    def convt_w(w_pt):                      # ConvTranspose2d weight (Cin, Cout, 3, 3)
        cin, cout = w_pt.shape[0], w_pt.shape[1]
        # flipped kernel of the equivalent stride-1 conv: wf[ky,kx] = w_pt[...,2-ky,2-kx]
        wf = jnp.transpose(jnp.flip(w_pt, (2, 3)), (2, 3, 0, 1))
        T = jnp.zeros((3, 3, cpad, cpad), jnp.float32)
        T = T.at[:, :, :cin, :cout].set(wf)
        w00 = T[1, 1]                                                   # (C, C)
        w01 = jnp.concatenate([T[1, 0], T[1, 2]], axis=0)               # (2C, C)
        w10 = jnp.concatenate([T[0, 1], T[2, 1]], axis=0)               # (2C, C)
        w11 = jnp.concatenate([T[0, 0], T[0, 2], T[2, 0], T[2, 2]], axis=0)  # (4C, C)
        return tuple(w.astype(bf16) for w in (w00, w01, w10, w11))

    return {
        "fc_w1": params["fc1_w"].T.astype(bf16),
        "fc_b1": params["fc1_b"].reshape(1, -1).astype(jnp.float32),
        "fc_w2": params["fc2_w"].T.astype(bf16),
        "fc_b2": params["fc2_b"].reshape(1, -1).astype(jnp.float32),
        "ct1_w": convt_w(params["ct1_w"]), "ct1_b": pad_bias(params["ct1_b"]),
        "c2_w": conv_w(params["c2_w"]),    "c2_b":  pad_bias(params["c2_b"]),
        "ct3_w": convt_w(params["ct3_w"]), "ct3_b": pad_bias(params["ct3_b"]),
        "c4_w": conv_w(params["c4_w"]),    "c4_b":  pad_bias(params["c4_b"]),
        "ct5_w": convt_w(params["ct5_w"]), "ct5_b": pad_bias(params["ct5_b"]),
    }


# ----------------------------------------------------------------------------
# Decoder forward (mirrors Decoder_cifar.forward)
# ----------------------------------------------------------------------------
def decoder_forward(z, prep, *, filt, c_dim, cpad=LANES):
    B = z.shape[0]
    f2 = 2 * filt
    # self.fc (fused)
    h = fc_fused(z, prep["fc_w1"], prep["fc_b1"], prep["fc_w2"], prep["fc_b2"])
    # torch .view(B, -1, 4, 4) (NCHW) -> channels-last, lane-pad channels to 128
    x = jnp.transpose(h.reshape(B, f2, 4, 4), (0, 2, 3, 1))            # (B,4,4,f2)
    x = jnp.pad(x, ((0, 0), (0, 0), (0, 0), (0, cpad - f2)))           # (B,4,4,128)
    # self.model
    x = convt3x3(x, prep["ct1_w"], prep["ct1_b"], "relu")              # (B,8,8,128)
    x = conv3x3(x, prep["c2_w"], prep["c2_b"], "relu")                 # (B,8,8,128)
    x = convt3x3(x, prep["ct3_w"], prep["ct3_b"], "relu")              # (B,16,16,128)
    x = conv3x3(x, prep["c4_w"], prep["c4_b"], "relu")                 # (B,16,16,128)
    x = convt3x3(x, prep["ct5_w"], prep["ct5_b"], "sigmoid",
                 out_dtype=jnp.float32)                                # (B,32,32,128)
    x = x[..., :c_dim]                                                 # drop lane pad
    return jnp.transpose(x, (0, 3, 1, 2))                              # NCHW like torch


# ----------------------------------------------------------------------------
# Deterministic synthetic parameters (PyTorch layouts)
# ----------------------------------------------------------------------------
def init_params(key, z_dim, c_dim, filt):
    f, f2 = filt, 2 * filt
    ks = jax.random.split(key, 14)

    def n(k, shape, fan_in):
        return jax.random.normal(k, shape, jnp.float32) / jnp.sqrt(fan_in)

    def bias(k, d):
        return 0.1 * jax.random.normal(k, (d,), jnp.float32)

    return {
        "fc1_w": n(ks[0], (512, z_dim), z_dim),            # Linear: (out, in)
        "fc1_b": bias(ks[1], 512),
        "fc2_w": n(ks[2], (2 * 16 * filt, 512), 512),
        "fc2_b": bias(ks[3], 2 * 16 * filt),
        "ct1_w": n(ks[4], (f2, f2, 3, 3), 9 * f2),         # ConvT: (in, out, kH, kW)
        "ct1_b": bias(ks[5], f2),
        "c2_w": n(ks[6], (f2, f2, 3, 3), 9 * f2),          # Conv: (out, in, kH, kW)
        "c2_b": bias(ks[7], f2),
        "ct3_w": n(ks[8], (f2, f, 3, 3), 9 * f2),
        "ct3_b": bias(ks[9], f),
        "c4_w": n(ks[10], (f, f, 3, 3), 9 * f),
        "c4_b": bias(ks[11], f),
        "ct5_w": n(ks[12], (f, c_dim, 3, 3), 9 * f),
        "ct5_b": bias(ks[13], c_dim),
    }


# ----------------------------------------------------------------------------
# Pure-JAX reference (XLA convs, f32) for a correctness check
# ----------------------------------------------------------------------------
def reference_forward(z, params, *, filt):
    P = jax.lax.Precision.HIGHEST
    dn = ("NHWC", "HWIO", "NHWC")

    def conv(x, w_pt, b):
        w = jnp.transpose(w_pt, (2, 3, 1, 0))
        return jax.lax.conv_general_dilated(
            x, w, (1, 1), ((1, 1), (1, 1)), dimension_numbers=dn, precision=P) + b

    def convt(x, w_pt, b):
        w = jnp.transpose(jnp.flip(w_pt, (2, 3)), (2, 3, 0, 1))
        return jax.lax.conv_general_dilated(
            x, w, (1, 1), ((1, 2), (1, 2)), lhs_dilation=(2, 2),
            dimension_numbers=dn, precision=P) + b

    relu = lambda v: jnp.maximum(v, 0.0)
    h = relu(jnp.dot(z, params["fc1_w"].T, precision=P) + params["fc1_b"])
    h = relu(jnp.dot(h, params["fc2_w"].T, precision=P) + params["fc2_b"])
    x = jnp.transpose(h.reshape(z.shape[0], 2 * filt, 4, 4), (0, 2, 3, 1))
    x = relu(convt(x, params["ct1_w"], params["ct1_b"]))
    x = relu(conv(x, params["c2_w"], params["c2_b"]))
    x = relu(convt(x, params["ct3_w"], params["ct3_b"]))
    x = relu(conv(x, params["c4_w"], params["c4_b"]))
    x = jax.nn.sigmoid(convt(x, params["ct5_w"], params["ct5_b"]))
    return jnp.transpose(x, (0, 3, 1, 2))


# ----------------------------------------------------------------------------
if __name__ == "__main__":
    Z_DIM, C_DIM, X_DIM, FILT, B = 16, 3, 32, 32, 2

    key = jax.random.PRNGKey(0)
    kp, kz = jax.random.split(key)
    params = init_params(kp, Z_DIM, C_DIM, FILT)
    z = jax.random.normal(kz, (B, Z_DIM), jnp.float32)

    prep = prepare_params(params)

    fwd = jax.jit(functools.partial(decoder_forward, filt=FILT, c_dim=C_DIM))
    out = jax.block_until_ready(fwd(z, prep))

    assert out.shape == (B, C_DIM, X_DIM, X_DIM), out.shape
    assert bool(jnp.isfinite(out).all())

    ref = reference_forward(z, params, filt=FILT)
    max_err = float(jnp.max(jnp.abs(out - ref)))
    # bf16 MXU inputs with f32 accumulation vs. a pure-f32 reference.
    assert max_err < 3e-2, f"max abs err {max_err}"

    print("KERNEL_OK")
</pallas_src>

<mosaic_0001>
module attributes {stable_mosaic.version = 11 : i64} {
  func.func @_fc_fused_kernel(%arg0: memref<2x16xbf16, #tpu.memory_space<vmem>>, %arg1: memref<16x512xbf16, #tpu.memory_space<vmem>>, %arg2: memref<1x512xf32, #tpu.memory_space<vmem>>, %arg3: memref<512x1024xbf16, #tpu.memory_space<vmem>>, %arg4: memref<1x1024xf32, #tpu.memory_space<vmem>>, %arg5: memref<2x1024xbf16, #tpu.memory_space<vmem>>) attributes {dimension_semantics = [], scalar_prefetch = 0 : i64, scratch_operands = 0 : i64, tpu.core_type = #tpu.core_type<tc>} {
    %c0 = arith.constant 0 : index
    %c0_0 = arith.constant 0 : index
    %0 = vector.load %arg0[%c0, %c0_0] : memref<2x16xbf16, #tpu.memory_space<vmem>>, vector<2x16xbf16>
    %c0_1 = arith.constant 0 : index
    %c0_2 = arith.constant 0 : index
    %1 = vector.load %arg1[%c0_1, %c0_2] : memref<16x512xbf16, #tpu.memory_space<vmem>>, vector<16x512xbf16>
    %cst = arith.constant dense<0.000000e+00> : vector<2x512xf32>
    %2 = tpu.matmul %0, %1, %cst {dimension_numbers = #tpu.dot_dimension_numbers<[1], [0], [0], [1], [0, 0, 1, 1], [], []>} : vector<2x16xbf16>, vector<16x512xbf16>, vector<2x512xf32> -> vector<2x512xf32>
    %c0_3 = arith.constant 0 : index
    %c0_4 = arith.constant 0 : index
    %3 = vector.load %arg2[%c0_3, %c0_4] : memref<1x512xf32, #tpu.memory_space<vmem>>, vector<1x512xf32>
    %4 = vector.broadcast %3 : vector<1x512xf32> to vector<2x512xf32>
    %5 = arith.addf %2, %4 : vector<2x512xf32>
    %cst_5 = arith.constant 0.000000e+00 : f32
    %6 = vector.broadcast %cst_5 : f32 to vector<2x512xf32>
    %7 = arith.maximumf %5, %6 : vector<2x512xf32>
    %8 = arith.truncf %7 : vector<2x512xf32> to vector<2x512xbf16>
    %c0_6 = arith.constant 0 : index
    %c0_7 = arith.constant 0 : index
    %9 = vector.load %arg3[%c0_6, %c0_7] : memref<512x1024xbf16, #tpu.memory_space<vmem>>, vector<512x1024xbf16>
    %cst_8 = arith.constant dense<0.000000e+00> : vector<2x1024xf32>
    %10 = tpu.matmul %8, %9, %cst_8 {dimension_numbers = #tpu.dot_dimension_numbers<[1], [0], [0], [1], [0, 0, 1, 1], [], []>} : vector<2x512xbf16>, vector<512x1024xbf16>, vector<2x1024xf32> -> vector<2x1024xf32>
    %c0_9 = arith.constant 0 : index
    %c0_10 = arith.constant 0 : index
    %11 = vector.load %arg4[%c0_9, %c0_10] : memref<1x1024xf32, #tpu.memory_space<vmem>>, vector<1x1024xf32>
    %12 = vector.broadcast %11 : vector<1x1024xf32> to vector<2x1024xf32>
    %13 = arith.addf %10, %12 : vector<2x1024xf32>
    %cst_11 = arith.constant 0.000000e+00 : f32
    %14 = vector.broadcast %cst_11 : f32 to vector<2x1024xf32>
    %15 = arith.maximumf %13, %14 : vector<2x1024xf32>
    %16 = arith.truncf %15 : vector<2x1024xf32> to vector<2x1024xbf16>
    %c0_12 = arith.constant 0 : index
    %c0_13 = arith.constant 0 : index
    %17 = vector.load %arg5[%c0_12, %c0_13] : memref<2x1024xbf16, #tpu.memory_space<vmem>>, vector<2x1024xbf16>
    tpu.vector_store %arg5[%c0_12, %c0_13], %16 {strides = array<i32>} : memref<2x1024xbf16, #tpu.memory_space<vmem>>, vector<2x1024xbf16>,
    return
  }
}

module attributes {stable_mosaic.version = 11 : i64} {
  func.func @_convt3x3_kernel(%arg0: i32, %arg1: memref<1x26x128xbf16, #tpu.memory_space<vmem>>, %arg2: memref<128x128xbf16, #tpu.memory_space<vmem>>, %arg3: memref<256x128xbf16, #tpu.memory_space<vmem>>, %arg4: memref<256x128xbf16, #tpu.memory_space<vmem>>, %arg5: memref<512x128xbf16, #tpu.memory_space<vmem>>, %arg6: memref<1x128xf32, #tpu.memory_space<vmem>>, %arg7: memref<1x4x20x128xbf16, #tpu.memory_space<vmem>>) attributes {dimension_semantics = [#tpu.dimension_semantics<parallel>], iteration_bounds = array<i64: 2>, scalar_prefetch = 0 : i64, scratch_operands = 0 : i64, tpu.core_type = #tpu.core_type<tc>, window_params = [{transform_indices = @transform_0, window_bounds = array<i64: 1, 26, 128>}, {pipeline_mode = #tpu.pipeline_mode<synchronous>, transform_indices = @transform_1, window_bounds = array<i64: 128, 128>}, {pipeline_mode = #tpu.pipeline_mode<synchronous>, transform_indices = @transform_2, window_bounds = array<i64: 256, 128>}, {pipeline_mode = #tpu.pipeline_mode<synchronous>, transform_indices = @transform_3, window_bounds = array<i64: 256, 128>}, {pipeline_mode = #tpu.pipeline_mode<synchronous>, transform_indices = @transform_4, window_bounds = array<i64: 512, 128>}, {pipeline_mode = #tpu.pipeline_mode<synchronous>, transform_indices = @transform_5, window_bounds = array<i64: 1, 128>}, {transform_indices = @transform_6, window_bounds = array<i64: 1, 4, 20, 128>}]} {
    %c0 = arith.constant 0 : index
    %c0_0 = arith.constant 0 : index
    %c0_1 = arith.constant 0 : index
    %0 = vector.load %arg1[%c0, %c0_0, %c0_1] : memref<1x26x128xbf16, #tpu.memory_space<vmem>>, vector<1x26x128xbf16>
    %1 = vector.shape_cast %0 : vector<1x26x128xbf16> to vector<26x128xbf16>
    %2 = vector.extract_strided_slice %1 {offsets = [0, 0], sizes = [20, 128], strides = [1, 1]} : vector<26x128xbf16> to vector<20x128xbf16>
    %3 = vector.extract_strided_slice %1 {offsets = [1, 0], sizes = [20, 128], strides = [1, 1]} : vector<26x128xbf16> to vector<20x128xbf16>
    %4 = vector.extract_strided_slice %1 {offsets = [5, 0], sizes = [20, 128], strides = [1, 1]} : vector<26x128xbf16> to vector<20x128xbf16>
    %5 = vector.extract_strided_slice %1 {offsets = [6, 0], sizes = [20, 128], strides = [1, 1]} : vector<26x128xbf16> to vector<20x128xbf16>
    %c0_2 = arith.constant 0 : index
    %c0_3 = arith.constant 0 : index
    %6 = vector.load %arg6[%c0_2, %c0_3] : memref<1x128xf32, #tpu.memory_space<vmem>>, vector<1x128xf32>
    %c0_4 = arith.constant 0 : index
    %c0_5 = arith.constant 0 : index
    %7 = vector.load %arg2[%c0_4, %c0_5] : memref<128x128xbf16, #tpu.memory_space<vmem>>, vector<128x128xbf16>
    %cst = arith.constant dense<0.000000e+00> : vector<20x128xf32>
    %8 = tpu.matmul %2, %7, %cst {dimension_numbers = #tpu.dot_dimension_numbers<[1], [0], [0], [1], [0, 0, 1, 1], [], []>} : vector<20x128xbf16>, vector<128x128xbf16>, vector<20x128xf32> -> vector<20x128xf32>
    %9 = vector.broadcast %6 : vector<1x128xf32> to vector<20x128xf32>
    %10 = arith.addf %8, %9 : vector<20x128xf32>
    %cst_6 = arith.constant 0.000000e+00 : f32
    %11 = vector.broadcast %cst_6 : f32 to vector<20x128xf32>
    %12 = arith.maximumf %10, %11 : vector<20x128xf32>
    %13 = tpu.concatenate %2, %3 in 1 : vector<20x128xbf16>, vector<20x128xbf16> -> vector<20x256xbf16>
    %c0_7 = arith.constant 0 : index
    %c0_8 = arith.constant 0 : index
    %14 = vector.load %arg3[%c0_7, %c0_8] : memref<256x128xbf16, #tpu.memory_space<vmem>>, vector<256x128xbf16>
    %cst_9 = arith.constant dense<0.000000e+00> : vector<20x128xf32>
    %15 = tpu.matmul %13, %14, %cst_9 {dimension_numbers = #tpu.dot_dimension_numbers<[1], [0], [0], [1], [0, 0, 1, 1], [], []>} : vector<20x256xbf16>, vector<256x128xbf16>, vector<20x128xf32> -> vector<20x128xf32>
    %16 = vector.broadcast %6 : vector<1x128xf32> to vector<20x128xf32>
    %17 = arith.addf %15, %16 : vector<20x128xf32>
    %cst_10 = arith.constant 0.000000e+00 : f32
    %18 = vector.broadcast %cst_10 : f32 to vector<20x128xf32>
    %19 = arith.maximumf %17, %18 : vector<20x128xf32>
    %20 = tpu.concatenate %2, %4 in 1 : vector<20x128xbf16>, vector<20x128xbf16> -> vector<20x256xbf16>
    %c0_11 = arith.constant 0 : index
    %c0_12 = arith.constant 0 : index
    %21 = vector.load %arg4[%c0_11, %c0_12] : memref<256x128xbf16, #tpu.memory_space<vmem>>, vector<256x128xbf16>
    %cst_13 = arith.constant dense<0.000000e+00> : vector<20x128xf32>
    %22 = tpu.matmul %20, %21, %cst_13 {dimension_numbers = #tpu.dot_dimension_numbers<[1], [0], [0], [1], [0, 0, 1, 1], [], []>} : vector<20x256xbf16>, vector<256x128xbf16>, vector<20x128xf32> -> vector<20x128xf32>
    %23 = vector.broadcast %6 : vector<1x128xf32> to vector<20x128xf32>
    %24 = arith.addf %22, %23 : vector<20x128xf32>
    %cst_14 = arith.constant 0.000000e+00 : f32
    %25 = vector.broadcast %cst_14 : f32 to vector<20x128xf32>
    %26 = arith.maximumf %24, %25 : vector<20x128xf32>
    %27 = tpu.concatenate %2, %3, %4, %5 in 1 : vector<20x128xbf16>, vector<20x128xbf16>, vector<20x128xbf16>, vector<20x128xbf16> -> vector<20x512xbf16>
    %c0_15 = arith.constant 0 : index
    %c0_16 = arith.constant 0 : index
    %28 = vector.load %arg5[%c0_15, %c0_16] : memref<512x128xbf16, #tpu.memory_space<vmem>>, vector<512x128xbf16>
    %cst_17 = arith.constant dense<0.000000e+00> : vector<20x128xf32>
    %29 = tpu.matmul %27, %28, %cst_17 {dimension_numbers = #tpu.dot_dimension_numbers<[1], [0], [0], [1], [0, 0, 1, 1], [], []>} : vector<20x512xbf16>, vector<512x128xbf16>, vector<20x128xf32> -> vector<20x128xf32>
    %30 = vector.broadcast %6 : vector<1x128xf32> to vector<20x128xf32>
    %31 = arith.addf %29, %30 : vector<20x128xf32>
    %cst_18 = arith.constant 0.000000e+00 : f32
    %32 = vector.broadcast %cst_18 : f32 to vector<20x128xf32>
    %33 = arith.maximumf %31, %32 : vector<20x128xf32>
    %34 = arith.truncf %12 : vector<20x128xf32> to vector<20x128xbf16>
    %c0_19 = arith.constant 0 : index
    %c0_20 = arith.constant 0 : index
    %c0_21 = arith.constant 0 : index
    %c0_22 = arith.constant 0 : index
    %35 = vector.load %arg7[%c0_19, %c0_20, %c0_21, %c0_22] : memref<1x4x20x128xbf16, #tpu.memory_space<vmem>>, vector<1x1x20x128xbf16>
    %36 = vector.shape_cast %35 : vector<1x1x20x128xbf16> to vector<20x128xbf16>
    %37 = vector.shape_cast %34 : vector<20x128xbf16> to vector<1x1x20x128xbf16>
    tpu.vector_store %arg7[%c0_19, %c0_20, %c0_21, %c0_22], %37 {strides = array<i32>} : memref<1x4x20x128xbf16, #tpu.memory_space<vmem>>, vector<1x1x20x128xbf16>,
    %38 = arith.truncf %19 : vector<20x128xf32> to vector<20x128xbf16>
    %c0_23 = arith.constant 0 : index
    %c1 = arith.constant 1 : index
    %c0_24 = arith.constant 0 : index
    %c0_25 = arith.constant 0 : index
    %39 = vector.load %arg7[%c0_23, %c1, %c0_24, %c0_25] : memref<1x4x20x128xbf16, #tpu.memory_space<vmem>>, vector<1x1x20x128xbf16>
    %40 = vector.shape_cast %39 : vector<1x1x20x128xbf16> to vector<20x128xbf16>
    %41 = vector.shape_cast %38 : vector<20x128xbf16> to vector<1x1x20x128xbf16>
    tpu.vector_store %arg7[%c0_23, %c1, %c0_24, %c0_25], %41 {strides = array<i32>} : memref<1x4x20x128xbf16, #tpu.memory_space<vmem>>, vector<1x1x20x128xbf16>,
    %42 = arith.truncf %26 : vector<20x128xf32> to vector<20x128xbf16>
    %c0_26 = arith.constant 0 : index
    %c2 = arith.constant 2 : index
    %c0_27 = arith.constant 0 : index
    %c0_28 = arith.constant 0 : index
    %43 = vector.load %arg7[%c0_26, %c2, %c0_27, %c0_28] : memref<1x4x20x128xbf16, #tpu.memory_space<vmem>>, vector<1x1x20x128xbf16>
    %44 = vector.shape_cast %43 : vector<1x1x20x128xbf16> to vector<20x128xbf16>
    %45 = vector.shape_cast %42 : vector<20x128xbf16> to vector<1x1x20x128xbf16>
    tpu.vector_store %arg7[%c0_26, %c2, %c0_27, %c0_28], %45 {strides = array<i32>} : memref<1x4x20x128xbf16, #tpu.memory_space<vmem>>, vector<1x1x20x128xbf16>,
    %46 = arith.truncf %33 : vector<20x128xf32> to vector<20x128xbf16>
    %c0_29 = arith.constant 0 : index
    %c3 = arith.constant 3 : index
    %c0_30 = arith.constant 0 : index
    %c0_31 = arith.constant 0 : index
    %47 = vector.load %arg7[%c0_29, %c3, %c0_30, %c0_31] : memref<1x4x20x128xbf16, #tpu.memory_space<vmem>>, vector<1x1x20x128xbf16>
    %48 = vector.shape_cast %47 : vector<1x1x20x128xbf16> to vector<20x128xbf16>
    %49 = vector.shape_cast %46 : vector<20x128xbf16> to vector<1x1x20x128xbf16>
    tpu.vector_store %arg7[%c0_29, %c3, %c0_30, %c0_31], %49 {strides = array<i32>} : memref<1x4x20x128xbf16, #tpu.memory_space<vmem>>, vector<1x1x20x128xbf16>,
    return
  }
  func.func @transform_0(%arg0: i32) -> (i32, i32, i32) {
    %c0_i32 = arith.constant 0 : i32
    %c0_i32_0 = arith.constant 0 : i32
    %c0_i32_1 = arith.constant 0 : i32
    return %arg0, %c0_i32, %c0_i32_0 : i32, i32, i32
  }
  func.func @transform_1(%arg0: i32) -> (i32, i32) {
    %c0_i32 = arith.constant 0 : i32
    %c0_i32_0 = arith.constant 0 : i32
    %c0_i32_1 = arith.constant 0 : i32
    return %c0_i32, %c0_i32_0 : i32, i32
  }
  func.func @transform_2(%arg0: i32) -> (i32, i32) {
    %c0_i32 = arith.constant 0 : i32
    %c0_i32_0 = arith.constant 0 : i32
    %c0_i32_1 = arith.constant 0 : i32
    return %c0_i32, %c0_i32_0 : i32, i32
  }
  func.func @transform_3(%arg0: i32) -> (i32, i32) {
    %c0_i32 = arith.constant 0 : i32
    %c0_i32_0 = arith.constant 0 : i32
    %c0_i32_1 = arith.constant 0 : i32
    return %c0_i32, %c0_i32_0 : i32, i32
  }
  func.func @transform_4(%arg0: i32) -> (i32, i32) {
    %c0_i32 = arith.constant 0 : i32
    %c0_i32_0 = arith.constant 0 : i32
    %c0_i32_1 = arith.constant 0 : i32
    return %c0_i32, %c0_i32_0 : i32, i32
  }
  func.func @transform_5(%arg0: i32) -> (i32, i32) {
    %c0_i32 = arith.constant 0 : i32
    %c0_i32_0 = arith.constant 0 : i32
    %c0_i32_1 = arith.constant 0 : i32
    return %c0_i32, %c0_i32_0 : i32, i32
  }
  func.func @transform_6(%arg0: i32) -> (i32, i32, i32, i32) {
    %c0_i32 = arith.constant 0 : i32
    %c0_i32_0 = arith.constant 0 : i32
    %c0_i32_1 = arith.constant 0 : i32
    %c0_i32_2 = arith.constant 0 : i32
    return %arg0, %c0_i32, %c0_i32_0, %c0_i32_1 : i32, i32, i32, i32
  }
}

module attributes {stable_mosaic.version = 11 : i64} {
  func.func @_conv3x3_kernel(%arg0: i32, %arg1: memref<1x102x128xbf16, #tpu.memory_space<vmem>>, %arg2: memref<1152x128xbf16, #tpu.memory_space<vmem>>, %arg3: memref<1x128xf32, #tpu.memory_space<vmem>>, %arg4: memref<1x80x128xbf16, #tpu.memory_space<vmem>>) attributes {dimension_semantics = [#tpu.dimension_semantics<parallel>], iteration_bounds = array<i64: 2>, scalar_prefetch = 0 : i64, scratch_operands = 0 : i64, tpu.core_type = #tpu.core_type<tc>, window_params = [{transform_indices = @transform_0, window_bounds = array<i64: 1, 102, 128>}, {pipeline_mode = #tpu.pipeline_mode<synchronous>, transform_indices = @transform_1, window_bounds = array<i64: 1152, 128>}, {pipeline_mode = #tpu.pipeline_mode<synchronous>, transform_indices = @transform_2, window_bounds = array<i64: 1, 128>}, {transform_indices = @transform_3, window_bounds = array<i64: 1, 80, 128>}]} {
    %c0 = arith.constant 0 : index
    %c0_0 = arith.constant 0 : index
    %c0_1 = arith.constant 0 : index
    %0 = vector.load %arg1[%c0, %c0_0, %c0_1] : memref<1x102x128xbf16, #tpu.memory_space<vmem>>, vector<1x102x128xbf16>
    %1 = vector.shape_cast %0 : vector<1x102x128xbf16> to vector<102x128xbf16>
    %2 = vector.extract_strided_slice %1 {offsets = [0, 0], sizes = [80, 128], strides = [1, 1]} : vector<102x128xbf16> to vector<80x128xbf16>
    %3 = vector.extract_strided_slice %1 {offsets = [1, 0], sizes = [80, 128], strides = [1, 1]} : vector<102x128xbf16> to vector<80x128xbf16>
    %4 = vector.extract_strided_slice %1 {offsets = [2, 0], sizes = [80, 128], strides = [1, 1]} : vector<102x128xbf16> to vector<80x128xbf16>
    %5 = vector.extract_strided_slice %1 {offsets = [10, 0], sizes = [80, 128], strides = [1, 1]} : vector<102x128xbf16> to vector<80x128xbf16>
    %6 = vector.extract_strided_slice %1 {offsets = [11, 0], sizes = [80, 128], strides = [1, 1]} : vector<102x128xbf16> to vector<80x128xbf16>
    %7 = vector.extract_strided_slice %1 {offsets = [12, 0], sizes = [80, 128], strides = [1, 1]} : vector<102x128xbf16> to vector<80x128xbf16>
    %8 = vector.extract_strided_slice %1 {offsets = [20, 0], sizes = [80, 128], strides = [1, 1]} : vector<102x128xbf16> to vector<80x128xbf16>
    %9 = vector.extract_strided_slice %1 {offsets = [21, 0], sizes = [80, 128], strides = [1, 1]} : vector<102x128xbf16> to vector<80x128xbf16>
    %10 = vector.extract_strided_slice %1 {offsets = [22, 0], sizes = [80, 128], strides = [1, 1]} : vector<102x128xbf16> to vector<80x128xbf16>
    %11 = tpu.concatenate %2, %3, %4, %5, %6, %7, %8, %9, %10 in 1 : vector<80x128xbf16>, vector<80x128xbf16>, vector<80x128xbf16>, vector<80x128xbf16>, vector<80x128xbf16>, vector<80x128xbf16>, vector<80x128xbf16>, vector<80x128xbf16>, vector<80x128xbf16> -> vector<80x1152xbf16>
    %c0_2 = arith.constant 0 : index
    %c0_3 = arith.constant 0 : index
    %12 = vector.load %arg2[%c0_2, %c0_3] : memref<1152x128xbf16, #tpu.memory_space<vmem>>, vector<1152x128xbf16>
    %cst = arith.constant dense<0.000000e+00> : vector<80x128xf32>
    %13 = tpu.matmul %11, %12, %cst {dimension_numbers = #tpu.dot_dimension_numbers<[1], [0], [0], [1], [0, 0, 1, 1], [], []>} : vector<80x1152xbf16>, vector<1152x128xbf16>, vector<80x128xf32> -> vector<80x128xf32>
    %c0_4 = arith.constant 0 : index
    %c0_5 = arith.constant 0 : index
    %14 = vector.load %arg3[%c0_4, %c0_5] : memref<1x128xf32, #tpu.memory_space<vmem>>, vector<1x128xf32>
    %15 = vector.broadcast %14 : vector<1x128xf32> to vector<80x128xf32>
    %16 = arith.addf %13, %15 : vector<80x128xf32>
    %cst_6 = arith.constant 0.000000e+00 : f32
    %17 = vector.broadcast %cst_6 : f32 to vector<80x128xf32>
    %18 = arith.maximumf %16, %17 : vector<80x128xf32>
    %19 = arith.truncf %18 : vector<80x128xf32> to vector<80x128xbf16>
    %c0_7 = arith.constant 0 : index
    %c0_8 = arith.constant 0 : index
    %c0_9 = arith.constant 0 : index
    %20 = vector.load %arg4[%c0_7, %c0_8, %c0_9] : memref<1x80x128xbf16, #tpu.memory_space<vmem>>, vector<1x80x128xbf16>
    %21 = vector.shape_cast %20 : vector<1x80x128xbf16> to vector<80x128xbf16>
    %22 = vector.shape_cast %19 : vector<80x128xbf16> to vector<1x80x128xbf16>
    tpu.vector_store %arg4[%c0_7, %c0_8, %c0_9], %22 {strides = array<i32>} : memref<1x80x128xbf16, #tpu.memory_space<vmem>>, vector<1x80x128xbf16>,
    return
  }
  func.func @transform_0(%arg0: i32) -> (i32, i32, i32) {
    %c0_i32 = arith.constant 0 : i32
    %c0_i32_0 = arith.constant 0 : i32
    %c0_i32_1 = arith.constant 0 : i32
    return %arg0, %c0_i32, %c0_i32_0 : i32, i32, i32
  }
  func.func @transform_1(%arg0: i32) -> (i32, i32) {
    %c0_i32 = arith.constant 0 : i32
    %c0_i32_0 = arith.constant 0 : i32
    %c0_i32_1 = arith.constant 0 : i32
    return %c0_i32, %c0_i32_0 : i32, i32
  }
  func.func @transform_2(%arg0: i32) -> (i32, i32) {
    %c0_i32 = arith.constant 0 : i32
    %c0_i32_0 = arith.constant 0 : i32
    %c0_i32_1 = arith.constant 0 : i32
    return %c0_i32, %c0_i32_0 : i32, i32
  }
  func.func @transform_3(%arg0: i32) -> (i32, i32, i32) {
    %c0_i32 = arith.constant 0 : i32
    %c0_i32_0 = arith.constant 0 : i32
    %c0_i32_1 = arith.constant 0 : i32
    return %arg0, %c0_i32, %c0_i32_0 : i32, i32, i32
  }
}

module attributes {stable_mosaic.version = 11 : i64} {
  func.func @_convt3x3_kernel(%arg0: i32, %arg1: memref<1x82x128xbf16, #tpu.memory_space<vmem>>, %arg2: memref<128x128xbf16, #tpu.memory_space<vmem>>, %arg3: memref<256x128xbf16, #tpu.memory_space<vmem>>, %arg4: memref<256x128xbf16, #tpu.memory_space<vmem>>, %arg5: memref<512x128xbf16, #tpu.memory_space<vmem>>, %arg6: memref<1x128xf32, #tpu.memory_space<vmem>>, %arg7: memref<1x4x72x128xbf16, #tpu.memory_space<vmem>>) attributes {dimension_semantics = [#tpu.dimension_semantics<parallel>], iteration_bounds = array<i64: 2>, scalar_prefetch = 0 : i64, scratch_operands = 0 : i64, tpu.core_type = #tpu.core_type<tc>, window_params = [{transform_indices = @transform_0, window_bounds = array<i64: 1, 82, 128>}, {pipeline_mode = #tpu.pipeline_mode<synchronous>, transform_indices = @transform_1, window_bounds = array<i64: 128, 128>}, {pipeline_mode = #tpu.pipeline_mode<synchronous>, transform_indices = @transform_2, window_bounds = array<i64: 256, 128>}, {pipeline_mode = #tpu.pipeline_mode<synchronous>, transform_indices = @transform_3, window_bounds = array<i64: 256, 128>}, {pipeline_mode = #tpu.pipeline_mode<synchronous>, transform_indices = @transform_4, window_bounds = array<i64: 512, 128>}, {pipeline_mode = #tpu.pipeline_mode<synchronous>, transform_indices = @transform_5, window_bounds = array<i64: 1, 128>}, {transform_indices = @transform_6, window_bounds = array<i64: 1, 4, 72, 128>}]} {
    %c0 = arith.constant 0 : index
    %c0_0 = arith.constant 0 : index
    %c0_1 = arith.constant 0 : index
    %0 = vector.load %arg1[%c0, %c0_0, %c0_1] : memref<1x82x128xbf16, #tpu.memory_space<vmem>>, vector<1x82x128xbf16>
    %1 = vector.shape_cast %0 : vector<1x82x128xbf16> to vector<82x128xbf16>
    %2 = vector.extract_strided_slice %1 {offsets = [0, 0], sizes = [72, 128], strides = [1, 1]} : vector<82x128xbf16> to vector<72x128xbf16>
    %3 = vector.extract_strided_slice %1 {offsets = [1, 0], sizes = [72, 128], strides = [1, 1]} : vector<82x128xbf16> to vector<72x128xbf16>
    %4 = vector.extract_strided_slice %1 {offsets = [9, 0], sizes = [72, 128], strides = [1, 1]} : vector<82x128xbf16> to vector<72x128xbf16>
    %5 = vector.extract_strided_slice %1 {offsets = [10, 0], sizes = [72, 128], strides = [1, 1]} : vector<82x128xbf16> to vector<72x128xbf16>
    %c0_2 = arith.constant 0 : index
    %c0_3 = arith.constant 0 : index
    %6 = vector.load %arg6[%c0_2, %c0_3] : memref<1x128xf32, #tpu.memory_space<vmem>>, vector<1x128xf32>
    %c0_4 = arith.constant 0 : index
    %c0_5 = arith.constant 0 : index
    %7 = vector.load %arg2[%c0_4, %c0_5] : memref<128x128xbf16, #tpu.memory_space<vmem>>, vector<128x128xbf16>
    %cst = arith.constant dense<0.000000e+00> : vector<72x128xf32>
    %8 = tpu.matmul %2, %7, %cst {dimension_numbers = #tpu.dot_dimension_numbers<[1], [0], [0], [1], [0, 0, 1, 1], [], []>} : vector<72x128xbf16>, vector<128x128xbf16>, vector<72x128xf32> -> vector<72x128xf32>
    %9 = vector.broadcast %6 : vector<1x128xf32> to vector<72x128xf32>
    %10 = arith.addf %8, %9 : vector<72x128xf32>
    %cst_6 = arith.constant 0.000000e+00 : f32
    %11 = vector.broadcast %cst_6 : f32 to vector<72x128xf32>
    %12 = arith.maximumf %10, %11 : vector<72x128xf32>
    %13 = tpu.concatenate %2, %3 in 1 : vector<72x128xbf16>, vector<72x128xbf16> -> vector<72x256xbf16>
    %c0_7 = arith.constant 0 : index
    %c0_8 = arith.constant 0 : index
    %14 = vector.load %arg3[%c0_7, %c0_8] : memref<256x128xbf16, #tpu.memory_space<vmem>>, vector<256x128xbf16>
    %cst_9 = arith.constant dense<0.000000e+00> : vector<72x128xf32>
    %15 = tpu.matmul %13, %14, %cst_9 {dimension_numbers = #tpu.dot_dimension_numbers<[1], [0], [0], [1], [0, 0, 1, 1], [], []>} : vector<72x256xbf16>, vector<256x128xbf16>, vector<72x128xf32> -> vector<72x128xf32>
    %16 = vector.broadcast %6 : vector<1x128xf32> to vector<72x128xf32>
    %17 = arith.addf %15, %16 : vector<72x128xf32>
    %cst_10 = arith.constant 0.000000e+00 : f32
    %18 = vector.broadcast %cst_10 : f32 to vector<72x128xf32>
    %19 = arith.maximumf %17, %18 : vector<72x128xf32>
    %20 = tpu.concatenate %2, %4 in 1 : vector<72x128xbf16>, vector<72x128xbf16> -> vector<72x256xbf16>
    %c0_11 = arith.constant 0 : index
    %c0_12 = arith.constant 0 : index
    %21 = vector.load %arg4[%c0_11, %c0_12] : memref<256x128xbf16, #tpu.memory_space<vmem>>, vector<256x128xbf16>
    %cst_13 = arith.constant dense<0.000000e+00> : vector<72x128xf32>
    %22 = tpu.matmul %20, %21, %cst_13 {dimension_numbers = #tpu.dot_dimension_numbers<[1], [0], [0], [1], [0, 0, 1, 1], [], []>} : vector<72x256xbf16>, vector<256x128xbf16>, vector<72x128xf32> -> vector<72x128xf32>
    %23 = vector.broadcast %6 : vector<1x128xf32> to vector<72x128xf32>
    %24 = arith.addf %22, %23 : vector<72x128xf32>
    %cst_14 = arith.constant 0.000000e+00 : f32
    %25 = vector.broadcast %cst_14 : f32 to vector<72x128xf32>
    %26 = arith.maximumf %24, %25 : vector<72x128xf32>
    %27 = tpu.concatenate %2, %3, %4, %5 in 1 : vector<72x128xbf16>, vector<72x128xbf16>, vector<72x128xbf16>, vector<72x128xbf16> -> vector<72x512xbf16>
    %c0_15 = arith.constant 0 : index
    %c0_16 = arith.constant 0 : index
    %28 = vector.load %arg5[%c0_15, %c0_16] : memref<512x128xbf16, #tpu.memory_space<vmem>>, vector<512x128xbf16>
    %cst_17 = arith.constant dense<0.000000e+00> : vector<72x128xf32>
    %29 = tpu.matmul %27, %28, %cst_17 {dimension_numbers = #tpu.dot_dimension_numbers<[1], [0], [0], [1], [0, 0, 1, 1], [], []>} : vector<72x512xbf16>, vector<512x128xbf16>, vector<72x128xf32> -> vector<72x128xf32>
    %30 = vector.broadcast %6 : vector<1x128xf32> to vector<72x128xf32>
    %31 = arith.addf %29, %30 : vector<72x128xf32>
    %cst_18 = arith.constant 0.000000e+00 : f32
    %32 = vector.broadcast %cst_18 : f32 to vector<72x128xf32>
    %33 = arith.maximumf %31, %32 : vector<72x128xf32>
    %34 = arith.truncf %12 : vector<72x128xf32> to vector<72x128xbf16>
    %c0_19 = arith.constant 0 : index
    %c0_20 = arith.constant 0 : index
    %c0_21 = arith.constant 0 : index
    %c0_22 = arith.constant 0 : index
    %35 = vector.load %arg7[%c0_19, %c0_20, %c0_21, %c0_22] : memref<1x4x72x128xbf16, #tpu.memory_space<vmem>>, vector<1x1x72x128xbf16>
    %36 = vector.shape_cast %35 : vector<1x1x72x128xbf16> to vector<72x128xbf16>
    %37 = vector.shape_cast %34 : vector<72x128xbf16> to vector<1x1x72x128xbf16>
    tpu.vector_store %arg7[%c0_19, %c0_20, %c0_21, %c0_22], %37 {strides = array<i32>} : memref<1x4x72x128xbf16, #tpu.memory_space<vmem>>, vector<1x1x72x128xbf16>,
    %38 = arith.truncf %19 : vector<72x128xf32> to vector<72x128xbf16>
    %c0_23 = arith.constant 0 : index
    %c1 = arith.constant 1 : index
    %c0_24 = arith.constant 0 : index
    %c0_25 = arith.constant 0 : index
    %39 = vector.load %arg7[%c0_23, %c1, %c0_24, %c0_25] : memref<1x4x72x128xbf16, #tpu.memory_space<vmem>>, vector<1x1x72x128xbf16>
    %40 = vector.shape_cast %39 : vector<1x1x72x128xbf16> to vector<72x128xbf16>
    %41 = vector.shape_cast %38 : vector<72x128xbf16> to vector<1x1x72x128xbf16>
    tpu.vector_store %arg7[%c0_23, %c1, %c0_24, %c0_25], %41 {strides = array<i32>} : memref<1x4x72x128xbf16, #tpu.memory_space<vmem>>, vector<1x1x72x128xbf16>,
    %42 = arith.truncf %26 : vector<72x128xf32> to vector<72x128xbf16>
    %c0_26 = arith.constant 0 : index
    %c2 = arith.constant 2 : index
    %c0_27 = arith.constant 0 : index
    %c0_28 = arith.constant 0 : index
    %43 = vector.load %arg7[%c0_26, %c2, %c0_27, %c0_28] : memref<1x4x72x128xbf16, #tpu.memory_space<vmem>>, vector<1x1x72x128xbf16>
    %44 = vector.shape_cast %43 : vector<1x1x72x128xbf16> to vector<72x128xbf16>
    %45 = vector.shape_cast %42 : vector<72x128xbf16> to vector<1x1x72x128xbf16>
    tpu.vector_store %arg7[%c0_26, %c2, %c0_27, %c0_28], %45 {strides = array<i32>} : memref<1x4x72x128xbf16, #tpu.memory_space<vmem>>, vector<1x1x72x128xbf16>,
    %46 = arith.truncf %33 : vector<72x128xf32> to vector<72x128xbf16>
    %c0_29 = arith.constant 0 : index
    %c3 = arith.constant 3 : index
    %c0_30 = arith.constant 0 : index
    %c0_31 = arith.constant 0 : index
    %47 = vector.load %arg7[%c0_29, %c3, %c0_30, %c0_31] : memref<1x4x72x128xbf16, #tpu.memory_space<vmem>>, vector<1x1x72x128xbf16>
    %48 = vector.shape_cast %47 : vector<1x1x72x128xbf16> to vector<72x128xbf16>
    %49 = vector.shape_cast %46 : vector<72x128xbf16> to vector<1x1x72x128xbf16>
    tpu.vector_store %arg7[%c0_29, %c3, %c0_30, %c0_31], %49 {strides = array<i32>} : memref<1x4x72x128xbf16, #tpu.memory_space<vmem>>, vector<1x1x72x128xbf16>,
    return
  }
  func.func @transform_0(%arg0: i32) -> (i32, i32, i32) {
    %c0_i32 = arith.constant 0 : i32
    %c0_i32_0 = arith.constant 0 : i32
    %c0_i32_1 = arith.constant 0 : i32
    return %arg0, %c0_i32, %c0_i32_0 : i32, i32, i32
  }
  func.func @transform_1(%arg0: i32) -> (i32, i32) {
    %c0_i32 = arith.constant 0 : i32
    %c0_i32_0 = arith.constant 0 : i32
    %c0_i32_1 = arith.constant 0 : i32
    return %c0_i32, %c0_i32_0 : i32, i32
  }
  func.func @transform_2(%arg0: i32) -> (i32, i32) {
    %c0_i32 = arith.constant 0 : i32
    %c0_i32_0 = arith.constant 0 : i32
    %c0_i32_1 = arith.constant 0 : i32
    return %c0_i32, %c0_i32_0 : i32, i32
  }
  func.func @transform_3(%arg0: i32) -> (i32, i32) {
    %c0_i32 = arith.constant 0 : i32
    %c0_i32_0 = arith.constant 0 : i32
    %c0_i32_1 = arith.constant 0 : i32
    return %c0_i32, %c0_i32_0 : i32, i32
  }
  func.func @transform_4(%arg0: i32) -> (i32, i32) {
    %c0_i32 = arith.constant 0 : i32
    %c0_i32_0 = arith.constant 0 : i32
    %c0_i32_1 = arith.constant 0 : i32
    return %c0_i32, %c0_i32_0 : i32, i32
  }
  func.func @transform_5(%arg0: i32) -> (i32, i32) {
    %c0_i32 = arith.constant 0 : i32
    %c0_i32_0 = arith.constant 0 : i32
    %c0_i32_1 = arith.constant 0 : i32
    return %c0_i32, %c0_i32_0 : i32, i32
  }
  func.func @transform_6(%arg0: i32) -> (i32, i32, i32, i32) {
    %c0_i32 = arith.constant 0 : i32
    %c0_i32_0 = arith.constant 0 : i32
    %c0_i32_1 = arith.constant 0 : i32
    %c0_i32_2 = arith.constant 0 : i32
    return %arg0, %c0_i32, %c0_i32_0, %c0_i32_1 : i32, i32, i32, i32
  }
}

module attributes {stable_mosaic.version = 11 : i64} {
  func.func @_conv3x3_kernel(%arg0: i32, %arg1: memref<1x326x128xbf16, #tpu.memory_space<vmem>>, %arg2: memref<1152x128xbf16, #tpu.memory_space<vmem>>, %arg3: memref<1x128xf32, #tpu.memory_space<vmem>>, %arg4: memref<1x288x128xbf16, #tpu.memory_space<vmem>>) attributes {dimension_semantics = [#tpu.dimension_semantics<parallel>], iteration_bounds = array<i64: 2>, scalar_prefetch = 0 : i64, scratch_operands = 0 : i64, tpu.core_type = #tpu.core_type<tc>, window_params = [{transform_indices = @transform_0, window_bounds = array<i64: 1, 326, 128>}, {pipeline_mode = #tpu.pipeline_mode<synchronous>, transform_indices = @transform_1, window_bounds = array<i64: 1152, 128>}, {pipeline_mode = #tpu.pipeline_mode<synchronous>, transform_indices = @transform_2, window_bounds = array<i64: 1, 128>}, {transform_indices = @transform_3, window_bounds = array<i64: 1, 288, 128>}]} {
    %c0 = arith.constant 0 : index
    %c0_0 = arith.constant 0 : index
    %c0_1 = arith.constant 0 : index
    %0 = vector.load %arg1[%c0, %c0_0, %c0_1] : memref<1x326x128xbf16, #tpu.memory_space<vmem>>, vector<1x326x128xbf16>
    %1 = vector.shape_cast %0 : vector<1x326x128xbf16> to vector<326x128xbf16>
    %2 = vector.extract_strided_slice %1 {offsets = [0, 0], sizes = [288, 128], strides = [1, 1]} : vector<326x128xbf16> to vector<288x128xbf16>
    %3 = vector.extract_strided_slice %1 {offsets = [1, 0], sizes = [288, 128], strides = [1, 1]} : vector<326x128xbf16> to vector<288x128xbf16>
    %4 = vector.extract_strided_slice %1 {offsets = [2, 0], sizes = [288, 128], strides = [1, 1]} : vector<326x128xbf16> to vector<288x128xbf16>
    %5 = vector.extract_strided_slice %1 {offsets = [18, 0], sizes = [288, 128], strides = [1, 1]} : vector<326x128xbf16> to vector<288x128xbf16>
    %6 = vector.extract_strided_slice %1 {offsets = [19, 0], sizes = [288, 128], strides = [1, 1]} : vector<326x128xbf16> to vector<288x128xbf16>
    %7 = vector.extract_strided_slice %1 {offsets = [20, 0], sizes = [288, 128], strides = [1, 1]} : vector<326x128xbf16> to vector<288x128xbf16>
    %8 = vector.extract_strided_slice %1 {offsets = [36, 0], sizes = [288, 128], strides = [1, 1]} : vector<326x128xbf16> to vector<288x128xbf16>
    %9 = vector.extract_strided_slice %1 {offsets = [37, 0], sizes = [288, 128], strides = [1, 1]} : vector<326x128xbf16> to vector<288x128xbf16>
    %10 = vector.extract_strided_slice %1 {offsets = [38, 0], sizes = [288, 128], strides = [1, 1]} : vector<326x128xbf16> to vector<288x128xbf16>
    %11 = tpu.concatenate %2, %3, %4, %5, %6, %7, %8, %9, %10 in 1 : vector<288x128xbf16>, vector<288x128xbf16>, vector<288x128xbf16>, vector<288x128xbf16>, vector<288x128xbf16>, vector<288x128xbf16>, vector<288x128xbf16>, vector<288x128xbf16>, vector<288x128xbf16> -> vector<288x1152xbf16>
    %c0_2 = arith.constant 0 : index
    %c0_3 = arith.constant 0 : index
    %12 = vector.load %arg2[%c0_2, %c0_3] : memref<1152x128xbf16, #tpu.memory_space<vmem>>, vector<1152x128xbf16>
    %cst = arith.constant dense<0.000000e+00> : vector<288x128xf32>
    %13 = tpu.matmul %11, %12, %cst {dimension_numbers = #tpu.dot_dimension_numbers<[1], [0], [0], [1], [0, 0, 1, 1], [], []>} : vector<288x1152xbf16>, vector<1152x128xbf16>, vector<288x128xf32> -> vector<288x128xf32>
    %c0_4 = arith.constant 0 : index
    %c0_5 = arith.constant 0 : index
    %14 = vector.load %arg3[%c0_4, %c0_5] : memref<1x128xf32, #tpu.memory_space<vmem>>, vector<1x128xf32>
    %15 = vector.broadcast %14 : vector<1x128xf32> to vector<288x128xf32>
    %16 = arith.addf %13, %15 : vector<288x128xf32>
    %cst_6 = arith.constant 0.000000e+00 : f32
    %17 = vector.broadcast %cst_6 : f32 to vector<288x128xf32>
    %18 = arith.maximumf %16, %17 : vector<288x128xf32>
    %19 = arith.truncf %18 : vector<288x128xf32> to vector<288x128xbf16>
    %c0_7 = arith.constant 0 : index
    %c0_8 = arith.constant 0 : index
    %c0_9 = arith.constant 0 : index
    %20 = vector.load %arg4[%c0_7, %c0_8, %c0_9] : memref<1x288x128xbf16, #tpu.memory_space<vmem>>, vector<1x288x128xbf16>
    %21 = vector.shape_cast %20 : vector<1x288x128xbf16> to vector<288x128xbf16>
    %22 = vector.shape_cast %19 : vector<288x128xbf16> to vector<1x288x128xbf16>
    tpu.vector_store %arg4[%c0_7, %c0_8, %c0_9], %22 {strides = array<i32>} : memref<1x288x128xbf16, #tpu.memory_space<vmem>>, vector<1x288x128xbf16>,
    return
  }
  func.func @transform_0(%arg0: i32) -> (i32, i32, i32) {
    %c0_i32 = arith.constant 0 : i32
    %c0_i32_0 = arith.constant 0 : i32
    %c0_i32_1 = arith.constant 0 : i32
    return %arg0, %c0_i32, %c0_i32_0 : i32, i32, i32
  }
  func.func @transform_1(%arg0: i32) -> (i32, i32) {
    %c0_i32 = arith.constant 0 : i32
    %c0_i32_0 = arith.constant 0 : i32
    %c0_i32_1 = arith.constant 0 : i32
    return %c0_i32, %c0_i32_0 : i32, i32
  }
  func.func @transform_2(%arg0: i32) -> (i32, i32) {
    %c0_i32 = arith.constant 0 : i32
    %c0_i32_0 = arith.constant 0 : i32
    %c0_i32_1 = arith.constant 0 : i32
    return %c0_i32, %c0_i32_0 : i32, i32
  }
  func.func @transform_3(%arg0: i32) -> (i32, i32, i32) {
    %c0_i32 = arith.constant 0 : i32
    %c0_i32_0 = arith.constant 0 : i32
    %c0_i32_1 = arith.constant 0 : i32
    return %arg0, %c0_i32, %c0_i32_0 : i32, i32, i32
  }
}

module attributes {stable_mosaic.version = 11 : i64} {
  func.func @_convt3x3_kernel(%arg0: i32, %arg1: memref<1x290x128xbf16, #tpu.memory_space<vmem>>, %arg2: memref<128x128xbf16, #tpu.memory_space<vmem>>, %arg3: memref<256x128xbf16, #tpu.memory_space<vmem>>, %arg4: memref<256x128xbf16, #tpu.memory_space<vmem>>, %arg5: memref<512x128xbf16, #tpu.memory_space<vmem>>, %arg6: memref<1x128xf32, #tpu.memory_space<vmem>>, %arg7: memref<1x4x272x128xf32, #tpu.memory_space<vmem>>) attributes {dimension_semantics = [#tpu.dimension_semantics<parallel>], iteration_bounds = array<i64: 2>, scalar_prefetch = 0 : i64, scratch_operands = 0 : i64, tpu.core_type = #tpu.core_type<tc>, window_params = [{transform_indices = @transform_0, window_bounds = array<i64: 1, 290, 128>}, {pipeline_mode = #tpu.pipeline_mode<synchronous>, transform_indices = @transform_1, window_bounds = array<i64: 128, 128>}, {pipeline_mode = #tpu.pipeline_mode<synchronous>, transform_indices = @transform_2, window_bounds = array<i64: 256, 128>}, {pipeline_mode = #tpu.pipeline_mode<synchronous>, transform_indices = @transform_3, window_bounds = array<i64: 256, 128>}, {pipeline_mode = #tpu.pipeline_mode<synchronous>, transform_indices = @transform_4, window_bounds = array<i64: 512, 128>}, {pipeline_mode = #tpu.pipeline_mode<synchronous>, transform_indices = @transform_5, window_bounds = array<i64: 1, 128>}, {transform_indices = @transform_6, window_bounds = array<i64: 1, 4, 272, 128>}]} {
    %c0 = arith.constant 0 : index
    %c0_0 = arith.constant 0 : index
    %c0_1 = arith.constant 0 : index
    %0 = vector.load %arg1[%c0, %c0_0, %c0_1] : memref<1x290x128xbf16, #tpu.memory_space<vmem>>, vector<1x290x128xbf16>
    %1 = vector.shape_cast %0 : vector<1x290x128xbf16> to vector<290x128xbf16>
    %2 = vector.extract_strided_slice %1 {offsets = [0, 0], sizes = [272, 128], strides = [1, 1]} : vector<290x128xbf16> to vector<272x128xbf16>
    %3 = vector.extract_strided_slice %1 {offsets = [1, 0], sizes = [272, 128], strides = [1, 1]} : vector<290x128xbf16> to vector<272x128xbf16>
    %4 = vector.extract_strided_slice %1 {offsets = [17, 0], sizes = [272, 128], strides = [1, 1]} : vector<290x128xbf16> to vector<272x128xbf16>
    %5 = vector.extract_strided_slice %1 {offsets = [18, 0], sizes = [272, 128], strides = [1, 1]} : vector<290x128xbf16> to vector<272x128xbf16>
    %c0_2 = arith.constant 0 : index
    %c0_3 = arith.constant 0 : index
    %6 = vector.load %arg6[%c0_2, %c0_3] : memref<1x128xf32, #tpu.memory_space<vmem>>, vector<1x128xf32>
    %c0_4 = arith.constant 0 : index
    %c0_5 = arith.constant 0 : index
    %7 = vector.load %arg2[%c0_4, %c0_5] : memref<128x128xbf16, #tpu.memory_space<vmem>>, vector<128x128xbf16>
    %cst = arith.constant dense<0.000000e+00> : vector<272x128xf32>
    %8 = tpu.matmul %2, %7, %cst {dimension_numbers = #tpu.dot_dimension_numbers<[1], [0], [0], [1], [0, 0, 1, 1], [], []>} : vector<272x128xbf16>, vector<128x128xbf16>, vector<272x128xf32> -> vector<272x128xf32>
    %9 = vector.broadcast %6 : vector<1x128xf32> to vector<272x128xf32>
    %10 = arith.addf %8, %9 : vector<272x128xf32>
    %11 = arith.negf %10 : vector<272x128xf32>
    %12 = math.exp %11 : vector<272x128xf32>
    %cst_6 = arith.constant 1.000000e+00 : f32
    %13 = vector.broadcast %cst_6 : f32 to vector<272x128xf32>
    %14 = arith.addf %13, %12 : vector<272x128xf32>
    %15 = arith.divf %13, %14 : vector<272x128xf32>
    %16 = tpu.concatenate %2, %3 in 1 : vector<272x128xbf16>, vector<272x128xbf16> -> vector<272x256xbf16>
    %c0_7 = arith.constant 0 : index
    %c0_8 = arith.constant 0 : index
    %17 = vector.load %arg3[%c0_7, %c0_8] : memref<256x128xbf16, #tpu.memory_space<vmem>>, vector<256x128xbf16>
    %cst_9 = arith.constant dense<0.000000e+00> : vector<272x128xf32>
    %18 = tpu.matmul %16, %17, %cst_9 {dimension_numbers = #tpu.dot_dimension_numbers<[1], [0], [0], [1], [0, 0, 1, 1], [], []>} : vector<272x256xbf16>, vector<256x128xbf16>, vector<272x128xf32> -> vector<272x128xf32>
    %19 = vector.broadcast %6 : vector<1x128xf32> to vector<272x128xf32>
    %20 = arith.addf %18, %19 : vector<272x128xf32>
    %21 = arith.negf %20 : vector<272x128xf32>
    %22 = math.exp %21 : vector<272x128xf32>
    %cst_10 = arith.constant 1.000000e+00 : f32
    %23 = vector.broadcast %cst_10 : f32 to vector<272x128xf32>
    %24 = arith.addf %23, %22 : vector<272x128xf32>
    %25 = arith.divf %23, %24 : vector<272x128xf32>
    %26 = tpu.concatenate %2, %4 in 1 : vector<272x128xbf16>, vector<272x128xbf16> -> vector<272x256xbf16>
    %c0_11 = arith.constant 0 : index
    %c0_12 = arith.constant 0 : index
    %27 = vector.load %arg4[%c0_11, %c0_12] : memref<256x128xbf16, #tpu.memory_space<vmem>>, vector<256x128xbf16>
    %cst_13 = arith.constant dense<0.000000e+00> : vector<272x128xf32>
    %28 = tpu.matmul %26, %27, %cst_13 {dimension_numbers = #tpu.dot_dimension_numbers<[1], [0], [0], [1], [0, 0, 1, 1], [], []>} : vector<272x256xbf16>, vector<256x128xbf16>, vector<272x128xf32> -> vector<272x128xf32>
    %29 = vector.broadcast %6 : vector<1x128xf32> to vector<272x128xf32>
    %30 = arith.addf %28, %29 : vector<272x128xf32>
    %31 = arith.negf %30 : vector<272x128xf32>
    %32 = math.exp %31 : vector<272x128xf32>
    %cst_14 = arith.constant 1.000000e+00 : f32
    %33 = vector.broadcast %cst_14 : f32 to vector<272x128xf32>
    %34 = arith.addf %33, %32 : vector<272x128xf32>
    %35 = arith.divf %33, %34 : vector<272x128xf32>
    %36 = tpu.concatenate %2, %3, %4, %5 in 1 : vector<272x128xbf16>, vector<272x128xbf16>, vector<272x128xbf16>, vector<272x128xbf16> -> vector<272x512xbf16>
    %c0_15 = arith.constant 0 : index
    %c0_16 = arith.constant 0 : index
    %37 = vector.load %arg5[%c0_15, %c0_16] : memref<512x128xbf16, #tpu.memory_space<vmem>>, vector<512x128xbf16>
    %cst_17 = arith.constant dense<0.000000e+00> : vector<272x128xf32>
    %38 = tpu.matmul %36, %37, %cst_17 {dimension_numbers = #tpu.dot_dimension_numbers<[1], [0], [0], [1], [0, 0, 1, 1], [], []>} : vector<272x512xbf16>, vector<512x128xbf16>, vector<272x128xf32> -> vector<272x128xf32>
    %39 = vector.broadcast %6 : vector<1x128xf32> to vector<272x128xf32>
    %40 = arith.addf %38, %39 : vector<272x128xf32>
    %41 = arith.negf %40 : vector<272x128xf32>
    %42 = math.exp %41 : vector<272x128xf32>
    %cst_18 = arith.constant 1.000000e+00 : f32
    %43 = vector.broadcast %cst_18 : f32 to vector<272x128xf32>
    %44 = arith.addf %43, %42 : vector<272x128xf32>
    %45 = arith.divf %43, %44 : vector<272x128xf32>
    %c0_19 = arith.constant 0 : index
    %c0_20 = arith.constant 0 : index
    %c0_21 = arith.constant 0 : index
    %c0_22 = arith.constant 0 : index
    %46 = vector.load %arg7[%c0_19, %c0_20, %c0_21, %c0_22] : memref<1x4x272x128xf32, #tpu.memory_space<vmem>>, vector<1x1x272x128xf32>
    %47 = vector.shape_cast %46 : vector<1x1x272x128xf32> to vector<272x128xf32>
    %48 = vector.shape_cast %15 : vector<272x128xf32> to vector<1x1x272x128xf32>
    tpu.vector_store %arg7[%c0_19, %c0_20, %c0_21, %c0_22], %48 {strides = array<i32>} : memref<1x4x272x128xf32, #tpu.memory_space<vmem>>, vector<1x1x272x128xf32>,
    %c0_23 = arith.constant 0 : index
    %c1 = arith.constant 1 : index
    %c0_24 = arith.constant 0 : index
    %c0_25 = arith.constant 0 : index
    %49 = vector.load %arg7[%c0_23, %c1, %c0_24, %c0_25] : memref<1x4x272x128xf32, #tpu.memory_space<vmem>>, vector<1x1x272x128xf32>
    %50 = vector.shape_cast %49 : vector<1x1x272x128xf32> to vector<272x128xf32>
    %51 = vector.shape_cast %25 : vector<272x128xf32> to vector<1x1x272x128xf32>
    tpu.vector_store %arg7[%c0_23, %c1, %c0_24, %c0_25], %51 {strides = array<i32>} : memref<1x4x272x128xf32, #tpu.memory_space<vmem>>, vector<1x1x272x128xf32>,
    %c0_26 = arith.constant 0 : index
    %c2 = arith.constant 2 : index
    %c0_27 = arith.constant 0 : index
    %c0_28 = arith.constant 0 : index
    %52 = vector.load %arg7[%c0_26, %c2, %c0_27, %c0_28] : memref<1x4x272x128xf32, #tpu.memory_space<vmem>>, vector<1x1x272x128xf32>
    %53 = vector.shape_cast %52 : vector<1x1x272x128xf32> to vector<272x128xf32>
    %54 = vector.shape_cast %35 : vector<272x128xf32> to vector<1x1x272x128xf32>
    tpu.vector_store %arg7[%c0_26, %c2, %c0_27, %c0_28], %54 {strides = array<i32>} : memref<1x4x272x128xf32, #tpu.memory_space<vmem>>, vector<1x1x272x128xf32>,
    %c0_29 = arith.constant 0 : index
    %c3 = arith.constant 3 : index
    %c0_30 = arith.constant 0 : index
    %c0_31 = arith.constant 0 : index
    %55 = vector.load %arg7[%c0_29, %c3, %c0_30, %c0_31] : memref<1x4x272x128xf32, #tpu.memory_space<vmem>>, vector<1x1x272x128xf32>
    %56 = vector.shape_cast %55 : vector<1x1x272x128xf32> to vector<272x128xf32>
    %57 = vector.shape_cast %45 : vector<272x128xf32> to vector<1x1x272x128xf32>
    tpu.vector_store %arg7[%c0_29, %c3, %c0_30, %c0_31], %57 {strides = array<i32>} : memref<1x4x272x128xf32, #tpu.memory_space<vmem>>, vector<1x1x272x128xf32>,
    return
  }
  func.func @transform_0(%arg0: i32) -> (i32, i32, i32) {
    %c0_i32 = arith.constant 0 : i32
    %c0_i32_0 = arith.constant 0 : i32
    %c0_i32_1 = arith.constant 0 : i32
    return %arg0, %c0_i32, %c0_i32_0 : i32, i32, i32
  }
  func.func @transform_1(%arg0: i32) -> (i32, i32) {
    %c0_i32 = arith.constant 0 : i32
    %c0_i32_0 = arith.constant 0 : i32
    %c0_i32_1 = arith.constant 0 : i32
    return %c0_i32, %c0_i32_0 : i32, i32
  }
  func.func @transform_2(%arg0: i32) -> (i32, i32) {
    %c0_i32 = arith.constant 0 : i32
    %c0_i32_0 = arith.constant 0 : i32
    %c0_i32_1 = arith.constant 0 : i32
    return %c0_i32, %c0_i32_0 : i32, i32
  }
  func.func @transform_3(%arg0: i32) -> (i32, i32) {
    %c0_i32 = arith.constant 0 : i32
    %c0_i32_0 = arith.constant 0 : i32
    %c0_i32_1 = arith.constant 0 : i32
    return %c0_i32, %c0_i32_0 : i32, i32
  }
  func.func @transform_4(%arg0: i32) -> (i32, i32) {
    %c0_i32 = arith.constant 0 : i32
    %c0_i32_0 = arith.constant 0 : i32
    %c0_i32_1 = arith.constant 0 : i32
    return %c0_i32, %c0_i32_0 : i32, i32
  }
  func.func @transform_5(%arg0: i32) -> (i32, i32) {
    %c0_i32 = arith.constant 0 : i32
    %c0_i32_0 = arith.constant 0 : i32
    %c0_i32_1 = arith.constant 0 : i32
    return %c0_i32, %c0_i32_0 : i32, i32
  }
  func.func @transform_6(%arg0: i32) -> (i32, i32, i32, i32) {
    %c0_i32 = arith.constant 0 : i32
    %c0_i32_0 = arith.constant 0 : i32
    %c0_i32_1 = arith.constant 0 : i32
    %c0_i32_2 = arith.constant 0 : i32
    return %arg0, %c0_i32, %c0_i32_0, %c0_i32_1 : i32, i32, i32, i32
  }
}

</mosaic_0001>

<llo_original>
// kernel: decoder_forward.7
$region0: #{decoder_forward.7}
  #allocation0 [shape = 'u32[]', space=smem, size = 0x4, offset = 0x4, fixed_abs, tag = 'smem constant byte address 0x4 - core index']
  #allocation1 [shape = 'u32[144,128]{1,0:T(1,128)}', space=vmem, size = 0x12000, scoped, tag = 'internal scratch']
  %s0 = inlined_call_operand.vmem [shape: bf16[2,26,128], index: 0, kind: input, shape index: {}]
  %s1 = inlined_call_operand.vmem [shape: bf16[128,128], index: 1, kind: input, shape index: {}]
  %s2 = inlined_call_operand.vmem [shape: bf16[256,128], index: 2, kind: input, shape index: {}]
  %s3 = inlined_call_operand.vmem [shape: bf16[256,128], index: 3, kind: input, shape index: {}]
  %s4 = inlined_call_operand.vmem [shape: bf16[512,128], index: 4, kind: input, shape index: {}]
  %s5 = inlined_call_operand.vmem [shape: f32[1,128], index: 5, kind: input, shape index: {}]
  %s6 = inlined_call_operand.vmem [shape: bf16[2,4,20,128], index: 6, kind: output, shape index: {}]
  %s7 = sld [smem:[#allocation0]]
  $region57: #{decoder_forward.7} parent=0
    _
  %s9 = ssub.s32 1, %s7
  %s10 = scalar_select 0, %s9, %s7
  loop: start=0, step=1, limit=4
  $region2: #{decoder_forward.7} parent=0 // loop_pre_header
    _
  $region3: #{decoder_forward.7} parent=0 // loop_header
    %s12 = sphi 0, %s16
    %p13 = scmp.ge.s32.totalorder %s12, 4
    %s22 = sphi 0, %s24
    %s25 = sphi 0, %s22
    %s26 = sphi 0, %s25
    %s42 = sphi 0, %s26
    %s46 = sphi 0, %s46
    %s48 = sphi 0, %s46
    %s49 = sphi 0, %s48
    %s63 = sphi 0, %s49
    %s67 = sphi 0, %s67
    %s69 = sphi 0, %s67
    %s70 = sphi 0, %s69
    %s84 = sphi 0, %s70
    %s88 = sphi 0, %s88
    %s90 = sphi 0, %s88
    %s91 = sphi 0, %s90
    %s105 = sphi 0, %s91
    %s109 = sphi 0, %s109
    %s111 = sphi 0, %s109
    %s112 = sphi 0, %s111
    %s126 = sphi 0, %s112
    %s130 = sphi 0, %s130
    %s132 = sphi 0, %s130
    %s133 = sphi 0, %s132
    %s147 = sphi 0, %s133
    %s153 = sphi 0, %s155
    %s156 = sphi 0, %s153
    %s157 = sphi 0, %s156
    %s173 = sphi 0, %s157
  $region4: #{decoder_forward.7} parent=0 // loop_header_branch
    %15 = sbr.rel (%p13) target = $region8
  $region5: #{decoder_forward.7} parent=0 // loop_body
    %s17 = ssub.s32 %s12, 1
    %s18 = ssub.s32 %s12, 2
    %s19 = sadd.s32 %s12, 1
    %s20 = ssub.s32 %s12, %s19
    %p21 = scmp.eq.s32.totalorder %s20, 0
    %s23 = sadd.s32 %s22, 1
    %s24 = scalar_select %p21, %s22, %s23
    %p27 = pneg %p21
    %p28 = scmp.eq.s32.totalorder %s12, 1
    %p29 = por %p27, %p28
    %p30 = scmp.ne.s32.totalorder %s22, %s25
    %p31 = scmp.eq.s32.totalorder %s12, 0
    %p32 = por %p30, %p31
    %p33 = scmp.ne.s32.totalorder %s22, %s25
    %p34 = scmp.eq.s32.totalorder %s17, 1
    %p35 = por %p33, %p34
    %p36 = scmp.ne.s32.totalorder %s25, %s26
    %p37 = scmp.eq.s32.totalorder %s17, 0
    %p38 = por %p36, %p37
    %p39 = scmp.ne.s32.totalorder %s25, %s26
    %p40 = scmp.eq.s32.totalorder %s18, 1
    %p41 = por %p39, %p40
    %p43 = scmp.ne.s32.totalorder %s26, %s42
    %p44 = scmp.eq.s32.totalorder %s18, 0
    %p45 = por %p43, %p44
    %s47 = sadd.s32 %s46, 1
    %p50 = scmp.eq.s32.totalorder %s12, 1
    %p51 = scmp.ne.s32.totalorder %s46, %s48
    %p52 = scmp.eq.s32.totalorder %s12, 0
    %p53 = por %p51, %p52
    %p54 = scmp.ne.s32.totalorder %s46, %s48
    %p55 = scmp.eq.s32.totalorder %s17, 1
    %p56 = por %p54, %p55
    %p57 = scmp.ne.s32.totalorder %s48, %s49
    %p58 = scmp.eq.s32.totalorder %s17, 0
    %p59 = por %p57, %p58
    %p60 = scmp.ne.s32.totalorder %s48, %s49
    %p61 = scmp.eq.s32.totalorder %s18, 1
    %p62 = por %p60, %p61
    %p64 = scmp.ne.s32.totalorder %s49, %s63
    %p65 = scmp.eq.s32.totalorder %s18, 0
    %p66 = por %p64, %p65
    %s68 = sadd.s32 %s67, 1
    %p71 = scmp.eq.s32.totalorder %s12, 1
    %p72 = scmp.ne.s32.totalorder %s67, %s69
    %p73 = scmp.eq.s32.totalorder %s12, 0
    %p74 = por %p72, %p73
    %p75 = scmp.ne.s32.totalorder %s67, %s69
    %p76 = scmp.eq.s32.totalorder %s17, 1
    %p77 = por %p75, %p76
    %p78 = scmp.ne.s32.totalorder %s69, %s70
    %p79 = scmp.eq.s32.totalorder %s17, 0
    %p80 = por %p78, %p79
    %p81 = scmp.ne.s32.totalorder %s69, %s70
    %p82 = scmp.eq.s32.totalorder %s18, 1
    %p83 = por %p81, %p82
    %p85 = scmp.ne.s32.totalorder %s70, %s84
    %p86 = scmp.eq.s32.totalorder %s18, 0
    %p87 = por %p85, %p86
    %s89 = sadd.s32 %s88, 1
    %p92 = scmp.eq.s32.totalorder %s12, 1
    %p93 = scmp.ne.s32.totalorder %s88, %s90
    %p94 = scmp.eq.s32.totalorder %s12, 0
    %p95 = por %p93, %p94
    %p96 = scmp.ne.s32.totalorder %s88, %s90
    %p97 = scmp.eq.s32.totalorder %s17, 1
    %p98 = por %p96, %p97
    %p99 = scmp.ne.s32.totalorder %s90, %s91
    %p100 = scmp.eq.s32.totalorder %s17, 0
    %p101 = por %p99, %p100
    %p102 = scmp.ne.s32.totalorder %s90, %s91
    %p103 = scmp.eq.s32.totalorder %s18, 1
    %p104 = por %p102, %p103
    %p106 = scmp.ne.s32.totalorder %s91, %s105
    %p107 = scmp.eq.s32.totalorder %s18, 0
    %p108 = por %p106, %p107
    %s110 = sadd.s32 %s109, 1
    %p113 = scmp.eq.s32.totalorder %s12, 1
    %p114 = scmp.ne.s32.totalorder %s109, %s111
    %p115 = scmp.eq.s32.totalorder %s12, 0
    %p116 = por %p114, %p115
    %p117 = scmp.ne.s32.totalorder %s109, %s111
    %p118 = scmp.eq.s32.totalorder %s17, 1
    %p119 = por %p117, %p118
    %p120 = scmp.ne.s32.totalorder %s111, %s112
    %p121 = scmp.eq.s32.totalorder %s17, 0
    %p122 = por %p120, %p121
    %p123 = scmp.ne.s32.totalorder %s111, %s112
    %p124 = scmp.eq.s32.totalorder %s18, 1
    %p125 = por %p123, %p124
    %p127 = scmp.ne.s32.totalorder %s112, %s126
    %p128 = scmp.eq.s32.totalorder %s18, 0
    %p129 = por %p127, %p128
    %s131 = sadd.s32 %s130, 1
    %p134 = scmp.eq.s32.totalorder %s12, 1
    %p135 = scmp.ne.s32.totalorder %s130, %s132
    %p136 = scmp.eq.s32.totalorder %s12, 0
    %p137 = por %p135, %p136
    %p138 = scmp.ne.s32.totalorder %s130, %s132
    %p139 = scmp.eq.s32.totalorder %s17, 1
    %p140 = por %p138, %p139
    %p141 = scmp.ne.s32.totalorder %s132, %s133
    %p142 = scmp.eq.s32.totalorder %s17, 0
    %p143 = por %p141, %p142
    %p144 = scmp.ne.s32.totalorder %s132, %s133
    %p145 = scmp.eq.s32.totalorder %s18, 1
    %p146 = por %p144, %p145
    %p148 = scmp.ne.s32.totalorder %s133, %s147
    %p149 = scmp.eq.s32.totalorder %s18, 0
    %p150 = por %p148, %p149
    %s151 = ssub.s32 %s12, %s19
    %p152 = scmp.eq.s32.totalorder %s151, 0
    %s154 = sadd.s32 %s153, 1
    %s155 = scalar_select %p152, %s153, %s154
    %p158 = pneg %p152
    %p159 = scmp.eq.s32.totalorder %s12, 1
    %p160 = por %p158, %p159
    %p161 = scmp.ne.s32.totalorder %s153, %s156
    %p162 = scmp.eq.s32.totalorder %s12, 0
    %p163 = por %p161, %p162
    %p164 = scmp.ne.s32.totalorder %s153, %s156
    %p165 = scmp.eq.s32.totalorder %s17, 1
    %p166 = por %p164, %p165
    %p167 = scmp.ne.s32.totalorder %s156, %s157
    %p168 = scmp.eq.s32.totalorder %s17, 0
    %p169 = por %p167, %p168
    %p170 = scmp.ne.s32.totalorder %s156, %s157
    %p171 = scmp.eq.s32.totalorder %s18, 1
    %p172 = por %p170, %p171
    %p174 = scmp.ne.s32.totalorder %s157, %s173
    %p175 = scmp.eq.s32.totalorder %s18, 0
    %p176 = por %p174, %p175
    %p177 = scmp.le.s32.totalorder 1, %s12
    %p178 = scmp.lt.s32.totalorder %s12, 3
    %p179 = pnand %p177, %p178
    %p180 = pneg %p179
    // Predicated region
    $region9: #{decoder_forward.7} parent=5 // pred_check
      _
    $region10: #{decoder_forward.7} parent=5 // pred_check_branch
      %182 = sbr.rel (%p179) target = $region12
    $region11: #{decoder_forward.7} parent=5 // pred_region
      %s183 = ssub.s32 %s12, 1
      // Predicated region
      $region13: #{decoder_forward.7} parent=11 // pred_check
        %p184 = pneg %p59
      $region14: #{decoder_forward.7} parent=11 // pred_check_branch
        %186 = sbr.rel (%p184) target = $region16
      $region15: #{decoder_forward.7} parent=11 // pred_region
        _
      $region16: #{decoder_forward.7} parent=11 // pred_fallthru
        _
      // Predicated region
      $region17: #{decoder_forward.7} parent=11 // pred_check
        %p187 = pneg %p80
      $region18: #{decoder_forward.7} parent=11 // pred_check_branch
        %189 = sbr.rel (%p187) target = $region20
      $region19: #{decoder_forward.7} parent=11 // pred_region
        _
      $region20: #{decoder_forward.7} parent=11 // pred_fallthru
        _
      // Predicated region
      $region21: #{decoder_forward.7} parent=11 // pred_check
        %p190 = pneg %p101
      $region22: #{decoder_forward.7} parent=11 // pred_check_branch
        %192 = sbr.rel (%p190) target = $region24
      $region23: #{decoder_forward.7} parent=11 // pred_region
        _
      $region24: #{decoder_forward.7} parent=11 // pred_fallthru
        _
      // Predicated region
      $region25: #{decoder_forward.7} parent=11 // pred_check
        %p193 = pneg %p122
      $region26: #{decoder_forward.7} parent=11 // pred_check_branch
        %195 = sbr.rel (%p193) target = $region28
      $region27: #{decoder_forward.7} parent=11 // pred_region
        _
      $region28: #{decoder_forward.7} parent=11 // pred_fallthru
        _
      // Predicated region
      $region29: #{decoder_forward.7} parent=11 // pred_check
        %p196 = pneg %p143
      $region30: #{decoder_forward.7} parent=11 // pred_check_branch
        %198 = sbr.rel (%p196) target = $region32
      $region31: #{decoder_forward.7} parent=11 // pred_region
        _
      $region32: #{decoder_forward.7} parent=11 // pred_fallthru
        _
    $region12: #{decoder_forward.7} parent=5 // pred_fallthru
      _
    %p199 = scmp.lt.s32.totalorder %s12, 2
    // Predicated region
    $region33: #{decoder_forward.7} parent=5 // pred_check
      %p200 = pneg %p199
    $region34: #{decoder_forward.7} parent=5 // pred_check_branch
      %202 = sbr.rel (%p200) target = $region36
    $region35: #{decoder_forward.7} parent=5 // pred_region
      // Predicated region
      $region37: #{decoder_forward.7} parent=35 // pred_check
        %p203 = pneg %p32
      $region38: #{decoder_forward.7} parent=35 // pred_check_branch
        %205 = sbr.rel (%p203) target = $region40
      $region39: #{decoder_forward.7} parent=35 // pred_region
        %p206 = scmp.lt.s32.totalorder %s12, 1
        %s207 = scalar_select %p206, %s12, 1
        %s208 = smul.addr %s207, 4
        %s209 = smul.addr %s208, 4
        %s210 = scalar_lea.vmem %s0, %s209
      $region40: #{decoder_forward.7} parent=35 // pred_fallthru
        _
    $region36: #{decoder_forward.7} parent=5 // pred_fallthru
      _
    %p211 = scmp.le.s32.totalorder 1, %s12
    %p212 = scmp.lt.s32.totalorder %s12, 3
    %p213 = pnand %p211, %p212
    %p214 = pneg %p213
    // Predicated region
    $region41: #{decoder_forward.7} parent=5 // pred_check
      _
    $region42: #{decoder_forward.7} parent=5 // pred_check_branch
      %216 = sbr.rel (%p213) target = $region44
    $region43: #{decoder_forward.7} parent=5 // pred_region
      %s217 = ssub.s32 %s12, 1
      %p218 = scmp.lt.s32.totalorder %s17, 1
      %s219 = scalar_select %p218, %s17, 1
      %s220 = smul.addr %s219, 4
      %s221 = smul.addr %s220, 4
      %s222 = scalar_lea.vmem %s0, %s221
      %p223 = pneg %p38
      %p224 = pneg %p35
      %p225 = pneg %p59
      %p226 = pneg %p56
      %p227 = pneg %p80
      %p228 = pneg %p77
      %p229 = pneg %p101
      %p230 = pneg %p98
      %p231 = pneg %p122
      %p232 = pneg %p119
      %p233 = pneg %p143
      %p234 = pneg %p140
      %p235 = pneg %p169
      %p236 = pneg %p166
      %p237 = scmp.lt.s32.totalorder %s17, 1
      %s238 = scalar_select %p237, %s17, 1
      %s239 = smul.addr %s238, 12
      %s240 = smul.addr %s239, 4
      %s241 = scalar_lea.vmem %s6, %s240
      %p242 = scmp.lt.s32.totalorder %s17, 1
      %s243 = scalar_select %p242, %s17, 1
      %s244 = smul.addr %s243, 4
      %s245 = smul.addr %s244, 4
      %s246 = scalar_lea.vmem %s0, %s245
      %p247 = scmp.lt.s32.totalorder %s17, 1
      %s248 = scalar_select %p247, %s17, 1
      %s249 = smul.addr %s248, 12
      %s250 = smul.addr %s249, 4
      %s251 = scalar_lea.vmem %s6, %s250
      %v253 = vld [vmem:[%s246] sm:$0xf]
      %v254 = vld [vmem:[%s246 + $0x4] sm:$0xf]
      %v255 = vld [vmem:[%s246 + $0x8] sm:$0xf]
      %v256 = vld [vmem:[%s246 + $0xc] sm:$0x1]
      %v257 = vld [vmem:[%s5] sm:$0x1]
      %v258 = vld [vmem:[%s1] sm:$0xf]
      %v259 = vld [vmem:[%s1 + $0x4] sm:$0xf]
      %v260 = vld [vmem:[%s1 + $0x8] sm:$0xf]
      %v261 = vld [vmem:[%s1 + $0xc] sm:$0xf]
      %v262 = vld [vmem:[%s1 + $0x10] sm:$0xf]
      %v263 = vld [vmem:[%s1 + $0x14] sm:$0xf]
      %v264 = vld [vmem:[%s1 + $0x18] sm:$0xf]
      %v265 = vld [vmem:[%s1 + $0x1c] sm:$0xf]
      %v266 = vld [vmem:[%s1 + $0x20] sm:$0xf]
      %v267 = vld [vmem:[%s1 + $0x24] sm:$0xf]
      %v268 = vld [vmem:[%s1 + $0x28] sm:$0xf]
      %v269 = vld [vmem:[%s1 + $0x2c] sm:$0xf]
      %v270 = vld [vmem:[%s1 + $0x30] sm:$0xf]
      %v271 = vld [vmem:[%s1 + $0x34] sm:$0xf]
      %v272 = vld [vmem:[%s1 + $0x38] sm:$0xf]
      %v273 = vld [vmem:[%s1 + $0x3c] sm:$0xf]
      %v275 = vlaneseq
      %v276 = vshrl.u32 %v275, 7
      %v277 = vsub.s32 0, %v276
      %v278 = vrot.slane %v257, %v277
      %v283 = vunpack.c.l.b16 %v253
      %v284 = vunpack.c.l.b16 %v254
      %v285 = vunpack.c.l.b16 %v255
      %v286 = vpack.c.b16 %v284, %v283
      %v287 = vpack.c.b16 %v285, %v285
      %v306 = vunpack.c.l.b16 %v258
      %v307 = vunpack.c.l.b16 %v259
      %v308 = vunpack.c.l.b16 %v260
      %v309 = vunpack.c.l.b16 %v261
      %v310 = vunpack.c.l.b16 %v262
      %v311 = vunpack.c.l.b16 %v263
      %v312 = vunpack.c.l.b16 %v264
      %v313 = vunpack.c.l.b16 %v265
      %v314 = vunpack.c.l.b16 %v266
      %v315 = vunpack.c.l.b16 %v267
      %v316 = vunpack.c.l.b16 %v268
      %v317 = vunpack.c.l.b16 %v269
      %v318 = vunpack.c.l.b16 %v270
      %v319 = vunpack.c.l.b16 %v271
      %v320 = vunpack.c.l.b16 %v272
      %v321 = vunpack.c.l.b16 %v273
      %v322 = vpack.c.b16 %v307, %v306
      %v323 = vpack.c.b16 %v309, %v308
      %v324 = vpack.c.b16 %v311, %v310
      %v325 = vpack.c.b16 %v313, %v312
      %v326 = vpack.c.b16 %v315, %v314
      %v327 = vpack.c.b16 %v317, %v316
      %v328 = vpack.c.b16 %v319, %v318
      %v329 = vpack.c.b16 %v321, %v320
      %338 = vmatprep.subr.bf16.mxu0 0
      %339 = vmatpush1.bf16.msra.mxu0 %v329
      %340 = vmatprep.subr.bf16.mxu0 0
      %341 = vmatpush1.bf16.msra.mxu0 %v328
      %342 = vmatprep.subr.bf16.mxu0 0
      %343 = vmatpush1.bf16.msra.mxu0 %v327
      %344 = vmatprep.subr.bf16.mxu0 0
      %345 = vmatpush1.bf16.msra.mxu0 %v326
      %346 = vmatprep.subr.bf16.mxu0 0
      %347 = vmatpush1.bf16.msra.mxu0 %v325
      %348 = vmatprep.subr.bf16.mxu0 0
      %349 = vmatpush1.bf16.msra.mxu0 %v324
      %350 = vmatprep.subr.bf16.mxu0 0
      %351 = vmatpush1.bf16.msra.mxu0 %v323
      %352 = vmatprep.subr.bf16.mxu0 0
      %353 = vmatpush1.bf16.msra.mxu0 %v322
      %354 = vmatprep.subr.bf16.mxu0 0
      %355 = vmatpush2.bf16.msra.mxu0 0
      %356 = vmatprep.subr.bf16.mxu0 0
      %357 = vmatpush2.bf16.msra.mxu0 0
      %358 = vmatprep.subr.bf16.mxu0 0
      %359 = vmatpush2.bf16.msra.mxu0 0
      %360 = vmatprep.subr.bf16.mxu0 0
      %361 = vmatpush2.bf16.msra.mxu0 0
      %362 = vmatprep.subr.bf16.mxu0 0
      %363 = vmatpush2.bf16.msra.mxu0 0
      %364 = vmatprep.subr.bf16.mxu0 0
      %365 = vmatpush2.bf16.msra.mxu0 0
      %366 = vmatprep.subr.bf16.mxu0 0
      %367 = vmatpush2.bf16.msra.mxu0 0
      %368 = vmatprep.subr.bf16.mxu0 0
      %369 = vmatpush2.bf16.msra.mxu0 0
      %370 = vmatprep.mubr.bf16.mxu0 0
      %371 = vmatmul.mubr.bf16.gmra.mxu0 %v286
      %v372 = vpop.f32.mrf.mxu0
      %v373 = vadd.f32 %v278, %v372
      %v374 = vpop.f32.mrf.mxu0
      %v375 = vpop.f32.mrf.mxu0
      %v376 = vadd.f32 %v278, %v375
      %v377 = vpop.f32.mrf.mxu0
      %378 = vmatprep.mubr.bf16.mxu0 0
      %379 = vmatmul.mubr.bf16.gmra.mxu0 %v287
      %v380 = vpop.f32.mrf.mxu0
      %v381 = vadd.f32 %v278, %v380
      %v382 = vpop.f32.mrf.mxu0
      %v383 = vpop.f32.mrf.mxu0
      %v384 = vpop.f32.mrf.mxu0
      %385 = vdwg.mxu0
      %v386 = vmax.f32 %v373, 0.0
      %v387 = vmax.f32 %v376, 0.0
      %v388 = vmax.f32 %v381, 0.0
      %vm389 = vsmask.f32 7424
      %v391 = vshrl.u32 %v286, 16
      %v393 = vshll.u32 %v286, 16
      %v395 = vrot.slane %v393, 1
      %v396 = vor.u32 %v391, %v395
      %v398 = vshll.u32 %v287, 16
      %v400 = vrot.slane %v398, 1
      %v401 = vsel %vm389, %v396, %v400
      %v402 = vshrl.u32 %v287, 16
      %v404 = vor.u32 %v402, %v400
      %v407 = vld [vmem:[%s2] sm:$0xf]
      %v408 = vld [vmem:[%s2 + $0x4] sm:$0xf]
      %v409 = vld [vmem:[%s2 + $0x8] sm:$0xf]
      %v410 = vld [vmem:[%s2 + $0xc] sm:$0xf]
      %v411 = vld [vmem:[%s2 + $0x10] sm:$0xf]
      %v412 = vld [vmem:[%s2 + $0x14] sm:$0xf]
      %v413 = vld [vmem:[%s2 + $0x18] sm:$0xf]
      %v414 = vld [vmem:[%s2 + $0x1c] sm:$0xf]
      %v415 = vld [vmem:[%s2 + $0x20] sm:$0xf]
      %v416 = vld [vmem:[%s2 + $0x24] sm:$0xf]
      %v417 = vld [vmem:[%s2 + $0x28] sm:$0xf]
      %v418 = vld [vmem:[%s2 + $0x2c] sm:$0xf]
      %v419 = vld [vmem:[%s2 + $0x30] sm:$0xf]
      %v420 = vld [vmem:[%s2 + $0x34] sm:$0xf]
      %v421 = vld [vmem:[%s2 + $0x38] sm:$0xf]
      %v422 = vld [vmem:[%s2 + $0x3c] sm:$0xf]
      %v423 = vld [vmem:[%s2 + $0x40] sm:$0xf]
      %v424 = vld [vmem:[%s2 + $0x44] sm:$0xf]
      %v425 = vld [vmem:[%s2 + $0x48] sm:$0xf]
      %v426 = vld [vmem:[%s2 + $0x4c] sm:$0xf]
      %v427 = vld [vmem:[%s2 + $0x50] sm:$0xf]
      %v428 = vld [vmem:[%s2 + $0x54] sm:$0xf]
      %v429 = vld [vmem:[%s2 + $0x58] sm:$0xf]
      %v430 = vld [vmem:[%s2 + $0x5c] sm:$0xf]
      %v431 = vld [vmem:[%s2 + $0x60] sm:$0xf]
      %v432 = vld [vmem:[%s2 + $0x64] sm:$0xf]
      %v433 = vld [vmem:[%s2 + $0x68] sm:$0xf]
      %v434 = vld [vmem:[%s2 + $0x6c] sm:$0xf]
      %v435 = vld [vmem:[%s2 + $0x70] sm:$0xf]
      %v436 = vld [vmem:[%s2 + $0x74] sm:$0xf]
      %v437 = vld [vmem:[%s2 + $0x78] sm:$0xf]
      %v438 = vld [vmem:[%s2 + $0x7c] sm:$0xf]
      %v471 = vunpack.c.l.b16 %v407
      %v472 = vunpack.c.l.b16 %v408
      %v473 = vunpack.c.l.b16 %v409
      %v474 = vunpack.c.l.b16 %v410
      %v475 = vunpack.c.l.b16 %v411
      %v476 = vunpack.c.l.b16 %v412
      %v477 = vunpack.c.l.b16 %v413
      %v478 = vunpack.c.l.b16 %v414
      %v479 = vunpack.c.l.b16 %v415
      %v480 = vunpack.c.l.b16 %v416
      %v481 = vunpack.c.l.b16 %v417
      %v482 = vunpack.c.l.b16 %v418
      %v483 = vunpack.c.l.b16 %v419
      %v484 = vunpack.c.l.b16 %v420
      %v485 = vunpack.c.l.b16 %v421
      %v486 = vunpack.c.l.b16 %v422
      %v487 = vunpack.c.l.b16 %v423
      %v488 = vunpack.c.l.b16 %v424
      %v489 = vunpack.c.l.b16 %v425
      %v490 = vunpack.c.l.b16 %v426
      %v491 = vunpack.c.l.b16 %v427
      %v492 = vunpack.c.l.b16 %v428
      %v493 = vunpack.c.l.b16 %v429
      %v494 = vunpack.c.l.b16 %v430
      %v495 = vunpack.c.l.b16 %v431
      %v496 = vunpack.c.l.b16 %v432
      %v497 = vunpack.c.l.b16 %v433
      %v498 = vunpack.c.l.b16 %v434
      %v499 = vunpack.c.l.b16 %v435
      %v500 = vunpack.c.l.b16 %v436
      %v501 = vunpack.c.l.b16 %v437
      %v502 = vunpack.c.l.b16 %v438
      %v503 = vpack.c.b16 %v472, %v471
      %v504 = vpack.c.b16 %v474, %v473
      %v505 = vpack.c.b16 %v476, %v475
      %v506 = vpack.c.b16 %v478, %v477
      %v507 = vpack.c.b16 %v480, %v479
      %v508 = vpack.c.b16 %v482, %v481
      %v509 = vpack.c.b16 %v484, %v483
      %v510 = vpack.c.b16 %v486, %v485
      %v511 = vpack.c.b16 %v488, %v487
      %v512 = vpack.c.b16 %v490, %v489
      %v513 = vpack.c.b16 %v492, %v491
      %v514 = vpack.c.b16 %v494, %v493
      %v515 = vpack.c.b16 %v496, %v495
      %v516 = vpack.c.b16 %v498, %v497
      %v517 = vpack.c.b16 %v500, %v499
      %v518 = vpack.c.b16 %v502, %v501
      %535 = vmatprep.subr.bf16.mxu0 0
      %536 = vmatpush1.bf16.msra.mxu0 %v510
      %537 = vmatprep.subr.bf16.mxu0 0
      %538 = vmatpush1.bf16.msra.mxu0 %v509
      %539 = vmatprep.subr.bf16.mxu0 0
      %540 = vmatpush1.bf16.msra.mxu0 %v508
      %541 = vmatprep.subr.bf16.mxu0 0
      %542 = vmatpush1.bf16.msra.mxu0 %v507
      %543 = vmatprep.subr.bf16.mxu0 0
      %544 = vmatpush1.bf16.msra.mxu0 %v506
      %545 = vmatprep.subr.bf16.mxu0 0
      %546 = vmatpush1.bf16.msra.mxu0 %v505
      %547 = vmatprep.subr.bf16.mxu0 0
      %548 = vmatpush1.bf16.msra.mxu0 %v504
      %549 = vmatprep.subr.bf16.mxu0 0
      %550 = vmatpush1.bf16.msra.mxu0 %v503
      %551 = vmatprep.subr.bf16.mxu0 0
      %552 = vmatpush2.bf16.msra.mxu0 %v518
      %553 = vmatprep.subr.bf16.mxu0 0
      %554 = vmatpush2.bf16.msra.mxu0 %v517
      %555 = vmatprep.subr.bf16.mxu0 0
      %556 = vmatpush2.bf16.msra.mxu0 %v516
      %557 = vmatprep.subr.bf16.mxu0 0
      %558 = vmatpush2.bf16.msra.mxu0 %v515
      %559 = vmatprep.subr.bf16.mxu0 0
      %560 = vmatpush2.bf16.msra.mxu0 %v514
      %561 = vmatprep.subr.bf16.mxu0 0
      %562 = vmatpush2.bf16.msra.mxu0 %v513
      %563 = vmatprep.subr.bf16.mxu0 0
      %564 = vmatpush2.bf16.msra.mxu0 %v512
      %565 = vmatprep.subr.bf16.mxu0 0
      %566 = vmatpush2.bf16.msra.mxu0 %v511
      %567 = vmatprep.mubr.bf16.mxu0 %v401
      %568 = vmatmul.mubr.bf16.gmra.mxu0 %v286
      %v569 = vpop.f32.mrf.mxu0
      %v570 = vadd.f32 %v278, %v569
      %v571 = vpop.f32.mrf.mxu0
      %v572 = vpop.f32.mrf.mxu0
      %v573 = vadd.f32 %v278, %v572
      %v574 = vpop.f32.mrf.mxu0
      %575 = vmatprep.mubr.bf16.mxu0 %v404
      %576 = vmatmul.mubr.bf16.gmra.mxu0 %v287
      %v577 = vpop.f32.mrf.mxu0
      %v578 = vadd.f32 %v278, %v577
      %v579 = vpop.f32.mrf.mxu0
      %v580 = vpop.f32.mrf.mxu0
      %v581 = vpop.f32.mrf.mxu0
      %582 = vdwg.mxu0
      %v583 = vmax.f32 %v570, 0.0
      %v584 = vmax.f32 %v573, 0.0
      %v585 = vmax.f32 %v578, 0.0
      %v587 = vunpack.c.l.b16 %v256
      %v588 = vpack.c.b16 %v587, %v285
      %vm589 = vsmask.f32 5376
      %v590 = vrot.slane %v391, 2
      %v591 = vrot.slane %v393, 3
      %v592 = vor.u32 %v590, %v591
      %v594 = vshrl.u32 %v588, 16
      %v596 = vrot.slane %v594, 2
      %v597 = vshll.u32 %v588, 16
      %v599 = vrot.slane %v597, 3
      %v600 = vor.u32 %v596, %v599
      %v601 = vsel %vm589, %v592, %v600
      %v604 = vld [vmem:[%s3] sm:$0xf]
      %v605 = vld [vmem:[%s3 + $0x4] sm:$0xf]
      %v606 = vld [vmem:[%s3 + $0x8] sm:$0xf]
      %v607 = vld [vmem:[%s3 + $0xc] sm:$0xf]
      %v608 = vld [vmem:[%s3 + $0x10] sm:$0xf]
      %v609 = vld [vmem:[%s3 + $0x14] sm:$0xf]
      %v610 = vld [vmem:[%s3 + $0x18] sm:$0xf]
      %v611 = vld [vmem:[%s3 + $0x1c] sm:$0xf]
      %v612 = vld [vmem:[%s3 + $0x20] sm:$0xf]
      %v613 = vld [vmem:[%s3 + $0x24] sm:$0xf]
      %v614 = vld [vmem:[%s3 + $0x28] sm:$0xf]
      %v615 = vld [vmem:[%s3 + $0x2c] sm:$0xf]
      %v616 = vld [vmem:[%s3 + $0x30] sm:$0xf]
      %v617 = vld [vmem:[%s3 + $0x34] sm:$0xf]
      %v618 = vld [vmem:[%s3 + $0x38] sm:$0xf]
      %v619 = vld [vmem:[%s3 + $0x3c] sm:$0xf]
      %v620 = vld [vmem:[%s3 + $0x40] sm:$0xf]
      %v621 = vld [vmem:[%s3 + $0x44] sm:$0xf]
      %v622 = vld [vmem:[%s3 + $0x48] sm:$0xf]
      %v623 = vld [vmem:[%s3 + $0x4c] sm:$0xf]
      %v624 = vld [vmem:[%s3 + $0x50] sm:$0xf]
      %v625 = vld [vmem:[%s3 + $0x54] sm:$0xf]
      %v626 = vld [vmem:[%s3 + $0x58] sm:$0xf]
      %v627 = vld [vmem:[%s3 + $0x5c] sm:$0xf]
      %v628 = vld [vmem:[%s3 + $0x60] sm:$0xf]
      %v629 = vld [vmem:[%s3 + $0x64] sm:$0xf]
      %v630 = vld [vmem:[%s3 + $0x68] sm:$0xf]
      %v631 = vld [vmem:[%s3 + $0x6c] sm:$0xf]
      %v632 = vld [vmem:[%s3 + $0x70] sm:$0xf]
      %v633 = vld [vmem:[%s3 + $0x74] sm:$0xf]
      %v634 = vld [vmem:[%s3 + $0x78] sm:$0xf]
      %v635 = vld [vmem:[%s3 + $0x7c] sm:$0xf]
      %v668 = vunpack.c.l.b16 %v604
      %v669 = vunpack.c.l.b16 %v605
      %v670 = vunpack.c.l.b16 %v606
      %v671 = vunpack.c.l.b16 %v607
      %v672 = vunpack.c.l.b16 %v608
      %v673 = vunpack.c.l.b16 %v609
      %v674 = vunpack.c.l.b16 %v610
      %v675 = vunpack.c.l.b16 %v611
      %v676 = vunpack.c.l.b16 %v612
      %v677 = vunpack.c.l.b16 %v613
      %v678 = vunpack.c.l.b16 %v614
      %v679 = vunpack.c.l.b16 %v615
      %v680 = vunpack.c.l.b16 %v616
      %v681 = vunpack.c.l.b16 %v617
      %v682 = vunpack.c.l.b16 %v618
      %v683 = vunpack.c.l.b16 %v619
      %v684 = vunpack.c.l.b16 %v620
      %v685 = vunpack.c.l.b16 %v621
      %v686 = vunpack.c.l.b16 %v622
      %v687 = vunpack.c.l.b16 %v623
      %v688 = vunpack.c.l.b16 %v624
      %v689 = vunpack.c.l.b16 %v625
      %v690 = vunpack.c.l.b16 %v626
      %v691 = vunpack.c.l.b16 %v627
      %v692 = vunpack.c.l.b16 %v628
      %v693 = vunpack.c.l.b16 %v629
      %v694 = vunpack.c.l.b16 %v630
      %v695 = vunpack.c.l.b16 %v631
      %v696 = vunpack.c.l.b16 %v632
      %v697 = vunpack.c.l.b16 %v633
      %v698 = vunpack.c.l.b16 %v634
      %v699 = vunpack.c.l.b16 %v635
      %v700 = vpack.c.b16 %v669, %v668
      %v701 = vpack.c.b16 %v671, %v670
      %v702 = vpack.c.b16 %v673, %v672
      %v703 = vpack.c.b16 %v675, %v674
      %v704 = vpack.c.b16 %v677, %v676
      %v705 = vpack.c.b16 %v679, %v678
      %v706 = vpack.c.b16 %v681, %v680
      %v707 = vpack.c.b16 %v683, %v682
      %v708 = vpack.c.b16 %v685, %v684
      %v709 = vpack.c.b16 %v687, %v686
      %v710 = vpack.c.b16 %v689, %v688
      %v711 = vpack.c.b16 %v691, %v690
      %v712 = vpack.c.b16 %v693, %v692
      %v713 = vpack.c.b16 %v695, %v694
      %v714 = vpack.c.b16 %v697, %v696
      %v715 = vpack.c.b16 %v699, %v698
      %732 = vmatprep.subr.bf16.mxu0 0
      %733 = vmatpush1.bf16.msra.mxu0 %v707
      %734 = vmatprep.subr.bf16.mxu0 0
      %735 = vmatpush1.bf16.msra.mxu0 %v706
      %736 = vmatprep.subr.bf16.mxu0 0
      %737 = vmatpush1.bf16.msra.mxu0 %v705
      %738 = vmatprep.subr.bf16.mxu0 0
      %739 = vmatpush1.bf16.msra.mxu0 %v704
      %740 = vmatprep.subr.bf16.mxu0 0
      %741 = vmatpush1.bf16.msra.mxu0 %v703
      %742 = vmatprep.subr.bf16.mxu0 0
      %743 = vmatpush1.bf16.msra.mxu0 %v702
      %744 = vmatprep.subr.bf16.mxu0 0
      %745 = vmatpush1.bf16.msra.mxu0 %v701
      %746 = vmatprep.subr.bf16.mxu0 0
      %747 = vmatpush1.bf16.msra.mxu0 %v700
      %748 = vmatprep.subr.bf16.mxu0 0
      %749 = vmatpush2.bf16.msra.mxu0 %v715
      %750 = vmatprep.subr.bf16.mxu0 0
      %751 = vmatpush2.bf16.msra.mxu0 %v714
      %752 = vmatprep.subr.bf16.mxu0 0
      %753 = vmatpush2.bf16.msra.mxu0 %v713
      %754 = vmatprep.subr.bf16.mxu0 0
      %755 = vmatpush2.bf16.msra.mxu0 %v712
      %756 = vmatprep.subr.bf16.mxu0 0
      %757 = vmatpush2.bf16.msra.mxu0 %v711
      %758 = vmatprep.subr.bf16.mxu0 0
      %759 = vmatpush2.bf16.msra.mxu0 %v710
      %760 = vmatprep.subr.bf16.mxu0 0
      %761 = vmatpush2.bf16.msra.mxu0 %v709
      %762 = vmatprep.subr.bf16.mxu0 0
      %763 = vmatpush2.bf16.msra.mxu0 %v708
      %764 = vmatprep.mubr.bf16.mxu0 %v601
      %765 = vmatmul.mubr.bf16.gmra.mxu0 %v286
      %v766 = vpop.f32.mrf.mxu0
      %v767 = vadd.f32 %v278, %v766
      %v768 = vpop.f32.mrf.mxu0
      %v769 = vpop.f32.mrf.mxu0
      %v770 = vadd.f32 %v278, %v769
      %v771 = vpop.f32.mrf.mxu0
      %772 = vmatprep.mubr.bf16.mxu0 %v600
      %773 = vmatmul.mubr.bf16.gmra.mxu0 %v287
      %v774 = vpop.f32.mrf.mxu0
      %v775 = vadd.f32 %v278, %v774
      %v776 = vpop.f32.mrf.mxu0
      %v777 = vpop.f32.mrf.mxu0
      %v778 = vpop.f32.mrf.mxu0
      %779 = vdwg.mxu0
      %v780 = vmax.f32 %v767, 0.0
      %v781 = vmax.f32 %v770, 0.0
      %v782 = vmax.f32 %v775, 0.0
      %vm783 = vcmask 1044480
      %v784 = vrot.slane %v286, 3
      %v785 = vrot.slane %v588, 3
      %v786 = vsel %vm783, %v784, %v785
      %v789 = vld [vmem:[%s4] sm:$0xf]
      %v790 = vld [vmem:[%s4 + $0x4] sm:$0xf]
      %v791 = vld [vmem:[%s4 + $0x8] sm:$0xf]
      %v792 = vld [vmem:[%s4 + $0xc] sm:$0xf]
      %v793 = vld [vmem:[%s4 + $0x10] sm:$0xf]
      %v794 = vld [vmem:[%s4 + $0x14] sm:$0xf]
      %v795 = vld [vmem:[%s4 + $0x18] sm:$0xf]
      %v796 = vld [vmem:[%s4 + $0x1c] sm:$0xf]
      %v797 = vld [vmem:[%s4 + $0x20] sm:$0xf]
      %v798 = vld [vmem:[%s4 + $0x24] sm:$0xf]
      %v799 = vld [vmem:[%s4 + $0x28] sm:$0xf]
      %v800 = vld [vmem:[%s4 + $0x2c] sm:$0xf]
      %v801 = vld [vmem:[%s4 + $0x30] sm:$0xf]
      %v802 = vld [vmem:[%s4 + $0x34] sm:$0xf]
      %v803 = vld [vmem:[%s4 + $0x38] sm:$0xf]
      %v804 = vld [vmem:[%s4 + $0x3c] sm:$0xf]
      %v805 = vld [vmem:[%s4 + $0x40] sm:$0xf]
      %v806 = vld [vmem:[%s4 + $0x44] sm:$0xf]
      %v807 = vld [vmem:[%s4 + $0x48] sm:$0xf]
      %v808 = vld [vmem:[%s4 + $0x4c] sm:$0xf]
      %v809 = vld [vmem:[%s4 + $0x50] sm:$0xf]
      %v810 = vld [vmem:[%s4 + $0x54] sm:$0xf]
      %v811 = vld [vmem:[%s4 + $0x58] sm:$0xf]
      %v812 = vld [vmem:[%s4 + $0x5c] sm:$0xf]
      %v813 = vld [vmem:[%s4 + $0x60] sm:$0xf]
      %v814 = vld [vmem:[%s4 + $0x64] sm:$0xf]
      %v815 = vld [vmem:[%s4 + $0x68] sm:$0xf]
      %v816 = vld [vmem:[%s4 + $0x6c] sm:$0xf]
      %v817 = vld [vmem:[%s4 + $0x70] sm:$0xf]
      %v818 = vld [vmem:[%s4 + $0x74] sm:$0xf]
      %v819 = vld [vmem:[%s4 + $0x78] sm:$0xf]
      %v820 = vld [vmem:[%s4 + $0x7c] sm:$0xf]
      %v821 = vld [vmem:[%s4 + $0x80] sm:$0xf]
      %v822 = vld [vmem:[%s4 + $0x84] sm:$0xf]
      %v823 = vld [vmem:[%s4 + $0x88] sm:$0xf]
      %v824 = vld [vmem:[%s4 + $0x8c] sm:$0xf]
      %v825 = vld [vmem:[%s4 + $0x90] sm:$0xf]
      %v826 = vld [vmem:[%s4 + $0x94] sm:$0xf]
      %v827 = vld [vmem:[%s4 + $0x98] sm:$0xf]
      %v828 = vld [vmem:[%s4 + $0x9c] sm:$0xf]
      %v829 = vld [vmem:[%s4 + $0xa0] sm:$0xf]
      %v830 = vld [vmem:[%s4 + $0xa4] sm:$0xf]
      %v831 = vld [vmem:[%s4 + $0xa8] sm:$0xf]
      %v832 = vld [vmem:[%s4 + $0xac] sm:$0xf]
      %v833 = vld [vmem:[%s4 + $0xb0] sm:$0xf]
      %v834 = vld [vmem:[%s4 + $0xb4] sm:$0xf]
      %v835 = vld [vmem:[%s4 + $0xb8] sm:$0xf]
      %v836 = vld [vmem:[%s4 + $0xbc] sm:$0xf]
      %v837 = vld [vmem:[%s4 + $0xc0] sm:$0xf]
      %v838 = vld [vmem:[%s4 + $0xc4] sm:$0xf]
      %v839 = vld [vmem:[%s4 + $0xc8] sm:$0xf]
      %v840 = vld [vmem:[%s4 + $0xcc] sm:$0xf]
      %v841 = vld [vmem:[%s4 + $0xd0] sm:$0xf]
      %v842 = vld [vmem:[%s4 + $0xd4] sm:$0xf]
      %v843 = vld [vmem:[%s4 + $0xd8] sm:$0xf]
      %v844 = vld [vmem:[%s4 + $0xdc] sm:$0xf]
      %v845 = vld [vmem:[%s4 + $0xe0] sm:$0xf]
      %v846 = vld [vmem:[%s4 + $0xe4] sm:$0xf]
      %v847 = vld [vmem:[%s4 + $0xe8] sm:$0xf]
      %v848 = vld [vmem:[%s4 + $0xec] sm:$0xf]
      %v849 = vld [vmem:[%s4 + $0xf0] sm:$0xf]
      %v850 = vld [vmem:[%s4 + $0xf4] sm:$0xf]
      %v851 = vld [vmem:[%s4 + $0xf8] sm:$0xf]
      %v852 = vld [vmem:[%s4 + $0xfc] sm:$0xf]
      %v917 = vunpack.c.l.b16 %v789
      %v918 = vunpack.c.l.b16 %v790
      %v919 = vunpack.c.l.b16 %v791
      %v920 = vunpack.c.l.b16 %v792
      %v921 = vunpack.c.l.b16 %v793
      %v922 = vunpack.c.l.b16 %v794
      %v923 = vunpack.c.l.b16 %v795
      %v924 = vunpack.c.l.b16 %v796
      %v925 = vunpack.c.l.b16 %v797
      %v926 = vunpack.c.l.b16 %v798
      %v927 = vunpack.c.l.b16 %v799
      %v928 = vunpack.c.l.b16 %v800
      %v929 = vunpack.c.l.b16 %v801
      %v930 = vunpack.c.l.b16 %v802
      %v931 = vunpack.c.l.b16 %v803
      %v932 = vunpack.c.l.b16 %v804
      %v933 = vunpack.c.l.b16 %v805
      %v934 = vunpack.c.l.b16 %v806
      %v935 = vunpack.c.l.b16 %v807
      %v936 = vunpack.c.l.b16 %v808
      %v937 = vunpack.c.l.b16 %v809
      %v938 = vunpack.c.l.b16 %v810
      %v939 = vunpack.c.l.b16 %v811
      %v940 = vunpack.c.l.b16 %v812
      %v941 = vunpack.c.l.b16 %v813
      %v942 = vunpack.c.l.b16 %v814
      %v943 = vunpack.c.l.b16 %v815
      %v944 = vunpack.c.l.b16 %v816
      %v945 = vunpack.c.l.b16 %v817
      %v946 = vunpack.c.l.b16 %v818
      %v947 = vunpack.c.l.b16 %v819
      %v948 = vunpack.c.l.b16 %v820
      %v949 = vunpack.c.l.b16 %v821
      %v950 = vunpack.c.l.b16 %v822
      %v951 = vunpack.c.l.b16 %v823
      %v952 = vunpack.c.l.b16 %v824
      %v953 = vunpack.c.l.b16 %v825
      %v954 = vunpack.c.l.b16 %v826
      %v955 = vunpack.c.l.b16 %v827
      %v956 = vunpack.c.l.b16 %v828
      %v957 = vunpack.c.l.b16 %v829
      %v958 = vunpack.c.l.b16 %v830
      %v959 = vunpack.c.l.b16 %v831
      %v960 = vunpack.c.l.b16 %v832
      %v961 = vunpack.c.l.b16 %v833
      %v962 = vunpack.c.l.b16 %v834
      %v963 = vunpack.c.l.b16 %v835
      %v964 = vunpack.c.l.b16 %v836
      %v965 = vunpack.c.l.b16 %v837
      %v966 = vunpack.c.l.b16 %v838
      %v967 = vunpack.c.l.b16 %v839
      %v968 = vunpack.c.l.b16 %v840
      %v969 = vunpack.c.l.b16 %v841
      %v970 = vunpack.c.l.b16 %v842
      %v971 = vunpack.c.l.b16 %v843
      %v972 = vunpack.c.l.b16 %v844
      %v973 = vunpack.c.l.b16 %v845
      %v974 = vunpack.c.l.b16 %v846
      %v975 = vunpack.c.l.b16 %v847
      %v976 = vunpack.c.l.b16 %v848
      %v977 = vunpack.c.l.b16 %v849
      %v978 = vunpack.c.l.b16 %v850
      %v979 = vunpack.c.l.b16 %v851
      %v980 = vunpack.c.l.b16 %v852
      %v981 = vpack.c.b16 %v918, %v917
      %v982 = vpack.c.b16 %v920, %v919
      %v983 = vpack.c.b16 %v922, %v921
      %v984 = vpack.c.b16 %v924, %v923
      %v985 = vpack.c.b16 %v926, %v925
      %v986 = vpack.c.b16 %v928, %v927
      %v987 = vpack.c.b16 %v930, %v929
      %v988 = vpack.c.b16 %v932, %v931
      %v989 = vpack.c.b16 %v934, %v933
      %v990 = vpack.c.b16 %v936, %v935
      %v991 = vpack.c.b16 %v938, %v937
      %v992 = vpack.c.b16 %v940, %v939
      %v993 = vpack.c.b16 %v942, %v941
      %v994 = vpack.c.b16 %v944, %v943
      %v995 = vpack.c.b16 %v946, %v945
      %v996 = vpack.c.b16 %v948, %v947
      %v997 = vpack.c.b16 %v950, %v949
      %v998 = vpack.c.b16 %v952, %v951
      %v999 = vpack.c.b16 %v954, %v953
      %v1000 = vpack.c.b16 %v956, %v955
      %v1001 = vpack.c.b16 %v958, %v957
      %v1002 = vpack.c.b16 %v960, %v959
      %v1003 = vpack.c.b16 %v962, %v961
      %v1004 = vpack.c.b16 %v964, %v963
      %v1005 = vpack.c.b16 %v966, %v965
      %v1006 = vpack.c.b16 %v968, %v967
      %v1007 = vpack.c.b16 %v970, %v969
      %v1008 = vpack.c.b16 %v972, %v971
      %v1009 = vpack.c.b16 %v974, %v973
      %v1010 = vpack.c.b16 %v976, %v975
      %v1011 = vpack.c.b16 %v978, %v977
      %v1012 = vpack.c.b16 %v980, %v979
      %1045 = vmatprep.subr.bf16.mxu0 0
      %1046 = vmatpush1.bf16.msra.mxu0 %v988
      %1047 = vmatprep.subr.bf16.mxu0 0
      %1048 = vmatpush1.bf16.msra.mxu0 %v987
      %1049 = vmatprep.subr.bf16.mxu0 0
      %1050 = vmatpush1.bf16.msra.mxu0 %v986
      %1051 = vmatprep.subr.bf16.mxu0 0
      %1052 = vmatpush1.bf16.msra.mxu0 %v985
      %1053 = vmatprep.subr.bf16.mxu0 0
      %1054 = vmatpush1.bf16.msra.mxu0 %v984
      %1055 = vmatprep.subr.bf16.mxu0 0
      %1056 = vmatpush1.bf16.msra.mxu0 %v983
      %1057 = vmatprep.subr.bf16.mxu0 0
      %1058 = vmatpush1.bf16.msra.mxu0 %v982
      %1059 = vmatprep.subr.bf16.mxu0 0
      %1060 = vmatpush1.bf16.msra.mxu0 %v981
      %1061 = vmatprep.subr.bf16.mxu0 0
      %1062 = vmatpush2.bf16.msra.mxu0 %v996
      %1063 = vmatprep.subr.bf16.mxu0 0
      %1064 = vmatpush2.bf16.msra.mxu0 %v995
      %1065 = vmatprep.subr.bf16.mxu0 0
      %1066 = vmatpush2.bf16.msra.mxu0 %v994
      %1067 = vmatprep.subr.bf16.mxu0 0
      %1068 = vmatpush2.bf16.msra.mxu0 %v993
      %1069 = vmatprep.subr.bf16.mxu0 0
      %1070 = vmatpush2.bf16.msra.mxu0 %v992
      %1071 = vmatprep.subr.bf16.mxu0 0
      %1072 = vmatpush2.bf16.msra.mxu0 %v991
      %1073 = vmatprep.subr.bf16.mxu0 0
      %1074 = vmatpush2.bf16.msra.mxu0 %v990
      %1075 = vmatprep.subr.bf16.mxu0 0
      %1076 = vmatpush2.bf16.msra.mxu0 %v989
      %1077 = vmatprep.mubr.bf16.mxu0 %v401
      %1078 = vmatmul.mubr.bf16.gmra.mxu0 %v286
      %v1079 = vpop.f32.mrf.mxu0
      %v1080 = vadd.f32 %v278, %v1079
      %v1081 = vpop.f32.mrf.mxu0
      %v1082 = vpop.f32.mrf.mxu0
      %v1083 = vadd.f32 %v278, %v1082
      %v1084 = vpop.f32.mrf.mxu0
      %1085 = vmatprep.mubr.bf16.mxu0 %v404
      %1086 = vmatmul.mubr.bf16.gmra.mxu0 %v287
      %v1087 = vpop.f32.mrf.mxu0
      %v1088 = vadd.f32 %v278, %v1087
      %v1089 = vpop.f32.mrf.mxu0
      %v1090 = vpop.f32.mrf.mxu0
      %v1091 = vpop.f32.mrf.mxu0
      %1092 = vdwg.mxu0
      %1093 = vmatprep.subr.bf16.mxu0 0
      %1094 = vmatpush1.bf16.msra.mxu0 %v1004
      %1095 = vmatprep.subr.bf16.mxu0 0
      %1096 = vmatpush1.bf16.msra.mxu0 %v1003
      %1097 = vmatprep.subr.bf16.mxu0 0
      %1098 = vmatpush1.bf16.msra.mxu0 %v1002
      %1099 = vmatprep.subr.bf16.mxu0 0
      %1100 = vmatpush1.bf16.msra.mxu0 %v1001
      %1101 = vmatprep.subr.bf16.mxu0 0
      %1102 = vmatpush1.bf16.msra.mxu0 %v1000
      %1103 = vmatprep.subr.bf16.mxu0 0
      %1104 = vmatpush1.bf16.msra.mxu0 %v999
      %1105 = vmatprep.subr.bf16.mxu0 0
      %1106 = vmatpush1.bf16.msra.mxu0 %v998
      %1107 = vmatprep.subr.bf16.mxu0 0
      %1108 = vmatpush1.bf16.msra.mxu0 %v997
      %1109 = vmatprep.subr.bf16.mxu0 0
      %1110 = vmatpush2.bf16.msra.mxu0 %v1012
      %1111 = vmatprep.subr.bf16.mxu0 0
      %1112 = vmatpush2.bf16.msra.mxu0 %v1011
      %1113 = vmatprep.subr.bf16.mxu0 0
      %1114 = vmatpush2.bf16.msra.mxu0 %v1010
      %1115 = vmatprep.subr.bf16.mxu0 0
      %1116 = vmatpush2.bf16.msra.mxu0 %v1009
      %1117 = vmatprep.subr.bf16.mxu0 0
      %1118 = vmatpush2.bf16.msra.mxu0 %v1008
      %1119 = vmatprep.subr.bf16.mxu0 0
      %1120 = vmatpush2.bf16.msra.mxu0 %v1007
      %1121 = vmatprep.subr.bf16.mxu0 0
      %1122 = vmatpush2.bf16.msra.mxu0 %v1006
      %1123 = vmatprep.subr.bf16.mxu0 0
      %1124 = vmatpush2.bf16.msra.mxu0 %v1005
      %1125 = vmatprep.mubr.bf16.mxu0 %v786
      %1126 = vmatmul.mubr.bf16.gmra.mxu0 %v601
      %v1127 = vpop.f32.mrf.mxu0
      %v1128 = vadd.f32 %v1080, %v1127
      %v1129 = vpop.f32.mrf.mxu0
      %v1130 = vpop.f32.mrf.mxu0
      %v1131 = vadd.f32 %v1083, %v1130
      %v1132 = vpop.f32.mrf.mxu0
      %1133 = vmatprep.mubr.bf16.mxu0 %v785
      %1134 = vmatmul.mubr.bf16.gmra.mxu0 %v600
      %v1135 = vpop.f32.mrf.mxu0
      %v1136 = vadd.f32 %v1088, %v1135
      %v1137 = vpop.f32.mrf.mxu0
      %v1138 = vpop.f32.mrf.mxu0
      %v1139 = vpop.f32.mrf.mxu0
      %1140 = vdwg.mxu0
      %v1141 = vmax.f32 %v1128, 0.0
      %v1142 = vmax.f32 %v1131, 0.0
      %v1143 = vmax.f32 %v1136, 0.0
      %v1144 = vpack.c.bf16 %v387, %v386
      %v1145 = vpack.c.bf16 %v388, %v388
      %v1148 = vunpack.c.l.b16 %v1144
      %v1149 = vunpack.c.h.b16 %v1144
      %v1150 = vunpack.c.l.b16 %v1145
      %v1151 = vpack.c.b16 %v1148, %v1148
      %v1152 = vpack.c.b16 %v1149, %v1149
      %v1153 = vpack.c.b16 %v1150, %v1150
      %1157 = vst [vmem:[%s251] sm:$0xf] %v1151
      %1158 = vst [vmem:[%s251 + $0x4] sm:$0xf] %v1152
      %1159 = vst [vmem:[%s251 + $0x8] sm:$0x3] %v1153
      %v1160 = vpack.c.bf16 %v584, %v583
      %v1161 = vpack.c.bf16 %v585, %v585
      %v1164 = vunpack.c.l.b16 %v1160
      %v1165 = vunpack.c.h.b16 %v1160
      %v1166 = vunpack.c.l.b16 %v1161
      %v1167 = vpack.c.b16 %v1164, %v1164
      %v1168 = vpack.c.b16 %v1165, %v1165
      %v1169 = vpack.c.b16 %v1166, %v1166
      %s1173 = scalar_lea.vmem %s251, 12
      %1174 = vst [vmem:[%s1173] sm:$0xf] %v1167
      %1175 = vst [vmem:[%s1173 + $0x4] sm:$0xf] %v1168
      %1176 = vst [vmem:[%s1173 + $0x8] sm:$0x3] %v1169
      %v1177 = vpack.c.bf16 %v781, %v780
      %v1178 = vpack.c.bf16 %v782, %v782
      %v1181 = vunpack.c.l.b16 %v1177
      %v1182 = vunpack.c.h.b16 %v1177
      %v1183 = vunpack.c.l.b16 %v1178
      %v1184 = vpack.c.b16 %v1181, %v1181
      %v1185 = vpack.c.b16 %v1182, %v1182
      %v1186 = vpack.c.b16 %v1183, %v1183
      %s1190 = scalar_lea.vmem %s251, 24
      %1191 = vst [vmem:[%s1190] sm:$0xf] %v1184
      %1192 = vst [vmem:[%s1190 + $0x4] sm:$0xf] %v1185
      %1193 = vst [vmem:[%s1190 + $0x8] sm:$0x3] %v1186
      %v1194 = vpack.c.bf16 %v1142, %v1141
      %v1195 = vpack.c.bf16 %v1143, %v1143
      %v1198 = vunpack.c.l.b16 %v1194
      %v1199 = vunpack.c.h.b16 %v1194
      %v1200 = vunpack.c.l.b16 %v1195
      %v1201 = vpack.c.b16 %v1198, %v1198
      %v1202 = vpack.c.b16 %v1199, %v1199
      %v1203 = vpack.c.b16 %v1200, %v1200
      %s1207 = scalar_lea.vmem %s251, 36
      %1208 = vst [vmem:[%s1207] sm:$0xf] %v1201
      %1209 = vst [vmem:[%s1207 + $0x4] sm:$0xf] %v1202
      %1210 = vst [vmem:[%s1207 + $0x8] sm:$0x3] %v1203
      %p1211 = scmp.lt.s32.totalorder %s17, 1
      %s1212 = scalar_select %p1211, %s17, 1
      %s1213 = smul.addr %s1212, 12
      %s1214 = smul.addr %s1213, 4
      %s1215 = scalar_lea.vmem %s6, %s1214
      // Predicated region
      $region45: #{decoder_forward.7} parent=43 // pred_check
        %p1216 = pneg %p166
      $region46: #{decoder_forward.7} parent=43 // pred_check_branch
        %1218 = sbr.rel (%p1216) target = $region48
      $region47: #{decoder_forward.7} parent=43 // pred_region
        _
      $region48: #{decoder_forward.7} parent=43 // pred_fallthru
        _
    $region44: #{decoder_forward.7} parent=5 // pred_fallthru
      _
    %p1219 = scmp.le.s32.totalorder 2, %s12
    // Predicated region
    $region49: #{decoder_forward.7} parent=5 // pred_check
      %p1220 = pneg %p1219
    $region50: #{decoder_forward.7} parent=5 // pred_check_branch
      %1222 = sbr.rel (%p1220) target = $region52
    $region51: #{decoder_forward.7} parent=5 // pred_region
      %s1223 = ssub.s32 %s12, 2
      // Predicated region
      $region53: #{decoder_forward.7} parent=51 // pred_check
        %p1224 = pneg %p172
      $region54: #{decoder_forward.7} parent=51 // pred_check_branch
        %1226 = sbr.rel (%p1224) target = $region56
      $region55: #{decoder_forward.7} parent=51 // pred_region
        %p1227 = scmp.lt.s32.totalorder %s18, 1
        %s1228 = scalar_select %p1227, %s18, 1
        %s1229 = smul.addr %s1228, 12
        %s1230 = smul.addr %s1229, 4
        %s1231 = scalar_lea.vmem %s6, %s1230
      $region56: #{decoder_forward.7} parent=51 // pred_fallthru
        _
    $region52: #{decoder_forward.7} parent=5 // pred_fallthru
      _
  $region6: #{decoder_forward.7} parent=0 // loop_footer
    %s16 = sadd.s32 1, %s12
  $region7: #{decoder_forward.7} parent=0 // loop_footer_branch
    %11 = sbr.rel target = $region3
  $region8: #{decoder_forward.7} parent=0 // loop_exit
    _

// kernel: decoder_forward.8
$region0: #{decoder_forward.8}
  #allocation0 [shape = 'u32[]', space=smem, size = 0x4, offset = 0x4, fixed_abs, tag = 'smem constant byte address 0x4 - core index']
  #allocation1 [shape = 'u32[144,128]{1,0:T(1,128)}', space=vmem, size = 0x12000, scoped, tag = 'internal scratch']
  %s0 = inlined_call_operand.vmem [shape: bf16[2,102,128], index: 0, kind: input, shape index: {}]
  %s1 = inlined_call_operand.vmem [shape: bf16[1152,128], index: 1, kind: input, shape index: {}]
  %s2 = inlined_call_operand.vmem [shape: f32[1,128], index: 2, kind: input, shape index: {}]
  %s3 = inlined_call_operand.vmem [shape: bf16[2,80,128], index: 3, kind: output, shape index: {}]
  %s4 = sld [smem:[#allocation0]]
  $region45: #{decoder_forward.8} parent=0
    _
  %s6 = ssub.s32 1, %s4
  %s7 = scalar_select 0, %s6, %s4
  loop: start=0, step=1, limit=4
  $region2: #{decoder_forward.8} parent=0 // loop_pre_header
    _
  $region3: #{decoder_forward.8} parent=0 // loop_header
    %s9 = sphi 0, %s13
    %p10 = scmp.ge.s32.totalorder %s9, 4
    %s19 = sphi 0, %s21
    %s22 = sphi 0, %s19
    %s23 = sphi 0, %s22
    %s39 = sphi 0, %s23
    %s43 = sphi 0, %s43
    %s45 = sphi 0, %s43
    %s46 = sphi 0, %s45
    %s60 = sphi 0, %s46
    %s64 = sphi 0, %s64
    %s66 = sphi 0, %s64
    %s67 = sphi 0, %s66
    %s81 = sphi 0, %s67
    %s87 = sphi 0, %s89
    %s90 = sphi 0, %s87
    %s91 = sphi 0, %s90
    %s107 = sphi 0, %s91
  $region4: #{decoder_forward.8} parent=0 // loop_header_branch
    %12 = sbr.rel (%p10) target = $region8
  $region5: #{decoder_forward.8} parent=0 // loop_body
    %s14 = ssub.s32 %s9, 1
    %s15 = ssub.s32 %s9, 2
    %s16 = sadd.s32 %s9, 1
    %s17 = ssub.s32 %s9, %s16
    %p18 = scmp.eq.s32.totalorder %s17, 0
    %s20 = sadd.s32 %s19, 1
    %s21 = scalar_select %p18, %s19, %s20
    %p24 = pneg %p18
    %p25 = scmp.eq.s32.totalorder %s9, 1
    %p26 = por %p24, %p25
    %p27 = scmp.ne.s32.totalorder %s19, %s22
    %p28 = scmp.eq.s32.totalorder %s9, 0
    %p29 = por %p27, %p28
    %p30 = scmp.ne.s32.totalorder %s19, %s22
    %p31 = scmp.eq.s32.totalorder %s14, 1
    %p32 = por %p30, %p31
    %p33 = scmp.ne.s32.totalorder %s22, %s23
    %p34 = scmp.eq.s32.totalorder %s14, 0
    %p35 = por %p33, %p34
    %p36 = scmp.ne.s32.totalorder %s22, %s23
    %p37 = scmp.eq.s32.totalorder %s15, 1
    %p38 = por %p36, %p37
    %p40 = scmp.ne.s32.totalorder %s23, %s39
    %p41 = scmp.eq.s32.totalorder %s15, 0
    %p42 = por %p40, %p41
    %s44 = sadd.s32 %s43, 1
    %p47 = scmp.eq.s32.totalorder %s9, 1
    %p48 = scmp.ne.s32.totalorder %s43, %s45
    %p49 = scmp.eq.s32.totalorder %s9, 0
    %p50 = por %p48, %p49
    %p51 = scmp.ne.s32.totalorder %s43, %s45
    %p52 = scmp.eq.s32.totalorder %s14, 1
    %p53 = por %p51, %p52
    %p54 = scmp.ne.s32.totalorder %s45, %s46
    %p55 = scmp.eq.s32.totalorder %s14, 0
    %p56 = por %p54, %p55
    %p57 = scmp.ne.s32.totalorder %s45, %s46
    %p58 = scmp.eq.s32.totalorder %s15, 1
    %p59 = por %p57, %p58
    %p61 = scmp.ne.s32.totalorder %s46, %s60
    %p62 = scmp.eq.s32.totalorder %s15, 0
    %p63 = por %p61, %p62
    %s65 = sadd.s32 %s64, 1
    %p68 = scmp.eq.s32.totalorder %s9, 1
    %p69 = scmp.ne.s32.totalorder %s64, %s66
    %p70 = scmp.eq.s32.totalorder %s9, 0
    %p71 = por %p69, %p70
    %p72 = scmp.ne.s32.totalorder %s64, %s66
    %p73 = scmp.eq.s32.totalorder %s14, 1
    %p74 = por %p72, %p73
    %p75 = scmp.ne.s32.totalorder %s66, %s67
    %p76 = scmp.eq.s32.totalorder %s14, 0
    %p77 = por %p75, %p76
    %p78 = scmp.ne.s32.totalorder %s66, %s67
    %p79 = scmp.eq.s32.totalorder %s15, 1
    %p80 = por %p78, %p79
    %p82 = scmp.ne.s32.totalorder %s67, %s81
    %p83 = scmp.eq.s32.totalorder %s15, 0
    %p84 = por %p82, %p83
    %s85 = ssub.s32 %s9, %s16
    %p86 = scmp.eq.s32.totalorder %s85, 0
    %s88 = sadd.s32 %s87, 1
    %s89 = scalar_select %p86, %s87, %s88
    %p92 = pneg %p86
    %p93 = scmp.eq.s32.totalorder %s9, 1
    %p94 = por %p92, %p93
    %p95 = scmp.ne.s32.totalorder %s87, %s90
    %p96 = scmp.eq.s32.totalorder %s9, 0
    %p97 = por %p95, %p96
    %p98 = scmp.ne.s32.totalorder %s87, %s90
    %p99 = scmp.eq.s32.totalorder %s14, 1
    %p100 = por %p98, %p99
    %p101 = scmp.ne.s32.totalorder %s90, %s91
    %p102 = scmp.eq.s32.totalorder %s14, 0
    %p103 = por %p101, %p102
    %p104 = scmp.ne.s32.totalorder %s90, %s91
    %p105 = scmp.eq.s32.totalorder %s15, 1
    %p106 = por %p104, %p105
    %p108 = scmp.ne.s32.totalorder %s91, %s107
    %p109 = scmp.eq.s32.totalorder %s15, 0
    %p110 = por %p108, %p109
    %p111 = scmp.le.s32.totalorder 1, %s9
    %p112 = scmp.lt.s32.totalorder %s9, 3
    %p113 = pnand %p111, %p112
    %p114 = pneg %p113
    // Predicated region
    $region9: #{decoder_forward.8} parent=5 // pred_check
      _
    $region10: #{decoder_forward.8} parent=5 // pred_check_branch
      %116 = sbr.rel (%p113) target = $region12
    $region11: #{decoder_forward.8} parent=5 // pred_region
      %s117 = ssub.s32 %s9, 1
      // Predicated region
      $region13: #{decoder_forward.8} parent=11 // pred_check
        %p118 = pneg %p56
      $region14: #{decoder_forward.8} parent=11 // pred_check_branch
        %120 = sbr.rel (%p118) target = $region16
      $region15: #{decoder_forward.8} parent=11 // pred_region
        _
      $region16: #{decoder_forward.8} parent=11 // pred_fallthru
        _
      // Predicated region
      $region17: #{decoder_forward.8} parent=11 // pred_check
        %p121 = pneg %p77
      $region18: #{decoder_forward.8} parent=11 // pred_check_branch
        %123 = sbr.rel (%p121) target = $region20
      $region19: #{decoder_forward.8} parent=11 // pred_region
        _
      $region20: #{decoder_forward.8} parent=11 // pred_fallthru
        _
    $region12: #{decoder_forward.8} parent=5 // pred_fallthru
      _
    %p124 = scmp.lt.s32.totalorder %s9, 2
    // Predicated region
    $region21: #{decoder_forward.8} parent=5 // pred_check
      %p125 = pneg %p124
    $region22: #{decoder_forward.8} parent=5 // pred_check_branch
      %127 = sbr.rel (%p125) target = $region24
    $region23: #{decoder_forward.8} parent=5 // pred_region
      // Predicated region
      $region25: #{decoder_forward.8} parent=23 // pred_check
        %p128 = pneg %p29
      $region26: #{decoder_forward.8} parent=23 // pred_check_branch
        %130 = sbr.rel (%p128) target = $region28
      $region27: #{decoder_forward.8} parent=23 // pred_region
        %p131 = scmp.lt.s32.totalorder %s9, 1
        %s132 = scalar_select %p131, %s9, 1
        %s133 = smul.addr %s132, 13
        %s134 = smul.addr %s133, 4
        %s135 = scalar_lea.vmem %s0, %s134
      $region28: #{decoder_forward.8} parent=23 // pred_fallthru
        _
    $region24: #{decoder_forward.8} parent=5 // pred_fallthru
      _
    %p136 = scmp.le.s32.totalorder 1, %s9
    %p137 = scmp.lt.s32.totalorder %s9, 3
    %p138 = pnand %p136, %p137
    %p139 = pneg %p138
    // Predicated region
    $region29: #{decoder_forward.8} parent=5 // pred_check
      _
    $region30: #{decoder_forward.8} parent=5 // pred_check_branch
      %141 = sbr.rel (%p138) target = $region32
    $region31: #{decoder_forward.8} parent=5 // pred_region
      %s142 = ssub.s32 %s9, 1
      %p143 = scmp.lt.s32.totalorder %s14, 1
      %s144 = scalar_select %p143, %s14, 1
      %s145 = smul.addr %s144, 13
      %s146 = smul.addr %s145, 4
      %s147 = scalar_lea.vmem %s0, %s146
      %p148 = pneg %p35
      %p149 = pneg %p32
      %p150 = pneg %p56
      %p151 = pneg %p53
      %p152 = pneg %p77
      %p153 = pneg %p74
      %p154 = pneg %p103
      %p155 = pneg %p100
      %p156 = scmp.lt.s32.totalorder %s14, 1
      %s157 = scalar_select %p156, %s14, 1
      %s158 = smul.addr %s157, 10
      %s159 = smul.addr %s158, 4
      %s160 = scalar_lea.vmem %s3, %s159
      %p161 = scmp.lt.s32.totalorder %s14, 1
      %s162 = scalar_select %p161, %s14, 1
      %s163 = smul.addr %s162, 13
      %s164 = smul.addr %s163, 4
      %s165 = scalar_lea.vmem %s0, %s164
      %p166 = scmp.lt.s32.totalorder %s14, 1
      %s167 = scalar_select %p166, %s14, 1
      %s168 = smul.addr %s167, 10
      %s169 = smul.addr %s168, 4
      %s170 = scalar_lea.vmem %s3, %s169
      %v172 = vld [vmem:[%s165] sm:$0xf]
      %v173 = vld [vmem:[%s165 + $0x4] sm:$0xf]
      %v174 = vld [vmem:[%s165 + $0x8] sm:$0xf]
      %v175 = vld [vmem:[%s165 + $0xc] sm:$0xf]
      %v176 = vld [vmem:[%s165 + $0x10] sm:$0xf]
      %v177 = vld [vmem:[%s165 + $0x14] sm:$0xf]
      %v178 = vld [vmem:[%s165 + $0x18] sm:$0xf]
      %v179 = vld [vmem:[%s165 + $0x1c] sm:$0xf]
      %v180 = vld [vmem:[%s165 + $0x20] sm:$0xf]
      %v181 = vld [vmem:[%s165 + $0x24] sm:$0xf]
      %v182 = vld [vmem:[%s165 + $0x28] sm:$0xf]
      %v183 = vld [vmem:[%s165 + $0x2c] sm:$0xf]
      %v184 = vld [vmem:[%s165 + $0x30] sm:$0x7]
      %v195 = vunpack.c.l.b16 %v172
      %v196 = vunpack.c.l.b16 %v173
      %v197 = vunpack.c.l.b16 %v174
      %v198 = vunpack.c.l.b16 %v175
      %v199 = vunpack.c.l.b16 %v176
      %v200 = vunpack.c.l.b16 %v177
      %v201 = vunpack.c.l.b16 %v178
      %v202 = vunpack.c.l.b16 %v179
      %v203 = vunpack.c.l.b16 %v180
      %v204 = vunpack.c.l.b16 %v181
      %v205 = vpack.c.b16 %v196, %v195
      %v206 = vpack.c.b16 %v198, %v197
      %v207 = vpack.c.b16 %v200, %v199
      %v208 = vpack.c.b16 %v202, %v201
      %v209 = vpack.c.b16 %v204, %v203
      %v216 = vunpack.c.l.b16 %v182
      %v217 = vpack.c.b16 %v216, %v216
      %vm218 = vsmask.f32 7424
      %v220 = vshrl.u32 %v205, 16
      %v222 = vshll.u32 %v205, 16
      %v224 = vrot.slane %v222, 1
      %v225 = vor.u32 %v220, %v224
      %v227 = vshll.u32 %v206, 16
      %v229 = vrot.slane %v227, 1
      %v230 = vsel %vm218, %v225, %v229
      %v231 = vshrl.u32 %v206, 16
      %v233 = vor.u32 %v231, %v229
      %v235 = vshll.u32 %v207, 16
      %v237 = vrot.slane %v235, 1
      %v238 = vsel %vm218, %v233, %v237
      %v239 = vshrl.u32 %v207, 16
      %v241 = vor.u32 %v239, %v237
      %v243 = vshll.u32 %v208, 16
      %v245 = vrot.slane %v243, 1
      %v246 = vsel %vm218, %v241, %v245
      %v247 = vshrl.u32 %v208, 16
      %v249 = vor.u32 %v247, %v245
      %v251 = vshll.u32 %v209, 16
      %v253 = vrot.slane %v251, 1
      %v254 = vsel %vm218, %v249, %v253
      %v255 = vshrl.u32 %v209, 16
      %v257 = vor.u32 %v255, %v253
      %v259 = vshll.u32 %v217, 16
      %v261 = vrot.slane %v259, 1
      %v262 = vsel %vm218, %v257, %v261
      %vm268 = vcmask 1046528
      %v269 = vrot.slane %v205, 1
      %v270 = vrot.slane %v206, 1
      %v271 = vsel %vm268, %v269, %v270
      %v272 = vrot.slane %v207, 1
      %v273 = vsel %vm268, %v270, %v272
      %v274 = vrot.slane %v208, 1
      %v275 = vsel %vm268, %v272, %v274
      %v276 = vrot.slane %v209, 1
      %v277 = vsel %vm268, %v274, %v276
      %v278 = vrot.slane %v217, 1
      %v279 = vsel %vm268, %v276, %v278
      %v286 = vunpack.c.l.b16 %v183
      %v287 = vpack.c.b16 %v197, %v196
      %v288 = vpack.c.b16 %v199, %v198
      %v289 = vpack.c.b16 %v201, %v200
      %v290 = vpack.c.b16 %v203, %v202
      %v291 = vpack.c.b16 %v216, %v204
      %v292 = vpack.c.b16 %v286, %v286
      %v293 = vrot.slane %v287, 1
      %v294 = vrot.slane %v288, 1
      %v295 = vsel %vm268, %v293, %v294
      %v296 = vrot.slane %v289, 1
      %v297 = vsel %vm268, %v294, %v296
      %v298 = vrot.slane %v290, 1
      %v299 = vsel %vm268, %v296, %v298
      %v300 = vrot.slane %v291, 1
      %v301 = vsel %vm268, %v298, %v300
      %v302 = vrot.slane %v292, 1
      %v303 = vsel %vm268, %v300, %v302
      %vm309 = vsmask.f32 6400
      %v311 = vshrl.u32 %v287, 16
      %v313 = vrot.slane %v311, 1
      %v314 = vshll.u32 %v287, 16
      %v316 = vrot.slane %v314, 2
      %v317 = vor.u32 %v313, %v316
      %v319 = vshrl.u32 %v288, 16
      %v321 = vrot.slane %v319, 1
      %v322 = vshll.u32 %v288, 16
      %v324 = vrot.slane %v322, 2
      %v325 = vor.u32 %v321, %v324
      %v326 = vsel %vm309, %v317, %v325
      %v328 = vshrl.u32 %v289, 16
      %v330 = vrot.slane %v328, 1
      %v331 = vshll.u32 %v289, 16
      %v333 = vrot.slane %v331, 2
      %v334 = vor.u32 %v330, %v333
      %v335 = vsel %vm309, %v325, %v334
      %v337 = vshrl.u32 %v290, 16
      %v339 = vrot.slane %v337, 1
      %v340 = vshll.u32 %v290, 16
      %v342 = vrot.slane %v340, 2
      %v343 = vor.u32 %v339, %v342
      %v344 = vsel %vm309, %v334, %v343
      %v346 = vshrl.u32 %v291, 16
      %v348 = vrot.slane %v346, 1
      %v349 = vshll.u32 %v291, 16
      %v351 = vrot.slane %v349, 2
      %v352 = vor.u32 %v348, %v351
      %v353 = vsel %vm309, %v343, %v352
      %v355 = vshrl.u32 %v292, 16
      %v357 = vrot.slane %v355, 1
      %v358 = vshll.u32 %v292, 16
      %v360 = vrot.slane %v358, 2
      %v361 = vor.u32 %v357, %v360
      %v362 = vsel %vm309, %v352, %v361
      %vm368 = vcmask 1045504
      %v369 = vrot.slane %v287, 2
      %v370 = vrot.slane %v288, 2
      %v371 = vsel %vm368, %v369, %v370
      %v372 = vrot.slane %v289, 2
      %v373 = vsel %vm368, %v370, %v372
      %v374 = vrot.slane %v290, 2
      %v375 = vsel %vm368, %v372, %v374
      %v376 = vrot.slane %v291, 2
      %v377 = vsel %vm368, %v374, %v376
      %v378 = vrot.slane %v292, 2
      %v379 = vsel %vm368, %v376, %v378
      %v386 = vunpack.c.l.b16 %v184
      %v387 = vpack.c.b16 %v286, %v216
      %v388 = vpack.c.b16 %v386, %v386
      %v389 = vrot.slane %v206, 2
      %v390 = vrot.slane %v207, 2
      %v391 = vsel %vm368, %v389, %v390
      %v392 = vrot.slane %v208, 2
      %v393 = vsel %vm368, %v390, %v392
      %v394 = vrot.slane %v209, 2
      %v395 = vsel %vm368, %v392, %v394
      %v396 = vrot.slane %v387, 2
      %v397 = vsel %vm368, %v394, %v396
      %v398 = vrot.slane %v388, 2
      %v399 = vsel %vm368, %v396, %v398
      %vm405 = vsmask.f32 5376
      %v406 = vrot.slane %v231, 2
      %v407 = vrot.slane %v227, 3
      %v408 = vor.u32 %v406, %v407
      %v409 = vrot.slane %v239, 2
      %v410 = vrot.slane %v235, 3
      %v411 = vor.u32 %v409, %v410
      %v412 = vsel %vm405, %v408, %v411
      %v413 = vrot.slane %v247, 2
      %v414 = vrot.slane %v243, 3
      %v415 = vor.u32 %v413, %v414
      %v416 = vsel %vm405, %v411, %v415
      %v417 = vrot.slane %v255, 2
      %v418 = vrot.slane %v251, 3
      %v419 = vor.u32 %v417, %v418
      %v420 = vsel %vm405, %v415, %v419
      %v422 = vshrl.u32 %v387, 16
      %v424 = vrot.slane %v422, 2
      %v425 = vshll.u32 %v387, 16
      %v427 = vrot.slane %v425, 3
      %v428 = vor.u32 %v424, %v427
      %v429 = vsel %vm405, %v419, %v428
      %v431 = vshrl.u32 %v388, 16
      %v433 = vrot.slane %v431, 2
      %v434 = vshll.u32 %v388, 16
      %v436 = vrot.slane %v434, 3
      %v437 = vor.u32 %v433, %v436
      %v438 = vsel %vm405, %v428, %v437
      %vm444 = vcmask 1044480
      %v445 = vrot.slane %v206, 3
      %v446 = vrot.slane %v207, 3
      %v447 = vsel %vm444, %v445, %v446
      %v448 = vrot.slane %v208, 3
      %v449 = vsel %vm444, %v446, %v448
      %v450 = vrot.slane %v209, 3
      %v451 = vsel %vm444, %v448, %v450
      %v452 = vrot.slane %v387, 3
      %v453 = vsel %vm444, %v450, %v452
      %v454 = vrot.slane %v388, 3
      %v455 = vsel %vm444, %v452, %v454
      %v461 = vld [vmem:[%s1] sm:$0xf]
      %v462 = vld [vmem:[%s1 + $0x4] sm:$0xf]
      %v463 = vld [vmem:[%s1 + $0x8] sm:$0xf]
      %v464 = vld [vmem:[%s1 + $0xc] sm:$0xf]
      %v465 = vld [vmem:[%s1 + $0x10] sm:$0xf]
      %v466 = vld [vmem:[%s1 + $0x14] sm:$0xf]
      %v467 = vld [vmem:[%s1 + $0x18] sm:$0xf]
      %v468 = vld [vmem:[%s1 + $0x1c] sm:$0xf]
      %v469 = vld [vmem:[%s1 + $0x20] sm:$0xf]
      %v470 = vld [vmem:[%s1 + $0x24] sm:$0xf]
      %v471 = vld [vmem:[%s1 + $0x28] sm:$0xf]
      %v472 = vld [vmem:[%s1 + $0x2c] sm:$0xf]
      %v473 = vld [vmem:[%s1 + $0x30] sm:$0xf]
      %v474 = vld [vmem:[%s1 + $0x34] sm:$0xf]
      %v475 = vld [vmem:[%s1 + $0x38] sm:$0xf]
      %v476 = vld [vmem:[%s1 + $0x3c] sm:$0xf]
      %v477 = vld [vmem:[%s1 + $0x40] sm:$0xf]
      %v478 = vld [vmem:[%s1 + $0x44] sm:$0xf]
      %v479 = vld [vmem:[%s1 + $0x48] sm:$0xf]
      %v480 = vld [vmem:[%s1 + $0x4c] sm:$0xf]
      %v481 = vld [vmem:[%s1 + $0x50] sm:$0xf]
      %v482 = vld [vmem:[%s1 + $0x54] sm:$0xf]
      %v483 = vld [vmem:[%s1 + $0x58] sm:$0xf]
      %v484 = vld [vmem:[%s1 + $0x5c] sm:$0xf]
      %v485 = vld [vmem:[%s1 + $0x60] sm:$0xf]
      %v486 = vld [vmem:[%s1 + $0x64] sm:$0xf]
      %v487 = vld [vmem:[%s1 + $0x68] sm:$0xf]
      %v488 = vld [vmem:[%s1 + $0x6c] sm:$0xf]
      %v489 = vld [vmem:[%s1 + $0x70] sm:$0xf]
      %v490 = vld [vmem:[%s1 + $0x74] sm:$0xf]
      %v491 = vld [vmem:[%s1 + $0x78] sm:$0xf]
      %v492 = vld [vmem:[%s1 + $0x7c] sm:$0xf]
      %v493 = vld [vmem:[%s1 + $0x80] sm:$0xf]
      %v494 = vld [vmem:[%s1 + $0x84] sm:$0xf]
      %v495 = vld [vmem:[%s1 + $0x88] sm:$0xf]
      %v496 = vld [vmem:[%s1 + $0x8c] sm:$0xf]
      %v497 = vld [vmem:[%s1 + $0x90] sm:$0xf]
      %v498 = vld [vmem:[%s1 + $0x94] sm:$0xf]
      %v499 = vld [vmem:[%s1 + $0x98] sm:$0xf]
      %v500 = vld [vmem:[%s1 + $0x9c] sm:$0xf]
      %v501 = vld [vmem:[%s1 + $0xa0] sm:$0xf]
      %v502 = vld [vmem:[%s1 + $0xa4] sm:$0xf]
      %v503 = vld [vmem:[%s1 + $0xa8] sm:$0xf]
      %v504 = vld [vmem:[%s1 + $0xac] sm:$0xf]
      %v505 = vld [vmem:[%s1 + $0xb0] sm:$0xf]
      %v506 = vld [vmem:[%s1 + $0xb4] sm:$0xf]
      %v507 = vld [vmem:[%s1 + $0xb8] sm:$0xf]
      %v508 = vld [vmem:[%s1 + $0xbc] sm:$0xf]
      %v509 = vld [vmem:[%s1 + $0xc0] sm:$0xf]
      %v510 = vld [vmem:[%s1 + $0xc4] sm:$0xf]
      %v511 = vld [vmem:[%s1 + $0xc8] sm:$0xf]
      %v512 = vld [vmem:[%s1 + $0xcc] sm:$0xf]
      %v513 = vld [vmem:[%s1 + $0xd0] sm:$0xf]
      %v514 = vld [vmem:[%s1 + $0xd4] sm:$0xf]
      %v515 = vld [vmem:[%s1 + $0xd8] sm:$0xf]
      %v516 = vld [vmem:[%s1 + $0xdc] sm:$0xf]
      %v517 = vld [vmem:[%s1 + $0xe0] sm:$0xf]
      %v518 = vld [vmem:[%s1 + $0xe4] sm:$0xf]
      %v519 = vld [vmem:[%s1 + $0xe8] sm:$0xf]
      %v520 = vld [vmem:[%s1 + $0xec] sm:$0xf]
      %v521 = vld [vmem:[%s1 + $0xf0] sm:$0xf]
      %v522 = vld [vmem:[%s1 + $0xf4] sm:$0xf]
      %v523 = vld [vmem:[%s1 + $0xf8] sm:$0xf]
      %v524 = vld [vmem:[%s1 + $0xfc] sm:$0xf]
      %v525 = vld [vmem:[%s1 + $0x100] sm:$0xf]
      %v526 = vld [vmem:[%s1 + $0x104] sm:$0xf]
      %v527 = vld [vmem:[%s1 + $0x108] sm:$0xf]
      %v528 = vld [vmem:[%s1 + $0x10c] sm:$0xf]
      %v529 = vld [vmem:[%s1 + $0x110] sm:$0xf]
      %v530 = vld [vmem:[%s1 + $0x114] sm:$0xf]
      %v531 = vld [vmem:[%s1 + $0x118] sm:$0xf]
      %v532 = vld [vmem:[%s1 + $0x11c] sm:$0xf]
      %v533 = vld [vmem:[%s1 + $0x120] sm:$0xf]
      %v534 = vld [vmem:[%s1 + $0x124] sm:$0xf]
      %v535 = vld [vmem:[%s1 + $0x128] sm:$0xf]
      %v536 = vld [vmem:[%s1 + $0x12c] sm:$0xf]
      %v537 = vld [vmem:[%s1 + $0x130] sm:$0xf]
      %v538 = vld [vmem:[%s1 + $0x134] sm:$0xf]
      %v539 = vld [vmem:[%s1 + $0x138] sm:$0xf]
      %v540 = vld [vmem:[%s1 + $0x13c] sm:$0xf]
      %v541 = vld [vmem:[%s1 + $0x140] sm:$0xf]
      %v542 = vld [vmem:[%s1 + $0x144] sm:$0xf]
      %v543 = vld [vmem:[%s1 + $0x148] sm:$0xf]
      %v544 = vld [vmem:[%s1 + $0x14c] sm:$0xf]
      %v545 = vld [vmem:[%s1 + $0x150] sm:$0xf]
      %v546 = vld [vmem:[%s1 + $0x154] sm:$0xf]
      %v547 = vld [vmem:[%s1 + $0x158] sm:$0xf]
      %v548 = vld [vmem:[%s1 + $0x15c] sm:$0xf]
      %v549 = vld [vmem:[%s1 + $0x160] sm:$0xf]
      %v550 = vld [vmem:[%s1 + $0x164] sm:$0xf]
      %v551 = vld [vmem:[%s1 + $0x168] sm:$0xf]
      %v552 = vld [vmem:[%s1 + $0x16c] sm:$0xf]
      %v553 = vld [vmem:[%s1 + $0x170] sm:$0xf]
      %v554 = vld [vmem:[%s1 + $0x174] sm:$0xf]
      %v555 = vld [vmem:[%s1 + $0x178] sm:$0xf]
      %v556 = vld [vmem:[%s1 + $0x17c] sm:$0xf]
      %v557 = vld [vmem:[%s1 + $0x180] sm:$0xf]
      %v558 = vld [vmem:[%s1 + $0x184] sm:$0xf]
      %v559 = vld [vmem:[%s1 + $0x188] sm:$0xf]
      %v560 = vld [vmem:[%s1 + $0x18c] sm:$0xf]
      %v561 = vld [vmem:[%s1 + $0x190] sm:$0xf]
      %v562 = vld [vmem:[%s1 + $0x194] sm:$0xf]
      %v563 = vld [vmem:[%s1 + $0x198] sm:$0xf]
      %v564 = vld [vmem:[%s1 + $0x19c] sm:$0xf]
      %v565 = vld [vmem:[%s1 + $0x1a0] sm:$0xf]
      %v566 = vld [vmem:[%s1 + $0x1a4] sm:$0xf]
      %v567 = vld [vmem:[%s1 + $0x1a8] sm:$0xf]
      %v568 = vld [vmem:[%s1 + $0x1ac] sm:$0xf]
      %v569 = vld [vmem:[%s1 + $0x1b0] sm:$0xf]
      %v570 = vld [vmem:[%s1 + $0x1b4] sm:$0xf]
      %v571 = vld [vmem:[%s1 + $0x1b8] sm:$0xf]
      %v572 = vld [vmem:[%s1 + $0x1bc] sm:$0xf]
      %v573 = vld [vmem:[%s1 + $0x1c0] sm:$0xf]
      %v574 = vld [vmem:[%s1 + $0x1c4] sm:$0xf]
      %v575 = vld [vmem:[%s1 + $0x1c8] sm:$0xf]
      %v576 = vld [vmem:[%s1 + $0x1cc] sm:$0xf]
      %v577 = vld [vmem:[%s1 + $0x1d0] sm:$0xf]
      %v578 = vld [vmem:[%s1 + $0x1d4] sm:$0xf]
      %v579 = vld [vmem:[%s1 + $0x1d8] sm:$0xf]
      %v580 = vld [vmem:[%s1 + $0x1dc] sm:$0xf]
      %v581 = vld [vmem:[%s1 + $0x1e0] sm:$0xf]
      %v582 = vld [vmem:[%s1 + $0x1e4] sm:$0xf]
      %v583 = vld [vmem:[%s1 + $0x1e8] sm:$0xf]
      %v584 = vld [vmem:[%s1 + $0x1ec] sm:$0xf]
      %v585 = vld [vmem:[%s1 + $0x1f0] sm:$0xf]
      %v586 = vld [vmem:[%s1 + $0x1f4] sm:$0xf]
      %v587 = vld [vmem:[%s1 + $0x1f8] sm:$0xf]
      %v588 = vld [vmem:[%s1 + $0x1fc] sm:$0xf]
      %v589 = vld [vmem:[%s1 + $0x200] sm:$0xf]
      %v590 = vld [vmem:[%s1 + $0x204] sm:$0xf]
      %v591 = vld [vmem:[%s1 + $0x208] sm:$0xf]
      %v592 = vld [vmem:[%s1 + $0x20c] sm:$0xf]
      %v593 = vld [vmem:[%s1 + $0x210] sm:$0xf]
      %v594 = vld [vmem:[%s1 + $0x214] sm:$0xf]
      %v595 = vld [vmem:[%s1 + $0x218] sm:$0xf]
      %v596 = vld [vmem:[%s1 + $0x21c] sm:$0xf]
      %v597 = vld [vmem:[%s1 + $0x220] sm:$0xf]
      %v598 = vld [vmem:[%s1 + $0x224] sm:$0xf]
      %v599 = vld [vmem:[%s1 + $0x228] sm:$0xf]
      %v600 = vld [vmem:[%s1 + $0x22c] sm:$0xf]
      %v601 = vld [vmem:[%s1 + $0x230] sm:$0xf]
      %v602 = vld [vmem:[%s1 + $0x234] sm:$0xf]
      %v603 = vld [vmem:[%s1 + $0x238] sm:$0xf]
      %v604 = vld [vmem:[%s1 + $0x23c] sm:$0xf]
      %v605 = vld [vmem:[%s2] sm:$0x1]
      %v607 = vlaneseq
      %v608 = vshrl.u32 %v607, 7
      %v609 = vsub.s32 0, %v608
      %v610 = vrot.slane %v605, %v609
      %v756 = vunpack.c.l.b16 %v461
      %v757 = vunpack.c.l.b16 %v462
      %v758 = vunpack.c.l.b16 %v463
      %v759 = vunpack.c.l.b16 %v464
      %v760 = vunpack.c.l.b16 %v465
      %v761 = vunpack.c.l.b16 %v466
      %v762 = vunpack.c.l.b16 %v467
      %v763 = vunpack.c.l.b16 %v468
      %v764 = vunpack.c.l.b16 %v469
      %v765 = vunpack.c.l.b16 %v470
      %v766 = vunpack.c.l.b16 %v471
      %v767 = vunpack.c.l.b16 %v472
      %v768 = vunpack.c.l.b16 %v473
      %v769 = vunpack.c.l.b16 %v474
      %v770 = vunpack.c.l.b16 %v475
      %v771 = vunpack.c.l.b16 %v476
      %v772 = vunpack.c.l.b16 %v477
      %v773 = vunpack.c.l.b16 %v478
      %v774 = vunpack.c.l.b16 %v479
      %v775 = vunpack.c.l.b16 %v480
      %v776 = vunpack.c.l.b16 %v481
      %v777 = vunpack.c.l.b16 %v482
      %v778 = vunpack.c.l.b16 %v483
      %v779 = vunpack.c.l.b16 %v484
      %v780 = vunpack.c.l.b16 %v485
      %v781 = vunpack.c.l.b16 %v486
      %v782 = vunpack.c.l.b16 %v487
      %v783 = vunpack.c.l.b16 %v488
      %v784 = vunpack.c.l.b16 %v489
      %v785 = vunpack.c.l.b16 %v490
      %v786 = vunpack.c.l.b16 %v491
      %v787 = vunpack.c.l.b16 %v492
      %v788 = vunpack.c.l.b16 %v493
      %v789 = vunpack.c.l.b16 %v494
      %v790 = vunpack.c.l.b16 %v495
      %v791 = vunpack.c.l.b16 %v496
      %v792 = vunpack.c.l.b16 %v497
      %v793 = vunpack.c.l.b16 %v498
      %v794 = vunpack.c.l.b16 %v499
      %v795 = vunpack.c.l.b16 %v500
      %v796 = vunpack.c.l.b16 %v501
      %v797 = vunpack.c.l.b16 %v502
      %v798 = vunpack.c.l.b16 %v503
      %v799 = vunpack.c.l.b16 %v504
      %v800 = vunpack.c.l.b16 %v505
      %v801 = vunpack.c.l.b16 %v506
      %v802 = vunpack.c.l.b16 %v507
      %v803 = vunpack.c.l.b16 %v508
      %v804 = vunpack.c.l.b16 %v509
      %v805 = vunpack.c.l.b16 %v510
      %v806 = vunpack.c.l.b16 %v511
      %v807 = vunpack.c.l.b16 %v512
      %v808 = vunpack.c.l.b16 %v513
      %v809 = vunpack.c.l.b16 %v514
      %v810 = vunpack.c.l.b16 %v515
      %v811 = vunpack.c.l.b16 %v516
      %v812 = vunpack.c.l.b16 %v517
      %v813 = vunpack.c.l.b16 %v518
      %v814 = vunpack.c.l.b16 %v519
      %v815 = vunpack.c.l.b16 %v520
      %v816 = vunpack.c.l.b16 %v521
      %v817 = vunpack.c.l.b16 %v522
      %v818 = vunpack.c.l.b16 %v523
      %v819 = vunpack.c.l.b16 %v524
      %v820 = vunpack.c.l.b16 %v525
      %v821 = vunpack.c.l.b16 %v526
      %v822 = vunpack.c.l.b16 %v527
      %v823 = vunpack.c.l.b16 %v528
      %v824 = vunpack.c.l.b16 %v529
      %v825 = vunpack.c.l.b16 %v530
      %v826 = vunpack.c.l.b16 %v531
      %v827 = vunpack.c.l.b16 %v532
      %v828 = vunpack.c.l.b16 %v533
      %v829 = vunpack.c.l.b16 %v534
      %v830 = vunpack.c.l.b16 %v535
      %v831 = vunpack.c.l.b16 %v536
      %v832 = vunpack.c.l.b16 %v537
      %v833 = vunpack.c.l.b16 %v538
      %v834 = vunpack.c.l.b16 %v539
      %v835 = vunpack.c.l.b16 %v540
      %v836 = vunpack.c.l.b16 %v541
      %v837 = vunpack.c.l.b16 %v542
      %v838 = vunpack.c.l.b16 %v543
      %v839 = vunpack.c.l.b16 %v544
      %v840 = vunpack.c.l.b16 %v545
      %v841 = vunpack.c.l.b16 %v546
      %v842 = vunpack.c.l.b16 %v547
      %v843 = vunpack.c.l.b16 %v548
      %v844 = vunpack.c.l.b16 %v549
      %v845 = vunpack.c.l.b16 %v550
      %v846 = vunpack.c.l.b16 %v551
      %v847 = vunpack.c.l.b16 %v552
      %v848 = vunpack.c.l.b16 %v553
      %v849 = vunpack.c.l.b16 %v554
      %v850 = vunpack.c.l.b16 %v555
      %v851 = vunpack.c.l.b16 %v556
      %v852 = vunpack.c.l.b16 %v557
      %v853 = vunpack.c.l.b16 %v558
      %v854 = vunpack.c.l.b16 %v559
      %v855 = vunpack.c.l.b16 %v560
      %v856 = vunpack.c.l.b16 %v561
      %v857 = vunpack.c.l.b16 %v562
      %v858 = vunpack.c.l.b16 %v563
      %v859 = vunpack.c.l.b16 %v564
      %v860 = vunpack.c.l.b16 %v565
      %v861 = vunpack.c.l.b16 %v566
      %v862 = vunpack.c.l.b16 %v567
      %v863 = vunpack.c.l.b16 %v568
      %v864 = vunpack.c.l.b16 %v569
      %v865 = vunpack.c.l.b16 %v570
      %v866 = vunpack.c.l.b16 %v571
      %v867 = vunpack.c.l.b16 %v572
      %v868 = vunpack.c.l.b16 %v573
      %v869 = vunpack.c.l.b16 %v574
      %v870 = vunpack.c.l.b16 %v575
      %v871 = vunpack.c.l.b16 %v576
      %v872 = vunpack.c.l.b16 %v577
      %v873 = vunpack.c.l.b16 %v578
      %v874 = vunpack.c.l.b16 %v579
      %v875 = vunpack.c.l.b16 %v580
      %v876 = vunpack.c.l.b16 %v581
      %v877 = vunpack.c.l.b16 %v582
      %v878 = vunpack.c.l.b16 %v583
      %v879 = vunpack.c.l.b16 %v584
      %v880 = vunpack.c.l.b16 %v585
      %v881 = vunpack.c.l.b16 %v586
      %v882 = vunpack.c.l.b16 %v587
      %v883 = vunpack.c.l.b16 %v588
      %v884 = vunpack.c.l.b16 %v589
      %v885 = vunpack.c.l.b16 %v590
      %v886 = vunpack.c.l.b16 %v591
      %v887 = vunpack.c.l.b16 %v592
      %v888 = vunpack.c.l.b16 %v593
      %v889 = vunpack.c.l.b16 %v594
      %v890 = vunpack.c.l.b16 %v595
      %v891 = vunpack.c.l.b16 %v596
      %v892 = vunpack.c.l.b16 %v597
      %v893 = vunpack.c.l.b16 %v598
      %v894 = vunpack.c.l.b16 %v599
      %v895 = vunpack.c.l.b16 %v600
      %v896 = vunpack.c.l.b16 %v601
      %v897 = vunpack.c.l.b16 %v602
      %v898 = vunpack.c.l.b16 %v603
      %v899 = vunpack.c.l.b16 %v604
      %v900 = vpack.c.b16 %v757, %v756
      %v901 = vpack.c.b16 %v759, %v758
      %v902 = vpack.c.b16 %v761, %v760
      %v903 = vpack.c.b16 %v763, %v762
      %v904 = vpack.c.b16 %v765, %v764
      %v905 = vpack.c.b16 %v767, %v766
      %v906 = vpack.c.b16 %v769, %v768
      %v907 = vpack.c.b16 %v771, %v770
      %v908 = vpack.c.b16 %v773, %v772
      %v909 = vpack.c.b16 %v775, %v774
      %v910 = vpack.c.b16 %v777, %v776
      %v911 = vpack.c.b16 %v779, %v778
      %v912 = vpack.c.b16 %v781, %v780
      %v913 = vpack.c.b16 %v783, %v782
      %v914 = vpack.c.b16 %v785, %v784
      %v915 = vpack.c.b16 %v787, %v786
      %v916 = vpack.c.b16 %v789, %v788
      %v917 = vpack.c.b16 %v791, %v790
      %v918 = vpack.c.b16 %v793, %v792
      %v919 = vpack.c.b16 %v795, %v794
      %v920 = vpack.c.b16 %v797, %v796
      %v921 = vpack.c.b16 %v799, %v798
      %v922 = vpack.c.b16 %v801, %v800
      %v923 = vpack.c.b16 %v803, %v802
      %v924 = vpack.c.b16 %v805, %v804
      %v925 = vpack.c.b16 %v807, %v806
      %v926 = vpack.c.b16 %v809, %v808
      %v927 = vpack.c.b16 %v811, %v810
      %v928 = vpack.c.b16 %v813, %v812
      %v929 = vpack.c.b16 %v815, %v814
      %v930 = vpack.c.b16 %v817, %v816
      %v931 = vpack.c.b16 %v819, %v818
      %v932 = vpack.c.b16 %v821, %v820
      %v933 = vpack.c.b16 %v823, %v822
      %v934 = vpack.c.b16 %v825, %v824
      %v935 = vpack.c.b16 %v827, %v826
      %v936 = vpack.c.b16 %v829, %v828
      %v937 = vpack.c.b16 %v831, %v830
      %v938 = vpack.c.b16 %v833, %v832
      %v939 = vpack.c.b16 %v835, %v834
      %v940 = vpack.c.b16 %v837, %v836
      %v941 = vpack.c.b16 %v839, %v838
      %v942 = vpack.c.b16 %v841, %v840
      %v943 = vpack.c.b16 %v843, %v842
      %v944 = vpack.c.b16 %v845, %v844
      %v945 = vpack.c.b16 %v847, %v846
      %v946 = vpack.c.b16 %v849, %v848
      %v947 = vpack.c.b16 %v851, %v850
      %v948 = vpack.c.b16 %v853, %v852
      %v949 = vpack.c.b16 %v855, %v854
      %v950 = vpack.c.b16 %v857, %v856
      %v951 = vpack.c.b16 %v859, %v858
      %v952 = vpack.c.b16 %v861, %v860
      %v953 = vpack.c.b16 %v863, %v862
      %v954 = vpack.c.b16 %v865, %v864
      %v955 = vpack.c.b16 %v867, %v866
      %v956 = vpack.c.b16 %v869, %v868
      %v957 = vpack.c.b16 %v871, %v870
      %v958 = vpack.c.b16 %v873, %v872
      %v959 = vpack.c.b16 %v875, %v874
      %v960 = vpack.c.b16 %v877, %v876
      %v961 = vpack.c.b16 %v879, %v878
      %v962 = vpack.c.b16 %v881, %v880
      %v963 = vpack.c.b16 %v883, %v882
      %v964 = vpack.c.b16 %v885, %v884
      %v965 = vpack.c.b16 %v887, %v886
      %v966 = vpack.c.b16 %v889, %v888
      %v967 = vpack.c.b16 %v891, %v890
      %v968 = vpack.c.b16 %v893, %v892
      %v969 = vpack.c.b16 %v895, %v894
      %v970 = vpack.c.b16 %v897, %v896
      %v971 = vpack.c.b16 %v899, %v898
      %1044 = vmatprep.subr.bf16.mxu0 0
      %1045 = vmatpush1.bf16.msra.mxu0 %v907
      %1046 = vmatprep.subr.bf16.mxu0 0
      %1047 = vmatpush1.bf16.msra.mxu0 %v906
      %1048 = vmatprep.subr.bf16.mxu0 0
      %1049 = vmatpush1.bf16.msra.mxu0 %v905
      %1050 = vmatprep.subr.bf16.mxu0 0
      %1051 = vmatpush1.bf16.msra.mxu0 %v904
      %1052 = vmatprep.subr.bf16.mxu0 0
      %1053 = vmatpush1.bf16.msra.mxu0 %v903
      %1054 = vmatprep.subr.bf16.mxu0 0
      %1055 = vmatpush1.bf16.msra.mxu0 %v902
      %1056 = vmatprep.subr.bf16.mxu0 0
      %1057 = vmatpush1.bf16.msra.mxu0 %v901
      %1058 = vmatprep.subr.bf16.mxu0 0
      %1059 = vmatpush1.bf16.msra.mxu0 %v900
      %1060 = vmatprep.subr.bf16.mxu0 0
      %1061 = vmatpush2.bf16.msra.mxu0 %v915
      %1062 = vmatprep.subr.bf16.mxu0 0
      %1063 = vmatpush2.bf16.msra.mxu0 %v914
      %1064 = vmatprep.subr.bf16.mxu0 0
      %1065 = vmatpush2.bf16.msra.mxu0 %v913
      %1066 = vmatprep.subr.bf16.mxu0 0
      %1067 = vmatpush2.bf16.msra.mxu0 %v912
      %1068 = vmatprep.subr.bf16.mxu0 0
      %1069 = vmatpush2.bf16.msra.mxu0 %v911
      %1070 = vmatprep.subr.bf16.mxu0 0
      %1071 = vmatpush2.bf16.msra.mxu0 %v910
      %1072 = vmatprep.subr.bf16.mxu0 0
      %1073 = vmatpush2.bf16.msra.mxu0 %v909
      %1074 = vmatprep.subr.bf16.mxu0 0
      %1075 = vmatpush2.bf16.msra.mxu0 %v908
      %1076 = vmatprep.mubr.bf16.mxu0 %v230
      %1077 = vmatmul.mubr.bf16.gmra.mxu0 %v205
      %v1078 = vpop.f32.mrf.mxu0
      %v1079 = vadd.f32 %v610, %v1078
      %v1080 = vpop.f32.mrf.mxu0
      %v1081 = vpop.f32.mrf.mxu0
      %v1082 = vadd.f32 %v610, %v1081
      %v1083 = vpop.f32.mrf.mxu0
      %1084 = vmatprep.mubr.bf16.mxu0 %v238
      %1085 = vmatmul.mubr.bf16.gmra.mxu0 %v206
      %v1086 = vpop.f32.mrf.mxu0
      %v1087 = vadd.f32 %v610, %v1086
      %v1088 = vpop.f32.mrf.mxu0
      %v1089 = vpop.f32.mrf.mxu0
      %v1090 = vadd.f32 %v610, %v1089
      %v1091 = vpop.f32.mrf.mxu0
      %1092 = vmatprep.mubr.bf16.mxu0 %v246
      %1093 = vmatmul.mubr.bf16.gmra.mxu0 %v207
      %v1094 = vpop.f32.mrf.mxu0
      %v1095 = vadd.f32 %v610, %v1094
      %v1096 = vpop.f32.mrf.mxu0
      %v1097 = vpop.f32.mrf.mxu0
      %v1098 = vadd.f32 %v610, %v1097
      %v1099 = vpop.f32.mrf.mxu0
      %1100 = vmatprep.mubr.bf16.mxu0 %v254
      %1101 = vmatmul.mubr.bf16.gmra.mxu0 %v208
      %v1102 = vpop.f32.mrf.mxu0
      %v1103 = vadd.f32 %v610, %v1102
      %v1104 = vpop.f32.mrf.mxu0
      %v1105 = vpop.f32.mrf.mxu0
      %v1106 = vadd.f32 %v610, %v1105
      %v1107 = vpop.f32.mrf.mxu0
      %1108 = vmatprep.mubr.bf16.mxu0 %v262
      %1109 = vmatmul.mubr.bf16.gmra.mxu0 %v209
      %v1110 = vpop.f32.mrf.mxu0
      %v1111 = vadd.f32 %v610, %v1110
      %v1112 = vpop.f32.mrf.mxu0
      %v1113 = vpop.f32.mrf.mxu0
      %v1114 = vadd.f32 %v610, %v1113
      %v1115 = vpop.f32.mrf.mxu0
      %1116 = vdwg.mxu0
      %1117 = vmatprep.subr.bf16.mxu0 0
      %1118 = vmatpush1.bf16.msra.mxu0 %v923
      %1119 = vmatprep.subr.bf16.mxu0 0
      %1120 = vmatpush1.bf16.msra.mxu0 %v922
      %1121 = vmatprep.subr.bf16.mxu0 0
      %1122 = vmatpush1.bf16.msra.mxu0 %v921
      %1123 = vmatprep.subr.bf16.mxu0 0
      %1124 = vmatpush1.bf16.msra.mxu0 %v920
      %1125 = vmatprep.subr.bf16.mxu0 0
      %1126 = vmatpush1.bf16.msra.mxu0 %v919
      %1127 = vmatprep.subr.bf16.mxu0 0
      %1128 = vmatpush1.bf16.msra.mxu0 %v918
      %1129 = vmatprep.subr.bf16.mxu0 0
      %1130 = vmatpush1.bf16.msra.mxu0 %v917
      %1131 = vmatprep.subr.bf16.mxu0 0
      %1132 = vmatpush1.bf16.msra.mxu0 %v916
      %1133 = vmatprep.subr.bf16.mxu0 0
      %1134 = vmatpush2.bf16.msra.mxu0 %v931
      %1135 = vmatprep.subr.bf16.mxu0 0
      %1136 = vmatpush2.bf16.msra.mxu0 %v930
      %1137 = vmatprep.subr.bf16.mxu0 0
      %1138 = vmatpush2.bf16.msra.mxu0 %v929
      %1139 = vmatprep.subr.bf16.mxu0 0
      %1140 = vmatpush2.bf16.msra.mxu0 %v928
      %1141 = vmatprep.subr.bf16.mxu0 0
      %1142 = vmatpush2.bf16.msra.mxu0 %v927
      %1143 = vmatprep.subr.bf16.mxu0 0
      %1144 = vmatpush2.bf16.msra.mxu0 %v926
      %1145 = vmatprep.subr.bf16.mxu0 0
      %1146 = vmatpush2.bf16.msra.mxu0 %v925
      %1147 = vmatprep.subr.bf16.mxu0 0
      %1148 = vmatpush2.bf16.msra.mxu0 %v924
      %1149 = vmatprep.mubr.bf16.mxu0 %v295
      %1150 = vmatmul.mubr.bf16.gmra.mxu0 %v271
      %v1151 = vpop.f32.mrf.mxu0
      %v1152 = vadd.f32 %v1079, %v1151
      %v1153 = vpop.f32.mrf.mxu0
      %v1154 = vpop.f32.mrf.mxu0
      %v1155 = vadd.f32 %v1082, %v1154
      %v1156 = vpop.f32.mrf.mxu0
      %1157 = vmatprep.mubr.bf16.mxu0 %v297
      %1158 = vmatmul.mubr.bf16.gmra.mxu0 %v273
      %v1159 = vpop.f32.mrf.mxu0
      %v1160 = vadd.f32 %v1087, %v1159
      %v1161 = vpop.f32.mrf.mxu0
      %v1162 = vpop.f32.mrf.mxu0
      %v1163 = vadd.f32 %v1090, %v1162
      %v1164 = vpop.f32.mrf.mxu0
      %1165 = vmatprep.mubr.bf16.mxu0 %v299
      %1166 = vmatmul.mubr.bf16.gmra.mxu0 %v275
      %v1167 = vpop.f32.mrf.mxu0
      %v1168 = vadd.f32 %v1095, %v1167
      %v1169 = vpop.f32.mrf.mxu0
      %v1170 = vpop.f32.mrf.mxu0
      %v1171 = vadd.f32 %v1098, %v1170
      %v1172 = vpop.f32.mrf.mxu0
      %1173 = vmatprep.mubr.bf16.mxu0 %v301
      %1174 = vmatmul.mubr.bf16.gmra.mxu0 %v277
      %v1175 = vpop.f32.mrf.mxu0
      %v1176 = vadd.f32 %v1103, %v1175
      %v1177 = vpop.f32.mrf.mxu0
      %v1178 = vpop.f32.mrf.mxu0
      %v1179 = vadd.f32 %v1106, %v1178
      %v1180 = vpop.f32.mrf.mxu0
      %1181 = vmatprep.mubr.bf16.mxu0 %v303
      %1182 = vmatmul.mubr.bf16.gmra.mxu0 %v279
      %v1183 = vpop.f32.mrf.mxu0
      %v1184 = vadd.f32 %v1111, %v1183
      %v1185 = vpop.f32.mrf.mxu0
      %v1186 = vpop.f32.mrf.mxu0
      %v1187 = vadd.f32 %v1114, %v1186
      %v1188 = vpop.f32.mrf.mxu0
      %1189 = vdwg.mxu0
      %1190 = vmatprep.subr.bf16.mxu0 0
      %1191 = vmatpush1.bf16.msra.mxu0 %v939
      %1192 = vmatprep.subr.bf16.mxu0 0
      %1193 = vmatpush1.bf16.msra.mxu0 %v938
      %1194 = vmatprep.subr.bf16.mxu0 0
      %1195 = vmatpush1.bf16.msra.mxu0 %v937
      %1196 = vmatprep.subr.bf16.mxu0 0
      %1197 = vmatpush1.bf16.msra.mxu0 %v936
      %1198 = vmatprep.subr.bf16.mxu0 0
      %1199 = vmatpush1.bf16.msra.mxu0 %v935
      %1200 = vmatprep.subr.bf16.mxu0 0
      %1201 = vmatpush1.bf16.msra.mxu0 %v934
      %1202 = vmatprep.subr.bf16.mxu0 0
      %1203 = vmatpush1.bf16.msra.mxu0 %v933
      %1204 = vmatprep.subr.bf16.mxu0 0
      %1205 = vmatpush1.bf16.msra.mxu0 %v932
      %1206 = vmatprep.subr.bf16.mxu0 0
      %1207 = vmatpush2.bf16.msra.mxu0 %v947
      %1208 = vmatprep.subr.bf16.mxu0 0
      %1209 = vmatpush2.bf16.msra.mxu0 %v946
      %1210 = vmatprep.subr.bf16.mxu0 0
      %1211 = vmatpush2.bf16.msra.mxu0 %v945
      %1212 = vmatprep.subr.bf16.mxu0 0
      %1213 = vmatpush2.bf16.msra.mxu0 %v944
      %1214 = vmatprep.subr.bf16.mxu0 0
      %1215 = vmatpush2.bf16.msra.mxu0 %v943
      %1216 = vmatprep.subr.bf16.mxu0 0
      %1217 = vmatpush2.bf16.msra.mxu0 %v942
      %1218 = vmatprep.subr.bf16.mxu0 0
      %1219 = vmatpush2.bf16.msra.mxu0 %v941
      %1220 = vmatprep.subr.bf16.mxu0 0
      %1221 = vmatpush2.bf16.msra.mxu0 %v940
      %1222 = vmatprep.mubr.bf16.mxu0 %v371
      %1223 = vmatmul.mubr.bf16.gmra.mxu0 %v326
      %v1224 = vpop.f32.mrf.mxu0
      %v1225 = vadd.f32 %v1152, %v1224
      %v1226 = vpop.f32.mrf.mxu0
      %v1227 = vpop.f32.mrf.mxu0
      %v1228 = vadd.f32 %v1155, %v1227
      %v1229 = vpop.f32.mrf.mxu0
      %1230 = vmatprep.mubr.bf16.mxu0 %v373
      %1231 = vmatmul.mubr.bf16.gmra.mxu0 %v335
      %v1232 = vpop.f32.mrf.mxu0
      %v1233 = vadd.f32 %v1160, %v1232
      %v1234 = vpop.f32.mrf.mxu0
      %v1235 = vpop.f32.mrf.mxu0
      %v1236 = vadd.f32 %v1163, %v1235
      %v1237 = vpop.f32.mrf.mxu0
      %1238 = vmatprep.mubr.bf16.mxu0 %v375
      %1239 = vmatmul.mubr.bf16.gmra.mxu0 %v344
      %v1240 = vpop.f32.mrf.mxu0
      %v1241 = vadd.f32 %v1168, %v1240
      %v1242 = vpop.f32.mrf.mxu0
      %v1243 = vpop.f32.mrf.mxu0
      %v1244 = vadd.f32 %v1171, %v1243
      %v1245 = vpop.f32.mrf.mxu0
      %1246 = vmatprep.mubr.bf16.mxu0 %v377
      %1247 = vmatmul.mubr.bf16.gmra.mxu0 %v353
      %v1248 = vpop.f32.mrf.mxu0
      %v1249 = vadd.f32 %v1176, %v1248
      %v1250 = vpop.f32.mrf.mxu0
      %v1251 = vpop.f32.mrf.mxu0
      %v1252 = vadd.f32 %v1179, %v1251
      %v1253 = vpop.f32.mrf.mxu0
      %1254 = vmatprep.mubr.bf16.mxu0 %v379
      %1255 = vmatmul.mubr.bf16.gmra.mxu0 %v362
      %v1256 = vpop.f32.mrf.mxu0
      %v1257 = vadd.f32 %v1184, %v1256
      %v1258 = vpop.f32.mrf.mxu0
      %v1259 = vpop.f32.mrf.mxu0
      %v1260 = vadd.f32 %v1187, %v1259
      %v1261 = vpop.f32.mrf.mxu0
      %1262 = vdwg.mxu0
      %1263 = vmatprep.subr.bf16.mxu0 0
      %1264 = vmatpush1.bf16.msra.mxu0 %v955
      %1265 = vmatprep.subr.bf16.mxu0 0
      %1266 = vmatpush1.bf16.msra.mxu0 %v954
      %1267 = vmatprep.subr.bf16.mxu0 0
      %1268 = vmatpush1.bf16.msra.mxu0 %v953
      %1269 = vmatprep.subr.bf16.mxu0 0
      %1270 = vmatpush1.bf16.msra.mxu0 %v952
      %1271 = vmatprep.subr.bf16.mxu0 0
      %1272 = vmatpush1.bf16.msra.mxu0 %v951
      %1273 = vmatprep.subr.bf16.mxu0 0
      %1274 = vmatpush1.bf16.msra.mxu0 %v950
      %1275 = vmatprep.subr.bf16.mxu0 0
      %1276 = vmatpush1.bf16.msra.mxu0 %v949
      %1277 = vmatprep.subr.bf16.mxu0 0
      %1278 = vmatpush1.bf16.msra.mxu0 %v948
      %1279 = vmatprep.subr.bf16.mxu0 0
      %1280 = vmatpush2.bf16.msra.mxu0 %v963
      %1281 = vmatprep.subr.bf16.mxu0 0
      %1282 = vmatpush2.bf16.msra.mxu0 %v962
      %1283 = vmatprep.subr.bf16.mxu0 0
      %1284 = vmatpush2.bf16.msra.mxu0 %v961
      %1285 = vmatprep.subr.bf16.mxu0 0
      %1286 = vmatpush2.bf16.msra.mxu0 %v960
      %1287 = vmatprep.subr.bf16.mxu0 0
      %1288 = vmatpush2.bf16.msra.mxu0 %v959
      %1289 = vmatprep.subr.bf16.mxu0 0
      %1290 = vmatpush2.bf16.msra.mxu0 %v958
      %1291 = vmatprep.subr.bf16.mxu0 0
      %1292 = vmatpush2.bf16.msra.mxu0 %v957
      %1293 = vmatprep.subr.bf16.mxu0 0
      %1294 = vmatpush2.bf16.msra.mxu0 %v956
      %1295 = vmatprep.mubr.bf16.mxu0 %v412
      %1296 = vmatmul.mubr.bf16.gmra.mxu0 %v391
      %v1297 = vpop.f32.mrf.mxu0
      %v1298 = vadd.f32 %v1225, %v1297
      %v1299 = vpop.f32.mrf.mxu0
      %v1300 = vpop.f32.mrf.mxu0
      %v1301 = vadd.f32 %v1228, %v1300
      %v1302 = vpop.f32.mrf.mxu0
      %1303 = vmatprep.mubr.bf16.mxu0 %v416
      %1304 = vmatmul.mubr.bf16.gmra.mxu0 %v393
      %v1305 = vpop.f32.mrf.mxu0
      %v1306 = vadd.f32 %v1233, %v1305
      %v1307 = vpop.f32.mrf.mxu0
      %v1308 = vpop.f32.mrf.mxu0
      %v1309 = vadd.f32 %v1236, %v1308
      %v1310 = vpop.f32.mrf.mxu0
      %1311 = vmatprep.mubr.bf16.mxu0 %v420
      %1312 = vmatmul.mubr.bf16.gmra.mxu0 %v395
      %v1313 = vpop.f32.mrf.mxu0
      %v1314 = vadd.f32 %v1241, %v1313
      %v1315 = vpop.f32.mrf.mxu0
      %v1316 = vpop.f32.mrf.mxu0
      %v1317 = vadd.f32 %v1244, %v1316
      %v1318 = vpop.f32.mrf.mxu0
      %1319 = vmatprep.mubr.bf16.mxu0 %v429
      %1320 = vmatmul.mubr.bf16.gmra.mxu0 %v397
      %v1321 = vpop.f32.mrf.mxu0
      %v1322 = vadd.f32 %v1249, %v1321
      %v1323 = vpop.f32.mrf.mxu0
      %v1324 = vpop.f32.mrf.mxu0
      %v1325 = vadd.f32 %v1252, %v1324
      %v1326 = vpop.f32.mrf.mxu0
      %1327 = vmatprep.mubr.bf16.mxu0 %v438
      %1328 = vmatmul.mubr.bf16.gmra.mxu0 %v399
      %v1329 = vpop.f32.mrf.mxu0
      %v1330 = vadd.f32 %v1257, %v1329
      %v1331 = vpop.f32.mrf.mxu0
      %v1332 = vpop.f32.mrf.mxu0
      %v1333 = vadd.f32 %v1260, %v1332
      %v1334 = vpop.f32.mrf.mxu0
      %1335 = vdwg.mxu0
      %1336 = vmatprep.subr.bf16.mxu0 0
      %1337 = vmatpush1.bf16.msra.mxu0 %v971
      %1338 = vmatprep.subr.bf16.mxu0 0
      %1339 = vmatpush1.bf16.msra.mxu0 %v970
      %1340 = vmatprep.subr.bf16.mxu0 0
      %1341 = vmatpush1.bf16.msra.mxu0 %v969
      %1342 = vmatprep.subr.bf16.mxu0 0
      %1343 = vmatpush1.bf16.msra.mxu0 %v968
      %1344 = vmatprep.subr.bf16.mxu0 0
      %1345 = vmatpush1.bf16.msra.mxu0 %v967
      %1346 = vmatprep.subr.bf16.mxu0 0
      %1347 = vmatpush1.bf16.msra.mxu0 %v966
      %1348 = vmatprep.subr.bf16.mxu0 0
      %1349 = vmatpush1.bf16.msra.mxu0 %v965
      %1350 = vmatprep.subr.bf16.mxu0 0
      %1351 = vmatpush1.bf16.msra.mxu0 %v964
      %1352 = vmatprep.subr.bf16.mxu0 0
      %1353 = vmatpush2.bf16.msra.mxu0 0
      %1354 = vmatprep.subr.bf16.mxu0 0
      %1355 = vmatpush2.bf16.msra.mxu0 0
      %1356 = vmatprep.subr.bf16.mxu0 0
      %1357 = vmatpush2.bf16.msra.mxu0 0
      %1358 = vmatprep.subr.bf16.mxu0 0
      %1359 = vmatpush2.bf16.msra.mxu0 0
      %1360 = vmatprep.subr.bf16.mxu0 0
      %1361 = vmatpush2.bf16.msra.mxu0 0
      %1362 = vmatprep.subr.bf16.mxu0 0
      %1363 = vmatpush2.bf16.msra.mxu0 0
      %1364 = vmatprep.subr.bf16.mxu0 0
      %1365 = vmatpush2.bf16.msra.mxu0 0
      %1366 = vmatprep.subr.bf16.mxu0 0
      %1367 = vmatpush2.bf16.msra.mxu0 0
      %1368 = vmatprep.mubr.bf16.mxu0 0
      %1369 = vmatmul.mubr.bf16.gmra.mxu0 %v447
      %v1370 = vpop.f32.mrf.mxu0
      %v1371 = vadd.f32 %v1298, %v1370
      %v1372 = vpop.f32.mrf.mxu0
      %v1373 = vpop.f32.mrf.mxu0
      %v1374 = vadd.f32 %v1301, %v1373
      %v1375 = vpop.f32.mrf.mxu0
      %1376 = vmatprep.mubr.bf16.mxu0 0
      %1377 = vmatmul.mubr.bf16.gmra.mxu0 %v449
      %v1378 = vpop.f32.mrf.mxu0
      %v1379 = vadd.f32 %v1306, %v1378
      %v1380 = vpop.f32.mrf.mxu0
      %v1381 = vpop.f32.mrf.mxu0
      %v1382 = vadd.f32 %v1309, %v1381
      %v1383 = vpop.f32.mrf.mxu0
      %1384 = vmatprep.mubr.bf16.mxu0 0
      %1385 = vmatmul.mubr.bf16.gmra.mxu0 %v451
      %v1386 = vpop.f32.mrf.mxu0
      %v1387 = vadd.f32 %v1314, %v1386
      %v1388 = vpop.f32.mrf.mxu0
      %v1389 = vpop.f32.mrf.mxu0
      %v1390 = vadd.f32 %v1317, %v1389
      %v1391 = vpop.f32.mrf.mxu0
      %1392 = vmatprep.mubr.bf16.mxu0 0
      %1393 = vmatmul.mubr.bf16.gmra.mxu0 %v453
      %v1394 = vpop.f32.mrf.mxu0
      %v1395 = vadd.f32 %v1322, %v1394
      %v1396 = vpop.f32.mrf.mxu0
      %v1397 = vpop.f32.mrf.mxu0
      %v1398 = vadd.f32 %v1325, %v1397
      %v1399 = vpop.f32.mrf.mxu0
      %1400 = vmatprep.mubr.bf16.mxu0 0
      %1401 = vmatmul.mubr.bf16.gmra.mxu0 %v455
      %v1402 = vpop.f32.mrf.mxu0
      %v1403 = vadd.f32 %v1330, %v1402
      %v1404 = vpop.f32.mrf.mxu0
      %v1405 = vpop.f32.mrf.mxu0
      %v1406 = vadd.f32 %v1333, %v1405
      %v1407 = vpop.f32.mrf.mxu0
      %1408 = vdwg.mxu0
      %v1409 = vmax.f32 %v1371, 0.0
      %v1410 = vmax.f32 %v1374, 0.0
      %v1411 = vmax.f32 %v1379, 0.0
      %v1412 = vmax.f32 %v1382, 0.0
      %v1413 = vmax.f32 %v1387, 0.0
      %v1414 = vmax.f32 %v1390, 0.0
      %v1415 = vmax.f32 %v1395, 0.0
      %v1416 = vmax.f32 %v1398, 0.0
      %v1417 = vmax.f32 %v1403, 0.0
      %v1418 = vmax.f32 %v1406, 0.0
      %v1419 = vpack.c.bf16 %v1410, %v1409
      %v1420 = vpack.c.bf16 %v1412, %v1411
      %v1421 = vpack.c.bf16 %v1414, %v1413
      %v1422 = vpack.c.bf16 %v1416, %v1415
      %v1423 = vpack.c.bf16 %v1418, %v1417
      %v1429 = vunpack.c.l.b16 %v1419
      %v1430 = vunpack.c.h.b16 %v1419
      %v1431 = vunpack.c.l.b16 %v1420
      %v1432 = vunpack.c.h.b16 %v1420
      %v1433 = vunpack.c.l.b16 %v1421
      %v1434 = vunpack.c.h.b16 %v1421
      %v1435 = vunpack.c.l.b16 %v1422
      %v1436 = vunpack.c.h.b16 %v1422
      %v1437 = vunpack.c.l.b16 %v1423
      %v1438 = vunpack.c.h.b16 %v1423
      %v1439 = vpack.c.b16 %v1429, %v1429
      %v1440 = vpack.c.b16 %v1430, %v1430
      %v1441 = vpack.c.b16 %v1431, %v1431
      %v1442 = vpack.c.b16 %v1432, %v1432
      %v1443 = vpack.c.b16 %v1433, %v1433
      %v1444 = vpack.c.b16 %v1434, %v1434
      %v1445 = vpack.c.b16 %v1435, %v1435
      %v1446 = vpack.c.b16 %v1436, %v1436
      %v1447 = vpack.c.b16 %v1437, %v1437
      %v1448 = vpack.c.b16 %v1438, %v1438
      %1459 = vst [vmem:[%s170] sm:$0xf] %v1439
      %1460 = vst [vmem:[%s170 + $0x4] sm:$0xf] %v1440
      %1461 = vst [vmem:[%s170 + $0x8] sm:$0xf] %v1441
      %1462 = vst [vmem:[%s170 + $0xc] sm:$0xf] %v1442
      %1463 = vst [vmem:[%s170 + $0x10] sm:$0xf] %v1443
      %1464 = vst [vmem:[%s170 + $0x14] sm:$0xf] %v1444
      %1465 = vst [vmem:[%s170 + $0x18] sm:$0xf] %v1445
      %1466 = vst [vmem:[%s170 + $0x1c] sm:$0xf] %v1446
      %1467 = vst [vmem:[%s170 + $0x20] sm:$0xf] %v1447
      %1468 = vst [vmem:[%s170 + $0x24] sm:$0xf] %v1448
      %p1469 = scmp.lt.s32.totalorder %s14, 1
      %s1470 = scalar_select %p1469, %s14, 1
      %s1471 = smul.addr %s1470, 10
      %s1472 = smul.addr %s1471, 4
      %s1473 = scalar_lea.vmem %s3, %s1472
      // Predicated region
      $region33: #{decoder_forward.8} parent=31 // pred_check
        %p1474 = pneg %p100
      $region34: #{decoder_forward.8} parent=31 // pred_check_branch
        %1476 = sbr.rel (%p1474) target = $region36
      $region35: #{decoder_forward.8} parent=31 // pred_region
        _
      $region36: #{decoder_forward.8} parent=31 // pred_fallthru
        _
    $region32: #{decoder_forward.8} parent=5 // pred_fallthru
      _
    %p1477 = scmp.le.s32.totalorder 2, %s9
    // Predicated region
    $region37: #{decoder_forward.8} parent=5 // pred_check
      %p1478 = pneg %p1477
    $region38: #{decoder_forward.8} parent=5 // pred_check_branch
      %1480 = sbr.rel (%p1478) target = $region40
    $region39: #{decoder_forward.8} parent=5 // pred_region
      %s1481 = ssub.s32 %s9, 2
      // Predicated region
      $region41: #{decoder_forward.8} parent=39 // pred_check
        %p1482 = pneg %p106
      $region42: #{decoder_forward.8} parent=39 // pred_check_branch
        %1484 = sbr.rel (%p1482) target = $region44
      $region43: #{decoder_forward.8} parent=39 // pred_region
        %p1485 = scmp.lt.s32.totalorder %s15, 1
        %s1486 = scalar_select %p1485, %s15, 1
        %s1487 = smul.addr %s1486, 10
        %s1488 = smul.addr %s1487, 4
        %s1489 = scalar_lea.vmem %s3, %s1488
      $region44: #{decoder_forward.8} parent=39 // pred_fallthru
        _
    $region40: #{decoder_forward.8} parent=5 // pred_fallthru
      _
  $region6: #{decoder_forward.8} parent=0 // loop_footer
    %s13 = sadd.s32 1, %s9
  $region7: #{decoder_forward.8} parent=0 // loop_footer_branch
    %8 = sbr.rel target = $region3
  $region8: #{decoder_forward.8} parent=0 // loop_exit
    _

// kernel: decoder_forward.6
$region0: #{decoder_forward.6}
  #allocation0 [shape = 'u32[]', space=smem, size = 0x4, offset = 0x4, fixed_abs, tag = 'smem constant byte address 0x4 - core index']
  #allocation1 [shape = 'u32[144,128]{1,0:T(1,128)}', space=vmem, size = 0x12000, scoped, tag = 'internal scratch']
  %s0 = inlined_call_operand.vmem [shape: bf16[2,16], index: 0, kind: input, shape index: {}]
  %s1 = inlined_call_operand.hbm [shape: bf16[16,512], index: 1, kind: input, shape index: {}]
  %s2 = inlined_call_operand.hbm [shape: f32[1,512], index: 2, kind: input, shape index: {}]
  %s3 = inlined_call_operand.hbm [shape: bf16[512,1024], index: 3, kind: input, shape index: {}]
  %s4 = inlined_call_operand.hbm [shape: f32[1,1024], index: 4, kind: input, shape index: {}]
  %s5 = inlined_call_operand.vmem [shape: bf16[2,1024], index: 5, kind: output, shape index: {}]
  %s6 = sld [smem:[#allocation0]]
  $region46: #{decoder_forward.6} parent=0
    _
  %s8 = ssub.s32 1, %s6
  %s9 = scalar_select 0, %s8, %s6
  $region1: #{decoder_forward.6} parent=0
    #allocation2 [shape = 'u8[16384]{0}', space=vmem, size = 0x4000, scoped, tag = 'input window, operand 1, single buffered']
    #allocation3 [shape = 's32[1]{0}', space=sflag, size = 0x4, scoped, tag = 'scoped memory for decoder_forward.6']
    #allocation4 [shape = 'u8[2048]{0}', space=vmem, size = 0x800, scoped, tag = 'input window, operand 2, single buffered']
    #allocation5 [shape = 's32[1]{0}', space=sflag, size = 0x4, scoped, tag = 'scoped memory for decoder_forward.6']
    #allocation6 [shape = 'u8[1048576]{0}', space=vmem, size = 0x100000, scoped, tag = 'input window, operand 3, single buffered']
    #allocation7 [shape = 'u8[4096]{0}', space=vmem, size = 0x1000, scoped, tag = 'input window, operand 4, single buffered']
    #allocation8 [shape = 's32[1]{0}', space=sflag, size = 0x4, scoped, tag = 'scoped memory for decoder_forward.6']
    %10 = vsyncpa [#allocation3], 0
    %11 = vsyncpa [#allocation5], 0
    %12 = vsyncpa [#allocation8], 0
    // Predicated region
    $region2: #{decoder_forward.6} parent=1 // pred_check
      _
    $region3: #{decoder_forward.6} parent=1 // pred_check_branch
      %14 = sbr.rel (0) target = $region5
    $region4: #{decoder_forward.6} parent=1 // pred_region
      _
    $region5: #{decoder_forward.6} parent=1 // pred_fallthru
      _
    // Predicated region
    $region6: #{decoder_forward.6} parent=1 // pred_check
      _
    $region7: #{decoder_forward.6} parent=1 // pred_check_branch
      %16 = sbr.rel (0) target = $region9
    $region8: #{decoder_forward.6} parent=1 // pred_region
      %s18 = ssub.s32 512, 512
      %19 = vsyncadd [#allocation3], %s18
      %s20 = sshll.u32 [#allocation2], 4
      %s21 = int_to_ptr.vmem [resolvable:$true] %s20
      %26 = dma.hbm_to_vmem [thread:$0]  %s1, 512, %s21, [#allocation3], 256, 256, 16
    $region9: #{decoder_forward.6} parent=1 // pred_fallthru
      _
    // Predicated region
    $region10: #{decoder_forward.6} parent=1 // pred_check
      _
    $region11: #{decoder_forward.6} parent=1 // pred_check_branch
      %28 = sbr.rel (0) target = $region13
    $region12: #{decoder_forward.6} parent=1 // pred_region
      %s30 = ssub.s32 64, 64
      %31 = vsyncadd [#allocation5], %s30
      %s33 = sshll.u32 [#allocation4], 4
      %s34 = int_to_ptr.vmem [resolvable:$true] %s33
      %36 = dma.hbm_to_vmem [thread:$0]  %s2, 64, %s34, [#allocation5]
    $region13: #{decoder_forward.6} parent=1 // pred_fallthru
      _
    // Predicated region
    $region14: #{decoder_forward.6} parent=1 // pred_check
      _
    $region15: #{decoder_forward.6} parent=1 // pred_check_branch
      %38 = sbr.rel (0) target = $region17
    $region16: #{decoder_forward.6} parent=1 // pred_region
      %s40 = ssub.s32 32768, 32768
      %41 = vsyncadd [#allocation5], %s40
      %s42 = sshll.u32 [#allocation6], 4
      %s43 = int_to_ptr.vmem [resolvable:$true] %s42
      %48 = dma.hbm_to_vmem [thread:$0]  %s3, 32768, %s43, [#allocation5], 512, 512, 32
    $region17: #{decoder_forward.6} parent=1 // pred_fallthru
      _
    // Predicated region
    $region18: #{decoder_forward.6} parent=1 // pred_check
      _
    $region19: #{decoder_forward.6} parent=1 // pred_check_branch
      %50 = sbr.rel (0) target = $region21
    $region20: #{decoder_forward.6} parent=1 // pred_region
      %s52 = ssub.s32 128, 128
      %53 = vsyncadd [#allocation8], %s52
      %s55 = sshll.u32 [#allocation7], 4
      %s56 = int_to_ptr.vmem [resolvable:$true] %s55
      %58 = dma.hbm_to_vmem [thread:$0]  %s4, 128, %s56, [#allocation8]
    $region21: #{decoder_forward.6} parent=1 // pred_fallthru
      _
    // Predicated region
    $region22: #{decoder_forward.6} parent=1 // pred_check
      _
    $region23: #{decoder_forward.6} parent=1 // pred_check_branch
      %60 = sbr.rel (0) target = $region25
    $region24: #{decoder_forward.6} parent=1 // pred_region
      %61 = dma.done [#allocation3], 512
    $region25: #{decoder_forward.6} parent=1 // pred_fallthru
      _
    // Predicated region
    $region26: #{decoder_forward.6} parent=1 // pred_check
      _
    $region27: #{decoder_forward.6} parent=1 // pred_check_branch
      %63 = sbr.rel (0) target = $region29
    $region28: #{decoder_forward.6} parent=1 // pred_region
      %64 = dma.done [#allocation5], 64
    $region29: #{decoder_forward.6} parent=1 // pred_fallthru
      _
    // Predicated region
    $region30: #{decoder_forward.6} parent=1 // pred_check
      _
    $region31: #{decoder_forward.6} parent=1 // pred_check_branch
      %66 = sbr.rel (0) target = $region33
    $region32: #{decoder_forward.6} parent=1 // pred_region
      %67 = dma.done [#allocation5], 32768
    $region33: #{decoder_forward.6} parent=1 // pred_fallthru
      _
    // Predicated region
    $region34: #{decoder_forward.6} parent=1 // pred_check
      _
    $region35: #{decoder_forward.6} parent=1 // pred_check_branch
      %69 = sbr.rel (0) target = $region37
    $region36: #{decoder_forward.6} parent=1 // pred_region
      %70 = dma.done [#allocation8], 128
    $region37: #{decoder_forward.6} parent=1 // pred_fallthru
      _
    %v72 = vld [vmem:[%s0] sm:$0x1]
    %v73 = vld [vmem:[#allocation2] sm:$0xff]
    %v74 = vld [vmem:[#allocation2 + $0x8] sm:$0xff]
    %v75 = vld [vmem:[#allocation2 + $0x10] sm:$0xff]
    %v76 = vld [vmem:[#allocation2 + $0x18] sm:$0xff]
    %v77 = vld [vmem:[#allocation4] sm:$0xf]
    %v79 = vlaneseq
    %v80 = vshrl.u32 %v79, 7
    %v81 = vsub.s32 0, %v80
    %v82 = vrot.slane %v77, %v81
    %v83 = vlaneseq
    %v84 = vshrl.u32 %v83, 7
    %v85 = vsub.s32 1, %v84
    %v86 = vrot.slane %v77, %v85
    %v87 = vlaneseq
    %v88 = vshrl.u32 %v87, 7
    %v89 = vsub.s32 2, %v88
    %v90 = vrot.slane %v77, %v89
    %v91 = vlaneseq
    %v92 = vshrl.u32 %v91, 7
    %v93 = vsub.s32 3, %v92
    %v94 = vrot.slane %v77, %v93
    %v103 = vunpack.c.l.b16 %v73
    %v104 = vunpack.c.h.b16 %v73
    %v105 = vunpack.c.l.b16 %v74
    %v106 = vunpack.c.h.b16 %v74
    %v107 = vunpack.c.l.b16 %v75
    %v108 = vunpack.c.h.b16 %v75
    %v109 = vunpack.c.l.b16 %v76
    %v110 = vunpack.c.h.b16 %v76
    %v111 = vpack.c.b16 %v107, %v103
    %v112 = vpack.c.b16 %v108, %v104
    %v113 = vpack.c.b16 %v109, %v105
    %v114 = vpack.c.b16 %v110, %v106
    %vm119 = vcmask 130048
    %v121 = vsel %vm119, %v72, 0
    %123 = vmatprep.subr.bf16.mxu0 0
    %124 = vmatpush1.bf16.msra.mxu0 0
    %125 = vmatprep.subr.bf16.mxu0 0
    %126 = vmatpush1.bf16.msra.mxu0 0
    %127 = vmatprep.subr.bf16.mxu0 0
    %128 = vmatpush1.bf16.msra.mxu0 0
    %129 = vmatprep.subr.bf16.mxu0 0
    %130 = vmatpush1.bf16.msra.mxu0 0
    %131 = vmatprep.subr.bf16.mxu0 0
    %132 = vmatpush1.bf16.msra.mxu0 0
    %133 = vmatprep.subr.bf16.mxu0 0
    %134 = vmatpush1.bf16.msra.mxu0 0
    %135 = vmatprep.subr.bf16.mxu0 0
    %136 = vmatpush1.bf16.msra.mxu0 0
    %137 = vmatprep.subr.bf16.mxu0 %v112
    %138 = vmatpush1.bf16.msra.mxu0 %v111
    %139 = vmatprep.subr.bf16.mxu0 0
    %140 = vmatpush2.bf16.msra.mxu0 0
    %141 = vmatprep.subr.bf16.mxu0 0
    %142 = vmatpush2.bf16.msra.mxu0 0
    %143 = vmatprep.subr.bf16.mxu0 0
    %144 = vmatpush2.bf16.msra.mxu0 0
    %145 = vmatprep.subr.bf16.mxu0 0
    %146 = vmatpush2.bf16.msra.mxu0 0
    %147 = vmatprep.subr.bf16.mxu0 0
    %148 = vmatpush2.bf16.msra.mxu0 0
    %149 = vmatprep.subr.bf16.mxu0 0
    %150 = vmatpush2.bf16.msra.mxu0 0
    %151 = vmatprep.subr.bf16.mxu0 0
    %152 = vmatpush2.bf16.msra.mxu0 0
    %153 = vmatprep.subr.bf16.mxu0 0
    %154 = vmatpush2.bf16.msra.mxu0 0
    %155 = vmatprep.mubr.bf16.mxu0 0
    %156 = vmatmul.mubr.bf16.gmra.mxu0 %v121
    %v157 = vpop.f32.mrf.mxu0
    %v158 = vadd.f32 %v82, %v157
    %v159 = vpop.f32.mrf.mxu0
    %v160 = vadd.f32 %v86, %v159
    %v161 = vpop.f32.mrf.mxu0
    %v162 = vpop.f32.mrf.mxu0
    %163 = vdwg.mxu0
    %164 = vmatprep.subr.bf16.mxu0 0
    %165 = vmatpush1.bf16.msra.mxu0 0
    %166 = vmatprep.subr.bf16.mxu0 0
    %167 = vmatpush1.bf16.msra.mxu0 0
    %168 = vmatprep.subr.bf16.mxu0 0
    %169 = vmatpush1.bf16.msra.mxu0 0
    %170 = vmatprep.subr.bf16.mxu0 0
    %171 = vmatpush1.bf16.msra.mxu0 0
    %172 = vmatprep.subr.bf16.mxu0 0
    %173 = vmatpush1.bf16.msra.mxu0 0
    %174 = vmatprep.subr.bf16.mxu0 0
    %175 = vmatpush1.bf16.msra.mxu0 0
    %176 = vmatprep.subr.bf16.mxu0 0
    %177 = vmatpush1.bf16.msra.mxu0 0
    %178 = vmatprep.subr.bf16.mxu0 %v114
    %179 = vmatpush1.bf16.msra.mxu0 %v113
    %180 = vmatprep.subr.bf16.mxu0 0
    %181 = vmatpush2.bf16.msra.mxu0 0
    %182 = vmatprep.subr.bf16.mxu0 0
    %183 = vmatpush2.bf16.msra.mxu0 0
    %184 = vmatprep.subr.bf16.mxu0 0
    %185 = vmatpush2.bf16.msra.mxu0 0
    %186 = vmatprep.subr.bf16.mxu0 0
    %187 = vmatpush2.bf16.msra.mxu0 0
    %188 = vmatprep.subr.bf16.mxu0 0
    %189 = vmatpush2.bf16.msra.mxu0 0
    %190 = vmatprep.subr.bf16.mxu0 0
    %191 = vmatpush2.bf16.msra.mxu0 0
    %192 = vmatprep.subr.bf16.mxu0 0
    %193 = vmatpush2.bf16.msra.mxu0 0
    %194 = vmatprep.subr.bf16.mxu0 0
    %195 = vmatpush2.bf16.msra.mxu0 0
    %196 = vmatprep.mubr.bf16.mxu0 0
    %197 = vmatmul.mubr.bf16.gmra.mxu0 %v121
    %v198 = vpop.f32.mrf.mxu0
    %v199 = vadd.f32 %v90, %v198
    %v200 = vpop.f32.mrf.mxu0
    %v201 = vadd.f32 %v94, %v200
    %v202 = vpop.f32.mrf.mxu0
    %v203 = vpop.f32.mrf.mxu0
    %204 = vdwg.mxu0
    %v205 = vmax.f32 %v158, 0.0
    %v206 = vmax.f32 %v160, 0.0
    %v207 = vmax.f32 %v199, 0.0
    %v208 = vmax.f32 %v201, 0.0
    %v209 = vpack.c.bf16 %v205, %v205
    %v210 = vpack.c.bf16 %v206, %v206
    %v211 = vpack.c.bf16 %v207, %v207
    %v212 = vpack.c.bf16 %v208, %v208
    %v213 = vld [vmem:[#allocation6] sm:$0xff]
    %v214 = vld [vmem:[#allocation6 + $0x8] sm:$0xff]
    %v215 = vld [vmem:[#allocation6 + $0x10] sm:$0xff]
    %v216 = vld [vmem:[#allocation6 + $0x18] sm:$0xff]
    %v217 = vld [vmem:[#allocation6 + $0x20] sm:$0xff]
    %v218 = vld [vmem:[#allocation6 + $0x28] sm:$0xff]
    %v219 = vld [vmem:[#allocation6 + $0x30] sm:$0xff]
    %v220 = vld [vmem:[#allocation6 + $0x38] sm:$0xff]
    %v221 = vld [vmem:[#allocation6 + $0x40] sm:$0xff]
    %v222 = vld [vmem:[#allocation6 + $0x48] sm:$0xff]
    %v223 = vld [vmem:[#allocation6 + $0x50] sm:$0xff]
    %v224 = vld [vmem:[#allocation6 + $0x58] sm:$0xff]
    %v225 = vld [vmem:[#allocation6 + $0x60] sm:$0xff]
    %v226 = vld [vmem:[#allocation6 + $0x68] sm:$0xff]
    %v227 = vld [vmem:[#allocation6 + $0x70] sm:$0xff]
    %v228 = vld [vmem:[#allocation6 + $0x78] sm:$0xff]
    %v229 = vld [vmem:[#allocation6 + $0x80] sm:$0xff]
    %v230 = vld [vmem:[#allocation6 + $0x88] sm:$0xff]
    %v231 = vld [vmem:[#allocation6 + $0x90] sm:$0xff]
    %v232 = vld [vmem:[#allocation6 + $0x98] sm:$0xff]
    %v233 = vld [vmem:[#allocation6 + $0xa0] sm:$0xff]
    %v234 = vld [vmem:[#allocation6 + $0xa8] sm:$0xff]
    %v235 = vld [vmem:[#allocation6 + $0xb0] sm:$0xff]
    %v236 = vld [vmem:[#allocation6 + $0xb8] sm:$0xff]
    %v237 = vld [vmem:[#allocation6 + $0xc0] sm:$0xff]
    %v238 = vld [vmem:[#allocation6 + $0xc8] sm:$0xff]
    %v239 = vld [vmem:[#allocation6 + $0xd0] sm:$0xff]
    %v240 = vld [vmem:[#allocation6 + $0xd8] sm:$0xff]
    %v241 = vld [vmem:[#allocation6 + $0xe0] sm:$0xff]
    %v242 = vld [vmem:[#allocation6 + $0xe8] sm:$0xff]
    %v243 = vld [vmem:[#allocation6 + $0xf0] sm:$0xff]
    %v244 = vld [vmem:[#allocation6 + $0xf8] sm:$0xff]
    %v245 = vld [vmem:[#allocation6 + $0x100] sm:$0xff]
    %v246 = vld [vmem:[#allocation6 + $0x108] sm:$0xff]
    %v247 = vld [vmem:[#allocation6 + $0x110] sm:$0xff]
    %v248 = vld [vmem:[#allocation6 + $0x118] sm:$0xff]
    %v249 = vld [vmem:[#allocation6 + $0x120] sm:$0xff]
    %v250 = vld [vmem:[#allocation6 + $0x128] sm:$0xff]
    %v251 = vld [vmem:[#allocation6 + $0x130] sm:$0xff]
    %v252 = vld [vmem:[#allocation6 + $0x138] sm:$0xff]
    %v253 = vld [vmem:[#allocation6 + $0x140] sm:$0xff]
    %v254 = vld [vmem:[#allocation6 + $0x148] sm:$0xff]
    %v255 = vld [vmem:[#allocation6 + $0x150] sm:$0xff]
    %v256 = vld [vmem:[#allocation6 + $0x158] sm:$0xff]
    %v257 = vld [vmem:[#allocation6 + $0x160] sm:$0xff]
    %v258 = vld [vmem:[#allocation6 + $0x168] sm:$0xff]
    %v259 = vld [vmem:[#allocation6 + $0x170] sm:$0xff]
    %v260 = vld [vmem:[#allocation6 + $0x178] sm:$0xff]
    %v261 = vld [vmem:[#allocation6 + $0x180] sm:$0xff]
    %v262 = vld [vmem:[#allocation6 + $0x188] sm:$0xff]
    %v263 = vld [vmem:[#allocation6 + $0x190] sm:$0xff]
    %v264 = vld [vmem:[#allocation6 + $0x198] sm:$0xff]
    %v265 = vld [vmem:[#allocation6 + $0x1a0] sm:$0xff]
    %v266 = vld [vmem:[#allocation6 + $0x1a8] sm:$0xff]
    %v267 = vld [vmem:[#allocation6 + $0x1b0] sm:$0xff]
    %v268 = vld [vmem:[#allocation6 + $0x1b8] sm:$0xff]
    %v269 = vld [vmem:[#allocation6 + $0x1c0] sm:$0xff]
    %v270 = vld [vmem:[#allocation6 + $0x1c8] sm:$0xff]
    %v271 = vld [vmem:[#allocation6 + $0x1d0] sm:$0xff]
    %v272 = vld [vmem:[#allocation6 + $0x1d8] sm:$0xff]
    %v273 = vld [vmem:[#allocation6 + $0x1e0] sm:$0xff]
    %v274 = vld [vmem:[#allocation6 + $0x1e8] sm:$0xff]
    %v275 = vld [vmem:[#allocation6 + $0x1f0] sm:$0xff]
    %v276 = vld [vmem:[#allocation6 + $0x1f8] sm:$0xff]
    %v277 = vld [vmem:[#allocation6 + $0x200] sm:$0xff]
    %v278 = vld [vmem:[#allocation6 + $0x208] sm:$0xff]
    %v279 = vld [vmem:[#allocation6 + $0x210] sm:$0xff]
    %v280 = vld [vmem:[#allocation6 + $0x218] sm:$0xff]
    %v281 = vld [vmem:[#allocation6 + $0x220] sm:$0xff]
    %v282 = vld [vmem:[#allocation6 + $0x228] sm:$0xff]
    %v283 = vld [vmem:[#allocation6 + $0x230] sm:$0xff]
    %v284 = vld [vmem:[#allocation6 + $0x238] sm:$0xff]
    %v285 = vld [vmem:[#allocation6 + $0x240] sm:$0xff]
    %v286 = vld [vmem:[#allocation6 + $0x248] sm:$0xff]
    %v287 = vld [vmem:[#allocation6 + $0x250] sm:$0xff]
    %v288 = vld [vmem:[#allocation6 + $0x258] sm:$0xff]
    %v289 = vld [vmem:[#allocation6 + $0x260] sm:$0xff]
    %v290 = vld [vmem:[#allocation6 + $0x268] sm:$0xff]
    %v291 = vld [vmem:[#allocation6 + $0x270] sm:$0xff]
    %v292 = vld [vmem:[#allocation6 + $0x278] sm:$0xff]
    %v293 = vld [vmem:[#allocation6 + $0x280] sm:$0xff]
    %v294 = vld [vmem:[#allocation6 + $0x288] sm:$0xff]
    %v295 = vld [vmem:[#allocation6 + $0x290] sm:$0xff]
    %v296 = vld [vmem:[#allocation6 + $0x298] sm:$0xff]
    %v297 = vld [vmem:[#allocation6 + $0x2a0] sm:$0xff]
    %v298 = vld [vmem:[#allocation6 + $0x2a8] sm:$0xff]
    %v299 = vld [vmem:[#allocation6 + $0x2b0] sm:$0xff]
    %v300 = vld [vmem:[#allocation6 + $0x2b8] sm:$0xff]
    %v301 = vld [vmem:[#allocation6 + $0x2c0] sm:$0xff]
    %v302 = vld [vmem:[#allocation6 + $0x2c8] sm:$0xff]
    %v303 = vld [vmem:[#allocation6 + $0x2d0] sm:$0xff]
    %v304 = vld [vmem:[#allocation6 + $0x2d8] sm:$0xff]
    %v305 = vld [vmem:[#allocation6 + $0x2e0] sm:$0xff]
    %v306 = vld [vmem:[#allocation6 + $0x2e8] sm:$0xff]
    %v307 = vld [vmem:[#allocation6 + $0x2f0] sm:$0xff]
    %v308 = vld [vmem:[#allocation6 + $0x2f8] sm:$0xff]
    %v309 = vld [vmem:[#allocation6 + $0x300] sm:$0xff]
    %v310 = vld [vmem:[#allocation6 + $0x308] sm:$0xff]
    %v311 = vld [vmem:[#allocation6 + $0x310] sm:$0xff]
    %v312 = vld [vmem:[#allocation6 + $0x318] sm:$0xff]
    %v313 = vld [vmem:[#allocation6 + $0x320] sm:$0xff]
    %v314 = vld [vmem:[#allocation6 + $0x328] sm:$0xff]
    %v315 = vld [vmem:[#allocation6 + $0x330] sm:$0xff]
    %v316 = vld [vmem:[#allocation6 + $0x338] sm:$0xff]
    %v317 = vld [vmem:[#allocation6 + $0x340] sm:$0xff]
    %v318 = vld [vmem:[#allocation6 + $0x348] sm:$0xff]
    %v319 = vld [vmem:[#allocation6 + $0x350] sm:$0xff]
    %v320 = vld [vmem:[#allocation6 + $0x358] sm:$0xff]
    %v321 = vld [vmem:[#allocation6 + $0x360] sm:$0xff]
    %v322 = vld [vmem:[#allocation6 + $0x368] sm:$0xff]
    %v323 = vld [vmem:[#allocation6 + $0x370] sm:$0xff]
    %v324 = vld [vmem:[#allocation6 + $0x378] sm:$0xff]
    %v325 = vld [vmem:[#allocation6 + $0x380] sm:$0xff]
    %v326 = vld [vmem:[#allocation6 + $0x388] sm:$0xff]
    %v327 = vld [vmem:[#allocation6 + $0x390] sm:$0xff]
    %v328 = vld [vmem:[#allocation6 + $0x398] sm:$0xff]
    %v329 = vld [vmem:[#allocation6 + $0x3a0] sm:$0xff]
    %v330 = vld [vmem:[#allocation6 + $0x3a8] sm:$0xff]
    %v331 = vld [vmem:[#allocation6 + $0x3b0] sm:$0xff]
    %v332 = vld [vmem:[#allocation6 + $0x3b8] sm:$0xff]
    %v333 = vld [vmem:[#allocation6 + $0x3c0] sm:$0xff]
    %v334 = vld [vmem:[#allocation6 + $0x3c8] sm:$0xff]
    %v335 = vld [vmem:[#allocation6 + $0x3d0] sm:$0xff]
    %v336 = vld [vmem:[#allocation6 + $0x3d8] sm:$0xff]
    %v337 = vld [vmem:[#allocation6 + $0x3e0] sm:$0xff]
    %v338 = vld [vmem:[#allocation6 + $0x3e8] sm:$0xff]
    %v339 = vld [vmem:[#allocation6 + $0x3f0] sm:$0xff]
    %v340 = vld [vmem:[#allocation6 + $0x3f8] sm:$0xff]
    %v341 = vld [vmem:[#allocation6 + $0x400] sm:$0xff]
    %v342 = vld [vmem:[#allocation6 + $0x408] sm:$0xff]
    %v343 = vld [vmem:[#allocation6 + $0x410] sm:$0xff]
    %v344 = vld [vmem:[#allocation6 + $0x418] sm:$0xff]
    %v345 = vld [vmem:[#allocation6 + $0x420] sm:$0xff]
    %v346 = vld [vmem:[#allocation6 + $0x428] sm:$0xff]
    %v347 = vld [vmem:[#allocation6 + $0x430] sm:$0xff]
    %v348 = vld [vmem:[#allocation6 + $0x438] sm:$0xff]
    %v349 = vld [vmem:[#allocation6 + $0x440] sm:$0xff]
    %v350 = vld [vmem:[#allocation6 + $0x448] sm:$0xff]
    %v351 = vld [vmem:[#allocation6 + $0x450] sm:$0xff]
    %v352 = vld [vmem:[#allocation6 + $0x458] sm:$0xff]
    %v353 = vld [vmem:[#allocation6 + $0x460] sm:$0xff]
    %v354 = vld [vmem:[#allocation6 + $0x468] sm:$0xff]
    %v355 = vld [vmem:[#allocation6 + $0x470] sm:$0xff]
    %v356 = vld [vmem:[#allocation6 + $0x478] sm:$0xff]
    %v357 = vld [vmem:[#allocation6 + $0x480] sm:$0xff]
    %v358 = vld [vmem:[#allocation6 + $0x488] sm:$0xff]
    %v359 = vld [vmem:[#allocation6 + $0x490] sm:$0xff]
    %v360 = vld [vmem:[#allocation6 + $0x498] sm:$0xff]
    %v361 = vld [vmem:[#allocation6 + $0x4a0] sm:$0xff]
    %v362 = vld [vmem:[#allocation6 + $0x4a8] sm:$0xff]
    %v363 = vld [vmem:[#allocation6 + $0x4b0] sm:$0xff]
    %v364 = vld [vmem:[#allocation6 + $0x4b8] sm:$0xff]
    %v365 = vld [vmem:[#allocation6 + $0x4c0] sm:$0xff]
    %v366 = vld [vmem:[#allocation6 + $0x4c8] sm:$0xff]
    %v367 = vld [vmem:[#allocation6 + $0x4d0] sm:$0xff]
    %v368 = vld [vmem:[#allocation6 + $0x4d8] sm:$0xff]
    %v369 = vld [vmem:[#allocation6 + $0x4e0] sm:$0xff]
    %v370 = vld [vmem:[#allocation6 + $0x4e8] sm:$0xff]
    %v371 = vld [vmem:[#allocation6 + $0x4f0] sm:$0xff]
    %v372 = vld [vmem:[#allocation6 + $0x4f8] sm:$0xff]
    %v373 = vld [vmem:[#allocation6 + $0x500] sm:$0xff]
    %v374 = vld [vmem:[#allocation6 + $0x508] sm:$0xff]
    %v375 = vld [vmem:[#allocation6 + $0x510] sm:$0xff]
    %v376 = vld [vmem:[#allocation6 + $0x518] sm:$0xff]
    %v377 = vld [vmem:[#allocation6 + $0x520] sm:$0xff]
    %v378 = vld [vmem:[#allocation6 + $0x528] sm:$0xff]
    %v379 = vld [vmem:[#allocation6 + $0x530] sm:$0xff]
    %v380 = vld [vmem:[#allocation6 + $0x538] sm:$0xff]
    %v381 = vld [vmem:[#allocation6 + $0x540] sm:$0xff]
    %v382 = vld [vmem:[#allocation6 + $0x548] sm:$0xff]
    %v383 = vld [vmem:[#allocation6 + $0x550] sm:$0xff]
    %v384 = vld [vmem:[#allocation6 + $0x558] sm:$0xff]
    %v385 = vld [vmem:[#allocation6 + $0x560] sm:$0xff]
    %v386 = vld [vmem:[#allocation6 + $0x568] sm:$0xff]
    %v387 = vld [vmem:[#allocation6 + $0x570] sm:$0xff]
    %v388 = vld [vmem:[#allocation6 + $0x578] sm:$0xff]
    %v389 = vld [vmem:[#allocation6 + $0x580] sm:$0xff]
    %v390 = vld [vmem:[#allocation6 + $0x588] sm:$0xff]
    %v391 = vld [vmem:[#allocation6 + $0x590] sm:$0xff]
    %v392 = vld [vmem:[#allocation6 + $0x598] sm:$0xff]
    %v393 = vld [vmem:[#allocation6 + $0x5a0] sm:$0xff]
    %v394 = vld [vmem:[#allocation6 + $0x5a8] sm:$0xff]
    %v395 = vld [vmem:[#allocation6 + $0x5b0] sm:$0xff]
    %v396 = vld [vmem:[#allocation6 + $0x5b8] sm:$0xff]
    %v397 = vld [vmem:[#allocation6 + $0x5c0] sm:$0xff]
    %v398 = vld [vmem:[#allocation6 + $0x5c8] sm:$0xff]
    %v399 = vld [vmem:[#allocation6 + $0x5d0] sm:$0xff]
    %v400 = vld [vmem:[#allocation6 + $0x5d8] sm:$0xff]
    %v401 = vld [vmem:[#allocation6 + $0x5e0] sm:$0xff]
    %v402 = vld [vmem:[#allocation6 + $0x5e8] sm:$0xff]
    %v403 = vld [vmem:[#allocation6 + $0x5f0] sm:$0xff]
    %v404 = vld [vmem:[#allocation6 + $0x5f8] sm:$0xff]
    %v405 = vld [vmem:[#allocation6 + $0x600] sm:$0xff]
    %v406 = vld [vmem:[#allocation6 + $0x608] sm:$0xff]
    %v407 = vld [vmem:[#allocation6 + $0x610] sm:$0xff]
    %v408 = vld [vmem:[#allocation6 + $0x618] sm:$0xff]
    %v409 = vld [vmem:[#allocation6 + $0x620] sm:$0xff]
    %v410 = vld [vmem:[#allocation6 + $0x628] sm:$0xff]
    %v411 = vld [vmem:[#allocation6 + $0x630] sm:$0xff]
    %v412 = vld [vmem:[#allocation6 + $0x638] sm:$0xff]
    %v413 = vld [vmem:[#allocation6 + $0x640] sm:$0xff]
    %v414 = vld [vmem:[#allocation6 + $0x648] sm:$0xff]
    %v415 = vld [vmem:[#allocation6 + $0x650] sm:$0xff]
    %v416 = vld [vmem:[#allocation6 + $0x658] sm:$0xff]
    %v417 = vld [vmem:[#allocation6 + $0x660] sm:$0xff]
    %v418 = vld [vmem:[#allocation6 + $0x668] sm:$0xff]
    %v419 = vld [vmem:[#allocation6 + $0x670] sm:$0xff]
    %v420 = vld [vmem:[#allocation6 + $0x678] sm:$0xff]
    %v421 = vld [vmem:[#allocation6 + $0x680] sm:$0xff]
    %v422 = vld [vmem:[#allocation6 + $0x688] sm:$0xff]
    %v423 = vld [vmem:[#allocation6 + $0x690] sm:$0xff]
    %v424 = vld [vmem:[#allocation6 + $0x698] sm:$0xff]
    %v425 = vld [vmem:[#allocation6 + $0x6a0] sm:$0xff]
    %v426 = vld [vmem:[#allocation6 + $0x6a8] sm:$0xff]
    %v427 = vld [vmem:[#allocation6 + $0x6b0] sm:$0xff]
    %v428 = vld [vmem:[#allocation6 + $0x6b8] sm:$0xff]
    %v429 = vld [vmem:[#allocation6 + $0x6c0] sm:$0xff]
    %v430 = vld [vmem:[#allocation6 + $0x6c8] sm:$0xff]
    %v431 = vld [vmem:[#allocation6 + $0x6d0] sm:$0xff]
    %v432 = vld [vmem:[#allocation6 + $0x6d8] sm:$0xff]
    %v433 = vld [vmem:[#allocation6 + $0x6e0] sm:$0xff]
    %v434 = vld [vmem:[#allocation6 + $0x6e8] sm:$0xff]
    %v435 = vld [vmem:[#allocation6 + $0x6f0] sm:$0xff]
    %v436 = vld [vmem:[#allocation6 + $0x6f8] sm:$0xff]
    %v437 = vld [vmem:[#allocation6 + $0x700] sm:$0xff]
    %v438 = vld [vmem:[#allocation6 + $0x708] sm:$0xff]
    %v439 = vld [vmem:[#allocation6 + $0x710] sm:$0xff]
    %v440 = vld [vmem:[#allocation6 + $0x718] sm:$0xff]
    %v441 = vld [vmem:[#allocation6 + $0x720] sm:$0xff]
    %v442 = vld [vmem:[#allocation6 + $0x728] sm:$0xff]
    %v443 = vld [vmem:[#allocation6 + $0x730] sm:$0xff]
    %v444 = vld [vmem:[#allocation6 + $0x738] sm:$0xff]
    %v445 = vld [vmem:[#allocation6 + $0x740] sm:$0xff]
    %v446 = vld [vmem:[#allocation6 + $0x748] sm:$0xff]
    %v447 = vld [vmem:[#allocation6 + $0x750] sm:$0xff]
    %v448 = vld [vmem:[#allocation6 + $0x758] sm:$0xff]
    %v449 = vld [vmem:[#allocation6 + $0x760] sm:$0xff]
    %v450 = vld [vmem:[#allocation6 + $0x768] sm:$0xff]
    %v451 = vld [vmem:[#allocation6 + $0x770] sm:$0xff]
    %v452 = vld [vmem:[#allocation6 + $0x778] sm:$0xff]
    %v453 = vld [vmem:[#allocation6 + $0x780] sm:$0xff]
    %v454 = vld [vmem:[#allocation6 + $0x788] sm:$0xff]
    %v455 = vld [vmem:[#allocation6 + $0x790] sm:$0xff]
    %v456 = vld [vmem:[#allocation6 + $0x798] sm:$0xff]
    %v457 = vld [vmem:[#allocation6 + $0x7a0] sm:$0xff]
    %v458 = vld [vmem:[#allocation6 + $0x7a8] sm:$0xff]
    %v459 = vld [vmem:[#allocation6 + $0x7b0] sm:$0xff]
    %v460 = vld [vmem:[#allocation6 + $0x7b8] sm:$0xff]
    %v461 = vld [vmem:[#allocation6 + $0x7c0] sm:$0xff]
    %v462 = vld [vmem:[#allocation6 + $0x7c8] sm:$0xff]
    %v463 = vld [vmem:[#allocation6 + $0x7d0] sm:$0xff]
    %v464 = vld [vmem:[#allocation6 + $0x7d8] sm:$0xff]
    %v465 = vld [vmem:[#allocation6 + $0x7e0] sm:$0xff]
    %v466 = vld [vmem:[#allocation6 + $0x7e8] sm:$0xff]
    %v467 = vld [vmem:[#allocation6 + $0x7f0] sm:$0xff]
    %v468 = vld [vmem:[#allocation6 + $0x7f8] sm:$0xff]
    %v469 = vld [vmem:[#allocation7] sm:$0xff]
    %v471 = vlaneseq
    %v472 = vshrl.u32 %v471, 7
    %v473 = vsub.s32 0, %v472
    %v474 = vrot.slane %v469, %v473
    %v475 = vlaneseq
    %v476 = vshrl.u32 %v475, 7
    %v477 = vsub.s32 1, %v476
    %v478 = vrot.slane %v469, %v477
    %v479 = vlaneseq
    %v480 = vshrl.u32 %v479, 7
    %v481 = vsub.s32 2, %v480
    %v482 = vrot.slane %v469, %v481
    %v483 = vlaneseq
    %v484 = vshrl.u32 %v483, 7
    %v485 = vsub.s32 3, %v484
    %v486 = vrot.slane %v469, %v485
    %v487 = vlaneseq
    %v488 = vshrl.u32 %v487, 7
    %v489 = vsub.s32 4, %v488
    %v490 = vrot.slane %v469, %v489
    %v491 = vlaneseq
    %v492 = vshrl.u32 %v491, 7
    %v493 = vsub.s32 5, %v492
    %v494 = vrot.slane %v469, %v493
    %v495 = vlaneseq
    %v496 = vshrl.u32 %v495, 7
    %v497 = vsub.s32 6, %v496
    %v498 = vrot.slane %v469, %v497
    %v499 = vlaneseq
    %v500 = vshrl.u32 %v499, 7
    %v501 = vsub.s32 7, %v500
    %v502 = vrot.slane %v469, %v501
    %v767 = vunpack.c.l.b16 %v213
    %v768 = vunpack.c.h.b16 %v213
    %v769 = vunpack.c.l.b16 %v214
    %v770 = vunpack.c.h.b16 %v214
    %v771 = vunpack.c.l.b16 %v215
    %v772 = vunpack.c.h.b16 %v215
    %v773 = vunpack.c.l.b16 %v216
    %v774 = vunpack.c.h.b16 %v216
    %v775 = vunpack.c.l.b16 %v217
    %v776 = vunpack.c.h.b16 %v217
    %v777 = vunpack.c.l.b16 %v218
    %v778 = vunpack.c.h.b16 %v218
    %v779 = vunpack.c.l.b16 %v219
    %v780 = vunpack.c.h.b16 %v219
    %v781 = vunpack.c.l.b16 %v220
    %v782 = vunpack.c.h.b16 %v220
    %v783 = vunpack.c.l.b16 %v221
    %v784 = vunpack.c.h.b16 %v221
    %v785 = vunpack.c.l.b16 %v222
    %v786 = vunpack.c.h.b16 %v222
    %v787 = vunpack.c.l.b16 %v223
    %v788 = vunpack.c.h.b16 %v223
    %v789 = vunpack.c.l.b16 %v224
    %v790 = vunpack.c.h.b16 %v224
    %v791 = vunpack.c.l.b16 %v225
    %v792 = vunpack.c.h.b16 %v225
    %v793 = vunpack.c.l.b16 %v226
    %v794 = vunpack.c.h.b16 %v226
    %v795 = vunpack.c.l.b16 %v227
    %v796 = vunpack.c.h.b16 %v227
    %v797 = vunpack.c.l.b16 %v228
    %v798 = vunpack.c.h.b16 %v228
    %v799 = vunpack.c.l.b16 %v229
    %v800 = vunpack.c.h.b16 %v229
    %v801 = vunpack.c.l.b16 %v230
    %v802 = vunpack.c.h.b16 %v230
    %v803 = vunpack.c.l.b16 %v231
    %v804 = vunpack.c.h.b16 %v231
    %v805 = vunpack.c.l.b16 %v232
    %v806 = vunpack.c.h.b16 %v232
    %v807 = vunpack.c.l.b16 %v233
    %v808 = vunpack.c.h.b16 %v233
    %v809 = vunpack.c.l.b16 %v234
    %v810 = vunpack.c.h.b16 %v234
    %v811 = vunpack.c.l.b16 %v235
    %v812 = vunpack.c.h.b16 %v235
    %v813 = vunpack.c.l.b16 %v236
    %v814 = vunpack.c.h.b16 %v236
    %v815 = vunpack.c.l.b16 %v237
    %v816 = vunpack.c.h.b16 %v237
    %v817 = vunpack.c.l.b16 %v238
    %v818 = vunpack.c.h.b16 %v238
    %v819 = vunpack.c.l.b16 %v239
    %v820 = vunpack.c.h.b16 %v239
    %v821 = vunpack.c.l.b16 %v240
    %v822 = vunpack.c.h.b16 %v240
    %v823 = vunpack.c.l.b16 %v241
    %v824 = vunpack.c.h.b16 %v241
    %v825 = vunpack.c.l.b16 %v242
    %v826 = vunpack.c.h.b16 %v242
    %v827 = vunpack.c.l.b16 %v243
    %v828 = vunpack.c.h.b16 %v243
    %v829 = vunpack.c.l.b16 %v244
    %v830 = vunpack.c.h.b16 %v244
    %v831 = vunpack.c.l.b16 %v245
    %v832 = vunpack.c.h.b16 %v245
    %v833 = vunpack.c.l.b16 %v246
    %v834 = vunpack.c.h.b16 %v246
    %v835 = vunpack.c.l.b16 %v247
    %v836 = vunpack.c.h.b16 %v247
    %v837 = vunpack.c.l.b16 %v248
    %v838 = vunpack.c.h.b16 %v248
    %v839 = vunpack.c.l.b16 %v249
    %v840 = vunpack.c.h.b16 %v249
    %v841 = vunpack.c.l.b16 %v250
    %v842 = vunpack.c.h.b16 %v250
    %v843 = vunpack.c.l.b16 %v251
    %v844 = vunpack.c.h.b16 %v251
    %v845 = vunpack.c.l.b16 %v252
    %v846 = vunpack.c.h.b16 %v252
    %v847 = vunpack.c.l.b16 %v253
    %v848 = vunpack.c.h.b16 %v253
    %v849 = vunpack.c.l.b16 %v254
    %v850 = vunpack.c.h.b16 %v254
    %v851 = vunpack.c.l.b16 %v255
    %v852 = vunpack.c.h.b16 %v255
    %v853 = vunpack.c.l.b16 %v256
    %v854 = vunpack.c.h.b16 %v256
    %v855 = vunpack.c.l.b16 %v257
    %v856 = vunpack.c.h.b16 %v257
    %v857 = vunpack.c.l.b16 %v258
    %v858 = vunpack.c.h.b16 %v258
    %v859 = vunpack.c.l.b16 %v259
    %v860 = vunpack.c.h.b16 %v259
    %v861 = vunpack.c.l.b16 %v260
    %v862 = vunpack.c.h.b16 %v260
    %v863 = vunpack.c.l.b16 %v261
    %v864 = vunpack.c.h.b16 %v261
    %v865 = vunpack.c.l.b16 %v262
    %v866 = vunpack.c.h.b16 %v262
    %v867 = vunpack.c.l.b16 %v263
    %v868 = vunpack.c.h.b16 %v263
    %v869 = vunpack.c.l.b16 %v264
    %v870 = vunpack.c.h.b16 %v264
    %v871 = vunpack.c.l.b16 %v265
    %v872 = vunpack.c.h.b16 %v265
    %v873 = vunpack.c.l.b16 %v266
    %v874 = vunpack.c.h.b16 %v266
    %v875 = vunpack.c.l.b16 %v267
    %v876 = vunpack.c.h.b16 %v267
    %v877 = vunpack.c.l.b16 %v268
    %v878 = vunpack.c.h.b16 %v268
    %v879 = vunpack.c.l.b16 %v269
    %v880 = vunpack.c.h.b16 %v269
    %v881 = vunpack.c.l.b16 %v270
    %v882 = vunpack.c.h.b16 %v270
    %v883 = vunpack.c.l.b16 %v271
    %v884 = vunpack.c.h.b16 %v271
    %v885 = vunpack.c.l.b16 %v272
    %v886 = vunpack.c.h.b16 %v272
    %v887 = vunpack.c.l.b16 %v273
    %v888 = vunpack.c.h.b16 %v273
    %v889 = vunpack.c.l.b16 %v274
    %v890 = vunpack.c.h.b16 %v274
    %v891 = vunpack.c.l.b16 %v275
    %v892 = vunpack.c.h.b16 %v275
    %v893 = vunpack.c.l.b16 %v276
    %v894 = vunpack.c.h.b16 %v276
    %v895 = vunpack.c.l.b16 %v277
    %v896 = vunpack.c.h.b16 %v277
    %v897 = vunpack.c.l.b16 %v278
    %v898 = vunpack.c.h.b16 %v278
    %v899 = vunpack.c.l.b16 %v279
    %v900 = vunpack.c.h.b16 %v279
    %v901 = vunpack.c.l.b16 %v280
    %v902 = vunpack.c.h.b16 %v280
    %v903 = vunpack.c.l.b16 %v281
    %v904 = vunpack.c.h.b16 %v281
    %v905 = vunpack.c.l.b16 %v282
    %v906 = vunpack.c.h.b16 %v282
    %v907 = vunpack.c.l.b16 %v283
    %v908 = vunpack.c.h.b16 %v283
    %v909 = vunpack.c.l.b16 %v284
    %v910 = vunpack.c.h.b16 %v284
    %v911 = vunpack.c.l.b16 %v285
    %v912 = vunpack.c.h.b16 %v285
    %v913 = vunpack.c.l.b16 %v286
    %v914 = vunpack.c.h.b16 %v286
    %v915 = vunpack.c.l.b16 %v287
    %v916 = vunpack.c.h.b16 %v287
    %v917 = vunpack.c.l.b16 %v288
    %v918 = vunpack.c.h.b16 %v288
    %v919 = vunpack.c.l.b16 %v289
    %v920 = vunpack.c.h.b16 %v289
    %v921 = vunpack.c.l.b16 %v290
    %v922 = vunpack.c.h.b16 %v290
    %v923 = vunpack.c.l.b16 %v291
    %v924 = vunpack.c.h.b16 %v291
    %v925 = vunpack.c.l.b16 %v292
    %v926 = vunpack.c.h.b16 %v292
    %v927 = vunpack.c.l.b16 %v293
    %v928 = vunpack.c.h.b16 %v293
    %v929 = vunpack.c.l.b16 %v294
    %v930 = vunpack.c.h.b16 %v294
    %v931 = vunpack.c.l.b16 %v295
    %v932 = vunpack.c.h.b16 %v295
    %v933 = vunpack.c.l.b16 %v296
    %v934 = vunpack.c.h.b16 %v296
    %v935 = vunpack.c.l.b16 %v297
    %v936 = vunpack.c.h.b16 %v297
    %v937 = vunpack.c.l.b16 %v298
    %v938 = vunpack.c.h.b16 %v298
    %v939 = vunpack.c.l.b16 %v299
    %v940 = vunpack.c.h.b16 %v299
    %v941 = vunpack.c.l.b16 %v300
    %v942 = vunpack.c.h.b16 %v300
    %v943 = vunpack.c.l.b16 %v301
    %v944 = vunpack.c.h.b16 %v301
    %v945 = vunpack.c.l.b16 %v302
    %v946 = vunpack.c.h.b16 %v302
    %v947 = vunpack.c.l.b16 %v303
    %v948 = vunpack.c.h.b16 %v303
    %v949 = vunpack.c.l.b16 %v304
    %v950 = vunpack.c.h.b16 %v304
    %v951 = vunpack.c.l.b16 %v305
    %v952 = vunpack.c.h.b16 %v305
    %v953 = vunpack.c.l.b16 %v306
    %v954 = vunpack.c.h.b16 %v306
    %v955 = vunpack.c.l.b16 %v307
    %v956 = vunpack.c.h.b16 %v307
    %v957 = vunpack.c.l.b16 %v308
    %v958 = vunpack.c.h.b16 %v308
    %v959 = vunpack.c.l.b16 %v309
    %v960 = vunpack.c.h.b16 %v309
    %v961 = vunpack.c.l.b16 %v310
    %v962 = vunpack.c.h.b16 %v310
    %v963 = vunpack.c.l.b16 %v311
    %v964 = vunpack.c.h.b16 %v311
    %v965 = vunpack.c.l.b16 %v312
    %v966 = vunpack.c.h.b16 %v312
    %v967 = vunpack.c.l.b16 %v313
    %v968 = vunpack.c.h.b16 %v313
    %v969 = vunpack.c.l.b16 %v314
    %v970 = vunpack.c.h.b16 %v314
    %v971 = vunpack.c.l.b16 %v315
    %v972 = vunpack.c.h.b16 %v315
    %v973 = vunpack.c.l.b16 %v316
    %v974 = vunpack.c.h.b16 %v316
    %v975 = vunpack.c.l.b16 %v317
    %v976 = vunpack.c.h.b16 %v317
    %v977 = vunpack.c.l.b16 %v318
    %v978 = vunpack.c.h.b16 %v318
    %v979 = vunpack.c.l.b16 %v319
    %v980 = vunpack.c.h.b16 %v319
    %v981 = vunpack.c.l.b16 %v320
    %v982 = vunpack.c.h.b16 %v320
    %v983 = vunpack.c.l.b16 %v321
    %v984 = vunpack.c.h.b16 %v321
    %v985 = vunpack.c.l.b16 %v322
    %v986 = vunpack.c.h.b16 %v322
    %v987 = vunpack.c.l.b16 %v323
    %v988 = vunpack.c.h.b16 %v323
    %v989 = vunpack.c.l.b16 %v324
    %v990 = vunpack.c.h.b16 %v324
    %v991 = vunpack.c.l.b16 %v325
    %v992 = vunpack.c.h.b16 %v325
    %v993 = vunpack.c.l.b16 %v326
    %v994 = vunpack.c.h.b16 %v326
    %v995 = vunpack.c.l.b16 %v327
    %v996 = vunpack.c.h.b16 %v327
    %v997 = vunpack.c.l.b16 %v328
    %v998 = vunpack.c.h.b16 %v328
    %v999 = vunpack.c.l.b16 %v329
    %v1000 = vunpack.c.h.b16 %v329
    %v1001 = vunpack.c.l.b16 %v330
    %v1002 = vunpack.c.h.b16 %v330
    %v1003 = vunpack.c.l.b16 %v331
    %v1004 = vunpack.c.h.b16 %v331
    %v1005 = vunpack.c.l.b16 %v332
    %v1006 = vunpack.c.h.b16 %v332
    %v1007 = vunpack.c.l.b16 %v333
    %v1008 = vunpack.c.h.b16 %v333
    %v1009 = vunpack.c.l.b16 %v334
    %v1010 = vunpack.c.h.b16 %v334
    %v1011 = vunpack.c.l.b16 %v335
    %v1012 = vunpack.c.h.b16 %v335
    %v1013 = vunpack.c.l.b16 %v336
    %v1014 = vunpack.c.h.b16 %v336
    %v1015 = vunpack.c.l.b16 %v337
    %v1016 = vunpack.c.h.b16 %v337
    %v1017 = vunpack.c.l.b16 %v338
    %v1018 = vunpack.c.h.b16 %v338
    %v1019 = vunpack.c.l.b16 %v339
    %v1020 = vunpack.c.h.b16 %v339
    %v1021 = vunpack.c.l.b16 %v340
    %v1022 = vunpack.c.h.b16 %v340
    %v1023 = vunpack.c.l.b16 %v341
    %v1024 = vunpack.c.h.b16 %v341
    %v1025 = vunpack.c.l.b16 %v342
    %v1026 = vunpack.c.h.b16 %v342
    %v1027 = vunpack.c.l.b16 %v343
    %v1028 = vunpack.c.h.b16 %v343
    %v1029 = vunpack.c.l.b16 %v344
    %v1030 = vunpack.c.h.b16 %v344
    %v1031 = vunpack.c.l.b16 %v345
    %v1032 = vunpack.c.h.b16 %v345
    %v1033 = vunpack.c.l.b16 %v346
    %v1034 = vunpack.c.h.b16 %v346
    %v1035 = vunpack.c.l.b16 %v347
    %v1036 = vunpack.c.h.b16 %v347
    %v1037 = vunpack.c.l.b16 %v348
    %v1038 = vunpack.c.h.b16 %v348
    %v1039 = vunpack.c.l.b16 %v349
    %v1040 = vunpack.c.h.b16 %v349
    %v1041 = vunpack.c.l.b16 %v350
    %v1042 = vunpack.c.h.b16 %v350
    %v1043 = vunpack.c.l.b16 %v351
    %v1044 = vunpack.c.h.b16 %v351
    %v1045 = vunpack.c.l.b16 %v352
    %v1046 = vunpack.c.h.b16 %v352
    %v1047 = vunpack.c.l.b16 %v353
    %v1048 = vunpack.c.h.b16 %v353
    %v1049 = vunpack.c.l.b16 %v354
    %v1050 = vunpack.c.h.b16 %v354
    %v1051 = vunpack.c.l.b16 %v355
    %v1052 = vunpack.c.h.b16 %v355
    %v1053 = vunpack.c.l.b16 %v356
    %v1054 = vunpack.c.h.b16 %v356
    %v1055 = vunpack.c.l.b16 %v357
    %v1056 = vunpack.c.h.b16 %v357
    %v1057 = vunpack.c.l.b16 %v358
    %v1058 = vunpack.c.h.b16 %v358
    %v1059 = vunpack.c.l.b16 %v359
    %v1060 = vunpack.c.h.b16 %v359
    %v1061 = vunpack.c.l.b16 %v360
    %v1062 = vunpack.c.h.b16 %v360
    %v1063 = vunpack.c.l.b16 %v361
    %v1064 = vunpack.c.h.b16 %v361
    %v1065 = vunpack.c.l.b16 %v362
    %v1066 = vunpack.c.h.b16 %v362
    %v1067 = vunpack.c.l.b16 %v363
    %v1068 = vunpack.c.h.b16 %v363
    %v1069 = vunpack.c.l.b16 %v364
    %v1070 = vunpack.c.h.b16 %v364
    %v1071 = vunpack.c.l.b16 %v365
    %v1072 = vunpack.c.h.b16 %v365
    %v1073 = vunpack.c.l.b16 %v366
    %v1074 = vunpack.c.h.b16 %v366
    %v1075 = vunpack.c.l.b16 %v367
    %v1076 = vunpack.c.h.b16 %v367
    %v1077 = vunpack.c.l.b16 %v368
    %v1078 = vunpack.c.h.b16 %v368
    %v1079 = vunpack.c.l.b16 %v369
    %v1080 = vunpack.c.h.b16 %v369
    %v1081 = vunpack.c.l.b16 %v370
    %v1082 = vunpack.c.h.b16 %v370
    %v1083 = vunpack.c.l.b16 %v371
    %v1084 = vunpack.c.h.b16 %v371
    %v1085 = vunpack.c.l.b16 %v372
    %v1086 = vunpack.c.h.b16 %v372
    %v1087 = vunpack.c.l.b16 %v373
    %v1088 = vunpack.c.h.b16 %v373
    %v1089 = vunpack.c.l.b16 %v374
    %v1090 = vunpack.c.h.b16 %v374
    %v1091 = vunpack.c.l.b16 %v375
    %v1092 = vunpack.c.h.b16 %v375
    %v1093 = vunpack.c.l.b16 %v376
    %v1094 = vunpack.c.h.b16 %v376
    %v1095 = vunpack.c.l.b16 %v377
    %v1096 = vunpack.c.h.b16 %v377
    %v1097 = vunpack.c.l.b16 %v378
    %v1098 = vunpack.c.h.b16 %v378
    %v1099 = vunpack.c.l.b16 %v379
    %v1100 = vunpack.c.h.b16 %v379
    %v1101 = vunpack.c.l.b16 %v380
    %v1102 = vunpack.c.h.b16 %v380
    %v1103 = vunpack.c.l.b16 %v381
    %v1104 = vunpack.c.h.b16 %v381
    %v1105 = vunpack.c.l.b16 %v382
    %v1106 = vunpack.c.h.b16 %v382
    %v1107 = vunpack.c.l.b16 %v383
    %v1108 = vunpack.c.h.b16 %v383
    %v1109 = vunpack.c.l.b16 %v384
    %v1110 = vunpack.c.h.b16 %v384
    %v1111 = vunpack.c.l.b16 %v385
    %v1112 = vunpack.c.h.b16 %v385
    %v1113 = vunpack.c.l.b16 %v386
    %v1114 = vunpack.c.h.b16 %v386
    %v1115 = vunpack.c.l.b16 %v387
    %v1116 = vunpack.c.h.b16 %v387
    %v1117 = vunpack.c.l.b16 %v388
    %v1118 = vunpack.c.h.b16 %v388
    %v1119 = vunpack.c.l.b16 %v389
    %v1120 = vunpack.c.h.b16 %v389
    %v1121 = vunpack.c.l.b16 %v390
    %v1122 = vunpack.c.h.b16 %v390
    %v1123 = vunpack.c.l.b16 %v391
    %v1124 = vunpack.c.h.b16 %v391
    %v1125 = vunpack.c.l.b16 %v392
    %v1126 = vunpack.c.h.b16 %v392
    %v1127 = vunpack.c.l.b16 %v393
    %v1128 = vunpack.c.h.b16 %v393
    %v1129 = vunpack.c.l.b16 %v394
    %v1130 = vunpack.c.h.b16 %v394
    %v1131 = vunpack.c.l.b16 %v395
    %v1132 = vunpack.c.h.b16 %v395
    %v1133 = vunpack.c.l.b16 %v396
    %v1134 = vunpack.c.h.b16 %v396
    %v1135 = vunpack.c.l.b16 %v397
    %v1136 = vunpack.c.h.b16 %v397
    %v1137 = vunpack.c.l.b16 %v398
    %v1138 = vunpack.c.h.b16 %v398
    %v1139 = vunpack.c.l.b16 %v399
    %v1140 = vunpack.c.h.b16 %v399
    %v1141 = vunpack.c.l.b16 %v400
    %v1142 = vunpack.c.h.b16 %v400
    %v1143 = vunpack.c.l.b16 %v401
    %v1144 = vunpack.c.h.b16 %v401
    %v1145 = vunpack.c.l.b16 %v402
    %v1146 = vunpack.c.h.b16 %v402
    %v1147 = vunpack.c.l.b16 %v403
    %v1148 = vunpack.c.h.b16 %v403
    %v1149 = vunpack.c.l.b16 %v404
    %v1150 = vunpack.c.h.b16 %v404
    %v1151 = vunpack.c.l.b16 %v405
    %v1152 = vunpack.c.h.b16 %v405
    %v1153 = vunpack.c.l.b16 %v406
    %v1154 = vunpack.c.h.b16 %v406
    %v1155 = vunpack.c.l.b16 %v407
    %v1156 = vunpack.c.h.b16 %v407
    %v1157 = vunpack.c.l.b16 %v408
    %v1158 = vunpack.c.h.b16 %v408
    %v1159 = vunpack.c.l.b16 %v409
    %v1160 = vunpack.c.h.b16 %v409
    %v1161 = vunpack.c.l.b16 %v410
    %v1162 = vunpack.c.h.b16 %v410
    %v1163 = vunpack.c.l.b16 %v411
    %v1164 = vunpack.c.h.b16 %v411
    %v1165 = vunpack.c.l.b16 %v412
    %v1166 = vunpack.c.h.b16 %v412
    %v1167 = vunpack.c.l.b16 %v413
    %v1168 = vunpack.c.h.b16 %v413
    %v1169 = vunpack.c.l.b16 %v414
    %v1170 = vunpack.c.h.b16 %v414
    %v1171 = vunpack.c.l.b16 %v415
    %v1172 = vunpack.c.h.b16 %v415
    %v1173 = vunpack.c.l.b16 %v416
    %v1174 = vunpack.c.h.b16 %v416
    %v1175 = vunpack.c.l.b16 %v417
    %v1176 = vunpack.c.h.b16 %v417
    %v1177 = vunpack.c.l.b16 %v418
    %v1178 = vunpack.c.h.b16 %v418
    %v1179 = vunpack.c.l.b16 %v419
    %v1180 = vunpack.c.h.b16 %v419
    %v1181 = vunpack.c.l.b16 %v420
    %v1182 = vunpack.c.h.b16 %v420
    %v1183 = vunpack.c.l.b16 %v421
    %v1184 = vunpack.c.h.b16 %v421
    %v1185 = vunpack.c.l.b16 %v422
    %v1186 = vunpack.c.h.b16 %v422
    %v1187 = vunpack.c.l.b16 %v423
    %v1188 = vunpack.c.h.b16 %v423
    %v1189 = vunpack.c.l.b16 %v424
    %v1190 = vunpack.c.h.b16 %v424
    %v1191 = vunpack.c.l.b16 %v425
    %v1192 = vunpack.c.h.b16 %v425
    %v1193 = vunpack.c.l.b16 %v426
    %v1194 = vunpack.c.h.b16 %v426
    %v1195 = vunpack.c.l.b16 %v427
    %v1196 = vunpack.c.h.b16 %v427
    %v1197 = vunpack.c.l.b16 %v428
    %v1198 = vunpack.c.h.b16 %v428
    %v1199 = vunpack.c.l.b16 %v429
    %v1200 = vunpack.c.h.b16 %v429
    %v1201 = vunpack.c.l.b16 %v430
    %v1202 = vunpack.c.h.b16 %v430
    %v1203 = vunpack.c.l.b16 %v431
    %v1204 = vunpack.c.h.b16 %v431
    %v1205 = vunpack.c.l.b16 %v432
    %v1206 = vunpack.c.h.b16 %v432
    %v1207 = vunpack.c.l.b16 %v433
    %v1208 = vunpack.c.h.b16 %v433
    %v1209 = vunpack.c.l.b16 %v434
    %v1210 = vunpack.c.h.b16 %v434
    %v1211 = vunpack.c.l.b16 %v435
    %v1212 = vunpack.c.h.b16 %v435
    %v1213 = vunpack.c.l.b16 %v436
    %v1214 = vunpack.c.h.b16 %v436
    %v1215 = vunpack.c.l.b16 %v437
    %v1216 = vunpack.c.h.b16 %v437
    %v1217 = vunpack.c.l.b16 %v438
    %v1218 = vunpack.c.h.b16 %v438
    %v1219 = vunpack.c.l.b16 %v439
    %v1220 = vunpack.c.h.b16 %v439
    %v1221 = vunpack.c.l.b16 %v440
    %v1222 = vunpack.c.h.b16 %v440
    %v1223 = vunpack.c.l.b16 %v441
    %v1224 = vunpack.c.h.b16 %v441
    %v1225 = vunpack.c.l.b16 %v442
    %v1226 = vunpack.c.h.b16 %v442
    %v1227 = vunpack.c.l.b16 %v443
    %v1228 = vunpack.c.h.b16 %v443
    %v1229 = vunpack.c.l.b16 %v444
    %v1230 = vunpack.c.h.b16 %v444
    %v1231 = vunpack.c.l.b16 %v445
    %v1232 = vunpack.c.h.b16 %v445
    %v1233 = vunpack.c.l.b16 %v446
    %v1234 = vunpack.c.h.b16 %v446
    %v1235 = vunpack.c.l.b16 %v447
    %v1236 = vunpack.c.h.b16 %v447
    %v1237 = vunpack.c.l.b16 %v448
    %v1238 = vunpack.c.h.b16 %v448
    %v1239 = vunpack.c.l.b16 %v449
    %v1240 = vunpack.c.h.b16 %v449
    %v1241 = vunpack.c.l.b16 %v450
    %v1242 = vunpack.c.h.b16 %v450
    %v1243 = vunpack.c.l.b16 %v451
    %v1244 = vunpack.c.h.b16 %v451
    %v1245 = vunpack.c.l.b16 %v452
    %v1246 = vunpack.c.h.b16 %v452
    %v1247 = vunpack.c.l.b16 %v453
    %v1248 = vunpack.c.h.b16 %v453
    %v1249 = vunpack.c.l.b16 %v454
    %v1250 = vunpack.c.h.b16 %v454
    %v1251 = vunpack.c.l.b16 %v455
    %v1252 = vunpack.c.h.b16 %v455
    %v1253 = vunpack.c.l.b16 %v456
    %v1254 = vunpack.c.h.b16 %v456
    %v1255 = vunpack.c.l.b16 %v457
    %v1256 = vunpack.c.h.b16 %v457
    %v1257 = vunpack.c.l.b16 %v458
    %v1258 = vunpack.c.h.b16 %v458
    %v1259 = vunpack.c.l.b16 %v459
    %v1260 = vunpack.c.h.b16 %v459
    %v1261 = vunpack.c.l.b16 %v460
    %v1262 = vunpack.c.h.b16 %v460
    %v1263 = vunpack.c.l.b16 %v461
    %v1264 = vunpack.c.h.b16 %v461
    %v1265 = vunpack.c.l.b16 %v462
    %v1266 = vunpack.c.h.b16 %v462
    %v1267 = vunpack.c.l.b16 %v463
    %v1268 = vunpack.c.h.b16 %v463
    %v1269 = vunpack.c.l.b16 %v464
    %v1270 = vunpack.c.h.b16 %v464
    %v1271 = vunpack.c.l.b16 %v465
    %v1272 = vunpack.c.h.b16 %v465
    %v1273 = vunpack.c.l.b16 %v466
    %v1274 = vunpack.c.h.b16 %v466
    %v1275 = vunpack.c.l.b16 %v467
    %v1276 = vunpack.c.h.b16 %v467
    %v1277 = vunpack.c.l.b16 %v468
    %v1278 = vunpack.c.h.b16 %v468
    %v1279 = vpack.c.b16 %v775, %v767
    %v1280 = vpack.c.b16 %v776, %v768
    %v1281 = vpack.c.b16 %v777, %v769
    %v1282 = vpack.c.b16 %v778, %v770
    %v1283 = vpack.c.b16 %v779, %v771
    %v1284 = vpack.c.b16 %v780, %v772
    %v1285 = vpack.c.b16 %v781, %v773
    %v1286 = vpack.c.b16 %v782, %v774
    %v1287 = vpack.c.b16 %v791, %v783
    %v1288 = vpack.c.b16 %v792, %v784
    %v1289 = vpack.c.b16 %v793, %v785
    %v1290 = vpack.c.b16 %v794, %v786
    %v1291 = vpack.c.b16 %v795, %v787
    %v1292 = vpack.c.b16 %v796, %v788
    %v1293 = vpack.c.b16 %v797, %v789
    %v1294 = vpack.c.b16 %v798, %v790
    %v1295 = vpack.c.b16 %v807, %v799
    %v1296 = vpack.c.b16 %v808, %v800
    %v1297 = vpack.c.b16 %v809, %v801
    %v1298 = vpack.c.b16 %v810, %v802
    %v1299 = vpack.c.b16 %v811, %v803
    %v1300 = vpack.c.b16 %v812, %v804
    %v1301 = vpack.c.b16 %v813, %v805
    %v1302 = vpack.c.b16 %v814, %v806
    %v1303 = vpack.c.b16 %v823, %v815
    %v1304 = vpack.c.b16 %v824, %v816
    %v1305 = vpack.c.b16 %v825, %v817
    %v1306 = vpack.c.b16 %v826, %v818
    %v1307 = vpack.c.b16 %v827, %v819
    %v1308 = vpack.c.b16 %v828, %v820
    %v1309 = vpack.c.b16 %v829, %v821
    %v1310 = vpack.c.b16 %v830, %v822
    %v1311 = vpack.c.b16 %v839, %v831
    %v1312 = vpack.c.b16 %v840, %v832
    %v1313 = vpack.c.b16 %v841, %v833
    %v1314 = vpack.c.b16 %v842, %v834
    %v1315 = vpack.c.b16 %v843, %v835
    %v1316 = vpack.c.b16 %v844, %v836
    %v1317 = vpack.c.b16 %v845, %v837
    %v1318 = vpack.c.b16 %v846, %v838
    %v1319 = vpack.c.b16 %v855, %v847
    %v1320 = vpack.c.b16 %v856, %v848
    %v1321 = vpack.c.b16 %v857, %v849
    %v1322 = vpack.c.b16 %v858, %v850
    %v1323 = vpack.c.b16 %v859, %v851
    %v1324 = vpack.c.b16 %v860, %v852
    %v1325 = vpack.c.b16 %v861, %v853
    %v1326 = vpack.c.b16 %v862, %v854
    %v1327 = vpack.c.b16 %v871, %v863
    %v1328 = vpack.c.b16 %v872, %v864
    %v1329 = vpack.c.b16 %v873, %v865
    %v1330 = vpack.c.b16 %v874, %v866
    %v1331 = vpack.c.b16 %v875, %v867
    %v1332 = vpack.c.b16 %v876, %v868
    %v1333 = vpack.c.b16 %v877, %v869
    %v1334 = vpack.c.b16 %v878, %v870
    %v1335 = vpack.c.b16 %v887, %v879
    %v1336 = vpack.c.b16 %v888, %v880
    %v1337 = vpack.c.b16 %v889, %v881
    %v1338 = vpack.c.b16 %v890, %v882
    %v1339 = vpack.c.b16 %v891, %v883
    %v1340 = vpack.c.b16 %v892, %v884
    %v1341 = vpack.c.b16 %v893, %v885
    %v1342 = vpack.c.b16 %v894, %v886
    %v1343 = vpack.c.b16 %v903, %v895
    %v1344 = vpack.c.b16 %v904, %v896
    %v1345 = vpack.c.b16 %v905, %v897
    %v1346 = vpack.c.b16 %v906, %v898
    %v1347 = vpack.c.b16 %v907, %v899
    %v1348 = vpack.c.b16 %v908, %v900
    %v1349 = vpack.c.b16 %v909, %v901
    %v1350 = vpack.c.b16 %v910, %v902
    %v1351 = vpack.c.b16 %v919, %v911
    %v1352 = vpack.c.b16 %v920, %v912
    %v1353 = vpack.c.b16 %v921, %v913
    %v1354 = vpack.c.b16 %v922, %v914
    %v1355 = vpack.c.b16 %v923, %v915
    %v1356 = vpack.c.b16 %v924, %v916
    %v1357 = vpack.c.b16 %v925, %v917
    %v1358 = vpack.c.b16 %v926, %v918
    %v1359 = vpack.c.b16 %v935, %v927
    %v1360 = vpack.c.b16 %v936, %v928
    %v1361 = vpack.c.b16 %v937, %v929
    %v1362 = vpack.c.b16 %v938, %v930
    %v1363 = vpack.c.b16 %v939, %v931
    %v1364 = vpack.c.b16 %v940, %v932
    %v1365 = vpack.c.b16 %v941, %v933
    %v1366 = vpack.c.b16 %v942, %v934
    %v1367 = vpack.c.b16 %v951, %v943
    %v1368 = vpack.c.b16 %v952, %v944
    %v1369 = vpack.c.b16 %v953, %v945
    %v1370 = vpack.c.b16 %v954, %v946
    %v1371 = vpack.c.b16 %v955, %v947
    %v1372 = vpack.c.b16 %v956, %v948
    %v1373 = vpack.c.b16 %v957, %v949
    %v1374 = vpack.c.b16 %v958, %v950
    %v1375 = vpack.c.b16 %v967, %v959
    %v1376 = vpack.c.b16 %v968, %v960
    %v1377 = vpack.c.b16 %v969, %v961
    %v1378 = vpack.c.b16 %v970, %v962
    %v1379 = vpack.c.b16 %v971, %v963
    %v1380 = vpack.c.b16 %v972, %v964
    %v1381 = vpack.c.b16 %v973, %v965
    %v1382 = vpack.c.b16 %v974, %v966
    %v1383 = vpack.c.b16 %v983, %v975
    %v1384 = vpack.c.b16 %v984, %v976
    %v1385 = vpack.c.b16 %v985, %v977
    %v1386 = vpack.c.b16 %v986, %v978
    %v1387 = vpack.c.b16 %v987, %v979
    %v1388 = vpack.c.b16 %v988, %v980
    %v1389 = vpack.c.b16 %v989, %v981
    %v1390 = vpack.c.b16 %v990, %v982
    %v1391 = vpack.c.b16 %v999, %v991
    %v1392 = vpack.c.b16 %v1000, %v992
    %v1393 = vpack.c.b16 %v1001, %v993
    %v1394 = vpack.c.b16 %v1002, %v994
    %v1395 = vpack.c.b16 %v1003, %v995
    %v1396 = vpack.c.b16 %v1004, %v996
    %v1397 = vpack.c.b16 %v1005, %v997
    %v1398 = vpack.c.b16 %v1006, %v998
    %v1399 = vpack.c.b16 %v1015, %v1007
    %v1400 = vpack.c.b16 %v1016, %v1008
    %v1401 = vpack.c.b16 %v1017, %v1009
    %v1402 = vpack.c.b16 %v1018, %v1010
    %v1403 = vpack.c.b16 %v1019, %v1011
    %v1404 = vpack.c.b16 %v1020, %v1012
    %v1405 = vpack.c.b16 %v1021, %v1013
    %v1406 = vpack.c.b16 %v1022, %v1014
    %v1407 = vpack.c.b16 %v1031, %v1023
    %v1408 = vpack.c.b16 %v1032, %v1024
    %v1409 = vpack.c.b16 %v1033, %v1025
    %v1410 = vpack.c.b16 %v1034, %v1026
    %v1411 = vpack.c.b16 %v1035, %v1027
    %v1412 = vpack.c.b16 %v1036, %v1028
    %v1413 = vpack.c.b16 %v1037, %v1029
    %v1414 = vpack.c.b16 %v1038, %v1030
    %v1415 = vpack.c.b16 %v1047, %v1039
    %v1416 = vpack.c.b16 %v1048, %v1040
    %v1417 = vpack.c.b16 %v1049, %v1041
    %v1418 = vpack.c.b16 %v1050, %v1042
    %v1419 = vpack.c.b16 %v1051, %v1043
    %v1420 = vpack.c.b16 %v1052, %v1044
    %v1421 = vpack.c.b16 %v1053, %v1045
    %v1422 = vpack.c.b16 %v1054, %v1046
    %v1423 = vpack.c.b16 %v1063, %v1055
    %v1424 = vpack.c.b16 %v1064, %v1056
    %v1425 = vpack.c.b16 %v1065, %v1057
    %v1426 = vpack.c.b16 %v1066, %v1058
    %v1427 = vpack.c.b16 %v1067, %v1059
    %v1428 = vpack.c.b16 %v1068, %v1060
    %v1429 = vpack.c.b16 %v1069, %v1061
    %v1430 = vpack.c.b16 %v1070, %v1062
    %v1431 = vpack.c.b16 %v1079, %v1071
    %v1432 = vpack.c.b16 %v1080, %v1072
    %v1433 = vpack.c.b16 %v1081, %v1073
    %v1434 = vpack.c.b16 %v1082, %v1074
    %v1435 = vpack.c.b16 %v1083, %v1075
    %v1436 = vpack.c.b16 %v1084, %v1076
    %v1437 = vpack.c.b16 %v1085, %v1077
    %v1438 = vpack.c.b16 %v1086, %v1078
    %v1439 = vpack.c.b16 %v1095, %v1087
    %v1440 = vpack.c.b16 %v1096, %v1088
    %v1441 = vpack.c.b16 %v1097, %v1089
    %v1442 = vpack.c.b16 %v1098, %v1090
    %v1443 = vpack.c.b16 %v1099, %v1091
    %v1444 = vpack.c.b16 %v1100, %v1092
    %v1445 = vpack.c.b16 %v1101, %v1093
    %v1446 = vpack.c.b16 %v1102, %v1094
    %v1447 = vpack.c.b16 %v1111, %v1103
    %v1448 = vpack.c.b16 %v1112, %v1104
    %v1449 = vpack.c.b16 %v1113, %v1105
    %v1450 = vpack.c.b16 %v1114, %v1106
    %v1451 = vpack.c.b16 %v1115, %v1107
    %v1452 = vpack.c.b16 %v1116, %v1108
    %v1453 = vpack.c.b16 %v1117, %v1109
    %v1454 = vpack.c.b16 %v1118, %v1110
    %v1455 = vpack.c.b16 %v1127, %v1119
    %v1456 = vpack.c.b16 %v1128, %v1120
    %v1457 = vpack.c.b16 %v1129, %v1121
    %v1458 = vpack.c.b16 %v1130, %v1122
    %v1459 = vpack.c.b16 %v1131, %v1123
    %v1460 = vpack.c.b16 %v1132, %v1124
    %v1461 = vpack.c.b16 %v1133, %v1125
    %v1462 = vpack.c.b16 %v1134, %v1126
    %v1463 = vpack.c.b16 %v1143, %v1135
    %v1464 = vpack.c.b16 %v1144, %v1136
    %v1465 = vpack.c.b16 %v1145, %v1137
    %v1466 = vpack.c.b16 %v1146, %v1138
    %v1467 = vpack.c.b16 %v1147, %v1139
    %v1468 = vpack.c.b16 %v1148, %v1140
    %v1469 = vpack.c.b16 %v1149, %v1141
    %v1470 = vpack.c.b16 %v1150, %v1142
    %v1471 = vpack.c.b16 %v1159, %v1151
    %v1472 = vpack.c.b16 %v1160, %v1152
    %v1473 = vpack.c.b16 %v1161, %v1153
    %v1474 = vpack.c.b16 %v1162, %v1154
    %v1475 = vpack.c.b16 %v1163, %v1155
    %v1476 = vpack.c.b16 %v1164, %v1156
    %v1477 = vpack.c.b16 %v1165, %v1157
    %v1478 = vpack.c.b16 %v1166, %v1158
    %v1479 = vpack.c.b16 %v1175, %v1167
    %v1480 = vpack.c.b16 %v1176, %v1168
    %v1481 = vpack.c.b16 %v1177, %v1169
    %v1482 = vpack.c.b16 %v1178, %v1170
    %v1483 = vpack.c.b16 %v1179, %v1171
    %v1484 = vpack.c.b16 %v1180, %v1172
    %v1485 = vpack.c.b16 %v1181, %v1173
    %v1486 = vpack.c.b16 %v1182, %v1174
    %v1487 = vpack.c.b16 %v1191, %v1183
    %v1488 = vpack.c.b16 %v1192, %v1184
    %v1489 = vpack.c.b16 %v1193, %v1185
    %v1490 = vpack.c.b16 %v1194, %v1186
    %v1491 = vpack.c.b16 %v1195, %v1187
    %v1492 = vpack.c.b16 %v1196, %v1188
    %v1493 = vpack.c.b16 %v1197, %v1189
    %v1494 = vpack.c.b16 %v1198, %v1190
    %v1495 = vpack.c.b16 %v1207, %v1199
    %v1496 = vpack.c.b16 %v1208, %v1200
    %v1497 = vpack.c.b16 %v1209, %v1201
    %v1498 = vpack.c.b16 %v1210, %v1202
    %v1499 = vpack.c.b16 %v1211, %v1203
    %v1500 = vpack.c.b16 %v1212, %v1204
    %v1501 = vpack.c.b16 %v1213, %v1205
    %v1502 = vpack.c.b16 %v1214, %v1206
    %v1503 = vpack.c.b16 %v1223, %v1215
    %v1504 = vpack.c.b16 %v1224, %v1216
    %v1505 = vpack.c.b16 %v1225, %v1217
    %v1506 = vpack.c.b16 %v1226, %v1218
    %v1507 = vpack.c.b16 %v1227, %v1219
    %v1508 = vpack.c.b16 %v1228, %v1220
    %v1509 = vpack.c.b16 %v1229, %v1221
    %v1510 = vpack.c.b16 %v1230, %v1222
    %v1511 = vpack.c.b16 %v1239, %v1231
    %v1512 = vpack.c.b16 %v1240, %v1232
    %v1513 = vpack.c.b16 %v1241, %v1233
    %v1514 = vpack.c.b16 %v1242, %v1234
    %v1515 = vpack.c.b16 %v1243, %v1235
    %v1516 = vpack.c.b16 %v1244, %v1236
    %v1517 = vpack.c.b16 %v1245, %v1237
    %v1518 = vpack.c.b16 %v1246, %v1238
    %v1519 = vpack.c.b16 %v1255, %v1247
    %v1520 = vpack.c.b16 %v1256, %v1248
    %v1521 = vpack.c.b16 %v1257, %v1249
    %v1522 = vpack.c.b16 %v1258, %v1250
    %v1523 = vpack.c.b16 %v1259, %v1251
    %v1524 = vpack.c.b16 %v1260, %v1252
    %v1525 = vpack.c.b16 %v1261, %v1253
    %v1526 = vpack.c.b16 %v1262, %v1254
    %v1527 = vpack.c.b16 %v1271, %v1263
    %v1528 = vpack.c.b16 %v1272, %v1264
    %v1529 = vpack.c.b16 %v1273, %v1265
    %v1530 = vpack.c.b16 %v1274, %v1266
    %v1531 = vpack.c.b16 %v1275, %v1267
    %v1532 = vpack.c.b16 %v1276, %v1268
    %v1533 = vpack.c.b16 %v1277, %v1269
    %v1534 = vpack.c.b16 %v1278, %v1270
    %1791 = vmatprep.subr.bf16.mxu0 %v1336
    %1792 = vmatpush1.bf16.msra.mxu0 %v1335
    %1793 = vmatprep.subr.bf16.mxu0 %v1328
    %1794 = vmatpush1.bf16.msra.mxu0 %v1327
    %1795 = vmatprep.subr.bf16.mxu0 %v1320
    %1796 = vmatpush1.bf16.msra.mxu0 %v1319
    %1797 = vmatprep.subr.bf16.mxu0 %v1312
    %1798 = vmatpush1.bf16.msra.mxu0 %v1311
    %1799 = vmatprep.subr.bf16.mxu0 %v1304
    %1800 = vmatpush1.bf16.msra.mxu0 %v1303
    %1801 = vmatprep.subr.bf16.mxu0 %v1296
    %1802 = vmatpush1.bf16.msra.mxu0 %v1295
    %1803 = vmatprep.subr.bf16.mxu0 %v1288
    %1804 = vmatpush1.bf16.msra.mxu0 %v1287
    %1805 = vmatprep.subr.bf16.mxu0 %v1280
    %1806 = vmatpush1.bf16.msra.mxu0 %v1279
    %1807 = vmatprep.subr.bf16.mxu0 %v1400
    %1808 = vmatpush2.bf16.msra.mxu0 %v1399
    %1809 = vmatprep.subr.bf16.mxu0 %v1392
    %1810 = vmatpush2.bf16.msra.mxu0 %v1391
    %1811 = vmatprep.subr.bf16.mxu0 %v1384
    %1812 = vmatpush2.bf16.msra.mxu0 %v1383
    %1813 = vmatprep.subr.bf16.mxu0 %v1376
    %1814 = vmatpush2.bf16.msra.mxu0 %v1375
    %1815 = vmatprep.subr.bf16.mxu0 %v1368
    %1816 = vmatpush2.bf16.msra.mxu0 %v1367
    %1817 = vmatprep.subr.bf16.mxu0 %v1360
    %1818 = vmatpush2.bf16.msra.mxu0 %v1359
    %1819 = vmatprep.subr.bf16.mxu0 %v1352
    %1820 = vmatpush2.bf16.msra.mxu0 %v1351
    %1821 = vmatprep.subr.bf16.mxu0 %v1344
    %1822 = vmatpush2.bf16.msra.mxu0 %v1343
    %1823 = vmatprep.mubr.bf16.mxu0 %v210
    %1824 = vmatmul.mubr.bf16.gmra.mxu0 %v209
    %v1825 = vpop.f32.mrf.mxu0
    %v1826 = vadd.f32 %v474, %v1825
    %v1827 = vpop.f32.mrf.mxu0
    %v1828 = vadd.f32 %v478, %v1827
    %v1829 = vpop.f32.mrf.mxu0
    %v1830 = vpop.f32.mrf.mxu0
    %1831 = vdwg.mxu0
    %1832 = vmatprep.subr.bf16.mxu0 %v1464
    %1833 = vmatpush1.bf16.msra.mxu0 %v1463
    %1834 = vmatprep.subr.bf16.mxu0 %v1456
    %1835 = vmatpush1.bf16.msra.mxu0 %v1455
    %1836 = vmatprep.subr.bf16.mxu0 %v1448
    %1837 = vmatpush1.bf16.msra.mxu0 %v1447
    %1838 = vmatprep.subr.bf16.mxu0 %v1440
    %1839 = vmatpush1.bf16.msra.mxu0 %v1439
    %1840 = vmatprep.subr.bf16.mxu0 %v1432
    %1841 = vmatpush1.bf16.msra.mxu0 %v1431
    %1842 = vmatprep.subr.bf16.mxu0 %v1424
    %1843 = vmatpush1.bf16.msra.mxu0 %v1423
    %1844 = vmatprep.subr.bf16.mxu0 %v1416
    %1845 = vmatpush1.bf16.msra.mxu0 %v1415
    %1846 = vmatprep.subr.bf16.mxu0 %v1408
    %1847 = vmatpush1.bf16.msra.mxu0 %v1407
    %1848 = vmatprep.subr.bf16.mxu0 %v1528
    %1849 = vmatpush2.bf16.msra.mxu0 %v1527
    %1850 = vmatprep.subr.bf16.mxu0 %v1520
    %1851 = vmatpush2.bf16.msra.mxu0 %v1519
    %1852 = vmatprep.subr.bf16.mxu0 %v1512
    %1853 = vmatpush2.bf16.msra.mxu0 %v1511
    %1854 = vmatprep.subr.bf16.mxu0 %v1504
    %1855 = vmatpush2.bf16.msra.mxu0 %v1503
    %1856 = vmatprep.subr.bf16.mxu0 %v1496
    %1857 = vmatpush2.bf16.msra.mxu0 %v1495
    %1858 = vmatprep.subr.bf16.mxu0 %v1488
    %1859 = vmatpush2.bf16.msra.mxu0 %v1487
    %1860 = vmatprep.subr.bf16.mxu0 %v1480
    %1861 = vmatpush2.bf16.msra.mxu0 %v1479
    %1862 = vmatprep.subr.bf16.mxu0 %v1472
    %1863 = vmatpush2.bf16.msra.mxu0 %v1471
    %1864 = vmatprep.mubr.bf16.mxu0 %v212
    %1865 = vmatmul.mubr.bf16.gmra.mxu0 %v211
    %v1866 = vpop.f32.mrf.mxu0
    %v1867 = vadd.f32 %v1826, %v1866
    %v1868 = vpop.f32.mrf.mxu0
    %v1869 = vadd.f32 %v1828, %v1868
    %v1870 = vpop.f32.mrf.mxu0
    %v1871 = vpop.f32.mrf.mxu0
    %1872 = vdwg.mxu0
    %1873 = vmatprep.subr.bf16.mxu0 %v1338
    %1874 = vmatpush1.bf16.msra.mxu0 %v1337
    %1875 = vmatprep.subr.bf16.mxu0 %v1330
    %1876 = vmatpush1.bf16.msra.mxu0 %v1329
    %1877 = vmatprep.subr.bf16.mxu0 %v1322
    %1878 = vmatpush1.bf16.msra.mxu0 %v1321
    %1879 = vmatprep.subr.bf16.mxu0 %v1314
    %1880 = vmatpush1.bf16.msra.mxu0 %v1313
    %1881 = vmatprep.subr.bf16.mxu0 %v1306
    %1882 = vmatpush1.bf16.msra.mxu0 %v1305
    %1883 = vmatprep.subr.bf16.mxu0 %v1298
    %1884 = vmatpush1.bf16.msra.mxu0 %v1297
    %1885 = vmatprep.subr.bf16.mxu0 %v1290
    %1886 = vmatpush1.bf16.msra.mxu0 %v1289
    %1887 = vmatprep.subr.bf16.mxu0 %v1282
    %1888 = vmatpush1.bf16.msra.mxu0 %v1281
    %1889 = vmatprep.subr.bf16.mxu0 %v1402
    %1890 = vmatpush2.bf16.msra.mxu0 %v1401
    %1891 = vmatprep.subr.bf16.mxu0 %v1394
    %1892 = vmatpush2.bf16.msra.mxu0 %v1393
    %1893 = vmatprep.subr.bf16.mxu0 %v1386
    %1894 = vmatpush2.bf16.msra.mxu0 %v1385
    %1895 = vmatprep.subr.bf16.mxu0 %v1378
    %1896 = vmatpush2.bf16.msra.mxu0 %v1377
    %1897 = vmatprep.subr.bf16.mxu0 %v1370
    %1898 = vmatpush2.bf16.msra.mxu0 %v1369
    %1899 = vmatprep.subr.bf16.mxu0 %v1362
    %1900 = vmatpush2.bf16.msra.mxu0 %v1361
    %1901 = vmatprep.subr.bf16.mxu0 %v1354
    %1902 = vmatpush2.bf16.msra.mxu0 %v1353
    %1903 = vmatprep.subr.bf16.mxu0 %v1346
    %1904 = vmatpush2.bf16.msra.mxu0 %v1345
    %1905 = vmatprep.mubr.bf16.mxu0 %v210
    %1906 = vmatmul.mubr.bf16.gmra.mxu0 %v209
    %v1907 = vpop.f32.mrf.mxu0
    %v1908 = vadd.f32 %v482, %v1907
    %v1909 = vpop.f32.mrf.mxu0
    %v1910 = vadd.f32 %v486, %v1909
    %v1911 = vpop.f32.mrf.mxu0
    %v1912 = vpop.f32.mrf.mxu0
    %1913 = vdwg.mxu0
    %1914 = vmatprep.subr.bf16.mxu0 %v1466
    %1915 = vmatpush1.bf16.msra.mxu0 %v1465
    %1916 = vmatprep.subr.bf16.mxu0 %v1458
    %1917 = vmatpush1.bf16.msra.mxu0 %v1457
    %1918 = vmatprep.subr.bf16.mxu0 %v1450
    %1919 = vmatpush1.bf16.msra.mxu0 %v1449
    %1920 = vmatprep.subr.bf16.mxu0 %v1442
    %1921 = vmatpush1.bf16.msra.mxu0 %v1441
    %1922 = vmatprep.subr.bf16.mxu0 %v1434
    %1923 = vmatpush1.bf16.msra.mxu0 %v1433
    %1924 = vmatprep.subr.bf16.mxu0 %v1426
    %1925 = vmatpush1.bf16.msra.mxu0 %v1425
    %1926 = vmatprep.subr.bf16.mxu0 %v1418
    %1927 = vmatpush1.bf16.msra.mxu0 %v1417
    %1928 = vmatprep.subr.bf16.mxu0 %v1410
    %1929 = vmatpush1.bf16.msra.mxu0 %v1409
    %1930 = vmatprep.subr.bf16.mxu0 %v1530
    %1931 = vmatpush2.bf16.msra.mxu0 %v1529
    %1932 = vmatprep.subr.bf16.mxu0 %v1522
    %1933 = vmatpush2.bf16.msra.mxu0 %v1521
    %1934 = vmatprep.subr.bf16.mxu0 %v1514
    %1935 = vmatpush2.bf16.msra.mxu0 %v1513
    %1936 = vmatprep.subr.bf16.mxu0 %v1506
    %1937 = vmatpush2.bf16.msra.mxu0 %v1505
    %1938 = vmatprep.subr.bf16.mxu0 %v1498
    %1939 = vmatpush2.bf16.msra.mxu0 %v1497
    %1940 = vmatprep.subr.bf16.mxu0 %v1490
    %1941 = vmatpush2.bf16.msra.mxu0 %v1489
    %1942 = vmatprep.subr.bf16.mxu0 %v1482
    %1943 = vmatpush2.bf16.msra.mxu0 %v1481
    %1944 = vmatprep.subr.bf16.mxu0 %v1474
    %1945 = vmatpush2.bf16.msra.mxu0 %v1473
    %1946 = vmatprep.mubr.bf16.mxu0 %v212
    %1947 = vmatmul.mubr.bf16.gmra.mxu0 %v211
    %v1948 = vpop.f32.mrf.mxu0
    %v1949 = vadd.f32 %v1908, %v1948
    %v1950 = vpop.f32.mrf.mxu0
    %v1951 = vadd.f32 %v1910, %v1950
    %v1952 = vpop.f32.mrf.mxu0
    %v1953 = vpop.f32.mrf.mxu0
    %1954 = vdwg.mxu0
    %1955 = vmatprep.subr.bf16.mxu0 %v1340
    %1956 = vmatpush1.bf16.msra.mxu0 %v1339
    %1957 = vmatprep.subr.bf16.mxu0 %v1332
    %1958 = vmatpush1.bf16.msra.mxu0 %v1331
    %1959 = vmatprep.subr.bf16.mxu0 %v1324
    %1960 = vmatpush1.bf16.msra.mxu0 %v1323
    %1961 = vmatprep.subr.bf16.mxu0 %v1316
    %1962 = vmatpush1.bf16.msra.mxu0 %v1315
    %1963 = vmatprep.subr.bf16.mxu0 %v1308
    %1964 = vmatpush1.bf16.msra.mxu0 %v1307
    %1965 = vmatprep.subr.bf16.mxu0 %v1300
    %1966 = vmatpush1.bf16.msra.mxu0 %v1299
    %1967 = vmatprep.subr.bf16.mxu0 %v1292
    %1968 = vmatpush1.bf16.msra.mxu0 %v1291
    %1969 = vmatprep.subr.bf16.mxu0 %v1284
    %1970 = vmatpush1.bf16.msra.mxu0 %v1283
    %1971 = vmatprep.subr.bf16.mxu0 %v1404
    %1972 = vmatpush2.bf16.msra.mxu0 %v1403
    %1973 = vmatprep.subr.bf16.mxu0 %v1396
    %1974 = vmatpush2.bf16.msra.mxu0 %v1395
    %1975 = vmatprep.subr.bf16.mxu0 %v1388
    %1976 = vmatpush2.bf16.msra.mxu0 %v1387
    %1977 = vmatprep.subr.bf16.mxu0 %v1380
    %1978 = vmatpush2.bf16.msra.mxu0 %v1379
    %1979 = vmatprep.subr.bf16.mxu0 %v1372
    %1980 = vmatpush2.bf16.msra.mxu0 %v1371
    %1981 = vmatprep.subr.bf16.mxu0 %v1364
    %1982 = vmatpush2.bf16.msra.mxu0 %v1363
    %1983 = vmatprep.subr.bf16.mxu0 %v1356
    %1984 = vmatpush2.bf16.msra.mxu0 %v1355
    %1985 = vmatprep.subr.bf16.mxu0 %v1348
    %1986 = vmatpush2.bf16.msra.mxu0 %v1347
    %1987 = vmatprep.mubr.bf16.mxu0 %v210
    %1988 = vmatmul.mubr.bf16.gmra.mxu0 %v209
    %v1989 = vpop.f32.mrf.mxu0
    %v1990 = vadd.f32 %v490, %v1989
    %v1991 = vpop.f32.mrf.mxu0
    %v1992 = vadd.f32 %v494, %v1991
    %v1993 = vpop.f32.mrf.mxu0
    %v1994 = vpop.f32.mrf.mxu0
    %1995 = vdwg.mxu0
    %1996 = vmatprep.subr.bf16.mxu0 %v1468
    %1997 = vmatpush1.bf16.msra.mxu0 %v1467
    %1998 = vmatprep.subr.bf16.mxu0 %v1460
    %1999 = vmatpush1.bf16.msra.mxu0 %v1459
    %2000 = vmatprep.subr.bf16.mxu0 %v1452
    %2001 = vmatpush1.bf16.msra.mxu0 %v1451
    %2002 = vmatprep.subr.bf16.mxu0 %v1444
    %2003 = vmatpush1.bf16.msra.mxu0 %v1443
    %2004 = vmatprep.subr.bf16.mxu0 %v1436
    %2005 = vmatpush1.bf16.msra.mxu0 %v1435
    %2006 = vmatprep.subr.bf16.mxu0 %v1428
    %2007 = vmatpush1.bf16.msra.mxu0 %v1427
    %2008 = vmatprep.subr.bf16.mxu0 %v1420
    %2009 = vmatpush1.bf16.msra.mxu0 %v1419
    %2010 = vmatprep.subr.bf16.mxu0 %v1412
    %2011 = vmatpush1.bf16.msra.mxu0 %v1411
    %2012 = vmatprep.subr.bf16.mxu0 %v1532
    %2013 = vmatpush2.bf16.msra.mxu0 %v1531
    %2014 = vmatprep.subr.bf16.mxu0 %v1524
    %2015 = vmatpush2.bf16.msra.mxu0 %v1523
    %2016 = vmatprep.subr.bf16.mxu0 %v1516
    %2017 = vmatpush2.bf16.msra.mxu0 %v1515
    %2018 = vmatprep.subr.bf16.mxu0 %v1508
    %2019 = vmatpush2.bf16.msra.mxu0 %v1507
    %2020 = vmatprep.subr.bf16.mxu0 %v1500
    %2021 = vmatpush2.bf16.msra.mxu0 %v1499
    %2022 = vmatprep.subr.bf16.mxu0 %v1492
    %2023 = vmatpush2.bf16.msra.mxu0 %v1491
    %2024 = vmatprep.subr.bf16.mxu0 %v1484
    %2025 = vmatpush2.bf16.msra.mxu0 %v1483
    %2026 = vmatprep.subr.bf16.mxu0 %v1476
    %2027 = vmatpush2.bf16.msra.mxu0 %v1475
    %2028 = vmatprep.mubr.bf16.mxu0 %v212
    %2029 = vmatmul.mubr.bf16.gmra.mxu0 %v211
    %v2030 = vpop.f32.mrf.mxu0
    %v2031 = vadd.f32 %v1990, %v2030
    %v2032 = vpop.f32.mrf.mxu0
    %v2033 = vadd.f32 %v1992, %v2032
    %v2034 = vpop.f32.mrf.mxu0
    %v2035 = vpop.f32.mrf.mxu0
    %2036 = vdwg.mxu0
    %2037 = vmatprep.subr.bf16.mxu0 %v1342
    %2038 = vmatpush1.bf16.msra.mxu0 %v1341
    %2039 = vmatprep.subr.bf16.mxu0 %v1334
    %2040 = vmatpush1.bf16.msra.mxu0 %v1333
    %2041 = vmatprep.subr.bf16.mxu0 %v1326
    %2042 = vmatpush1.bf16.msra.mxu0 %v1325
    %2043 = vmatprep.subr.bf16.mxu0 %v1318
    %2044 = vmatpush1.bf16.msra.mxu0 %v1317
    %2045 = vmatprep.subr.bf16.mxu0 %v1310
    %2046 = vmatpush1.bf16.msra.mxu0 %v1309
    %2047 = vmatprep.subr.bf16.mxu0 %v1302
    %2048 = vmatpush1.bf16.msra.mxu0 %v1301
    %2049 = vmatprep.subr.bf16.mxu0 %v1294
    %2050 = vmatpush1.bf16.msra.mxu0 %v1293
    %2051 = vmatprep.subr.bf16.mxu0 %v1286
    %2052 = vmatpush1.bf16.msra.mxu0 %v1285
    %2053 = vmatprep.subr.bf16.mxu0 %v1406
    %2054 = vmatpush2.bf16.msra.mxu0 %v1405
    %2055 = vmatprep.subr.bf16.mxu0 %v1398
    %2056 = vmatpush2.bf16.msra.mxu0 %v1397
    %2057 = vmatprep.subr.bf16.mxu0 %v1390
    %2058 = vmatpush2.bf16.msra.mxu0 %v1389
    %2059 = vmatprep.subr.bf16.mxu0 %v1382
    %2060 = vmatpush2.bf16.msra.mxu0 %v1381
    %2061 = vmatprep.subr.bf16.mxu0 %v1374
    %2062 = vmatpush2.bf16.msra.mxu0 %v1373
    %2063 = vmatprep.subr.bf16.mxu0 %v1366
    %2064 = vmatpush2.bf16.msra.mxu0 %v1365
    %2065 = vmatprep.subr.bf16.mxu0 %v1358
    %2066 = vmatpush2.bf16.msra.mxu0 %v1357
    %2067 = vmatprep.subr.bf16.mxu0 %v1350
    %2068 = vmatpush2.bf16.msra.mxu0 %v1349
    %2069 = vmatprep.mubr.bf16.mxu0 %v210
    %2070 = vmatmul.mubr.bf16.gmra.mxu0 %v209
    %v2071 = vpop.f32.mrf.mxu0
    %v2072 = vadd.f32 %v498, %v2071
    %v2073 = vpop.f32.mrf.mxu0
    %v2074 = vadd.f32 %v502, %v2073
    %v2075 = vpop.f32.mrf.mxu0
    %v2076 = vpop.f32.mrf.mxu0
    %2077 = vdwg.mxu0
    %2078 = vmatprep.subr.bf16.mxu0 %v1470
    %2079 = vmatpush1.bf16.msra.mxu0 %v1469
    %2080 = vmatprep.subr.bf16.mxu0 %v1462
    %2081 = vmatpush1.bf16.msra.mxu0 %v1461
    %2082 = vmatprep.subr.bf16.mxu0 %v1454
    %2083 = vmatpush1.bf16.msra.mxu0 %v1453
    %2084 = vmatprep.subr.bf16.mxu0 %v1446
    %2085 = vmatpush1.bf16.msra.mxu0 %v1445
    %2086 = vmatprep.subr.bf16.mxu0 %v1438
    %2087 = vmatpush1.bf16.msra.mxu0 %v1437
    %2088 = vmatprep.subr.bf16.mxu0 %v1430
    %2089 = vmatpush1.bf16.msra.mxu0 %v1429
    %2090 = vmatprep.subr.bf16.mxu0 %v1422
    %2091 = vmatpush1.bf16.msra.mxu0 %v1421
    %2092 = vmatprep.subr.bf16.mxu0 %v1414
    %2093 = vmatpush1.bf16.msra.mxu0 %v1413
    %2094 = vmatprep.subr.bf16.mxu0 %v1534
    %2095 = vmatpush2.bf16.msra.mxu0 %v1533
    %2096 = vmatprep.subr.bf16.mxu0 %v1526
    %2097 = vmatpush2.bf16.msra.mxu0 %v1525
    %2098 = vmatprep.subr.bf16.mxu0 %v1518
    %2099 = vmatpush2.bf16.msra.mxu0 %v1517
    %2100 = vmatprep.subr.bf16.mxu0 %v1510
    %2101 = vmatpush2.bf16.msra.mxu0 %v1509
    %2102 = vmatprep.subr.bf16.mxu0 %v1502
    %2103 = vmatpush2.bf16.msra.mxu0 %v1501
    %2104 = vmatprep.subr.bf16.mxu0 %v1494
    %2105 = vmatpush2.bf16.msra.mxu0 %v1493
    %2106 = vmatprep.subr.bf16.mxu0 %v1486
    %2107 = vmatpush2.bf16.msra.mxu0 %v1485
    %2108 = vmatprep.subr.bf16.mxu0 %v1478
    %2109 = vmatpush2.bf16.msra.mxu0 %v1477
    %2110 = vmatprep.mubr.bf16.mxu0 %v212
    %2111 = vmatmul.mubr.bf16.gmra.mxu0 %v211
    %v2112 = vpop.f32.mrf.mxu0
    %v2113 = vadd.f32 %v2072, %v2112
    %v2114 = vpop.f32.mrf.mxu0
    %v2115 = vadd.f32 %v2074, %v2114
    %v2116 = vpop.f32.mrf.mxu0
    %v2117 = vpop.f32.mrf.mxu0
    %2118 = vdwg.mxu0
    %v2119 = vmax.f32 %v1867, 0.0
    %v2120 = vmax.f32 %v1869, 0.0
    %v2121 = vmax.f32 %v1949, 0.0
    %v2122 = vmax.f32 %v1951, 0.0
    %v2123 = vmax.f32 %v2031, 0.0
    %v2124 = vmax.f32 %v2033, 0.0
    %v2125 = vmax.f32 %v2113, 0.0
    %v2126 = vmax.f32 %v2115, 0.0
    %v2127 = vpack.c.bf16 %v2119, %v2119
    %v2128 = vpack.c.bf16 %v2120, %v2120
    %v2129 = vpack.c.bf16 %v2121, %v2121
    %v2130 = vpack.c.bf16 %v2122, %v2122
    %v2131 = vpack.c.bf16 %v2123, %v2123
    %v2132 = vpack.c.bf16 %v2124, %v2124
    %v2133 = vpack.c.bf16 %v2125, %v2125
    %v2134 = vpack.c.bf16 %v2126, %v2126
    %v2143 = vcombine.low %v2127, %v2128
    %v2144 = vcombine.low %v2129, %v2130
    %v2145 = vcombine.low %v2131, %v2132
    %v2146 = vcombine.low %v2133, %v2134
    %v2148 = vunpack.c.l.s4 1966171168
    %v2149 = vunpack.c.0.s8 %v2148
    %v2150 = vlaneseq
    %v2151 = vshrl.u32 %v2150, 7
    %v2152 = vsub.s32 %v2149, %v2151
    %v2153 = vrot.slane %v2143, %v2152
    %v2155 = vunpack.c.l.s4 1966171168
    %v2156 = vunpack.c.0.s8 %v2155
    %v2157 = vlaneseq
    %v2158 = vshrl.u32 %v2157, 7
    %v2159 = vsub.s32 %v2156, %v2158
    %v2160 = vrot.slane %v2144, %v2159
    %v2162 = vunpack.c.l.s4 1966171168
    %v2163 = vunpack.c.0.s8 %v2162
    %v2164 = vlaneseq
    %v2165 = vshrl.u32 %v2164, 7
    %v2166 = vsub.s32 %v2163, %v2165
    %v2167 = vrot.slane %v2145, %v2166
    %v2169 = vunpack.c.l.s4 1966171168
    %v2170 = vunpack.c.0.s8 %v2169
    %v2171 = vlaneseq
    %v2172 = vshrl.u32 %v2171, 7
    %v2173 = vsub.s32 %v2170, %v2172
    %v2174 = vrot.slane %v2146, %v2173
    %v2175 = vcombine.low %v2153, %v2160
    %v2176 = vcombine.low %v2167, %v2174
    %v2178 = vunpack.c.l.s4 1966171168
    %v2179 = vunpack.c.0.s8 %v2178
    %v2180 = vlaneseq
    %v2181 = vshrl.u32 %v2180, 7
    %v2182 = vsub.s32 %v2179, %v2181
    %v2183 = vrot.slane %v2175, %v2182
    %v2185 = vunpack.c.l.s4 1966171168
    %v2186 = vunpack.c.0.s8 %v2185
    %v2187 = vlaneseq
    %v2188 = vshrl.u32 %v2187, 7
    %v2189 = vsub.s32 %v2186, %v2188
    %v2190 = vrot.slane %v2176, %v2189
    %v2191 = vcombine.low %v2183, %v2190
    %2193 = vst [vmem:[%s5] sm:$0xff] %v2191
    // Predicated region
    $region38: #{decoder_forward.6} parent=1 // pred_check
      _
    $region39: #{decoder_forward.6} parent=1 // pred_check_branch
      %2195 = sbr.rel (0) target = $region41
    $region40: #{decoder_forward.6} parent=1 // pred_region
      _
    $region41: #{decoder_forward.6} parent=1 // pred_fallthru
      _
    // Predicated region
    $region42: #{decoder_forward.6} parent=1 // pred_check
      _
    $region43: #{decoder_forward.6} parent=1 // pred_check_branch
      %2197 = sbr.rel (0) target = $region45
    $region44: #{decoder_forward.6} parent=1 // pred_region
      _
    $region45: #{decoder_forward.6} parent=1 // pred_fallthru
      _
    %2198 = vsyncpa [#allocation3], 1
    %2199 = vsyncpa [#allocation5], 1
    %2200 = vsyncpa [#allocation8], 1

// kernel: decoder_forward.9
$region0: #{decoder_forward.9}
  #allocation0 [shape = 'u32[]', space=smem, size = 0x4, offset = 0x4, fixed_abs, tag = 'smem constant byte address 0x4 - core index']
  #allocation1 [shape = 'u32[144,128]{1,0:T(1,128)}', space=vmem, size = 0x12000, scoped, tag = 'internal scratch']
  %s0 = inlined_call_operand.vmem [shape: bf16[2,82,128], index: 0, kind: input, shape index: {}]
  %s1 = inlined_call_operand.vmem [shape: bf16[128,128], index: 1, kind: input, shape index: {}]
  %s2 = inlined_call_operand.vmem [shape: bf16[256,128], index: 2, kind: input, shape index: {}]
  %s3 = inlined_call_operand.vmem [shape: bf16[256,128], index: 3, kind: input, shape index: {}]
  %s4 = inlined_call_operand.vmem [shape: bf16[512,128], index: 4, kind: input, shape index: {}]
  %s5 = inlined_call_operand.vmem [shape: f32[1,128], index: 5, kind: input, shape index: {}]
  %s6 = inlined_call_operand.vmem [shape: bf16[2,4,72,128], index: 6, kind: output, shape index: {}]
  %s7 = sld [smem:[#allocation0]]
  $region57: #{decoder_forward.9} parent=0
    _
  %s9 = ssub.s32 1, %s7
  %s10 = scalar_select 0, %s9, %s7
  loop: start=0, step=1, limit=4
  $region2: #{decoder_forward.9} parent=0 // loop_pre_header
    _
  $region3: #{decoder_forward.9} parent=0 // loop_header
    %s12 = sphi 0, %s16
    %p13 = scmp.ge.s32.totalorder %s12, 4
    %s22 = sphi 0, %s24
    %s25 = sphi 0, %s22
    %s26 = sphi 0, %s25
    %s42 = sphi 0, %s26
    %s46 = sphi 0, %s46
    %s48 = sphi 0, %s46
    %s49 = sphi 0, %s48
    %s63 = sphi 0, %s49
    %s67 = sphi 0, %s67
    %s69 = sphi 0, %s67
    %s70 = sphi 0, %s69
    %s84 = sphi 0, %s70
    %s88 = sphi 0, %s88
    %s90 = sphi 0, %s88
    %s91 = sphi 0, %s90
    %s105 = sphi 0, %s91
    %s109 = sphi 0, %s109
    %s111 = sphi 0, %s109
    %s112 = sphi 0, %s111
    %s126 = sphi 0, %s112
    %s130 = sphi 0, %s130
    %s132 = sphi 0, %s130
    %s133 = sphi 0, %s132
    %s147 = sphi 0, %s133
    %s153 = sphi 0, %s155
    %s156 = sphi 0, %s153
    %s157 = sphi 0, %s156
    %s173 = sphi 0, %s157
  $region4: #{decoder_forward.9} parent=0 // loop_header_branch
    %15 = sbr.rel (%p13) target = $region8
  $region5: #{decoder_forward.9} parent=0 // loop_body
    %s17 = ssub.s32 %s12, 1
    %s18 = ssub.s32 %s12, 2
    %s19 = sadd.s32 %s12, 1
    %s20 = ssub.s32 %s12, %s19
    %p21 = scmp.eq.s32.totalorder %s20, 0
    %s23 = sadd.s32 %s22, 1
    %s24 = scalar_select %p21, %s22, %s23
    %p27 = pneg %p21
    %p28 = scmp.eq.s32.totalorder %s12, 1
    %p29 = por %p27, %p28
    %p30 = scmp.ne.s32.totalorder %s22, %s25
    %p31 = scmp.eq.s32.totalorder %s12, 0
    %p32 = por %p30, %p31
    %p33 = scmp.ne.s32.totalorder %s22, %s25
    %p34 = scmp.eq.s32.totalorder %s17, 1
    %p35 = por %p33, %p34
    %p36 = scmp.ne.s32.totalorder %s25, %s26
    %p37 = scmp.eq.s32.totalorder %s17, 0
    %p38 = por %p36, %p37
    %p39 = scmp.ne.s32.totalorder %s25, %s26
    %p40 = scmp.eq.s32.totalorder %s18, 1
    %p41 = por %p39, %p40
    %p43 = scmp.ne.s32.totalorder %s26, %s42
    %p44 = scmp.eq.s32.totalorder %s18, 0
    %p45 = por %p43, %p44
    %s47 = sadd.s32 %s46, 1
    %p50 = scmp.eq.s32.totalorder %s12, 1
    %p51 = scmp.ne.s32.totalorder %s46, %s48
    %p52 = scmp.eq.s32.totalorder %s12, 0
    %p53 = por %p51, %p52
    %p54 = scmp.ne.s32.totalorder %s46, %s48
    %p55 = scmp.eq.s32.totalorder %s17, 1
    %p56 = por %p54, %p55
    %p57 = scmp.ne.s32.totalorder %s48, %s49
    %p58 = scmp.eq.s32.totalorder %s17, 0
    %p59 = por %p57, %p58
    %p60 = scmp.ne.s32.totalorder %s48, %s49
    %p61 = scmp.eq.s32.totalorder %s18, 1
    %p62 = por %p60, %p61
    %p64 = scmp.ne.s32.totalorder %s49, %s63
    %p65 = scmp.eq.s32.totalorder %s18, 0
    %p66 = por %p64, %p65
    %s68 = sadd.s32 %s67, 1
    %p71 = scmp.eq.s32.totalorder %s12, 1
    %p72 = scmp.ne.s32.totalorder %s67, %s69
    %p73 = scmp.eq.s32.totalorder %s12, 0
    %p74 = por %p72, %p73
    %p75 = scmp.ne.s32.totalorder %s67, %s69
    %p76 = scmp.eq.s32.totalorder %s17, 1
    %p77 = por %p75, %p76
    %p78 = scmp.ne.s32.totalorder %s69, %s70
    %p79 = scmp.eq.s32.totalorder %s17, 0
    %p80 = por %p78, %p79
    %p81 = scmp.ne.s32.totalorder %s69, %s70
    %p82 = scmp.eq.s32.totalorder %s18, 1
    %p83 = por %p81, %p82
    %p85 = scmp.ne.s32.totalorder %s70, %s84
    %p86 = scmp.eq.s32.totalorder %s18, 0
    %p87 = por %p85, %p86
    %s89 = sadd.s32 %s88, 1
    %p92 = scmp.eq.s32.totalorder %s12, 1
    %p93 = scmp.ne.s32.totalorder %s88, %s90
    %p94 = scmp.eq.s32.totalorder %s12, 0
    %p95 = por %p93, %p94
    %p96 = scmp.ne.s32.totalorder %s88, %s90
    %p97 = scmp.eq.s32.totalorder %s17, 1
    %p98 = por %p96, %p97
    %p99 = scmp.ne.s32.totalorder %s90, %s91
    %p100 = scmp.eq.s32.totalorder %s17, 0
    %p101 = por %p99, %p100
    %p102 = scmp.ne.s32.totalorder %s90, %s91
    %p103 = scmp.eq.s32.totalorder %s18, 1
    %p104 = por %p102, %p103
    %p106 = scmp.ne.s32.totalorder %s91, %s105
    %p107 = scmp.eq.s32.totalorder %s18, 0
    %p108 = por %p106, %p107
    %s110 = sadd.s32 %s109, 1
    %p113 = scmp.eq.s32.totalorder %s12, 1
    %p114 = scmp.ne.s32.totalorder %s109, %s111
    %p115 = scmp.eq.s32.totalorder %s12, 0
    %p116 = por %p114, %p115
    %p117 = scmp.ne.s32.totalorder %s109, %s111
    %p118 = scmp.eq.s32.totalorder %s17, 1
    %p119 = por %p117, %p118
    %p120 = scmp.ne.s32.totalorder %s111, %s112
    %p121 = scmp.eq.s32.totalorder %s17, 0
    %p122 = por %p120, %p121
    %p123 = scmp.ne.s32.totalorder %s111, %s112
    %p124 = scmp.eq.s32.totalorder %s18, 1
    %p125 = por %p123, %p124
    %p127 = scmp.ne.s32.totalorder %s112, %s126
    %p128 = scmp.eq.s32.totalorder %s18, 0
    %p129 = por %p127, %p128
    %s131 = sadd.s32 %s130, 1
    %p134 = scmp.eq.s32.totalorder %s12, 1
    %p135 = scmp.ne.s32.totalorder %s130, %s132
    %p136 = scmp.eq.s32.totalorder %s12, 0
    %p137 = por %p135, %p136
    %p138 = scmp.ne.s32.totalorder %s130, %s132
    %p139 = scmp.eq.s32.totalorder %s17, 1
    %p140 = por %p138, %p139
    %p141 = scmp.ne.s32.totalorder %s132, %s133
    %p142 = scmp.eq.s32.totalorder %s17, 0
    %p143 = por %p141, %p142
    %p144 = scmp.ne.s32.totalorder %s132, %s133
    %p145 = scmp.eq.s32.totalorder %s18, 1
    %p146 = por %p144, %p145
    %p148 = scmp.ne.s32.totalorder %s133, %s147
    %p149 = scmp.eq.s32.totalorder %s18, 0
    %p150 = por %p148, %p149
    %s151 = ssub.s32 %s12, %s19
    %p152 = scmp.eq.s32.totalorder %s151, 0
    %s154 = sadd.s32 %s153, 1
    %s155 = scalar_select %p152, %s153, %s154
    %p158 = pneg %p152
    %p159 = scmp.eq.s32.totalorder %s12, 1
    %p160 = por %p158, %p159
    %p161 = scmp.ne.s32.totalorder %s153, %s156
    %p162 = scmp.eq.s32.totalorder %s12, 0
    %p163 = por %p161, %p162
    %p164 = scmp.ne.s32.totalorder %s153, %s156
    %p165 = scmp.eq.s32.totalorder %s17, 1
    %p166 = por %p164, %p165
    %p167 = scmp.ne.s32.totalorder %s156, %s157
    %p168 = scmp.eq.s32.totalorder %s17, 0
    %p169 = por %p167, %p168
    %p170 = scmp.ne.s32.totalorder %s156, %s157
    %p171 = scmp.eq.s32.totalorder %s18, 1
    %p172 = por %p170, %p171
    %p174 = scmp.ne.s32.totalorder %s157, %s173
    %p175 = scmp.eq.s32.totalorder %s18, 0
    %p176 = por %p174, %p175
    %p177 = scmp.le.s32.totalorder 1, %s12
    %p178 = scmp.lt.s32.totalorder %s12, 3
    %p179 = pnand %p177, %p178
    %p180 = pneg %p179
    // Predicated region
    $region9: #{decoder_forward.9} parent=5 // pred_check
      _
    $region10: #{decoder_forward.9} parent=5 // pred_check_branch
      %182 = sbr.rel (%p179) target = $region12
    $region11: #{decoder_forward.9} parent=5 // pred_region
      %s183 = ssub.s32 %s12, 1
      // Predicated region
      $region13: #{decoder_forward.9} parent=11 // pred_check
        %p184 = pneg %p59
      $region14: #{decoder_forward.9} parent=11 // pred_check_branch
        %186 = sbr.rel (%p184) target = $region16
      $region15: #{decoder_forward.9} parent=11 // pred_region
        _
      $region16: #{decoder_forward.9} parent=11 // pred_fallthru
        _
      // Predicated region
      $region17: #{decoder_forward.9} parent=11 // pred_check
        %p187 = pneg %p80
      $region18: #{decoder_forward.9} parent=11 // pred_check_branch
        %189 = sbr.rel (%p187) target = $region20
      $region19: #{decoder_forward.9} parent=11 // pred_region
        _
      $region20: #{decoder_forward.9} parent=11 // pred_fallthru
        _
      // Predicated region
      $region21: #{decoder_forward.9} parent=11 // pred_check
        %p190 = pneg %p101
      $region22: #{decoder_forward.9} parent=11 // pred_check_branch
        %192 = sbr.rel (%p190) target = $region24
      $region23: #{decoder_forward.9} parent=11 // pred_region
        _
      $region24: #{decoder_forward.9} parent=11 // pred_fallthru
        _
      // Predicated region
      $region25: #{decoder_forward.9} parent=11 // pred_check
        %p193 = pneg %p122
      $region26: #{decoder_forward.9} parent=11 // pred_check_branch
        %195 = sbr.rel (%p193) target = $region28
      $region27: #{decoder_forward.9} parent=11 // pred_region
        _
      $region28: #{decoder_forward.9} parent=11 // pred_fallthru
        _
      // Predicated region
      $region29: #{decoder_forward.9} parent=11 // pred_check
        %p196 = pneg %p143
      $region30: #{decoder_forward.9} parent=11 // pred_check_branch
        %198 = sbr.rel (%p196) target = $region32
      $region31: #{decoder_forward.9} parent=11 // pred_region
        _
      $region32: #{decoder_forward.9} parent=11 // pred_fallthru
        _
    $region12: #{decoder_forward.9} parent=5 // pred_fallthru
      _
    %p199 = scmp.lt.s32.totalorder %s12, 2
    // Predicated region
    $region33: #{decoder_forward.9} parent=5 // pred_check
      %p200 = pneg %p199
    $region34: #{decoder_forward.9} parent=5 // pred_check_branch
      %202 = sbr.rel (%p200) target = $region36
    $region35: #{decoder_forward.9} parent=5 // pred_region
      // Predicated region
      $region37: #{decoder_forward.9} parent=35 // pred_check
        %p203 = pneg %p32
      $region38: #{decoder_forward.9} parent=35 // pred_check_branch
        %205 = sbr.rel (%p203) target = $region40
      $region39: #{decoder_forward.9} parent=35 // pred_region
        %p206 = scmp.lt.s32.totalorder %s12, 1
        %s207 = scalar_select %p206, %s12, 1
        %s208 = smul.addr %s207, 11
        %s209 = smul.addr %s208, 4
        %s210 = scalar_lea.vmem %s0, %s209
      $region40: #{decoder_forward.9} parent=35 // pred_fallthru
        _
    $region36: #{decoder_forward.9} parent=5 // pred_fallthru
      _
    %p211 = scmp.le.s32.totalorder 1, %s12
    %p212 = scmp.lt.s32.totalorder %s12, 3
    %p213 = pnand %p211, %p212
    %p214 = pneg %p213
    // Predicated region
    $region41: #{decoder_forward.9} parent=5 // pred_check
      _
    $region42: #{decoder_forward.9} parent=5 // pred_check_branch
      %216 = sbr.rel (%p213) target = $region44
    $region43: #{decoder_forward.9} parent=5 // pred_region
      %s217 = ssub.s32 %s12, 1
      %p218 = scmp.lt.s32.totalorder %s17, 1
      %s219 = scalar_select %p218, %s17, 1
      %s220 = smul.addr %s219, 11
      %s221 = smul.addr %s220, 4
      %s222 = scalar_lea.vmem %s0, %s221
      %p223 = pneg %p38
      %p224 = pneg %p35
      %p225 = pneg %p59
      %p226 = pneg %p56
      %p227 = pneg %p80
      %p228 = pneg %p77
      %p229 = pneg %p101
      %p230 = pneg %p98
      %p231 = pneg %p122
      %p232 = pneg %p119
      %p233 = pneg %p143
      %p234 = pneg %p140
      %p235 = pneg %p169
      %p236 = pneg %p166
      %p237 = scmp.lt.s32.totalorder %s17, 1
      %s238 = scalar_select %p237, %s17, 1
      %s239 = smul.addr %s238, 36
      %s240 = smul.addr %s239, 4
      %s241 = scalar_lea.vmem %s6, %s240
      %p242 = scmp.lt.s32.totalorder %s17, 1
      %s243 = scalar_select %p242, %s17, 1
      %s244 = smul.addr %s243, 11
      %s245 = smul.addr %s244, 4
      %s246 = scalar_lea.vmem %s0, %s245
      %p247 = scmp.lt.s32.totalorder %s17, 1
      %s248 = scalar_select %p247, %s17, 1
      %s249 = smul.addr %s248, 36
      %s250 = smul.addr %s249, 4
      %s251 = scalar_lea.vmem %s6, %s250
      %v253 = vld [vmem:[%s246] sm:$0xf]
      %v254 = vld [vmem:[%s246 + $0x4] sm:$0xf]
      %v255 = vld [vmem:[%s246 + $0x8] sm:$0xf]
      %v256 = vld [vmem:[%s246 + $0xc] sm:$0xf]
      %v257 = vld [vmem:[%s246 + $0x10] sm:$0xf]
      %v258 = vld [vmem:[%s246 + $0x14] sm:$0xf]
      %v259 = vld [vmem:[%s246 + $0x18] sm:$0xf]
      %v260 = vld [vmem:[%s246 + $0x1c] sm:$0xf]
      %v261 = vld [vmem:[%s246 + $0x20] sm:$0xf]
      %v262 = vld [vmem:[%s246 + $0x24] sm:$0xf]
      %v263 = vld [vmem:[%s246 + $0x28] sm:$0x1]
      %v264 = vld [vmem:[%s5] sm:$0x1]
      %v265 = vld [vmem:[%s1] sm:$0xf]
      %v266 = vld [vmem:[%s1 + $0x4] sm:$0xf]
      %v267 = vld [vmem:[%s1 + $0x8] sm:$0xf]
      %v268 = vld [vmem:[%s1 + $0xc] sm:$0xf]
      %v269 = vld [vmem:[%s1 + $0x10] sm:$0xf]
      %v270 = vld [vmem:[%s1 + $0x14] sm:$0xf]
      %v271 = vld [vmem:[%s1 + $0x18] sm:$0xf]
      %v272 = vld [vmem:[%s1 + $0x1c] sm:$0xf]
      %v273 = vld [vmem:[%s1 + $0x20] sm:$0xf]
      %v274 = vld [vmem:[%s1 + $0x24] sm:$0xf]
      %v275 = vld [vmem:[%s1 + $0x28] sm:$0xf]
      %v276 = vld [vmem:[%s1 + $0x2c] sm:$0xf]
      %v277 = vld [vmem:[%s1 + $0x30] sm:$0xf]
      %v278 = vld [vmem:[%s1 + $0x34] sm:$0xf]
      %v279 = vld [vmem:[%s1 + $0x38] sm:$0xf]
      %v280 = vld [vmem:[%s1 + $0x3c] sm:$0xf]
      %v282 = vlaneseq
      %v283 = vshrl.u32 %v282, 7
      %v284 = vsub.s32 0, %v283
      %v285 = vrot.slane %v264, %v284
      %v296 = vunpack.c.l.b16 %v253
      %v297 = vunpack.c.l.b16 %v254
      %v298 = vunpack.c.l.b16 %v255
      %v299 = vunpack.c.l.b16 %v256
      %v300 = vunpack.c.l.b16 %v257
      %v301 = vunpack.c.l.b16 %v258
      %v302 = vunpack.c.l.b16 %v259
      %v303 = vunpack.c.l.b16 %v260
      %v304 = vunpack.c.l.b16 %v261
      %v305 = vpack.c.b16 %v297, %v296
      %v306 = vpack.c.b16 %v299, %v298
      %v307 = vpack.c.b16 %v301, %v300
      %v308 = vpack.c.b16 %v303, %v302
      %v309 = vpack.c.b16 %v304, %v304
      %v331 = vunpack.c.l.b16 %v265
      %v332 = vunpack.c.l.b16 %v266
      %v333 = vunpack.c.l.b16 %v267
      %v334 = vunpack.c.l.b16 %v268
      %v335 = vunpack.c.l.b16 %v269
      %v336 = vunpack.c.l.b16 %v270
      %v337 = vunpack.c.l.b16 %v271
      %v338 = vunpack.c.l.b16 %v272
      %v339 = vunpack.c.l.b16 %v273
      %v340 = vunpack.c.l.b16 %v274
      %v341 = vunpack.c.l.b16 %v275
      %v342 = vunpack.c.l.b16 %v276
      %v343 = vunpack.c.l.b16 %v277
      %v344 = vunpack.c.l.b16 %v278
      %v345 = vunpack.c.l.b16 %v279
      %v346 = vunpack.c.l.b16 %v280
      %v347 = vpack.c.b16 %v332, %v331
      %v348 = vpack.c.b16 %v334, %v333
      %v349 = vpack.c.b16 %v336, %v335
      %v350 = vpack.c.b16 %v338, %v337
      %v351 = vpack.c.b16 %v340, %v339
      %v352 = vpack.c.b16 %v342, %v341
      %v353 = vpack.c.b16 %v344, %v343
      %v354 = vpack.c.b16 %v346, %v345
      %363 = vmatprep.subr.bf16.mxu0 0
      %364 = vmatpush1.bf16.msra.mxu0 %v354
      %365 = vmatprep.subr.bf16.mxu0 0
      %366 = vmatpush1.bf16.msra.mxu0 %v353
      %367 = vmatprep.subr.bf16.mxu0 0
      %368 = vmatpush1.bf16.msra.mxu0 %v352
      %369 = vmatprep.subr.bf16.mxu0 0
      %370 = vmatpush1.bf16.msra.mxu0 %v351
      %371 = vmatprep.subr.bf16.mxu0 0
      %372 = vmatpush1.bf16.msra.mxu0 %v350
      %373 = vmatprep.subr.bf16.mxu0 0
      %374 = vmatpush1.bf16.msra.mxu0 %v349
      %375 = vmatprep.subr.bf16.mxu0 0
      %376 = vmatpush1.bf16.msra.mxu0 %v348
      %377 = vmatprep.subr.bf16.mxu0 0
      %378 = vmatpush1.bf16.msra.mxu0 %v347
      %379 = vmatprep.subr.bf16.mxu0 0
      %380 = vmatpush2.bf16.msra.mxu0 0
      %381 = vmatprep.subr.bf16.mxu0 0
      %382 = vmatpush2.bf16.msra.mxu0 0
      %383 = vmatprep.subr.bf16.mxu0 0
      %384 = vmatpush2.bf16.msra.mxu0 0
      %385 = vmatprep.subr.bf16.mxu0 0
      %386 = vmatpush2.bf16.msra.mxu0 0
      %387 = vmatprep.subr.bf16.mxu0 0
      %388 = vmatpush2.bf16.msra.mxu0 0
      %389 = vmatprep.subr.bf16.mxu0 0
      %390 = vmatpush2.bf16.msra.mxu0 0
      %391 = vmatprep.subr.bf16.mxu0 0
      %392 = vmatpush2.bf16.msra.mxu0 0
      %393 = vmatprep.subr.bf16.mxu0 0
      %394 = vmatpush2.bf16.msra.mxu0 0
      %395 = vmatprep.mubr.bf16.mxu0 0
      %396 = vmatmul.mubr.bf16.gmra.mxu0 %v305
      %v397 = vpop.f32.mrf.mxu0
      %v398 = vadd.f32 %v285, %v397
      %v399 = vpop.f32.mrf.mxu0
      %v400 = vpop.f32.mrf.mxu0
      %v401 = vadd.f32 %v285, %v400
      %v402 = vpop.f32.mrf.mxu0
      %403 = vmatprep.mubr.bf16.mxu0 0
      %404 = vmatmul.mubr.bf16.gmra.mxu0 %v306
      %v405 = vpop.f32.mrf.mxu0
      %v406 = vadd.f32 %v285, %v405
      %v407 = vpop.f32.mrf.mxu0
      %v408 = vpop.f32.mrf.mxu0
      %v409 = vadd.f32 %v285, %v408
      %v410 = vpop.f32.mrf.mxu0
      %411 = vmatprep.mubr.bf16.mxu0 0
      %412 = vmatmul.mubr.bf16.gmra.mxu0 %v307
      %v413 = vpop.f32.mrf.mxu0
      %v414 = vadd.f32 %v285, %v413
      %v415 = vpop.f32.mrf.mxu0
      %v416 = vpop.f32.mrf.mxu0
      %v417 = vadd.f32 %v285, %v416
      %v418 = vpop.f32.mrf.mxu0
      %419 = vmatprep.mubr.bf16.mxu0 0
      %420 = vmatmul.mubr.bf16.gmra.mxu0 %v308
      %v421 = vpop.f32.mrf.mxu0
      %v422 = vadd.f32 %v285, %v421
      %v423 = vpop.f32.mrf.mxu0
      %v424 = vpop.f32.mrf.mxu0
      %v425 = vadd.f32 %v285, %v424
      %v426 = vpop.f32.mrf.mxu0
      %427 = vmatprep.mubr.bf16.mxu0 0
      %428 = vmatmul.mubr.bf16.gmra.mxu0 %v309
      %v429 = vpop.f32.mrf.mxu0
      %v430 = vadd.f32 %v285, %v429
      %v431 = vpop.f32.mrf.mxu0
      %v432 = vpop.f32.mrf.mxu0
      %v433 = vpop.f32.mrf.mxu0
      %434 = vdwg.mxu0
      %v435 = vmax.f32 %v398, 0.0
      %v436 = vmax.f32 %v401, 0.0
      %v437 = vmax.f32 %v406, 0.0
      %v438 = vmax.f32 %v409, 0.0
      %v439 = vmax.f32 %v414, 0.0
      %v440 = vmax.f32 %v417, 0.0
      %v441 = vmax.f32 %v422, 0.0
      %v442 = vmax.f32 %v425, 0.0
      %v443 = vmax.f32 %v430, 0.0
      %v445 = vunpack.c.l.b16 %v262
      %v446 = vpack.c.b16 %v445, %v304
      %vm447 = vsmask.f32 7424
      %v449 = vshrl.u32 %v305, 16
      %v451 = vshll.u32 %v305, 16
      %v453 = vrot.slane %v451, 1
      %v454 = vor.u32 %v449, %v453
      %v456 = vshll.u32 %v306, 16
      %v458 = vrot.slane %v456, 1
      %v459 = vsel %vm447, %v454, %v458
      %v460 = vshrl.u32 %v306, 16
      %v462 = vor.u32 %v460, %v458
      %v464 = vshll.u32 %v307, 16
      %v466 = vrot.slane %v464, 1
      %v467 = vsel %vm447, %v462, %v466
      %v468 = vshrl.u32 %v307, 16
      %v470 = vor.u32 %v468, %v466
      %v472 = vshll.u32 %v308, 16
      %v474 = vrot.slane %v472, 1
      %v475 = vsel %vm447, %v470, %v474
      %v476 = vshrl.u32 %v308, 16
      %v478 = vor.u32 %v476, %v474
      %v480 = vshll.u32 %v446, 16
      %v482 = vrot.slane %v480, 1
      %v483 = vsel %vm447, %v478, %v482
      %v484 = vshrl.u32 %v446, 16
      %v486 = vor.u32 %v484, %v482
      %v492 = vld [vmem:[%s2] sm:$0xf]
      %v493 = vld [vmem:[%s2 + $0x4] sm:$0xf]
      %v494 = vld [vmem:[%s2 + $0x8] sm:$0xf]
      %v495 = vld [vmem:[%s2 + $0xc] sm:$0xf]
      %v496 = vld [vmem:[%s2 + $0x10] sm:$0xf]
      %v497 = vld [vmem:[%s2 + $0x14] sm:$0xf]
      %v498 = vld [vmem:[%s2 + $0x18] sm:$0xf]
      %v499 = vld [vmem:[%s2 + $0x1c] sm:$0xf]
      %v500 = vld [vmem:[%s2 + $0x20] sm:$0xf]
      %v501 = vld [vmem:[%s2 + $0x24] sm:$0xf]
      %v502 = vld [vmem:[%s2 + $0x28] sm:$0xf]
      %v503 = vld [vmem:[%s2 + $0x2c] sm:$0xf]
      %v504 = vld [vmem:[%s2 + $0x30] sm:$0xf]
      %v505 = vld [vmem:[%s2 + $0x34] sm:$0xf]
      %v506 = vld [vmem:[%s2 + $0x38] sm:$0xf]
      %v507 = vld [vmem:[%s2 + $0x3c] sm:$0xf]
      %v508 = vld [vmem:[%s2 + $0x40] sm:$0xf]
      %v509 = vld [vmem:[%s2 + $0x44] sm:$0xf]
      %v510 = vld [vmem:[%s2 + $0x48] sm:$0xf]
      %v511 = vld [vmem:[%s2 + $0x4c] sm:$0xf]
      %v512 = vld [vmem:[%s2 + $0x50] sm:$0xf]
      %v513 = vld [vmem:[%s2 + $0x54] sm:$0xf]
      %v514 = vld [vmem:[%s2 + $0x58] sm:$0xf]
      %v515 = vld [vmem:[%s2 + $0x5c] sm:$0xf]
      %v516 = vld [vmem:[%s2 + $0x60] sm:$0xf]
      %v517 = vld [vmem:[%s2 + $0x64] sm:$0xf]
      %v518 = vld [vmem:[%s2 + $0x68] sm:$0xf]
      %v519 = vld [vmem:[%s2 + $0x6c] sm:$0xf]
      %v520 = vld [vmem:[%s2 + $0x70] sm:$0xf]
      %v521 = vld [vmem:[%s2 + $0x74] sm:$0xf]
      %v522 = vld [vmem:[%s2 + $0x78] sm:$0xf]
      %v523 = vld [vmem:[%s2 + $0x7c] sm:$0xf]
      %v556 = vunpack.c.l.b16 %v492
      %v557 = vunpack.c.l.b16 %v493
      %v558 = vunpack.c.l.b16 %v494
      %v559 = vunpack.c.l.b16 %v495
      %v560 = vunpack.c.l.b16 %v496
      %v561 = vunpack.c.l.b16 %v497
      %v562 = vunpack.c.l.b16 %v498
      %v563 = vunpack.c.l.b16 %v499
      %v564 = vunpack.c.l.b16 %v500
      %v565 = vunpack.c.l.b16 %v501
      %v566 = vunpack.c.l.b16 %v502
      %v567 = vunpack.c.l.b16 %v503
      %v568 = vunpack.c.l.b16 %v504
      %v569 = vunpack.c.l.b16 %v505
      %v570 = vunpack.c.l.b16 %v506
      %v571 = vunpack.c.l.b16 %v507
      %v572 = vunpack.c.l.b16 %v508
      %v573 = vunpack.c.l.b16 %v509
      %v574 = vunpack.c.l.b16 %v510
      %v575 = vunpack.c.l.b16 %v511
      %v576 = vunpack.c.l.b16 %v512
      %v577 = vunpack.c.l.b16 %v513
      %v578 = vunpack.c.l.b16 %v514
      %v579 = vunpack.c.l.b16 %v515
      %v580 = vunpack.c.l.b16 %v516
      %v581 = vunpack.c.l.b16 %v517
      %v582 = vunpack.c.l.b16 %v518
      %v583 = vunpack.c.l.b16 %v519
      %v584 = vunpack.c.l.b16 %v520
      %v585 = vunpack.c.l.b16 %v521
      %v586 = vunpack.c.l.b16 %v522
      %v587 = vunpack.c.l.b16 %v523
      %v588 = vpack.c.b16 %v557, %v556
      %v589 = vpack.c.b16 %v559, %v558
      %v590 = vpack.c.b16 %v561, %v560
      %v591 = vpack.c.b16 %v563, %v562
      %v592 = vpack.c.b16 %v565, %v564
      %v593 = vpack.c.b16 %v567, %v566
      %v594 = vpack.c.b16 %v569, %v568
      %v595 = vpack.c.b16 %v571, %v570
      %v596 = vpack.c.b16 %v573, %v572
      %v597 = vpack.c.b16 %v575, %v574
      %v598 = vpack.c.b16 %v577, %v576
      %v599 = vpack.c.b16 %v579, %v578
      %v600 = vpack.c.b16 %v581, %v580
      %v601 = vpack.c.b16 %v583, %v582
      %v602 = vpack.c.b16 %v585, %v584
      %v603 = vpack.c.b16 %v587, %v586
      %620 = vmatprep.subr.bf16.mxu0 0
      %621 = vmatpush1.bf16.msra.mxu0 %v595
      %622 = vmatprep.subr.bf16.mxu0 0
      %623 = vmatpush1.bf16.msra.mxu0 %v594
      %624 = vmatprep.subr.bf16.mxu0 0
      %625 = vmatpush1.bf16.msra.mxu0 %v593
      %626 = vmatprep.subr.bf16.mxu0 0
      %627 = vmatpush1.bf16.msra.mxu0 %v592
      %628 = vmatprep.subr.bf16.mxu0 0
      %629 = vmatpush1.bf16.msra.mxu0 %v591
      %630 = vmatprep.subr.bf16.mxu0 0
      %631 = vmatpush1.bf16.msra.mxu0 %v590
      %632 = vmatprep.subr.bf16.mxu0 0
      %633 = vmatpush1.bf16.msra.mxu0 %v589
      %634 = vmatprep.subr.bf16.mxu0 0
      %635 = vmatpush1.bf16.msra.mxu0 %v588
      %636 = vmatprep.subr.bf16.mxu0 0
      %637 = vmatpush2.bf16.msra.mxu0 %v603
      %638 = vmatprep.subr.bf16.mxu0 0
      %639 = vmatpush2.bf16.msra.mxu0 %v602
      %640 = vmatprep.subr.bf16.mxu0 0
      %641 = vmatpush2.bf16.msra.mxu0 %v601
      %642 = vmatprep.subr.bf16.mxu0 0
      %643 = vmatpush2.bf16.msra.mxu0 %v600
      %644 = vmatprep.subr.bf16.mxu0 0
      %645 = vmatpush2.bf16.msra.mxu0 %v599
      %646 = vmatprep.subr.bf16.mxu0 0
      %647 = vmatpush2.bf16.msra.mxu0 %v598
      %648 = vmatprep.subr.bf16.mxu0 0
      %649 = vmatpush2.bf16.msra.mxu0 %v597
      %650 = vmatprep.subr.bf16.mxu0 0
      %651 = vmatpush2.bf16.msra.mxu0 %v596
      %652 = vmatprep.mubr.bf16.mxu0 %v459
      %653 = vmatmul.mubr.bf16.gmra.mxu0 %v305
      %v654 = vpop.f32.mrf.mxu0
      %v655 = vadd.f32 %v285, %v654
      %v656 = vpop.f32.mrf.mxu0
      %v657 = vpop.f32.mrf.mxu0
      %v658 = vadd.f32 %v285, %v657
      %v659 = vpop.f32.mrf.mxu0
      %660 = vmatprep.mubr.bf16.mxu0 %v467
      %661 = vmatmul.mubr.bf16.gmra.mxu0 %v306
      %v662 = vpop.f32.mrf.mxu0
      %v663 = vadd.f32 %v285, %v662
      %v664 = vpop.f32.mrf.mxu0
      %v665 = vpop.f32.mrf.mxu0
      %v666 = vadd.f32 %v285, %v665
      %v667 = vpop.f32.mrf.mxu0
      %668 = vmatprep.mubr.bf16.mxu0 %v475
      %669 = vmatmul.mubr.bf16.gmra.mxu0 %v307
      %v670 = vpop.f32.mrf.mxu0
      %v671 = vadd.f32 %v285, %v670
      %v672 = vpop.f32.mrf.mxu0
      %v673 = vpop.f32.mrf.mxu0
      %v674 = vadd.f32 %v285, %v673
      %v675 = vpop.f32.mrf.mxu0
      %676 = vmatprep.mubr.bf16.mxu0 %v483
      %677 = vmatmul.mubr.bf16.gmra.mxu0 %v308
      %v678 = vpop.f32.mrf.mxu0
      %v679 = vadd.f32 %v285, %v678
      %v680 = vpop.f32.mrf.mxu0
      %v681 = vpop.f32.mrf.mxu0
      %v682 = vadd.f32 %v285, %v681
      %v683 = vpop.f32.mrf.mxu0
      %684 = vmatprep.mubr.bf16.mxu0 %v486
      %685 = vmatmul.mubr.bf16.gmra.mxu0 %v309
      %v686 = vpop.f32.mrf.mxu0
      %v687 = vadd.f32 %v285, %v686
      %v688 = vpop.f32.mrf.mxu0
      %v689 = vpop.f32.mrf.mxu0
      %v690 = vpop.f32.mrf.mxu0
      %691 = vdwg.mxu0
      %v692 = vmax.f32 %v655, 0.0
      %v693 = vmax.f32 %v658, 0.0
      %v694 = vmax.f32 %v663, 0.0
      %v695 = vmax.f32 %v666, 0.0
      %v696 = vmax.f32 %v671, 0.0
      %v697 = vmax.f32 %v674, 0.0
      %v698 = vmax.f32 %v679, 0.0
      %v699 = vmax.f32 %v682, 0.0
      %v700 = vmax.f32 %v687, 0.0
      %v702 = vunpack.c.l.b16 %v263
      %v703 = vpack.c.b16 %v298, %v297
      %v704 = vpack.c.b16 %v300, %v299
      %v705 = vpack.c.b16 %v302, %v301
      %v706 = vpack.c.b16 %v304, %v303
      %v707 = vpack.c.b16 %v702, %v445
      %v709 = vshrl.u32 %v703, 16
      %v711 = vshll.u32 %v703, 16
      %v713 = vrot.slane %v711, 1
      %v714 = vor.u32 %v709, %v713
      %v716 = vshll.u32 %v704, 16
      %v718 = vrot.slane %v716, 1
      %v719 = vsel %vm447, %v714, %v718
      %v720 = vshrl.u32 %v704, 16
      %v722 = vor.u32 %v720, %v718
      %v724 = vshll.u32 %v705, 16
      %v726 = vrot.slane %v724, 1
      %v727 = vsel %vm447, %v722, %v726
      %v728 = vshrl.u32 %v705, 16
      %v730 = vor.u32 %v728, %v726
      %v732 = vshll.u32 %v706, 16
      %v734 = vrot.slane %v732, 1
      %v735 = vsel %vm447, %v730, %v734
      %v736 = vshrl.u32 %v706, 16
      %v738 = vor.u32 %v736, %v734
      %v740 = vshll.u32 %v707, 16
      %v742 = vrot.slane %v740, 1
      %v743 = vsel %vm447, %v738, %v742
      %v744 = vshrl.u32 %v707, 16
      %v746 = vor.u32 %v744, %v742
      %v752 = vld [vmem:[%s3] sm:$0xf]
      %v753 = vld [vmem:[%s3 + $0x4] sm:$0xf]
      %v754 = vld [vmem:[%s3 + $0x8] sm:$0xf]
      %v755 = vld [vmem:[%s3 + $0xc] sm:$0xf]
      %v756 = vld [vmem:[%s3 + $0x10] sm:$0xf]
      %v757 = vld [vmem:[%s3 + $0x14] sm:$0xf]
      %v758 = vld [vmem:[%s3 + $0x18] sm:$0xf]
      %v759 = vld [vmem:[%s3 + $0x1c] sm:$0xf]
      %v760 = vld [vmem:[%s3 + $0x20] sm:$0xf]
      %v761 = vld [vmem:[%s3 + $0x24] sm:$0xf]
      %v762 = vld [vmem:[%s3 + $0x28] sm:$0xf]
      %v763 = vld [vmem:[%s3 + $0x2c] sm:$0xf]
      %v764 = vld [vmem:[%s3 + $0x30] sm:$0xf]
      %v765 = vld [vmem:[%s3 + $0x34] sm:$0xf]
      %v766 = vld [vmem:[%s3 + $0x38] sm:$0xf]
      %v767 = vld [vmem:[%s3 + $0x3c] sm:$0xf]
      %v768 = vld [vmem:[%s3 + $0x40] sm:$0xf]
      %v769 = vld [vmem:[%s3 + $0x44] sm:$0xf]
      %v770 = vld [vmem:[%s3 + $0x48] sm:$0xf]
      %v771 = vld [vmem:[%s3 + $0x4c] sm:$0xf]
      %v772 = vld [vmem:[%s3 + $0x50] sm:$0xf]
      %v773 = vld [vmem:[%s3 + $0x54] sm:$0xf]
      %v774 = vld [vmem:[%s3 + $0x58] sm:$0xf]
      %v775 = vld [vmem:[%s3 + $0x5c] sm:$0xf]
      %v776 = vld [vmem:[%s3 + $0x60] sm:$0xf]
      %v777 = vld [vmem:[%s3 + $0x64] sm:$0xf]
      %v778 = vld [vmem:[%s3 + $0x68] sm:$0xf]
      %v779 = vld [vmem:[%s3 + $0x6c] sm:$0xf]
      %v780 = vld [vmem:[%s3 + $0x70] sm:$0xf]
      %v781 = vld [vmem:[%s3 + $0x74] sm:$0xf]
      %v782 = vld [vmem:[%s3 + $0x78] sm:$0xf]
      %v783 = vld [vmem:[%s3 + $0x7c] sm:$0xf]
      %v816 = vunpack.c.l.b16 %v752
      %v817 = vunpack.c.l.b16 %v753
      %v818 = vunpack.c.l.b16 %v754
      %v819 = vunpack.c.l.b16 %v755
      %v820 = vunpack.c.l.b16 %v756
      %v821 = vunpack.c.l.b16 %v757
      %v822 = vunpack.c.l.b16 %v758
      %v823 = vunpack.c.l.b16 %v759
      %v824 = vunpack.c.l.b16 %v760
      %v825 = vunpack.c.l.b16 %v761
      %v826 = vunpack.c.l.b16 %v762
      %v827 = vunpack.c.l.b16 %v763
      %v828 = vunpack.c.l.b16 %v764
      %v829 = vunpack.c.l.b16 %v765
      %v830 = vunpack.c.l.b16 %v766
      %v831 = vunpack.c.l.b16 %v767
      %v832 = vunpack.c.l.b16 %v768
      %v833 = vunpack.c.l.b16 %v769
      %v834 = vunpack.c.l.b16 %v770
      %v835 = vunpack.c.l.b16 %v771
      %v836 = vunpack.c.l.b16 %v772
      %v837 = vunpack.c.l.b16 %v773
      %v838 = vunpack.c.l.b16 %v774
      %v839 = vunpack.c.l.b16 %v775
      %v840 = vunpack.c.l.b16 %v776
      %v841 = vunpack.c.l.b16 %v777
      %v842 = vunpack.c.l.b16 %v778
      %v843 = vunpack.c.l.b16 %v779
      %v844 = vunpack.c.l.b16 %v780
      %v845 = vunpack.c.l.b16 %v781
      %v846 = vunpack.c.l.b16 %v782
      %v847 = vunpack.c.l.b16 %v783
      %v848 = vpack.c.b16 %v817, %v816
      %v849 = vpack.c.b16 %v819, %v818
      %v850 = vpack.c.b16 %v821, %v820
      %v851 = vpack.c.b16 %v823, %v822
      %v852 = vpack.c.b16 %v825, %v824
      %v853 = vpack.c.b16 %v827, %v826
      %v854 = vpack.c.b16 %v829, %v828
      %v855 = vpack.c.b16 %v831, %v830
      %v856 = vpack.c.b16 %v833, %v832
      %v857 = vpack.c.b16 %v835, %v834
      %v858 = vpack.c.b16 %v837, %v836
      %v859 = vpack.c.b16 %v839, %v838
      %v860 = vpack.c.b16 %v841, %v840
      %v861 = vpack.c.b16 %v843, %v842
      %v862 = vpack.c.b16 %v845, %v844
      %v863 = vpack.c.b16 %v847, %v846
      %880 = vmatprep.subr.bf16.mxu0 0
      %881 = vmatpush1.bf16.msra.mxu0 %v855
      %882 = vmatprep.subr.bf16.mxu0 0
      %883 = vmatpush1.bf16.msra.mxu0 %v854
      %884 = vmatprep.subr.bf16.mxu0 0
      %885 = vmatpush1.bf16.msra.mxu0 %v853
      %886 = vmatprep.subr.bf16.mxu0 0
      %887 = vmatpush1.bf16.msra.mxu0 %v852
      %888 = vmatprep.subr.bf16.mxu0 0
      %889 = vmatpush1.bf16.msra.mxu0 %v851
      %890 = vmatprep.subr.bf16.mxu0 0
      %891 = vmatpush1.bf16.msra.mxu0 %v850
      %892 = vmatprep.subr.bf16.mxu0 0
      %893 = vmatpush1.bf16.msra.mxu0 %v849
      %894 = vmatprep.subr.bf16.mxu0 0
      %895 = vmatpush1.bf16.msra.mxu0 %v848
      %896 = vmatprep.subr.bf16.mxu0 0
      %897 = vmatpush2.bf16.msra.mxu0 %v863
      %898 = vmatprep.subr.bf16.mxu0 0
      %899 = vmatpush2.bf16.msra.mxu0 %v862
      %900 = vmatprep.subr.bf16.mxu0 0
      %901 = vmatpush2.bf16.msra.mxu0 %v861
      %902 = vmatprep.subr.bf16.mxu0 0
      %903 = vmatpush2.bf16.msra.mxu0 %v860
      %904 = vmatprep.subr.bf16.mxu0 0
      %905 = vmatpush2.bf16.msra.mxu0 %v859
      %906 = vmatprep.subr.bf16.mxu0 0
      %907 = vmatpush2.bf16.msra.mxu0 %v858
      %908 = vmatprep.subr.bf16.mxu0 0
      %909 = vmatpush2.bf16.msra.mxu0 %v857
      %910 = vmatprep.subr.bf16.mxu0 0
      %911 = vmatpush2.bf16.msra.mxu0 %v856
      %912 = vmatprep.mubr.bf16.mxu0 %v719
      %913 = vmatmul.mubr.bf16.gmra.mxu0 %v305
      %v914 = vpop.f32.mrf.mxu0
      %v915 = vadd.f32 %v285, %v914
      %v916 = vpop.f32.mrf.mxu0
      %v917 = vpop.f32.mrf.mxu0
      %v918 = vadd.f32 %v285, %v917
      %v919 = vpop.f32.mrf.mxu0
      %920 = vmatprep.mubr.bf16.mxu0 %v727
      %921 = vmatmul.mubr.bf16.gmra.mxu0 %v306
      %v922 = vpop.f32.mrf.mxu0
      %v923 = vadd.f32 %v285, %v922
      %v924 = vpop.f32.mrf.mxu0
      %v925 = vpop.f32.mrf.mxu0
      %v926 = vadd.f32 %v285, %v925
      %v927 = vpop.f32.mrf.mxu0
      %928 = vmatprep.mubr.bf16.mxu0 %v735
      %929 = vmatmul.mubr.bf16.gmra.mxu0 %v307
      %v930 = vpop.f32.mrf.mxu0
      %v931 = vadd.f32 %v285, %v930
      %v932 = vpop.f32.mrf.mxu0
      %v933 = vpop.f32.mrf.mxu0
      %v934 = vadd.f32 %v285, %v933
      %v935 = vpop.f32.mrf.mxu0
      %936 = vmatprep.mubr.bf16.mxu0 %v743
      %937 = vmatmul.mubr.bf16.gmra.mxu0 %v308
      %v938 = vpop.f32.mrf.mxu0
      %v939 = vadd.f32 %v285, %v938
      %v940 = vpop.f32.mrf.mxu0
      %v941 = vpop.f32.mrf.mxu0
      %v942 = vadd.f32 %v285, %v941
      %v943 = vpop.f32.mrf.mxu0
      %944 = vmatprep.mubr.bf16.mxu0 %v746
      %945 = vmatmul.mubr.bf16.gmra.mxu0 %v309
      %v946 = vpop.f32.mrf.mxu0
      %v947 = vadd.f32 %v285, %v946
      %v948 = vpop.f32.mrf.mxu0
      %v949 = vpop.f32.mrf.mxu0
      %v950 = vpop.f32.mrf.mxu0
      %951 = vdwg.mxu0
      %v952 = vmax.f32 %v915, 0.0
      %v953 = vmax.f32 %v918, 0.0
      %v954 = vmax.f32 %v923, 0.0
      %v955 = vmax.f32 %v926, 0.0
      %v956 = vmax.f32 %v931, 0.0
      %v957 = vmax.f32 %v934, 0.0
      %v958 = vmax.f32 %v939, 0.0
      %v959 = vmax.f32 %v942, 0.0
      %v960 = vmax.f32 %v947, 0.0
      %vm961 = vcmask 1046528
      %v962 = vrot.slane %v703, 1
      %v963 = vrot.slane %v704, 1
      %v964 = vsel %vm961, %v962, %v963
      %v965 = vrot.slane %v705, 1
      %v966 = vsel %vm961, %v963, %v965
      %v967 = vrot.slane %v706, 1
      %v968 = vsel %vm961, %v965, %v967
      %v969 = vrot.slane %v707, 1
      %v970 = vsel %vm961, %v967, %v969
      %v976 = vld [vmem:[%s4] sm:$0xf]
      %v977 = vld [vmem:[%s4 + $0x4] sm:$0xf]
      %v978 = vld [vmem:[%s4 + $0x8] sm:$0xf]
      %v979 = vld [vmem:[%s4 + $0xc] sm:$0xf]
      %v980 = vld [vmem:[%s4 + $0x10] sm:$0xf]
      %v981 = vld [vmem:[%s4 + $0x14] sm:$0xf]
      %v982 = vld [vmem:[%s4 + $0x18] sm:$0xf]
      %v983 = vld [vmem:[%s4 + $0x1c] sm:$0xf]
      %v984 = vld [vmem:[%s4 + $0x20] sm:$0xf]
      %v985 = vld [vmem:[%s4 + $0x24] sm:$0xf]
      %v986 = vld [vmem:[%s4 + $0x28] sm:$0xf]
      %v987 = vld [vmem:[%s4 + $0x2c] sm:$0xf]
      %v988 = vld [vmem:[%s4 + $0x30] sm:$0xf]
      %v989 = vld [vmem:[%s4 + $0x34] sm:$0xf]
      %v990 = vld [vmem:[%s4 + $0x38] sm:$0xf]
      %v991 = vld [vmem:[%s4 + $0x3c] sm:$0xf]
      %v992 = vld [vmem:[%s4 + $0x40] sm:$0xf]
      %v993 = vld [vmem:[%s4 + $0x44] sm:$0xf]
      %v994 = vld [vmem:[%s4 + $0x48] sm:$0xf]
      %v995 = vld [vmem:[%s4 + $0x4c] sm:$0xf]
      %v996 = vld [vmem:[%s4 + $0x50] sm:$0xf]
      %v997 = vld [vmem:[%s4 + $0x54] sm:$0xf]
      %v998 = vld [vmem:[%s4 + $0x58] sm:$0xf]
      %v999 = vld [vmem:[%s4 + $0x5c] sm:$0xf]
      %v1000 = vld [vmem:[%s4 + $0x60] sm:$0xf]
      %v1001 = vld [vmem:[%s4 + $0x64] sm:$0xf]
      %v1002 = vld [vmem:[%s4 + $0x68] sm:$0xf]
      %v1003 = vld [vmem:[%s4 + $0x6c] sm:$0xf]
      %v1004 = vld [vmem:[%s4 + $0x70] sm:$0xf]
      %v1005 = vld [vmem:[%s4 + $0x74] sm:$0xf]
      %v1006 = vld [vmem:[%s4 + $0x78] sm:$0xf]
      %v1007 = vld [vmem:[%s4 + $0x7c] sm:$0xf]
      %v1008 = vld [vmem:[%s4 + $0x80] sm:$0xf]
      %v1009 = vld [vmem:[%s4 + $0x84] sm:$0xf]
      %v1010 = vld [vmem:[%s4 + $0x88] sm:$0xf]
      %v1011 = vld [vmem:[%s4 + $0x8c] sm:$0xf]
      %v1012 = vld [vmem:[%s4 + $0x90] sm:$0xf]
      %v1013 = vld [vmem:[%s4 + $0x94] sm:$0xf]
      %v1014 = vld [vmem:[%s4 + $0x98] sm:$0xf]
      %v1015 = vld [vmem:[%s4 + $0x9c] sm:$0xf]
      %v1016 = vld [vmem:[%s4 + $0xa0] sm:$0xf]
      %v1017 = vld [vmem:[%s4 + $0xa4] sm:$0xf]
      %v1018 = vld [vmem:[%s4 + $0xa8] sm:$0xf]
      %v1019 = vld [vmem:[%s4 + $0xac] sm:$0xf]
      %v1020 = vld [vmem:[%s4 + $0xb0] sm:$0xf]
      %v1021 = vld [vmem:[%s4 + $0xb4] sm:$0xf]
      %v1022 = vld [vmem:[%s4 + $0xb8] sm:$0xf]
      %v1023 = vld [vmem:[%s4 + $0xbc] sm:$0xf]
      %v1024 = vld [vmem:[%s4 + $0xc0] sm:$0xf]
      %v1025 = vld [vmem:[%s4 + $0xc4] sm:$0xf]
      %v1026 = vld [vmem:[%s4 + $0xc8] sm:$0xf]
      %v1027 = vld [vmem:[%s4 + $0xcc] sm:$0xf]
      %v1028 = vld [vmem:[%s4 + $0xd0] sm:$0xf]
      %v1029 = vld [vmem:[%s4 + $0xd4] sm:$0xf]
      %v1030 = vld [vmem:[%s4 + $0xd8] sm:$0xf]
      %v1031 = vld [vmem:[%s4 + $0xdc] sm:$0xf]
      %v1032 = vld [vmem:[%s4 + $0xe0] sm:$0xf]
      %v1033 = vld [vmem:[%s4 + $0xe4] sm:$0xf]
      %v1034 = vld [vmem:[%s4 + $0xe8] sm:$0xf]
      %v1035 = vld [vmem:[%s4 + $0xec] sm:$0xf]
      %v1036 = vld [vmem:[%s4 + $0xf0] sm:$0xf]
      %v1037 = vld [vmem:[%s4 + $0xf4] sm:$0xf]
      %v1038 = vld [vmem:[%s4 + $0xf8] sm:$0xf]
      %v1039 = vld [vmem:[%s4 + $0xfc] sm:$0xf]
      %v1104 = vunpack.c.l.b16 %v976
      %v1105 = vunpack.c.l.b16 %v977
      %v1106 = vunpack.c.l.b16 %v978
      %v1107 = vunpack.c.l.b16 %v979
      %v1108 = vunpack.c.l.b16 %v980
      %v1109 = vunpack.c.l.b16 %v981
      %v1110 = vunpack.c.l.b16 %v982
      %v1111 = vunpack.c.l.b16 %v983
      %v1112 = vunpack.c.l.b16 %v984
      %v1113 = vunpack.c.l.b16 %v985
      %v1114 = vunpack.c.l.b16 %v986
      %v1115 = vunpack.c.l.b16 %v987
      %v1116 = vunpack.c.l.b16 %v988
      %v1117 = vunpack.c.l.b16 %v989
      %v1118 = vunpack.c.l.b16 %v990
      %v1119 = vunpack.c.l.b16 %v991
      %v1120 = vunpack.c.l.b16 %v992
      %v1121 = vunpack.c.l.b16 %v993
      %v1122 = vunpack.c.l.b16 %v994
      %v1123 = vunpack.c.l.b16 %v995
      %v1124 = vunpack.c.l.b16 %v996
      %v1125 = vunpack.c.l.b16 %v997
      %v1126 = vunpack.c.l.b16 %v998
      %v1127 = vunpack.c.l.b16 %v999
      %v1128 = vunpack.c.l.b16 %v1000
      %v1129 = vunpack.c.l.b16 %v1001
      %v1130 = vunpack.c.l.b16 %v1002
      %v1131 = vunpack.c.l.b16 %v1003
      %v1132 = vunpack.c.l.b16 %v1004
      %v1133 = vunpack.c.l.b16 %v1005
      %v1134 = vunpack.c.l.b16 %v1006
      %v1135 = vunpack.c.l.b16 %v1007
      %v1136 = vunpack.c.l.b16 %v1008
      %v1137 = vunpack.c.l.b16 %v1009
      %v1138 = vunpack.c.l.b16 %v1010
      %v1139 = vunpack.c.l.b16 %v1011
      %v1140 = vunpack.c.l.b16 %v1012
      %v1141 = vunpack.c.l.b16 %v1013
      %v1142 = vunpack.c.l.b16 %v1014
      %v1143 = vunpack.c.l.b16 %v1015
      %v1144 = vunpack.c.l.b16 %v1016
      %v1145 = vunpack.c.l.b16 %v1017
      %v1146 = vunpack.c.l.b16 %v1018
      %v1147 = vunpack.c.l.b16 %v1019
      %v1148 = vunpack.c.l.b16 %v1020
      %v1149 = vunpack.c.l.b16 %v1021
      %v1150 = vunpack.c.l.b16 %v1022
      %v1151 = vunpack.c.l.b16 %v1023
      %v1152 = vunpack.c.l.b16 %v1024
      %v1153 = vunpack.c.l.b16 %v1025
      %v1154 = vunpack.c.l.b16 %v1026
      %v1155 = vunpack.c.l.b16 %v1027
      %v1156 = vunpack.c.l.b16 %v1028
      %v1157 = vunpack.c.l.b16 %v1029
      %v1158 = vunpack.c.l.b16 %v1030
      %v1159 = vunpack.c.l.b16 %v1031
      %v1160 = vunpack.c.l.b16 %v1032
      %v1161 = vunpack.c.l.b16 %v1033
      %v1162 = vunpack.c.l.b16 %v1034
      %v1163 = vunpack.c.l.b16 %v1035
      %v1164 = vunpack.c.l.b16 %v1036
      %v1165 = vunpack.c.l.b16 %v1037
      %v1166 = vunpack.c.l.b16 %v1038
      %v1167 = vunpack.c.l.b16 %v1039
      %v1168 = vpack.c.b16 %v1105, %v1104
      %v1169 = vpack.c.b16 %v1107, %v1106
      %v1170 = vpack.c.b16 %v1109, %v1108
      %v1171 = vpack.c.b16 %v1111, %v1110
      %v1172 = vpack.c.b16 %v1113, %v1112
      %v1173 = vpack.c.b16 %v1115, %v1114
      %v1174 = vpack.c.b16 %v1117, %v1116
      %v1175 = vpack.c.b16 %v1119, %v1118
      %v1176 = vpack.c.b16 %v1121, %v1120
      %v1177 = vpack.c.b16 %v1123, %v1122
      %v1178 = vpack.c.b16 %v1125, %v1124
      %v1179 = vpack.c.b16 %v1127, %v1126
      %v1180 = vpack.c.b16 %v1129, %v1128
      %v1181 = vpack.c.b16 %v1131, %v1130
      %v1182 = vpack.c.b16 %v1133, %v1132
      %v1183 = vpack.c.b16 %v1135, %v1134
      %v1184 = vpack.c.b16 %v1137, %v1136
      %v1185 = vpack.c.b16 %v1139, %v1138
      %v1186 = vpack.c.b16 %v1141, %v1140
      %v1187 = vpack.c.b16 %v1143, %v1142
      %v1188 = vpack.c.b16 %v1145, %v1144
      %v1189 = vpack.c.b16 %v1147, %v1146
      %v1190 = vpack.c.b16 %v1149, %v1148
      %v1191 = vpack.c.b16 %v1151, %v1150
      %v1192 = vpack.c.b16 %v1153, %v1152
      %v1193 = vpack.c.b16 %v1155, %v1154
      %v1194 = vpack.c.b16 %v1157, %v1156
      %v1195 = vpack.c.b16 %v1159, %v1158
      %v1196 = vpack.c.b16 %v1161, %v1160
      %v1197 = vpack.c.b16 %v1163, %v1162
      %v1198 = vpack.c.b16 %v1165, %v1164
      %v1199 = vpack.c.b16 %v1167, %v1166
      %1232 = vmatprep.subr.bf16.mxu0 0
      %1233 = vmatpush1.bf16.msra.mxu0 %v1175
      %1234 = vmatprep.subr.bf16.mxu0 0
      %1235 = vmatpush1.bf16.msra.mxu0 %v1174
      %1236 = vmatprep.subr.bf16.mxu0 0
      %1237 = vmatpush1.bf16.msra.mxu0 %v1173
      %1238 = vmatprep.subr.bf16.mxu0 0
      %1239 = vmatpush1.bf16.msra.mxu0 %v1172
      %1240 = vmatprep.subr.bf16.mxu0 0
      %1241 = vmatpush1.bf16.msra.mxu0 %v1171
      %1242 = vmatprep.subr.bf16.mxu0 0
      %1243 = vmatpush1.bf16.msra.mxu0 %v1170
      %1244 = vmatprep.subr.bf16.mxu0 0
      %1245 = vmatpush1.bf16.msra.mxu0 %v1169
      %1246 = vmatprep.subr.bf16.mxu0 0
      %1247 = vmatpush1.bf16.msra.mxu0 %v1168
      %1248 = vmatprep.subr.bf16.mxu0 0
      %1249 = vmatpush2.bf16.msra.mxu0 %v1183
      %1250 = vmatprep.subr.bf16.mxu0 0
      %1251 = vmatpush2.bf16.msra.mxu0 %v1182
      %1252 = vmatprep.subr.bf16.mxu0 0
      %1253 = vmatpush2.bf16.msra.mxu0 %v1181
      %1254 = vmatprep.subr.bf16.mxu0 0
      %1255 = vmatpush2.bf16.msra.mxu0 %v1180
      %1256 = vmatprep.subr.bf16.mxu0 0
      %1257 = vmatpush2.bf16.msra.mxu0 %v1179
      %1258 = vmatprep.subr.bf16.mxu0 0
      %1259 = vmatpush2.bf16.msra.mxu0 %v1178
      %1260 = vmatprep.subr.bf16.mxu0 0
      %1261 = vmatpush2.bf16.msra.mxu0 %v1177
      %1262 = vmatprep.subr.bf16.mxu0 0
      %1263 = vmatpush2.bf16.msra.mxu0 %v1176
      %1264 = vmatprep.mubr.bf16.mxu0 %v459
      %1265 = vmatmul.mubr.bf16.gmra.mxu0 %v305
      %v1266 = vpop.f32.mrf.mxu0
      %v1267 = vadd.f32 %v285, %v1266
      %v1268 = vpop.f32.mrf.mxu0
      %v1269 = vpop.f32.mrf.mxu0
      %v1270 = vadd.f32 %v285, %v1269
      %v1271 = vpop.f32.mrf.mxu0
      %1272 = vmatprep.mubr.bf16.mxu0 %v467
      %1273 = vmatmul.mubr.bf16.gmra.mxu0 %v306
      %v1274 = vpop.f32.mrf.mxu0
      %v1275 = vadd.f32 %v285, %v1274
      %v1276 = vpop.f32.mrf.mxu0
      %v1277 = vpop.f32.mrf.mxu0
      %v1278 = vadd.f32 %v285, %v1277
      %v1279 = vpop.f32.mrf.mxu0
      %1280 = vmatprep.mubr.bf16.mxu0 %v475
      %1281 = vmatmul.mubr.bf16.gmra.mxu0 %v307
      %v1282 = vpop.f32.mrf.mxu0
      %v1283 = vadd.f32 %v285, %v1282
      %v1284 = vpop.f32.mrf.mxu0
      %v1285 = vpop.f32.mrf.mxu0
      %v1286 = vadd.f32 %v285, %v1285
      %v1287 = vpop.f32.mrf.mxu0
      %1288 = vmatprep.mubr.bf16.mxu0 %v483
      %1289 = vmatmul.mubr.bf16.gmra.mxu0 %v308
      %v1290 = vpop.f32.mrf.mxu0
      %v1291 = vadd.f32 %v285, %v1290
      %v1292 = vpop.f32.mrf.mxu0
      %v1293 = vpop.f32.mrf.mxu0
      %v1294 = vadd.f32 %v285, %v1293
      %v1295 = vpop.f32.mrf.mxu0
      %1296 = vmatprep.mubr.bf16.mxu0 %v486
      %1297 = vmatmul.mubr.bf16.gmra.mxu0 %v309
      %v1298 = vpop.f32.mrf.mxu0
      %v1299 = vadd.f32 %v285, %v1298
      %v1300 = vpop.f32.mrf.mxu0
      %v1301 = vpop.f32.mrf.mxu0
      %v1302 = vpop.f32.mrf.mxu0
      %1303 = vdwg.mxu0
      %1304 = vmatprep.subr.bf16.mxu0 0
      %1305 = vmatpush1.bf16.msra.mxu0 %v1191
      %1306 = vmatprep.subr.bf16.mxu0 0
      %1307 = vmatpush1.bf16.msra.mxu0 %v1190
      %1308 = vmatprep.subr.bf16.mxu0 0
      %1309 = vmatpush1.bf16.msra.mxu0 %v1189
      %1310 = vmatprep.subr.bf16.mxu0 0
      %1311 = vmatpush1.bf16.msra.mxu0 %v1188
      %1312 = vmatprep.subr.bf16.mxu0 0
      %1313 = vmatpush1.bf16.msra.mxu0 %v1187
      %1314 = vmatprep.subr.bf16.mxu0 0
      %1315 = vmatpush1.bf16.msra.mxu0 %v1186
      %1316 = vmatprep.subr.bf16.mxu0 0
      %1317 = vmatpush1.bf16.msra.mxu0 %v1185
      %1318 = vmatprep.subr.bf16.mxu0 0
      %1319 = vmatpush1.bf16.msra.mxu0 %v1184
      %1320 = vmatprep.subr.bf16.mxu0 0
      %1321 = vmatpush2.bf16.msra.mxu0 %v1199
      %1322 = vmatprep.subr.bf16.mxu0 0
      %1323 = vmatpush2.bf16.msra.mxu0 %v1198
      %1324 = vmatprep.subr.bf16.mxu0 0
      %1325 = vmatpush2.bf16.msra.mxu0 %v1197
      %1326 = vmatprep.subr.bf16.mxu0 0
      %1327 = vmatpush2.bf16.msra.mxu0 %v1196
      %1328 = vmatprep.subr.bf16.mxu0 0
      %1329 = vmatpush2.bf16.msra.mxu0 %v1195
      %1330 = vmatprep.subr.bf16.mxu0 0
      %1331 = vmatpush2.bf16.msra.mxu0 %v1194
      %1332 = vmatprep.subr.bf16.mxu0 0
      %1333 = vmatpush2.bf16.msra.mxu0 %v1193
      %1334 = vmatprep.subr.bf16.mxu0 0
      %1335 = vmatpush2.bf16.msra.mxu0 %v1192
      %1336 = vmatprep.mubr.bf16.mxu0 %v964
      %1337 = vmatmul.mubr.bf16.gmra.mxu0 %v719
      %v1338 = vpop.f32.mrf.mxu0
      %v1339 = vadd.f32 %v1267, %v1338
      %v1340 = vpop.f32.mrf.mxu0
      %v1341 = vpop.f32.mrf.mxu0
      %v1342 = vadd.f32 %v1270, %v1341
      %v1343 = vpop.f32.mrf.mxu0
      %1344 = vmatprep.mubr.bf16.mxu0 %v966
      %1345 = vmatmul.mubr.bf16.gmra.mxu0 %v727
      %v1346 = vpop.f32.mrf.mxu0
      %v1347 = vadd.f32 %v1275, %v1346
      %v1348 = vpop.f32.mrf.mxu0
      %v1349 = vpop.f32.mrf.mxu0
      %v1350 = vadd.f32 %v1278, %v1349
      %v1351 = vpop.f32.mrf.mxu0
      %1352 = vmatprep.mubr.bf16.mxu0 %v968
      %1353 = vmatmul.mubr.bf16.gmra.mxu0 %v735
      %v1354 = vpop.f32.mrf.mxu0
      %v1355 = vadd.f32 %v1283, %v1354
      %v1356 = vpop.f32.mrf.mxu0
      %v1357 = vpop.f32.mrf.mxu0
      %v1358 = vadd.f32 %v1286, %v1357
      %v1359 = vpop.f32.mrf.mxu0
      %1360 = vmatprep.mubr.bf16.mxu0 %v970
      %1361 = vmatmul.mubr.bf16.gmra.mxu0 %v743
      %v1362 = vpop.f32.mrf.mxu0
      %v1363 = vadd.f32 %v1291, %v1362
      %v1364 = vpop.f32.mrf.mxu0
      %v1365 = vpop.f32.mrf.mxu0
      %v1366 = vadd.f32 %v1294, %v1365
      %v1367 = vpop.f32.mrf.mxu0
      %1368 = vmatprep.mubr.bf16.mxu0 %v969
      %1369 = vmatmul.mubr.bf16.gmra.mxu0 %v746
      %v1370 = vpop.f32.mrf.mxu0
      %v1371 = vadd.f32 %v1299, %v1370
      %v1372 = vpop.f32.mrf.mxu0
      %v1373 = vpop.f32.mrf.mxu0
      %v1374 = vpop.f32.mrf.mxu0
      %1375 = vdwg.mxu0
      %v1376 = vmax.f32 %v1339, 0.0
      %v1377 = vmax.f32 %v1342, 0.0
      %v1378 = vmax.f32 %v1347, 0.0
      %v1379 = vmax.f32 %v1350, 0.0
      %v1380 = vmax.f32 %v1355, 0.0
      %v1381 = vmax.f32 %v1358, 0.0
      %v1382 = vmax.f32 %v1363, 0.0
      %v1383 = vmax.f32 %v1366, 0.0
      %v1384 = vmax.f32 %v1371, 0.0
      %v1385 = vpack.c.bf16 %v436, %v435
      %v1386 = vpack.c.bf16 %v438, %v437
      %v1387 = vpack.c.bf16 %v440, %v439
      %v1388 = vpack.c.bf16 %v442, %v441
      %v1389 = vpack.c.bf16 %v443, %v443
      %v1395 = vunpack.c.l.b16 %v1385
      %v1396 = vunpack.c.h.b16 %v1385
      %v1397 = vunpack.c.l.b16 %v1386
      %v1398 = vunpack.c.h.b16 %v1386
      %v1399 = vunpack.c.l.b16 %v1387
      %v1400 = vunpack.c.h.b16 %v1387
      %v1401 = vunpack.c.l.b16 %v1388
      %v1402 = vunpack.c.h.b16 %v1388
      %v1403 = vunpack.c.l.b16 %v1389
      %v1404 = vpack.c.b16 %v1395, %v1395
      %v1405 = vpack.c.b16 %v1396, %v1396
      %v1406 = vpack.c.b16 %v1397, %v1397
      %v1407 = vpack.c.b16 %v1398, %v1398
      %v1408 = vpack.c.b16 %v1399, %v1399
      %v1409 = vpack.c.b16 %v1400, %v1400
      %v1410 = vpack.c.b16 %v1401, %v1401
      %v1411 = vpack.c.b16 %v1402, %v1402
      %v1412 = vpack.c.b16 %v1403, %v1403
      %1422 = vst [vmem:[%s251] sm:$0xf] %v1404
      %1423 = vst [vmem:[%s251 + $0x4] sm:$0xf] %v1405
      %1424 = vst [vmem:[%s251 + $0x8] sm:$0xf] %v1406
      %1425 = vst [vmem:[%s251 + $0xc] sm:$0xf] %v1407
      %1426 = vst [vmem:[%s251 + $0x10] sm:$0xf] %v1408
      %1427 = vst [vmem:[%s251 + $0x14] sm:$0xf] %v1409
      %1428 = vst [vmem:[%s251 + $0x18] sm:$0xf] %v1410
      %1429 = vst [vmem:[%s251 + $0x1c] sm:$0xf] %v1411
      %1430 = vst [vmem:[%s251 + $0x20] sm:$0xf] %v1412
      %v1431 = vpack.c.bf16 %v693, %v692
      %v1432 = vpack.c.bf16 %v695, %v694
      %v1433 = vpack.c.bf16 %v697, %v696
      %v1434 = vpack.c.bf16 %v699, %v698
      %v1435 = vpack.c.bf16 %v700, %v700
      %v1441 = vunpack.c.l.b16 %v1431
      %v1442 = vunpack.c.h.b16 %v1431
      %v1443 = vunpack.c.l.b16 %v1432
      %v1444 = vunpack.c.h.b16 %v1432
      %v1445 = vunpack.c.l.b16 %v1433
      %v1446 = vunpack.c.h.b16 %v1433
      %v1447 = vunpack.c.l.b16 %v1434
      %v1448 = vunpack.c.h.b16 %v1434
      %v1449 = vunpack.c.l.b16 %v1435
      %v1450 = vpack.c.b16 %v1441, %v1441
      %v1451 = vpack.c.b16 %v1442, %v1442
      %v1452 = vpack.c.b16 %v1443, %v1443
      %v1453 = vpack.c.b16 %v1444, %v1444
      %v1454 = vpack.c.b16 %v1445, %v1445
      %v1455 = vpack.c.b16 %v1446, %v1446
      %v1456 = vpack.c.b16 %v1447, %v1447
      %v1457 = vpack.c.b16 %v1448, %v1448
      %v1458 = vpack.c.b16 %v1449, %v1449
      %s1468 = scalar_lea.vmem %s251, 36
      %1469 = vst [vmem:[%s1468] sm:$0xf] %v1450
      %1470 = vst [vmem:[%s1468 + $0x4] sm:$0xf] %v1451
      %1471 = vst [vmem:[%s1468 + $0x8] sm:$0xf] %v1452
      %1472 = vst [vmem:[%s1468 + $0xc] sm:$0xf] %v1453
      %1473 = vst [vmem:[%s1468 + $0x10] sm:$0xf] %v1454
      %1474 = vst [vmem:[%s1468 + $0x14] sm:$0xf] %v1455
      %1475 = vst [vmem:[%s1468 + $0x18] sm:$0xf] %v1456
      %1476 = vst [vmem:[%s1468 + $0x1c] sm:$0xf] %v1457
      %1477 = vst [vmem:[%s1468 + $0x20] sm:$0xf] %v1458
      %v1478 = vpack.c.bf16 %v953, %v952
      %v1479 = vpack.c.bf16 %v955, %v954
      %v1480 = vpack.c.bf16 %v957, %v956
      %v1481 = vpack.c.bf16 %v959, %v958
      %v1482 = vpack.c.bf16 %v960, %v960
      %v1488 = vunpack.c.l.b16 %v1478
      %v1489 = vunpack.c.h.b16 %v1478
      %v1490 = vunpack.c.l.b16 %v1479
      %v1491 = vunpack.c.h.b16 %v1479
      %v1492 = vunpack.c.l.b16 %v1480
      %v1493 = vunpack.c.h.b16 %v1480
      %v1494 = vunpack.c.l.b16 %v1481
      %v1495 = vunpack.c.h.b16 %v1481
      %v1496 = vunpack.c.l.b16 %v1482
      %v1497 = vpack.c.b16 %v1488, %v1488
      %v1498 = vpack.c.b16 %v1489, %v1489
      %v1499 = vpack.c.b16 %v1490, %v1490
      %v1500 = vpack.c.b16 %v1491, %v1491
      %v1501 = vpack.c.b16 %v1492, %v1492
      %v1502 = vpack.c.b16 %v1493, %v1493
      %v1503 = vpack.c.b16 %v1494, %v1494
      %v1504 = vpack.c.b16 %v1495, %v1495
      %v1505 = vpack.c.b16 %v1496, %v1496
      %s1515 = scalar_lea.vmem %s251, 72
      %1516 = vst [vmem:[%s1515] sm:$0xf] %v1497
      %1517 = vst [vmem:[%s1515 + $0x4] sm:$0xf] %v1498
      %1518 = vst [vmem:[%s1515 + $0x8] sm:$0xf] %v1499
      %1519 = vst [vmem:[%s1515 + $0xc] sm:$0xf] %v1500
      %1520 = vst [vmem:[%s1515 + $0x10] sm:$0xf] %v1501
      %1521 = vst [vmem:[%s1515 + $0x14] sm:$0xf] %v1502
      %1522 = vst [vmem:[%s1515 + $0x18] sm:$0xf] %v1503
      %1523 = vst [vmem:[%s1515 + $0x1c] sm:$0xf] %v1504
      %1524 = vst [vmem:[%s1515 + $0x20] sm:$0xf] %v1505
      %v1525 = vpack.c.bf16 %v1377, %v1376
      %v1526 = vpack.c.bf16 %v1379, %v1378
      %v1527 = vpack.c.bf16 %v1381, %v1380
      %v1528 = vpack.c.bf16 %v1383, %v1382
      %v1529 = vpack.c.bf16 %v1384, %v1384
      %v1535 = vunpack.c.l.b16 %v1525
      %v1536 = vunpack.c.h.b16 %v1525
      %v1537 = vunpack.c.l.b16 %v1526
      %v1538 = vunpack.c.h.b16 %v1526
      %v1539 = vunpack.c.l.b16 %v1527
      %v1540 = vunpack.c.h.b16 %v1527
      %v1541 = vunpack.c.l.b16 %v1528
      %v1542 = vunpack.c.h.b16 %v1528
      %v1543 = vunpack.c.l.b16 %v1529
      %v1544 = vpack.c.b16 %v1535, %v1535
      %v1545 = vpack.c.b16 %v1536, %v1536
      %v1546 = vpack.c.b16 %v1537, %v1537
      %v1547 = vpack.c.b16 %v1538, %v1538
      %v1548 = vpack.c.b16 %v1539, %v1539
      %v1549 = vpack.c.b16 %v1540, %v1540
      %v1550 = vpack.c.b16 %v1541, %v1541
      %v1551 = vpack.c.b16 %v1542, %v1542
      %v1552 = vpack.c.b16 %v1543, %v1543
      %s1562 = scalar_lea.vmem %s251, 108
      %1563 = vst [vmem:[%s1562] sm:$0xf] %v1544
      %1564 = vst [vmem:[%s1562 + $0x4] sm:$0xf] %v1545
      %1565 = vst [vmem:[%s1562 + $0x8] sm:$0xf] %v1546
      %1566 = vst [vmem:[%s1562 + $0xc] sm:$0xf] %v1547
      %1567 = vst [vmem:[%s1562 + $0x10] sm:$0xf] %v1548
      %1568 = vst [vmem:[%s1562 + $0x14] sm:$0xf] %v1549
      %1569 = vst [vmem:[%s1562 + $0x18] sm:$0xf] %v1550
      %1570 = vst [vmem:[%s1562 + $0x1c] sm:$0xf] %v1551
      %1571 = vst [vmem:[%s1562 + $0x20] sm:$0xf] %v1552
      %p1572 = scmp.lt.s32.totalorder %s17, 1
      %s1573 = scalar_select %p1572, %s17, 1
      %s1574 = smul.addr %s1573, 36
      %s1575 = smul.addr %s1574, 4
      %s1576 = scalar_lea.vmem %s6, %s1575
      // Predicated region
      $region45: #{decoder_forward.9} parent=43 // pred_check
        %p1577 = pneg %p166
      $region46: #{decoder_forward.9} parent=43 // pred_check_branch
        %1579 = sbr.rel (%p1577) target = $region48
      $region47: #{decoder_forward.9} parent=43 // pred_region
        _
      $region48: #{decoder_forward.9} parent=43 // pred_fallthru
        _
    $region44: #{decoder_forward.9} parent=5 // pred_fallthru
      _
    %p1580 = scmp.le.s32.totalorder 2, %s12
    // Predicated region
    $region49: #{decoder_forward.9} parent=5 // pred_check
      %p1581 = pneg %p1580
    $region50: #{decoder_forward.9} parent=5 // pred_check_branch
      %1583 = sbr.rel (%p1581) target = $region52
    $region51: #{decoder_forward.9} parent=5 // pred_region
      %s1584 = ssub.s32 %s12, 2
      // Predicated region
      $region53: #{decoder_forward.9} parent=51 // pred_check
        %p1585 = pneg %p172
      $region54: #{decoder_forward.9} parent=51 // pred_check_branch
        %1587 = sbr.rel (%p1585) target = $region56
      $region55: #{decoder_forward.9} parent=51 // pred_region
        %p1588 = scmp.lt.s32.totalorder %s18, 1
        %s1589 = scalar_select %p1588, %s18, 1
        %s1590 = smul.addr %s1589, 36
        %s1591 = smul.addr %s1590, 4
        %s1592 = scalar_lea.vmem %s6, %s1591
      $region56: #{decoder_forward.9} parent=51 // pred_fallthru
        _
    $region52: #{decoder_forward.9} parent=5 // pred_fallthru
      _
  $region6: #{decoder_forward.9} parent=0 // loop_footer
    %s16 = sadd.s32 1, %s12
  $region7: #{decoder_forward.9} parent=0 // loop_footer_branch
    %11 = sbr.rel target = $region3
  $region8: #{decoder_forward.9} parent=0 // loop_exit
    _

// kernel: decoder_forward.10
$region0: #{decoder_forward.10}
  #allocation0 [shape = 'u32[]', space=smem, size = 0x4, offset = 0x4, fixed_abs, tag = 'smem constant byte address 0x4 - core index']
  #allocation1 [shape = 'u32[144,128]{1,0:T(1,128)}', space=vmem, size = 0x12000, scoped, tag = 'internal scratch']
  %s0 = inlined_call_operand.vmem [shape: bf16[2,326,128], index: 0, kind: input, shape index: {}]
  %s1 = inlined_call_operand.vmem [shape: bf16[1152,128], index: 1, kind: input, shape index: {}]
  %s2 = inlined_call_operand.vmem [shape: f32[1,128], index: 2, kind: input, shape index: {}]
  %s3 = inlined_call_operand.vmem [shape: bf16[2,288,128], index: 3, kind: output, shape index: {}]
  %s4 = sld [smem:[#allocation0]]
  $region45: #{decoder_forward.10} parent=0
    _
  %s6 = ssub.s32 1, %s4
  %s7 = scalar_select 0, %s6, %s4
  loop: start=0, step=1, limit=4
  $region2: #{decoder_forward.10} parent=0 // loop_pre_header
    _
  $region3: #{decoder_forward.10} parent=0 // loop_header
    %s9 = sphi 0, %s13
    %p10 = scmp.ge.s32.totalorder %s9, 4
    %s19 = sphi 0, %s21
    %s22 = sphi 0, %s19
    %s23 = sphi 0, %s22
    %s39 = sphi 0, %s23
    %s43 = sphi 0, %s43
    %s45 = sphi 0, %s43
    %s46 = sphi 0, %s45
    %s60 = sphi 0, %s46
    %s64 = sphi 0, %s64
    %s66 = sphi 0, %s64
    %s67 = sphi 0, %s66
    %s81 = sphi 0, %s67
    %s87 = sphi 0, %s89
    %s90 = sphi 0, %s87
    %s91 = sphi 0, %s90
    %s107 = sphi 0, %s91
  $region4: #{decoder_forward.10} parent=0 // loop_header_branch
    %12 = sbr.rel (%p10) target = $region8
  $region5: #{decoder_forward.10} parent=0 // loop_body
    %s14 = ssub.s32 %s9, 1
    %s15 = ssub.s32 %s9, 2
    %s16 = sadd.s32 %s9, 1
    %s17 = ssub.s32 %s9, %s16
    %p18 = scmp.eq.s32.totalorder %s17, 0
    %s20 = sadd.s32 %s19, 1
    %s21 = scalar_select %p18, %s19, %s20
    %p24 = pneg %p18
    %p25 = scmp.eq.s32.totalorder %s9, 1
    %p26 = por %p24, %p25
    %p27 = scmp.ne.s32.totalorder %s19, %s22
    %p28 = scmp.eq.s32.totalorder %s9, 0
    %p29 = por %p27, %p28
    %p30 = scmp.ne.s32.totalorder %s19, %s22
    %p31 = scmp.eq.s32.totalorder %s14, 1
    %p32 = por %p30, %p31
    %p33 = scmp.ne.s32.totalorder %s22, %s23
    %p34 = scmp.eq.s32.totalorder %s14, 0
    %p35 = por %p33, %p34
    %p36 = scmp.ne.s32.totalorder %s22, %s23
    %p37 = scmp.eq.s32.totalorder %s15, 1
    %p38 = por %p36, %p37
    %p40 = scmp.ne.s32.totalorder %s23, %s39
    %p41 = scmp.eq.s32.totalorder %s15, 0
    %p42 = por %p40, %p41
    %s44 = sadd.s32 %s43, 1
    %p47 = scmp.eq.s32.totalorder %s9, 1
    %p48 = scmp.ne.s32.totalorder %s43, %s45
    %p49 = scmp.eq.s32.totalorder %s9, 0
    %p50 = por %p48, %p49
    %p51 = scmp.ne.s32.totalorder %s43, %s45
    %p52 = scmp.eq.s32.totalorder %s14, 1
    %p53 = por %p51, %p52
    %p54 = scmp.ne.s32.totalorder %s45, %s46
    %p55 = scmp.eq.s32.totalorder %s14, 0
    %p56 = por %p54, %p55
    %p57 = scmp.ne.s32.totalorder %s45, %s46
    %p58 = scmp.eq.s32.totalorder %s15, 1
    %p59 = por %p57, %p58
    %p61 = scmp.ne.s32.totalorder %s46, %s60
    %p62 = scmp.eq.s32.totalorder %s15, 0
    %p63 = por %p61, %p62
    %s65 = sadd.s32 %s64, 1
    %p68 = scmp.eq.s32.totalorder %s9, 1
    %p69 = scmp.ne.s32.totalorder %s64, %s66
    %p70 = scmp.eq.s32.totalorder %s9, 0
    %p71 = por %p69, %p70
    %p72 = scmp.ne.s32.totalorder %s64, %s66
    %p73 = scmp.eq.s32.totalorder %s14, 1
    %p74 = por %p72, %p73
    %p75 = scmp.ne.s32.totalorder %s66, %s67
    %p76 = scmp.eq.s32.totalorder %s14, 0
    %p77 = por %p75, %p76
    %p78 = scmp.ne.s32.totalorder %s66, %s67
    %p79 = scmp.eq.s32.totalorder %s15, 1
    %p80 = por %p78, %p79
    %p82 = scmp.ne.s32.totalorder %s67, %s81
    %p83 = scmp.eq.s32.totalorder %s15, 0
    %p84 = por %p82, %p83
    %s85 = ssub.s32 %s9, %s16
    %p86 = scmp.eq.s32.totalorder %s85, 0
    %s88 = sadd.s32 %s87, 1
    %s89 = scalar_select %p86, %s87, %s88
    %p92 = pneg %p86
    %p93 = scmp.eq.s32.totalorder %s9, 1
    %p94 = por %p92, %p93
    %p95 = scmp.ne.s32.totalorder %s87, %s90
    %p96 = scmp.eq.s32.totalorder %s9, 0
    %p97 = por %p95, %p96
    %p98 = scmp.ne.s32.totalorder %s87, %s90
    %p99 = scmp.eq.s32.totalorder %s14, 1
    %p100 = por %p98, %p99
    %p101 = scmp.ne.s32.totalorder %s90, %s91
    %p102 = scmp.eq.s32.totalorder %s14, 0
    %p103 = por %p101, %p102
    %p104 = scmp.ne.s32.totalorder %s90, %s91
    %p105 = scmp.eq.s32.totalorder %s15, 1
    %p106 = por %p104, %p105
    %p108 = scmp.ne.s32.totalorder %s91, %s107
    %p109 = scmp.eq.s32.totalorder %s15, 0
    %p110 = por %p108, %p109
    %p111 = scmp.le.s32.totalorder 1, %s9
    %p112 = scmp.lt.s32.totalorder %s9, 3
    %p113 = pnand %p111, %p112
    %p114 = pneg %p113
    // Predicated region
    $region9: #{decoder_forward.10} parent=5 // pred_check
      _
    $region10: #{decoder_forward.10} parent=5 // pred_check_branch
      %116 = sbr.rel (%p113) target = $region12
    $region11: #{decoder_forward.10} parent=5 // pred_region
      %s117 = ssub.s32 %s9, 1
      // Predicated region
      $region13: #{decoder_forward.10} parent=11 // pred_check
        %p118 = pneg %p56
      $region14: #{decoder_forward.10} parent=11 // pred_check_branch
        %120 = sbr.rel (%p118) target = $region16
      $region15: #{decoder_forward.10} parent=11 // pred_region
        _
      $region16: #{decoder_forward.10} parent=11 // pred_fallthru
        _
      // Predicated region
      $region17: #{decoder_forward.10} parent=11 // pred_check
        %p121 = pneg %p77
      $region18: #{decoder_forward.10} parent=11 // pred_check_branch
        %123 = sbr.rel (%p121) target = $region20
      $region19: #{decoder_forward.10} parent=11 // pred_region
        _
      $region20: #{decoder_forward.10} parent=11 // pred_fallthru
        _
    $region12: #{decoder_forward.10} parent=5 // pred_fallthru
      _
    %p124 = scmp.lt.s32.totalorder %s9, 2
    // Predicated region
    $region21: #{decoder_forward.10} parent=5 // pred_check
      %p125 = pneg %p124
    $region22: #{decoder_forward.10} parent=5 // pred_check_branch
      %127 = sbr.rel (%p125) target = $region24
    $region23: #{decoder_forward.10} parent=5 // pred_region
      // Predicated region
      $region25: #{decoder_forward.10} parent=23 // pred_check
        %p128 = pneg %p29
      $region26: #{decoder_forward.10} parent=23 // pred_check_branch
        %130 = sbr.rel (%p128) target = $region28
      $region27: #{decoder_forward.10} parent=23 // pred_region
        %p131 = scmp.lt.s32.totalorder %s9, 1
        %s132 = scalar_select %p131, %s9, 1
        %s133 = smul.addr %s132, 41
        %s134 = smul.addr %s133, 4
        %s135 = scalar_lea.vmem %s0, %s134
      $region28: #{decoder_forward.10} parent=23 // pred_fallthru
        _
    $region24: #{decoder_forward.10} parent=5 // pred_fallthru
      _
    %p136 = scmp.le.s32.totalorder 1, %s9
    %p137 = scmp.lt.s32.totalorder %s9, 3
    %p138 = pnand %p136, %p137
    %p139 = pneg %p138
    // Predicated region
    $region29: #{decoder_forward.10} parent=5 // pred_check
      _
    $region30: #{decoder_forward.10} parent=5 // pred_check_branch
      %141 = sbr.rel (%p138) target = $region32
    $region31: #{decoder_forward.10} parent=5 // pred_region
      %s142 = ssub.s32 %s9, 1
      %p143 = scmp.lt.s32.totalorder %s14, 1
      %s144 = scalar_select %p143, %s14, 1
      %s145 = smul.addr %s144, 41
      %s146 = smul.addr %s145, 4
      %s147 = scalar_lea.vmem %s0, %s146
      %p148 = pneg %p35
      %p149 = pneg %p32
      %p150 = pneg %p56
      %p151 = pneg %p53
      %p152 = pneg %p77
      %p153 = pneg %p74
      %p154 = pneg %p103
      %p155 = pneg %p100
      %p156 = scmp.lt.s32.totalorder %s14, 1
      %s157 = scalar_select %p156, %s14, 1
      %s158 = smul.addr %s157, 36
      %s159 = smul.addr %s158, 4
      %s160 = scalar_lea.vmem %s3, %s159
      %p161 = scmp.lt.s32.totalorder %s14, 1
      %s162 = scalar_select %p161, %s14, 1
      %s163 = smul.addr %s162, 41
      %s164 = smul.addr %s163, 4
      %s165 = scalar_lea.vmem %s0, %s164
      %p166 = scmp.lt.s32.totalorder %s14, 1
      %s167 = scalar_select %p166, %s14, 1
      %s168 = smul.addr %s167, 36
      %s169 = smul.addr %s168, 4
      %s170 = scalar_lea.vmem %s3, %s169
      %v172 = vld [vmem:[%s165] sm:$0xf]
      %v173 = vld [vmem:[%s165 + $0x4] sm:$0xf]
      %v174 = vld [vmem:[%s165 + $0x8] sm:$0xf]
      %v175 = vld [vmem:[%s165 + $0xc] sm:$0xf]
      %v176 = vld [vmem:[%s165 + $0x10] sm:$0xf]
      %v177 = vld [vmem:[%s165 + $0x14] sm:$0xf]
      %v178 = vld [vmem:[%s165 + $0x18] sm:$0xf]
      %v179 = vld [vmem:[%s165 + $0x1c] sm:$0xf]
      %v180 = vld [vmem:[%s165 + $0x20] sm:$0xf]
      %v181 = vld [vmem:[%s165 + $0x24] sm:$0xf]
      %v182 = vld [vmem:[%s165 + $0x28] sm:$0xf]
      %v183 = vld [vmem:[%s165 + $0x2c] sm:$0xf]
      %v184 = vld [vmem:[%s165 + $0x30] sm:$0xf]
      %v185 = vld [vmem:[%s165 + $0x34] sm:$0xf]
      %v186 = vld [vmem:[%s165 + $0x38] sm:$0xf]
      %v187 = vld [vmem:[%s165 + $0x3c] sm:$0xf]
      %v188 = vld [vmem:[%s165 + $0x40] sm:$0xf]
      %v189 = vld [vmem:[%s165 + $0x44] sm:$0xf]
      %v190 = vld [vmem:[%s165 + $0x48] sm:$0xf]
      %v191 = vld [vmem:[%s165 + $0x4c] sm:$0xf]
      %v192 = vld [vmem:[%s165 + $0x50] sm:$0xf]
      %v193 = vld [vmem:[%s165 + $0x54] sm:$0xf]
      %v194 = vld [vmem:[%s165 + $0x58] sm:$0xf]
      %v195 = vld [vmem:[%s165 + $0x5c] sm:$0xf]
      %v196 = vld [vmem:[%s165 + $0x60] sm:$0xf]
      %v197 = vld [vmem:[%s165 + $0x64] sm:$0xf]
      %v198 = vld [vmem:[%s165 + $0x68] sm:$0xf]
      %v199 = vld [vmem:[%s165 + $0x6c] sm:$0xf]
      %v200 = vld [vmem:[%s165 + $0x70] sm:$0xf]
      %v201 = vld [vmem:[%s165 + $0x74] sm:$0xf]
      %v202 = vld [vmem:[%s165 + $0x78] sm:$0xf]
      %v203 = vld [vmem:[%s165 + $0x7c] sm:$0xf]
      %v204 = vld [vmem:[%s165 + $0x80] sm:$0xf]
      %v205 = vld [vmem:[%s165 + $0x84] sm:$0xf]
      %v206 = vld [vmem:[%s165 + $0x88] sm:$0xf]
      %v207 = vld [vmem:[%s165 + $0x8c] sm:$0xf]
      %v208 = vld [vmem:[%s165 + $0x90] sm:$0xf]
      %v209 = vld [vmem:[%s165 + $0x94] sm:$0xf]
      %v210 = vld [vmem:[%s165 + $0x98] sm:$0xf]
      %v211 = vld [vmem:[%s165 + $0x9c] sm:$0xf]
      %v212 = vld [vmem:[%s165 + $0xa0] sm:$0x7]
      %v249 = vunpack.c.l.b16 %v172
      %v250 = vunpack.c.l.b16 %v173
      %v251 = vunpack.c.l.b16 %v174
      %v252 = vunpack.c.l.b16 %v175
      %v253 = vunpack.c.l.b16 %v176
      %v254 = vunpack.c.l.b16 %v177
      %v255 = vunpack.c.l.b16 %v178
      %v256 = vunpack.c.l.b16 %v179
      %v257 = vunpack.c.l.b16 %v180
      %v258 = vunpack.c.l.b16 %v181
      %v259 = vunpack.c.l.b16 %v182
      %v260 = vunpack.c.l.b16 %v183
      %v261 = vunpack.c.l.b16 %v184
      %v262 = vunpack.c.l.b16 %v185
      %v263 = vunpack.c.l.b16 %v186
      %v264 = vunpack.c.l.b16 %v187
      %v265 = vunpack.c.l.b16 %v188
      %v266 = vunpack.c.l.b16 %v189
      %v267 = vunpack.c.l.b16 %v190
      %v268 = vunpack.c.l.b16 %v191
      %v269 = vunpack.c.l.b16 %v192
      %v270 = vunpack.c.l.b16 %v193
      %v271 = vunpack.c.l.b16 %v194
      %v272 = vunpack.c.l.b16 %v195
      %v273 = vunpack.c.l.b16 %v196
      %v274 = vunpack.c.l.b16 %v197
      %v275 = vunpack.c.l.b16 %v198
      %v276 = vunpack.c.l.b16 %v199
      %v277 = vunpack.c.l.b16 %v200
      %v278 = vunpack.c.l.b16 %v201
      %v279 = vunpack.c.l.b16 %v202
      %v280 = vunpack.c.l.b16 %v203
      %v281 = vunpack.c.l.b16 %v204
      %v282 = vunpack.c.l.b16 %v205
      %v283 = vunpack.c.l.b16 %v206
      %v284 = vunpack.c.l.b16 %v207
      %v285 = vpack.c.b16 %v250, %v249
      %v286 = vpack.c.b16 %v252, %v251
      %v287 = vpack.c.b16 %v254, %v253
      %v288 = vpack.c.b16 %v256, %v255
      %v289 = vpack.c.b16 %v258, %v257
      %v290 = vpack.c.b16 %v260, %v259
      %v291 = vpack.c.b16 %v262, %v261
      %v292 = vpack.c.b16 %v264, %v263
      %v293 = vpack.c.b16 %v266, %v265
      %v294 = vpack.c.b16 %v268, %v267
      %v295 = vpack.c.b16 %v270, %v269
      %v296 = vpack.c.b16 %v272, %v271
      %v297 = vpack.c.b16 %v274, %v273
      %v298 = vpack.c.b16 %v276, %v275
      %v299 = vpack.c.b16 %v278, %v277
      %v300 = vpack.c.b16 %v280, %v279
      %v301 = vpack.c.b16 %v282, %v281
      %v302 = vpack.c.b16 %v284, %v283
      %v322 = vunpack.c.l.b16 %v208
      %v323 = vpack.c.b16 %v322, %v322
      %vm324 = vsmask.f32 7424
      %v326 = vshrl.u32 %v285, 16
      %v328 = vshll.u32 %v285, 16
      %v330 = vrot.slane %v328, 1
      %v331 = vor.u32 %v326, %v330
      %v333 = vshll.u32 %v286, 16
      %v335 = vrot.slane %v333, 1
      %v336 = vsel %vm324, %v331, %v335
      %v337 = vshrl.u32 %v286, 16
      %v339 = vor.u32 %v337, %v335
      %v341 = vshll.u32 %v287, 16
      %v343 = vrot.slane %v341, 1
      %v344 = vsel %vm324, %v339, %v343
      %v345 = vshrl.u32 %v287, 16
      %v347 = vor.u32 %v345, %v343
      %v349 = vshll.u32 %v288, 16
      %v351 = vrot.slane %v349, 1
      %v352 = vsel %vm324, %v347, %v351
      %v353 = vshrl.u32 %v288, 16
      %v355 = vor.u32 %v353, %v351
      %v357 = vshll.u32 %v289, 16
      %v359 = vrot.slane %v357, 1
      %v360 = vsel %vm324, %v355, %v359
      %v361 = vshrl.u32 %v289, 16
      %v363 = vor.u32 %v361, %v359
      %v365 = vshll.u32 %v290, 16
      %v367 = vrot.slane %v365, 1
      %v368 = vsel %vm324, %v363, %v367
      %v369 = vshrl.u32 %v290, 16
      %v371 = vor.u32 %v369, %v367
      %v373 = vshll.u32 %v291, 16
      %v375 = vrot.slane %v373, 1
      %v376 = vsel %vm324, %v371, %v375
      %v377 = vshrl.u32 %v291, 16
      %v379 = vor.u32 %v377, %v375
      %v381 = vshll.u32 %v292, 16
      %v383 = vrot.slane %v381, 1
      %v384 = vsel %vm324, %v379, %v383
      %v385 = vshrl.u32 %v292, 16
      %v387 = vor.u32 %v385, %v383
      %v389 = vshll.u32 %v293, 16
      %v391 = vrot.slane %v389, 1
      %v392 = vsel %vm324, %v387, %v391
      %v393 = vshrl.u32 %v293, 16
      %v395 = vor.u32 %v393, %v391
      %v397 = vshll.u32 %v294, 16
      %v399 = vrot.slane %v397, 1
      %v400 = vsel %vm324, %v395, %v399
      %v401 = vshrl.u32 %v294, 16
      %v403 = vor.u32 %v401, %v399
      %v405 = vshll.u32 %v295, 16
      %v407 = vrot.slane %v405, 1
      %v408 = vsel %vm324, %v403, %v407
      %v409 = vshrl.u32 %v295, 16
      %v411 = vor.u32 %v409, %v407
      %v413 = vshll.u32 %v296, 16
      %v415 = vrot.slane %v413, 1
      %v416 = vsel %vm324, %v411, %v415
      %v417 = vshrl.u32 %v296, 16
      %v419 = vor.u32 %v417, %v415
      %v421 = vshll.u32 %v297, 16
      %v423 = vrot.slane %v421, 1
      %v424 = vsel %vm324, %v419, %v423
      %v425 = vshrl.u32 %v297, 16
      %v427 = vor.u32 %v425, %v423
      %v429 = vshll.u32 %v298, 16
      %v431 = vrot.slane %v429, 1
      %v432 = vsel %vm324, %v427, %v431
      %v433 = vshrl.u32 %v298, 16
      %v435 = vor.u32 %v433, %v431
      %v437 = vshll.u32 %v299, 16
      %v439 = vrot.slane %v437, 1
      %v440 = vsel %vm324, %v435, %v439
      %v441 = vshrl.u32 %v299, 16
      %v443 = vor.u32 %v441, %v439
      %v445 = vshll.u32 %v300, 16
      %v447 = vrot.slane %v445, 1
      %v448 = vsel %vm324, %v443, %v447
      %v449 = vshrl.u32 %v300, 16
      %v451 = vor.u32 %v449, %v447
      %v453 = vshll.u32 %v301, 16
      %v455 = vrot.slane %v453, 1
      %v456 = vsel %vm324, %v451, %v455
      %v457 = vshrl.u32 %v301, 16
      %v459 = vor.u32 %v457, %v455
      %v461 = vshll.u32 %v302, 16
      %v463 = vrot.slane %v461, 1
      %v464 = vsel %vm324, %v459, %v463
      %v465 = vshrl.u32 %v302, 16
      %v467 = vor.u32 %v465, %v463
      %v469 = vshll.u32 %v323, 16
      %v471 = vrot.slane %v469, 1
      %v472 = vsel %vm324, %v467, %v471
      %vm491 = vcmask 1046528
      %v492 = vrot.slane %v285, 1
      %v493 = vrot.slane %v286, 1
      %v494 = vsel %vm491, %v492, %v493
      %v495 = vrot.slane %v287, 1
      %v496 = vsel %vm491, %v493, %v495
      %v497 = vrot.slane %v288, 1
      %v498 = vsel %vm491, %v495, %v497
      %v499 = vrot.slane %v289, 1
      %v500 = vsel %vm491, %v497, %v499
      %v501 = vrot.slane %v290, 1
      %v502 = vsel %vm491, %v499, %v501
      %v503 = vrot.slane %v291, 1
      %v504 = vsel %vm491, %v501, %v503
      %v505 = vrot.slane %v292, 1
      %v506 = vsel %vm491, %v503, %v505
      %v507 = vrot.slane %v293, 1
      %v508 = vsel %vm491, %v505, %v507
      %v509 = vrot.slane %v294, 1
      %v510 = vsel %vm491, %v507, %v509
      %v511 = vrot.slane %v295, 1
      %v512 = vsel %vm491, %v509, %v511
      %v513 = vrot.slane %v296, 1
      %v514 = vsel %vm491, %v511, %v513
      %v515 = vrot.slane %v297, 1
      %v516 = vsel %vm491, %v513, %v515
      %v517 = vrot.slane %v298, 1
      %v518 = vsel %vm491, %v515, %v517
      %v519 = vrot.slane %v299, 1
      %v520 = vsel %vm491, %v517, %v519
      %v521 = vrot.slane %v300, 1
      %v522 = vsel %vm491, %v519, %v521
      %v523 = vrot.slane %v301, 1
      %v524 = vsel %vm491, %v521, %v523
      %v525 = vrot.slane %v302, 1
      %v526 = vsel %vm491, %v523, %v525
      %v527 = vrot.slane %v323, 1
      %v528 = vsel %vm491, %v525, %v527
      %v549 = vunpack.c.l.b16 %v209
      %v550 = vunpack.c.l.b16 %v210
      %v551 = vpack.c.b16 %v549, %v322
      %v552 = vpack.c.b16 %v550, %v550
      %v553 = vrot.slane %v551, 1
      %v554 = vsel %vm491, %v525, %v553
      %v555 = vrot.slane %v552, 1
      %v556 = vsel %vm491, %v553, %v555
      %vm559 = vsmask.f32 6400
      %v560 = vrot.slane %v337, 1
      %v561 = vrot.slane %v333, 2
      %v562 = vor.u32 %v560, %v561
      %v563 = vrot.slane %v345, 1
      %v564 = vrot.slane %v341, 2
      %v565 = vor.u32 %v563, %v564
      %v566 = vsel %vm559, %v562, %v565
      %v567 = vrot.slane %v353, 1
      %v568 = vrot.slane %v349, 2
      %v569 = vor.u32 %v567, %v568
      %v570 = vsel %vm559, %v565, %v569
      %v571 = vrot.slane %v361, 1
      %v572 = vrot.slane %v357, 2
      %v573 = vor.u32 %v571, %v572
      %v574 = vsel %vm559, %v569, %v573
      %v575 = vrot.slane %v369, 1
      %v576 = vrot.slane %v365, 2
      %v577 = vor.u32 %v575, %v576
      %v578 = vsel %vm559, %v573, %v577
      %v579 = vrot.slane %v377, 1
      %v580 = vrot.slane %v373, 2
      %v581 = vor.u32 %v579, %v580
      %v582 = vsel %vm559, %v577, %v581
      %v583 = vrot.slane %v385, 1
      %v584 = vrot.slane %v381, 2
      %v585 = vor.u32 %v583, %v584
      %v586 = vsel %vm559, %v581, %v585
      %v587 = vrot.slane %v393, 1
      %v588 = vrot.slane %v389, 2
      %v589 = vor.u32 %v587, %v588
      %v590 = vsel %vm559, %v585, %v589
      %v591 = vrot.slane %v401, 1
      %v592 = vrot.slane %v397, 2
      %v593 = vor.u32 %v591, %v592
      %v594 = vsel %vm559, %v589, %v593
      %v595 = vrot.slane %v409, 1
      %v596 = vrot.slane %v405, 2
      %v597 = vor.u32 %v595, %v596
      %v598 = vsel %vm559, %v593, %v597
      %v599 = vrot.slane %v417, 1
      %v600 = vrot.slane %v413, 2
      %v601 = vor.u32 %v599, %v600
      %v602 = vsel %vm559, %v597, %v601
      %v603 = vrot.slane %v425, 1
      %v604 = vrot.slane %v421, 2
      %v605 = vor.u32 %v603, %v604
      %v606 = vsel %vm559, %v601, %v605
      %v607 = vrot.slane %v433, 1
      %v608 = vrot.slane %v429, 2
      %v609 = vor.u32 %v607, %v608
      %v610 = vsel %vm559, %v605, %v609
      %v611 = vrot.slane %v441, 1
      %v612 = vrot.slane %v437, 2
      %v613 = vor.u32 %v611, %v612
      %v614 = vsel %vm559, %v609, %v613
      %v615 = vrot.slane %v449, 1
      %v616 = vrot.slane %v445, 2
      %v617 = vor.u32 %v615, %v616
      %v618 = vsel %vm559, %v613, %v617
      %v619 = vrot.slane %v457, 1
      %v620 = vrot.slane %v453, 2
      %v621 = vor.u32 %v619, %v620
      %v622 = vsel %vm559, %v617, %v621
      %v623 = vrot.slane %v465, 1
      %v624 = vrot.slane %v461, 2
      %v625 = vor.u32 %v623, %v624
      %v626 = vsel %vm559, %v621, %v625
      %v628 = vshrl.u32 %v551, 16
      %v630 = vrot.slane %v628, 1
      %v631 = vshll.u32 %v551, 16
      %v633 = vrot.slane %v631, 2
      %v634 = vor.u32 %v630, %v633
      %v635 = vsel %vm559, %v625, %v634
      %v637 = vshrl.u32 %v552, 16
      %v639 = vrot.slane %v637, 1
      %v640 = vshll.u32 %v552, 16
      %v642 = vrot.slane %v640, 2
      %v643 = vor.u32 %v639, %v642
      %v644 = vsel %vm559, %v634, %v643
      %vm663 = vcmask 1045504
      %v664 = vrot.slane %v286, 2
      %v665 = vrot.slane %v287, 2
      %v666 = vsel %vm663, %v664, %v665
      %v667 = vrot.slane %v288, 2
      %v668 = vsel %vm663, %v665, %v667
      %v669 = vrot.slane %v289, 2
      %v670 = vsel %vm663, %v667, %v669
      %v671 = vrot.slane %v290, 2
      %v672 = vsel %vm663, %v669, %v671
      %v673 = vrot.slane %v291, 2
      %v674 = vsel %vm663, %v671, %v673
      %v675 = vrot.slane %v292, 2
      %v676 = vsel %vm663, %v673, %v675
      %v677 = vrot.slane %v293, 2
      %v678 = vsel %vm663, %v675, %v677
      %v679 = vrot.slane %v294, 2
      %v680 = vsel %vm663, %v677, %v679
      %v681 = vrot.slane %v295, 2
      %v682 = vsel %vm663, %v679, %v681
      %v683 = vrot.slane %v296, 2
      %v684 = vsel %vm663, %v681, %v683
      %v685 = vrot.slane %v297, 2
      %v686 = vsel %vm663, %v683, %v685
      %v687 = vrot.slane %v298, 2
      %v688 = vsel %vm663, %v685, %v687
      %v689 = vrot.slane %v299, 2
      %v690 = vsel %vm663, %v687, %v689
      %v691 = vrot.slane %v300, 2
      %v692 = vsel %vm663, %v689, %v691
      %v693 = vrot.slane %v301, 2
      %v694 = vsel %vm663, %v691, %v693
      %v695 = vrot.slane %v302, 2
      %v696 = vsel %vm663, %v693, %v695
      %v697 = vrot.slane %v551, 2
      %v698 = vsel %vm663, %v695, %v697
      %v699 = vrot.slane %v552, 2
      %v700 = vsel %vm663, %v697, %v699
      %v721 = vunpack.c.l.b16 %v211
      %v722 = vunpack.c.l.b16 %v212
      %v723 = vpack.c.b16 %v721, %v550
      %v724 = vpack.c.b16 %v722, %v722
      %v725 = vrot.slane %v723, 2
      %v726 = vsel %vm663, %v697, %v725
      %v727 = vrot.slane %v724, 2
      %v728 = vsel %vm663, %v725, %v727
      %vm731 = vsmask.f32 5376
      %v732 = vrot.slane %v345, 2
      %v733 = vrot.slane %v341, 3
      %v734 = vor.u32 %v732, %v733
      %v735 = vrot.slane %v353, 2
      %v736 = vrot.slane %v349, 3
      %v737 = vor.u32 %v735, %v736
      %v738 = vsel %vm731, %v734, %v737
      %v739 = vrot.slane %v361, 2
      %v740 = vrot.slane %v357, 3
      %v741 = vor.u32 %v739, %v740
      %v742 = vsel %vm731, %v737, %v741
      %v743 = vrot.slane %v369, 2
      %v744 = vrot.slane %v365, 3
      %v745 = vor.u32 %v743, %v744
      %v746 = vsel %vm731, %v741, %v745
      %v747 = vrot.slane %v377, 2
      %v748 = vrot.slane %v373, 3
      %v749 = vor.u32 %v747, %v748
      %v750 = vsel %vm731, %v745, %v749
      %v751 = vrot.slane %v385, 2
      %v752 = vrot.slane %v381, 3
      %v753 = vor.u32 %v751, %v752
      %v754 = vsel %vm731, %v749, %v753
      %v755 = vrot.slane %v393, 2
      %v756 = vrot.slane %v389, 3
      %v757 = vor.u32 %v755, %v756
      %v758 = vsel %vm731, %v753, %v757
      %v759 = vrot.slane %v401, 2
      %v760 = vrot.slane %v397, 3
      %v761 = vor.u32 %v759, %v760
      %v762 = vsel %vm731, %v757, %v761
      %v763 = vrot.slane %v409, 2
      %v764 = vrot.slane %v405, 3
      %v765 = vor.u32 %v763, %v764
      %v766 = vsel %vm731, %v761, %v765
      %v767 = vrot.slane %v417, 2
      %v768 = vrot.slane %v413, 3
      %v769 = vor.u32 %v767, %v768
      %v770 = vsel %vm731, %v765, %v769
      %v771 = vrot.slane %v425, 2
      %v772 = vrot.slane %v421, 3
      %v773 = vor.u32 %v771, %v772
      %v774 = vsel %vm731, %v769, %v773
      %v775 = vrot.slane %v433, 2
      %v776 = vrot.slane %v429, 3
      %v777 = vor.u32 %v775, %v776
      %v778 = vsel %vm731, %v773, %v777
      %v779 = vrot.slane %v441, 2
      %v780 = vrot.slane %v437, 3
      %v781 = vor.u32 %v779, %v780
      %v782 = vsel %vm731, %v777, %v781
      %v783 = vrot.slane %v449, 2
      %v784 = vrot.slane %v445, 3
      %v785 = vor.u32 %v783, %v784
      %v786 = vsel %vm731, %v781, %v785
      %v787 = vrot.slane %v457, 2
      %v788 = vrot.slane %v453, 3
      %v789 = vor.u32 %v787, %v788
      %v790 = vsel %vm731, %v785, %v789
      %v791 = vrot.slane %v465, 2
      %v792 = vrot.slane %v461, 3
      %v793 = vor.u32 %v791, %v792
      %v794 = vsel %vm731, %v789, %v793
      %v795 = vrot.slane %v628, 2
      %v796 = vrot.slane %v631, 3
      %v797 = vor.u32 %v795, %v796
      %v798 = vsel %vm731, %v793, %v797
      %v800 = vshrl.u32 %v723, 16
      %v802 = vrot.slane %v800, 2
      %v803 = vshll.u32 %v723, 16
      %v805 = vrot.slane %v803, 3
      %v806 = vor.u32 %v802, %v805
      %v807 = vsel %vm731, %v797, %v806
      %v809 = vshrl.u32 %v724, 16
      %v811 = vrot.slane %v809, 2
      %v812 = vshll.u32 %v724, 16
      %v814 = vrot.slane %v812, 3
      %v815 = vor.u32 %v811, %v814
      %v816 = vsel %vm731, %v806, %v815
      %vm835 = vcmask 1044480
      %v836 = vrot.slane %v287, 3
      %v837 = vrot.slane %v288, 3
      %v838 = vsel %vm835, %v836, %v837
      %v839 = vrot.slane %v289, 3
      %v840 = vsel %vm835, %v837, %v839
      %v841 = vrot.slane %v290, 3
      %v842 = vsel %vm835, %v839, %v841
      %v843 = vrot.slane %v291, 3
      %v844 = vsel %vm835, %v841, %v843
      %v845 = vrot.slane %v292, 3
      %v846 = vsel %vm835, %v843, %v845
      %v847 = vrot.slane %v293, 3
      %v848 = vsel %vm835, %v845, %v847
      %v849 = vrot.slane %v294, 3
      %v850 = vsel %vm835, %v847, %v849
      %v851 = vrot.slane %v295, 3
      %v852 = vsel %vm835, %v849, %v851
      %v853 = vrot.slane %v296, 3
      %v854 = vsel %vm835, %v851, %v853
      %v855 = vrot.slane %v297, 3
      %v856 = vsel %vm835, %v853, %v855
      %v857 = vrot.slane %v298, 3
      %v858 = vsel %vm835, %v855, %v857
      %v859 = vrot.slane %v299, 3
      %v860 = vsel %vm835, %v857, %v859
      %v861 = vrot.slane %v300, 3
      %v862 = vsel %vm835, %v859, %v861
      %v863 = vrot.slane %v301, 3
      %v864 = vsel %vm835, %v861, %v863
      %v865 = vrot.slane %v302, 3
      %v866 = vsel %vm835, %v863, %v865
      %v867 = vrot.slane %v551, 3
      %v868 = vsel %vm835, %v865, %v867
      %v869 = vrot.slane %v723, 3
      %v870 = vsel %vm835, %v867, %v869
      %v871 = vrot.slane %v724, 3
      %v872 = vsel %vm835, %v869, %v871
      %v891 = vld [vmem:[%s1] sm:$0xf]
      %v892 = vld [vmem:[%s1 + $0x4] sm:$0xf]
      %v893 = vld [vmem:[%s1 + $0x8] sm:$0xf]
      %v894 = vld [vmem:[%s1 + $0xc] sm:$0xf]
      %v895 = vld [vmem:[%s1 + $0x10] sm:$0xf]
      %v896 = vld [vmem:[%s1 + $0x14] sm:$0xf]
      %v897 = vld [vmem:[%s1 + $0x18] sm:$0xf]
      %v898 = vld [vmem:[%s1 + $0x1c] sm:$0xf]
      %v899 = vld [vmem:[%s1 + $0x20] sm:$0xf]
      %v900 = vld [vmem:[%s1 + $0x24] sm:$0xf]
      %v901 = vld [vmem:[%s1 + $0x28] sm:$0xf]
      %v902 = vld [vmem:[%s1 + $0x2c] sm:$0xf]
      %v903 = vld [vmem:[%s1 + $0x30] sm:$0xf]
      %v904 = vld [vmem:[%s1 + $0x34] sm:$0xf]
      %v905 = vld [vmem:[%s1 + $0x38] sm:$0xf]
      %v906 = vld [vmem:[%s1 + $0x3c] sm:$0xf]
      %v907 = vld [vmem:[%s1 + $0x40] sm:$0xf]
      %v908 = vld [vmem:[%s1 + $0x44] sm:$0xf]
      %v909 = vld [vmem:[%s1 + $0x48] sm:$0xf]
      %v910 = vld [vmem:[%s1 + $0x4c] sm:$0xf]
      %v911 = vld [vmem:[%s1 + $0x50] sm:$0xf]
      %v912 = vld [vmem:[%s1 + $0x54] sm:$0xf]
      %v913 = vld [vmem:[%s1 + $0x58] sm:$0xf]
      %v914 = vld [vmem:[%s1 + $0x5c] sm:$0xf]
      %v915 = vld [vmem:[%s1 + $0x60] sm:$0xf]
      %v916 = vld [vmem:[%s1 + $0x64] sm:$0xf]
      %v917 = vld [vmem:[%s1 + $0x68] sm:$0xf]
      %v918 = vld [vmem:[%s1 + $0x6c] sm:$0xf]
      %v919 = vld [vmem:[%s1 + $0x70] sm:$0xf]
      %v920 = vld [vmem:[%s1 + $0x74] sm:$0xf]
      %v921 = vld [vmem:[%s1 + $0x78] sm:$0xf]
      %v922 = vld [vmem:[%s1 + $0x7c] sm:$0xf]
      %v923 = vld [vmem:[%s1 + $0x80] sm:$0xf]
      %v924 = vld [vmem:[%s1 + $0x84] sm:$0xf]
      %v925 = vld [vmem:[%s1 + $0x88] sm:$0xf]
      %v926 = vld [vmem:[%s1 + $0x8c] sm:$0xf]
      %v927 = vld [vmem:[%s1 + $0x90] sm:$0xf]
      %v928 = vld [vmem:[%s1 + $0x94] sm:$0xf]
      %v929 = vld [vmem:[%s1 + $0x98] sm:$0xf]
      %v930 = vld [vmem:[%s1 + $0x9c] sm:$0xf]
      %v931 = vld [vmem:[%s1 + $0xa0] sm:$0xf]
      %v932 = vld [vmem:[%s1 + $0xa4] sm:$0xf]
      %v933 = vld [vmem:[%s1 + $0xa8] sm:$0xf]
      %v934 = vld [vmem:[%s1 + $0xac] sm:$0xf]
      %v935 = vld [vmem:[%s1 + $0xb0] sm:$0xf]
      %v936 = vld [vmem:[%s1 + $0xb4] sm:$0xf]
      %v937 = vld [vmem:[%s1 + $0xb8] sm:$0xf]
      %v938 = vld [vmem:[%s1 + $0xbc] sm:$0xf]
      %v939 = vld [vmem:[%s1 + $0xc0] sm:$0xf]
      %v940 = vld [vmem:[%s1 + $0xc4] sm:$0xf]
      %v941 = vld [vmem:[%s1 + $0xc8] sm:$0xf]
      %v942 = vld [vmem:[%s1 + $0xcc] sm:$0xf]
      %v943 = vld [vmem:[%s1 + $0xd0] sm:$0xf]
      %v944 = vld [vmem:[%s1 + $0xd4] sm:$0xf]
      %v945 = vld [vmem:[%s1 + $0xd8] sm:$0xf]
      %v946 = vld [vmem:[%s1 + $0xdc] sm:$0xf]
      %v947 = vld [vmem:[%s1 + $0xe0] sm:$0xf]
      %v948 = vld [vmem:[%s1 + $0xe4] sm:$0xf]
      %v949 = vld [vmem:[%s1 + $0xe8] sm:$0xf]
      %v950 = vld [vmem:[%s1 + $0xec] sm:$0xf]
      %v951 = vld [vmem:[%s1 + $0xf0] sm:$0xf]
      %v952 = vld [vmem:[%s1 + $0xf4] sm:$0xf]
      %v953 = vld [vmem:[%s1 + $0xf8] sm:$0xf]
      %v954 = vld [vmem:[%s1 + $0xfc] sm:$0xf]
      %v955 = vld [vmem:[%s1 + $0x100] sm:$0xf]
      %v956 = vld [vmem:[%s1 + $0x104] sm:$0xf]
      %v957 = vld [vmem:[%s1 + $0x108] sm:$0xf]
      %v958 = vld [vmem:[%s1 + $0x10c] sm:$0xf]
      %v959 = vld [vmem:[%s1 + $0x110] sm:$0xf]
      %v960 = vld [vmem:[%s1 + $0x114] sm:$0xf]
      %v961 = vld [vmem:[%s1 + $0x118] sm:$0xf]
      %v962 = vld [vmem:[%s1 + $0x11c] sm:$0xf]
      %v963 = vld [vmem:[%s1 + $0x120] sm:$0xf]
      %v964 = vld [vmem:[%s1 + $0x124] sm:$0xf]
      %v965 = vld [vmem:[%s1 + $0x128] sm:$0xf]
      %v966 = vld [vmem:[%s1 + $0x12c] sm:$0xf]
      %v967 = vld [vmem:[%s1 + $0x130] sm:$0xf]
      %v968 = vld [vmem:[%s1 + $0x134] sm:$0xf]
      %v969 = vld [vmem:[%s1 + $0x138] sm:$0xf]
      %v970 = vld [vmem:[%s1 + $0x13c] sm:$0xf]
      %v971 = vld [vmem:[%s1 + $0x140] sm:$0xf]
      %v972 = vld [vmem:[%s1 + $0x144] sm:$0xf]
      %v973 = vld [vmem:[%s1 + $0x148] sm:$0xf]
      %v974 = vld [vmem:[%s1 + $0x14c] sm:$0xf]
      %v975 = vld [vmem:[%s1 + $0x150] sm:$0xf]
      %v976 = vld [vmem:[%s1 + $0x154] sm:$0xf]
      %v977 = vld [vmem:[%s1 + $0x158] sm:$0xf]
      %v978 = vld [vmem:[%s1 + $0x15c] sm:$0xf]
      %v979 = vld [vmem:[%s1 + $0x160] sm:$0xf]
      %v980 = vld [vmem:[%s1 + $0x164] sm:$0xf]
      %v981 = vld [vmem:[%s1 + $0x168] sm:$0xf]
      %v982 = vld [vmem:[%s1 + $0x16c] sm:$0xf]
      %v983 = vld [vmem:[%s1 + $0x170] sm:$0xf]
      %v984 = vld [vmem:[%s1 + $0x174] sm:$0xf]
      %v985 = vld [vmem:[%s1 + $0x178] sm:$0xf]
      %v986 = vld [vmem:[%s1 + $0x17c] sm:$0xf]
      %v987 = vld [vmem:[%s1 + $0x180] sm:$0xf]
      %v988 = vld [vmem:[%s1 + $0x184] sm:$0xf]
      %v989 = vld [vmem:[%s1 + $0x188] sm:$0xf]
      %v990 = vld [vmem:[%s1 + $0x18c] sm:$0xf]
      %v991 = vld [vmem:[%s1 + $0x190] sm:$0xf]
      %v992 = vld [vmem:[%s1 + $0x194] sm:$0xf]
      %v993 = vld [vmem:[%s1 + $0x198] sm:$0xf]
      %v994 = vld [vmem:[%s1 + $0x19c] sm:$0xf]
      %v995 = vld [vmem:[%s1 + $0x1a0] sm:$0xf]
      %v996 = vld [vmem:[%s1 + $0x1a4] sm:$0xf]
      %v997 = vld [vmem:[%s1 + $0x1a8] sm:$0xf]
      %v998 = vld [vmem:[%s1 + $0x1ac] sm:$0xf]
      %v999 = vld [vmem:[%s1 + $0x1b0] sm:$0xf]
      %v1000 = vld [vmem:[%s1 + $0x1b4] sm:$0xf]
      %v1001 = vld [vmem:[%s1 + $0x1b8] sm:$0xf]
      %v1002 = vld [vmem:[%s1 + $0x1bc] sm:$0xf]
      %v1003 = vld [vmem:[%s1 + $0x1c0] sm:$0xf]
      %v1004 = vld [vmem:[%s1 + $0x1c4] sm:$0xf]
      %v1005 = vld [vmem:[%s1 + $0x1c8] sm:$0xf]
      %v1006 = vld [vmem:[%s1 + $0x1cc] sm:$0xf]
      %v1007 = vld [vmem:[%s1 + $0x1d0] sm:$0xf]
      %v1008 = vld [vmem:[%s1 + $0x1d4] sm:$0xf]
      %v1009 = vld [vmem:[%s1 + $0x1d8] sm:$0xf]
      %v1010 = vld [vmem:[%s1 + $0x1dc] sm:$0xf]
      %v1011 = vld [vmem:[%s1 + $0x1e0] sm:$0xf]
      %v1012 = vld [vmem:[%s1 + $0x1e4] sm:$0xf]
      %v1013 = vld [vmem:[%s1 + $0x1e8] sm:$0xf]
      %v1014 = vld [vmem:[%s1 + $0x1ec] sm:$0xf]
      %v1015 = vld [vmem:[%s1 + $0x1f0] sm:$0xf]
      %v1016 = vld [vmem:[%s1 + $0x1f4] sm:$0xf]
      %v1017 = vld [vmem:[%s1 + $0x1f8] sm:$0xf]
      %v1018 = vld [vmem:[%s1 + $0x1fc] sm:$0xf]
      %v1019 = vld [vmem:[%s1 + $0x200] sm:$0xf]
      %v1020 = vld [vmem:[%s1 + $0x204] sm:$0xf]
      %v1021 = vld [vmem:[%s1 + $0x208] sm:$0xf]
      %v1022 = vld [vmem:[%s1 + $0x20c] sm:$0xf]
      %v1023 = vld [vmem:[%s1 + $0x210] sm:$0xf]
      %v1024 = vld [vmem:[%s1 + $0x214] sm:$0xf]
      %v1025 = vld [vmem:[%s1 + $0x218] sm:$0xf]
      %v1026 = vld [vmem:[%s1 + $0x21c] sm:$0xf]
      %v1027 = vld [vmem:[%s1 + $0x220] sm:$0xf]
      %v1028 = vld [vmem:[%s1 + $0x224] sm:$0xf]
      %v1029 = vld [vmem:[%s1 + $0x228] sm:$0xf]
      %v1030 = vld [vmem:[%s1 + $0x22c] sm:$0xf]
      %v1031 = vld [vmem:[%s1 + $0x230] sm:$0xf]
      %v1032 = vld [vmem:[%s1 + $0x234] sm:$0xf]
      %v1033 = vld [vmem:[%s1 + $0x238] sm:$0xf]
      %v1034 = vld [vmem:[%s1 + $0x23c] sm:$0xf]
      %v1035 = vld [vmem:[%s2] sm:$0x1]
      %v1037 = vlaneseq
      %v1038 = vshrl.u32 %v1037, 7
      %v1039 = vsub.s32 0, %v1038
      %v1040 = vrot.slane %v1035, %v1039
      %v1186 = vunpack.c.l.b16 %v891
      %v1187 = vunpack.c.l.b16 %v892
      %v1188 = vunpack.c.l.b16 %v893
      %v1189 = vunpack.c.l.b16 %v894
      %v1190 = vunpack.c.l.b16 %v895
      %v1191 = vunpack.c.l.b16 %v896
      %v1192 = vunpack.c.l.b16 %v897
      %v1193 = vunpack.c.l.b16 %v898
      %v1194 = vunpack.c.l.b16 %v899
      %v1195 = vunpack.c.l.b16 %v900
      %v1196 = vunpack.c.l.b16 %v901
      %v1197 = vunpack.c.l.b16 %v902
      %v1198 = vunpack.c.l.b16 %v903
      %v1199 = vunpack.c.l.b16 %v904
      %v1200 = vunpack.c.l.b16 %v905
      %v1201 = vunpack.c.l.b16 %v906
      %v1202 = vunpack.c.l.b16 %v907
      %v1203 = vunpack.c.l.b16 %v908
      %v1204 = vunpack.c.l.b16 %v909
      %v1205 = vunpack.c.l.b16 %v910
      %v1206 = vunpack.c.l.b16 %v911
      %v1207 = vunpack.c.l.b16 %v912
      %v1208 = vunpack.c.l.b16 %v913
      %v1209 = vunpack.c.l.b16 %v914
      %v1210 = vunpack.c.l.b16 %v915
      %v1211 = vunpack.c.l.b16 %v916
      %v1212 = vunpack.c.l.b16 %v917
      %v1213 = vunpack.c.l.b16 %v918
      %v1214 = vunpack.c.l.b16 %v919
      %v1215 = vunpack.c.l.b16 %v920
      %v1216 = vunpack.c.l.b16 %v921
      %v1217 = vunpack.c.l.b16 %v922
      %v1218 = vunpack.c.l.b16 %v923
      %v1219 = vunpack.c.l.b16 %v924
      %v1220 = vunpack.c.l.b16 %v925
      %v1221 = vunpack.c.l.b16 %v926
      %v1222 = vunpack.c.l.b16 %v927
      %v1223 = vunpack.c.l.b16 %v928
      %v1224 = vunpack.c.l.b16 %v929
      %v1225 = vunpack.c.l.b16 %v930
      %v1226 = vunpack.c.l.b16 %v931
      %v1227 = vunpack.c.l.b16 %v932
      %v1228 = vunpack.c.l.b16 %v933
      %v1229 = vunpack.c.l.b16 %v934
      %v1230 = vunpack.c.l.b16 %v935
      %v1231 = vunpack.c.l.b16 %v936
      %v1232 = vunpack.c.l.b16 %v937
      %v1233 = vunpack.c.l.b16 %v938
      %v1234 = vunpack.c.l.b16 %v939
      %v1235 = vunpack.c.l.b16 %v940
      %v1236 = vunpack.c.l.b16 %v941
      %v1237 = vunpack.c.l.b16 %v942
      %v1238 = vunpack.c.l.b16 %v943
      %v1239 = vunpack.c.l.b16 %v944
      %v1240 = vunpack.c.l.b16 %v945
      %v1241 = vunpack.c.l.b16 %v946
      %v1242 = vunpack.c.l.b16 %v947
      %v1243 = vunpack.c.l.b16 %v948
      %v1244 = vunpack.c.l.b16 %v949
      %v1245 = vunpack.c.l.b16 %v950
      %v1246 = vunpack.c.l.b16 %v951
      %v1247 = vunpack.c.l.b16 %v952
      %v1248 = vunpack.c.l.b16 %v953
      %v1249 = vunpack.c.l.b16 %v954
      %v1250 = vunpack.c.l.b16 %v955
      %v1251 = vunpack.c.l.b16 %v956
      %v1252 = vunpack.c.l.b16 %v957
      %v1253 = vunpack.c.l.b16 %v958
      %v1254 = vunpack.c.l.b16 %v959
      %v1255 = vunpack.c.l.b16 %v960
      %v1256 = vunpack.c.l.b16 %v961
      %v1257 = vunpack.c.l.b16 %v962
      %v1258 = vunpack.c.l.b16 %v963
      %v1259 = vunpack.c.l.b16 %v964
      %v1260 = vunpack.c.l.b16 %v965
      %v1261 = vunpack.c.l.b16 %v966
      %v1262 = vunpack.c.l.b16 %v967
      %v1263 = vunpack.c.l.b16 %v968
      %v1264 = vunpack.c.l.b16 %v969
      %v1265 = vunpack.c.l.b16 %v970
      %v1266 = vunpack.c.l.b16 %v971
      %v1267 = vunpack.c.l.b16 %v972
      %v1268 = vunpack.c.l.b16 %v973
      %v1269 = vunpack.c.l.b16 %v974
      %v1270 = vunpack.c.l.b16 %v975
      %v1271 = vunpack.c.l.b16 %v976
      %v1272 = vunpack.c.l.b16 %v977
      %v1273 = vunpack.c.l.b16 %v978
      %v1274 = vunpack.c.l.b16 %v979
      %v1275 = vunpack.c.l.b16 %v980
      %v1276 = vunpack.c.l.b16 %v981
      %v1277 = vunpack.c.l.b16 %v982
      %v1278 = vunpack.c.l.b16 %v983
      %v1279 = vunpack.c.l.b16 %v984
      %v1280 = vunpack.c.l.b16 %v985
      %v1281 = vunpack.c.l.b16 %v986
      %v1282 = vunpack.c.l.b16 %v987
      %v1283 = vunpack.c.l.b16 %v988
      %v1284 = vunpack.c.l.b16 %v989
      %v1285 = vunpack.c.l.b16 %v990
      %v1286 = vunpack.c.l.b16 %v991
      %v1287 = vunpack.c.l.b16 %v992
      %v1288 = vunpack.c.l.b16 %v993
      %v1289 = vunpack.c.l.b16 %v994
      %v1290 = vunpack.c.l.b16 %v995
      %v1291 = vunpack.c.l.b16 %v996
      %v1292 = vunpack.c.l.b16 %v997
      %v1293 = vunpack.c.l.b16 %v998
      %v1294 = vunpack.c.l.b16 %v999
      %v1295 = vunpack.c.l.b16 %v1000
      %v1296 = vunpack.c.l.b16 %v1001
      %v1297 = vunpack.c.l.b16 %v1002
      %v1298 = vunpack.c.l.b16 %v1003
      %v1299 = vunpack.c.l.b16 %v1004
      %v1300 = vunpack.c.l.b16 %v1005
      %v1301 = vunpack.c.l.b16 %v1006
      %v1302 = vunpack.c.l.b16 %v1007
      %v1303 = vunpack.c.l.b16 %v1008
      %v1304 = vunpack.c.l.b16 %v1009
      %v1305 = vunpack.c.l.b16 %v1010
      %v1306 = vunpack.c.l.b16 %v1011
      %v1307 = vunpack.c.l.b16 %v1012
      %v1308 = vunpack.c.l.b16 %v1013
      %v1309 = vunpack.c.l.b16 %v1014
      %v1310 = vunpack.c.l.b16 %v1015
      %v1311 = vunpack.c.l.b16 %v1016
      %v1312 = vunpack.c.l.b16 %v1017
      %v1313 = vunpack.c.l.b16 %v1018
      %v1314 = vunpack.c.l.b16 %v1019
      %v1315 = vunpack.c.l.b16 %v1020
      %v1316 = vunpack.c.l.b16 %v1021
      %v1317 = vunpack.c.l.b16 %v1022
      %v1318 = vunpack.c.l.b16 %v1023
      %v1319 = vunpack.c.l.b16 %v1024
      %v1320 = vunpack.c.l.b16 %v1025
      %v1321 = vunpack.c.l.b16 %v1026
      %v1322 = vunpack.c.l.b16 %v1027
      %v1323 = vunpack.c.l.b16 %v1028
      %v1324 = vunpack.c.l.b16 %v1029
      %v1325 = vunpack.c.l.b16 %v1030
      %v1326 = vunpack.c.l.b16 %v1031
      %v1327 = vunpack.c.l.b16 %v1032
      %v1328 = vunpack.c.l.b16 %v1033
      %v1329 = vunpack.c.l.b16 %v1034
      %v1330 = vpack.c.b16 %v1187, %v1186
      %v1331 = vpack.c.b16 %v1189, %v1188
      %v1332 = vpack.c.b16 %v1191, %v1190
      %v1333 = vpack.c.b16 %v1193, %v1192
      %v1334 = vpack.c.b16 %v1195, %v1194
      %v1335 = vpack.c.b16 %v1197, %v1196
      %v1336 = vpack.c.b16 %v1199, %v1198
      %v1337 = vpack.c.b16 %v1201, %v1200
      %v1338 = vpack.c.b16 %v1203, %v1202
      %v1339 = vpack.c.b16 %v1205, %v1204
      %v1340 = vpack.c.b16 %v1207, %v1206
      %v1341 = vpack.c.b16 %v1209, %v1208
      %v1342 = vpack.c.b16 %v1211, %v1210
      %v1343 = vpack.c.b16 %v1213, %v1212
      %v1344 = vpack.c.b16 %v1215, %v1214
      %v1345 = vpack.c.b16 %v1217, %v1216
      %v1346 = vpack.c.b16 %v1219, %v1218
      %v1347 = vpack.c.b16 %v1221, %v1220
      %v1348 = vpack.c.b16 %v1223, %v1222
      %v1349 = vpack.c.b16 %v1225, %v1224
      %v1350 = vpack.c.b16 %v1227, %v1226
      %v1351 = vpack.c.b16 %v1229, %v1228
      %v1352 = vpack.c.b16 %v1231, %v1230
      %v1353 = vpack.c.b16 %v1233, %v1232
      %v1354 = vpack.c.b16 %v1235, %v1234
      %v1355 = vpack.c.b16 %v1237, %v1236
      %v1356 = vpack.c.b16 %v1239, %v1238
      %v1357 = vpack.c.b16 %v1241, %v1240
      %v1358 = vpack.c.b16 %v1243, %v1242
      %v1359 = vpack.c.b16 %v1245, %v1244
      %v1360 = vpack.c.b16 %v1247, %v1246
      %v1361 = vpack.c.b16 %v1249, %v1248
      %v1362 = vpack.c.b16 %v1251, %v1250
      %v1363 = vpack.c.b16 %v1253, %v1252
      %v1364 = vpack.c.b16 %v1255, %v1254
      %v1365 = vpack.c.b16 %v1257, %v1256
      %v1366 = vpack.c.b16 %v1259, %v1258
      %v1367 = vpack.c.b16 %v1261, %v1260
      %v1368 = vpack.c.b16 %v1263, %v1262
      %v1369 = vpack.c.b16 %v1265, %v1264
      %v1370 = vpack.c.b16 %v1267, %v1266
      %v1371 = vpack.c.b16 %v1269, %v1268
      %v1372 = vpack.c.b16 %v1271, %v1270
      %v1373 = vpack.c.b16 %v1273, %v1272
      %v1374 = vpack.c.b16 %v1275, %v1274
      %v1375 = vpack.c.b16 %v1277, %v1276
      %v1376 = vpack.c.b16 %v1279, %v1278
      %v1377 = vpack.c.b16 %v1281, %v1280
      %v1378 = vpack.c.b16 %v1283, %v1282
      %v1379 = vpack.c.b16 %v1285, %v1284
      %v1380 = vpack.c.b16 %v1287, %v1286
      %v1381 = vpack.c.b16 %v1289, %v1288
      %v1382 = vpack.c.b16 %v1291, %v1290
      %v1383 = vpack.c.b16 %v1293, %v1292
      %v1384 = vpack.c.b16 %v1295, %v1294
      %v1385 = vpack.c.b16 %v1297, %v1296
      %v1386 = vpack.c.b16 %v1299, %v1298
      %v1387 = vpack.c.b16 %v1301, %v1300
      %v1388 = vpack.c.b16 %v1303, %v1302
      %v1389 = vpack.c.b16 %v1305, %v1304
      %v1390 = vpack.c.b16 %v1307, %v1306
      %v1391 = vpack.c.b16 %v1309, %v1308
      %v1392 = vpack.c.b16 %v1311, %v1310
      %v1393 = vpack.c.b16 %v1313, %v1312
      %v1394 = vpack.c.b16 %v1315, %v1314
      %v1395 = vpack.c.b16 %v1317, %v1316
      %v1396 = vpack.c.b16 %v1319, %v1318
      %v1397 = vpack.c.b16 %v1321, %v1320
      %v1398 = vpack.c.b16 %v1323, %v1322
      %v1399 = vpack.c.b16 %v1325, %v1324
      %v1400 = vpack.c.b16 %v1327, %v1326
      %v1401 = vpack.c.b16 %v1329, %v1328
      %1474 = vmatprep.subr.bf16.mxu0 0
      %1475 = vmatpush1.bf16.msra.mxu0 %v1337
      %1476 = vmatprep.subr.bf16.mxu0 0
      %1477 = vmatpush1.bf16.msra.mxu0 %v1336
      %1478 = vmatprep.subr.bf16.mxu0 0
      %1479 = vmatpush1.bf16.msra.mxu0 %v1335
      %1480 = vmatprep.subr.bf16.mxu0 0
      %1481 = vmatpush1.bf16.msra.mxu0 %v1334
      %1482 = vmatprep.subr.bf16.mxu0 0
      %1483 = vmatpush1.bf16.msra.mxu0 %v1333
      %1484 = vmatprep.subr.bf16.mxu0 0
      %1485 = vmatpush1.bf16.msra.mxu0 %v1332
      %1486 = vmatprep.subr.bf16.mxu0 0
      %1487 = vmatpush1.bf16.msra.mxu0 %v1331
      %1488 = vmatprep.subr.bf16.mxu0 0
      %1489 = vmatpush1.bf16.msra.mxu0 %v1330
      %1490 = vmatprep.subr.bf16.mxu0 0
      %1491 = vmatpush2.bf16.msra.mxu0 %v1345
      %1492 = vmatprep.subr.bf16.mxu0 0
      %1493 = vmatpush2.bf16.msra.mxu0 %v1344
      %1494 = vmatprep.subr.bf16.mxu0 0
      %1495 = vmatpush2.bf16.msra.mxu0 %v1343
      %1496 = vmatprep.subr.bf16.mxu0 0
      %1497 = vmatpush2.bf16.msra.mxu0 %v1342
      %1498 = vmatprep.subr.bf16.mxu0 0
      %1499 = vmatpush2.bf16.msra.mxu0 %v1341
      %1500 = vmatprep.subr.bf16.mxu0 0
      %1501 = vmatpush2.bf16.msra.mxu0 %v1340
      %1502 = vmatprep.subr.bf16.mxu0 0
      %1503 = vmatpush2.bf16.msra.mxu0 %v1339
      %1504 = vmatprep.subr.bf16.mxu0 0
      %1505 = vmatpush2.bf16.msra.mxu0 %v1338
      %1506 = vmatprep.mubr.bf16.mxu0 %v336
      %1507 = vmatmul.mubr.bf16.gmra.mxu0 %v285
      %v1508 = vpop.f32.mrf.mxu0
      %v1509 = vadd.f32 %v1040, %v1508
      %v1510 = vpop.f32.mrf.mxu0
      %v1511 = vpop.f32.mrf.mxu0
      %v1512 = vadd.f32 %v1040, %v1511
      %v1513 = vpop.f32.mrf.mxu0
      %1514 = vmatprep.mubr.bf16.mxu0 %v344
      %1515 = vmatmul.mubr.bf16.gmra.mxu0 %v286
      %v1516 = vpop.f32.mrf.mxu0
      %v1517 = vadd.f32 %v1040, %v1516
      %v1518 = vpop.f32.mrf.mxu0
      %v1519 = vpop.f32.mrf.mxu0
      %v1520 = vadd.f32 %v1040, %v1519
      %v1521 = vpop.f32.mrf.mxu0
      %1522 = vmatprep.mubr.bf16.mxu0 %v352
      %1523 = vmatmul.mubr.bf16.gmra.mxu0 %v287
      %v1524 = vpop.f32.mrf.mxu0
      %v1525 = vadd.f32 %v1040, %v1524
      %v1526 = vpop.f32.mrf.mxu0
      %v1527 = vpop.f32.mrf.mxu0
      %v1528 = vadd.f32 %v1040, %v1527
      %v1529 = vpop.f32.mrf.mxu0
      %1530 = vmatprep.mubr.bf16.mxu0 %v360
      %1531 = vmatmul.mubr.bf16.gmra.mxu0 %v288
      %v1532 = vpop.f32.mrf.mxu0
      %v1533 = vadd.f32 %v1040, %v1532
      %v1534 = vpop.f32.mrf.mxu0
      %v1535 = vpop.f32.mrf.mxu0
      %v1536 = vadd.f32 %v1040, %v1535
      %v1537 = vpop.f32.mrf.mxu0
      %1538 = vmatprep.mubr.bf16.mxu0 %v368
      %1539 = vmatmul.mubr.bf16.gmra.mxu0 %v289
      %v1540 = vpop.f32.mrf.mxu0
      %v1541 = vadd.f32 %v1040, %v1540
      %v1542 = vpop.f32.mrf.mxu0
      %v1543 = vpop.f32.mrf.mxu0
      %v1544 = vadd.f32 %v1040, %v1543
      %v1545 = vpop.f32.mrf.mxu0
      %1546 = vmatprep.mubr.bf16.mxu0 %v376
      %1547 = vmatmul.mubr.bf16.gmra.mxu0 %v290
      %v1548 = vpop.f32.mrf.mxu0
      %v1549 = vadd.f32 %v1040, %v1548
      %v1550 = vpop.f32.mrf.mxu0
      %v1551 = vpop.f32.mrf.mxu0
      %v1552 = vadd.f32 %v1040, %v1551
      %v1553 = vpop.f32.mrf.mxu0
      %1554 = vmatprep.mubr.bf16.mxu0 %v384
      %1555 = vmatmul.mubr.bf16.gmra.mxu0 %v291
      %v1556 = vpop.f32.mrf.mxu0
      %v1557 = vadd.f32 %v1040, %v1556
      %v1558 = vpop.f32.mrf.mxu0
      %v1559 = vpop.f32.mrf.mxu0
      %v1560 = vadd.f32 %v1040, %v1559
      %v1561 = vpop.f32.mrf.mxu0
      %1562 = vmatprep.mubr.bf16.mxu0 %v392
      %1563 = vmatmul.mubr.bf16.gmra.mxu0 %v292
      %v1564 = vpop.f32.mrf.mxu0
      %v1565 = vadd.f32 %v1040, %v1564
      %v1566 = vpop.f32.mrf.mxu0
      %v1567 = vpop.f32.mrf.mxu0
      %v1568 = vadd.f32 %v1040, %v1567
      %v1569 = vpop.f32.mrf.mxu0
      %1570 = vmatprep.mubr.bf16.mxu0 %v400
      %1571 = vmatmul.mubr.bf16.gmra.mxu0 %v293
      %v1572 = vpop.f32.mrf.mxu0
      %v1573 = vadd.f32 %v1040, %v1572
      %v1574 = vpop.f32.mrf.mxu0
      %v1575 = vpop.f32.mrf.mxu0
      %v1576 = vadd.f32 %v1040, %v1575
      %v1577 = vpop.f32.mrf.mxu0
      %1578 = vmatprep.mubr.bf16.mxu0 %v408
      %1579 = vmatmul.mubr.bf16.gmra.mxu0 %v294
      %v1580 = vpop.f32.mrf.mxu0
      %v1581 = vadd.f32 %v1040, %v1580
      %v1582 = vpop.f32.mrf.mxu0
      %v1583 = vpop.f32.mrf.mxu0
      %v1584 = vadd.f32 %v1040, %v1583
      %v1585 = vpop.f32.mrf.mxu0
      %1586 = vmatprep.mubr.bf16.mxu0 %v416
      %1587 = vmatmul.mubr.bf16.gmra.mxu0 %v295
      %v1588 = vpop.f32.mrf.mxu0
      %v1589 = vadd.f32 %v1040, %v1588
      %v1590 = vpop.f32.mrf.mxu0
      %v1591 = vpop.f32.mrf.mxu0
      %v1592 = vadd.f32 %v1040, %v1591
      %v1593 = vpop.f32.mrf.mxu0
      %1594 = vmatprep.mubr.bf16.mxu0 %v424
      %1595 = vmatmul.mubr.bf16.gmra.mxu0 %v296
      %v1596 = vpop.f32.mrf.mxu0
      %v1597 = vadd.f32 %v1040, %v1596
      %v1598 = vpop.f32.mrf.mxu0
      %v1599 = vpop.f32.mrf.mxu0
      %v1600 = vadd.f32 %v1040, %v1599
      %v1601 = vpop.f32.mrf.mxu0
      %1602 = vmatprep.mubr.bf16.mxu0 %v432
      %1603 = vmatmul.mubr.bf16.gmra.mxu0 %v297
      %v1604 = vpop.f32.mrf.mxu0
      %v1605 = vadd.f32 %v1040, %v1604
      %v1606 = vpop.f32.mrf.mxu0
      %v1607 = vpop.f32.mrf.mxu0
      %v1608 = vadd.f32 %v1040, %v1607
      %v1609 = vpop.f32.mrf.mxu0
      %1610 = vmatprep.mubr.bf16.mxu0 %v440
      %1611 = vmatmul.mubr.bf16.gmra.mxu0 %v298
      %v1612 = vpop.f32.mrf.mxu0
      %v1613 = vadd.f32 %v1040, %v1612
      %v1614 = vpop.f32.mrf.mxu0
      %v1615 = vpop.f32.mrf.mxu0
      %v1616 = vadd.f32 %v1040, %v1615
      %v1617 = vpop.f32.mrf.mxu0
      %1618 = vmatprep.mubr.bf16.mxu0 %v448
      %1619 = vmatmul.mubr.bf16.gmra.mxu0 %v299
      %v1620 = vpop.f32.mrf.mxu0
      %v1621 = vadd.f32 %v1040, %v1620
      %v1622 = vpop.f32.mrf.mxu0
      %v1623 = vpop.f32.mrf.mxu0
      %v1624 = vadd.f32 %v1040, %v1623
      %v1625 = vpop.f32.mrf.mxu0
      %1626 = vmatprep.mubr.bf16.mxu0 %v456
      %1627 = vmatmul.mubr.bf16.gmra.mxu0 %v300
      %v1628 = vpop.f32.mrf.mxu0
      %v1629 = vadd.f32 %v1040, %v1628
      %v1630 = vpop.f32.mrf.mxu0
      %v1631 = vpop.f32.mrf.mxu0
      %v1632 = vadd.f32 %v1040, %v1631
      %v1633 = vpop.f32.mrf.mxu0
      %1634 = vmatprep.mubr.bf16.mxu0 %v464
      %1635 = vmatmul.mubr.bf16.gmra.mxu0 %v301
      %v1636 = vpop.f32.mrf.mxu0
      %v1637 = vadd.f32 %v1040, %v1636
      %v1638 = vpop.f32.mrf.mxu0
      %v1639 = vpop.f32.mrf.mxu0
      %v1640 = vadd.f32 %v1040, %v1639
      %v1641 = vpop.f32.mrf.mxu0
      %1642 = vmatprep.mubr.bf16.mxu0 %v472
      %1643 = vmatmul.mubr.bf16.gmra.mxu0 %v302
      %v1644 = vpop.f32.mrf.mxu0
      %v1645 = vadd.f32 %v1040, %v1644
      %v1646 = vpop.f32.mrf.mxu0
      %v1647 = vpop.f32.mrf.mxu0
      %v1648 = vadd.f32 %v1040, %v1647
      %v1649 = vpop.f32.mrf.mxu0
      %1650 = vdwg.mxu0
      %1651 = vmatprep.subr.bf16.mxu0 0
      %1652 = vmatpush1.bf16.msra.mxu0 %v1353
      %1653 = vmatprep.subr.bf16.mxu0 0
      %1654 = vmatpush1.bf16.msra.mxu0 %v1352
      %1655 = vmatprep.subr.bf16.mxu0 0
      %1656 = vmatpush1.bf16.msra.mxu0 %v1351
      %1657 = vmatprep.subr.bf16.mxu0 0
      %1658 = vmatpush1.bf16.msra.mxu0 %v1350
      %1659 = vmatprep.subr.bf16.mxu0 0
      %1660 = vmatpush1.bf16.msra.mxu0 %v1349
      %1661 = vmatprep.subr.bf16.mxu0 0
      %1662 = vmatpush1.bf16.msra.mxu0 %v1348
      %1663 = vmatprep.subr.bf16.mxu0 0
      %1664 = vmatpush1.bf16.msra.mxu0 %v1347
      %1665 = vmatprep.subr.bf16.mxu0 0
      %1666 = vmatpush1.bf16.msra.mxu0 %v1346
      %1667 = vmatprep.subr.bf16.mxu0 0
      %1668 = vmatpush2.bf16.msra.mxu0 %v1361
      %1669 = vmatprep.subr.bf16.mxu0 0
      %1670 = vmatpush2.bf16.msra.mxu0 %v1360
      %1671 = vmatprep.subr.bf16.mxu0 0
      %1672 = vmatpush2.bf16.msra.mxu0 %v1359
      %1673 = vmatprep.subr.bf16.mxu0 0
      %1674 = vmatpush2.bf16.msra.mxu0 %v1358
      %1675 = vmatprep.subr.bf16.mxu0 0
      %1676 = vmatpush2.bf16.msra.mxu0 %v1357
      %1677 = vmatprep.subr.bf16.mxu0 0
      %1678 = vmatpush2.bf16.msra.mxu0 %v1356
      %1679 = vmatprep.subr.bf16.mxu0 0
      %1680 = vmatpush2.bf16.msra.mxu0 %v1355
      %1681 = vmatprep.subr.bf16.mxu0 0
      %1682 = vmatpush2.bf16.msra.mxu0 %v1354
      %1683 = vmatprep.mubr.bf16.mxu0 %v496
      %1684 = vmatmul.mubr.bf16.gmra.mxu0 %v494
      %v1685 = vpop.f32.mrf.mxu0
      %v1686 = vadd.f32 %v1509, %v1685
      %v1687 = vpop.f32.mrf.mxu0
      %v1688 = vpop.f32.mrf.mxu0
      %v1689 = vadd.f32 %v1512, %v1688
      %v1690 = vpop.f32.mrf.mxu0
      %1691 = vmatprep.mubr.bf16.mxu0 %v498
      %1692 = vmatmul.mubr.bf16.gmra.mxu0 %v496
      %v1693 = vpop.f32.mrf.mxu0
      %v1694 = vadd.f32 %v1517, %v1693
      %v1695 = vpop.f32.mrf.mxu0
      %v1696 = vpop.f32.mrf.mxu0
      %v1697 = vadd.f32 %v1520, %v1696
      %v1698 = vpop.f32.mrf.mxu0
      %1699 = vmatprep.mubr.bf16.mxu0 %v500
      %1700 = vmatmul.mubr.bf16.gmra.mxu0 %v498
      %v1701 = vpop.f32.mrf.mxu0
      %v1702 = vadd.f32 %v1525, %v1701
      %v1703 = vpop.f32.mrf.mxu0
      %v1704 = vpop.f32.mrf.mxu0
      %v1705 = vadd.f32 %v1528, %v1704
      %v1706 = vpop.f32.mrf.mxu0
      %1707 = vmatprep.mubr.bf16.mxu0 %v502
      %1708 = vmatmul.mubr.bf16.gmra.mxu0 %v500
      %v1709 = vpop.f32.mrf.mxu0
      %v1710 = vadd.f32 %v1533, %v1709
      %v1711 = vpop.f32.mrf.mxu0
      %v1712 = vpop.f32.mrf.mxu0
      %v1713 = vadd.f32 %v1536, %v1712
      %v1714 = vpop.f32.mrf.mxu0
      %1715 = vmatprep.mubr.bf16.mxu0 %v504
      %1716 = vmatmul.mubr.bf16.gmra.mxu0 %v502
      %v1717 = vpop.f32.mrf.mxu0
      %v1718 = vadd.f32 %v1541, %v1717
      %v1719 = vpop.f32.mrf.mxu0
      %v1720 = vpop.f32.mrf.mxu0
      %v1721 = vadd.f32 %v1544, %v1720
      %v1722 = vpop.f32.mrf.mxu0
      %1723 = vmatprep.mubr.bf16.mxu0 %v506
      %1724 = vmatmul.mubr.bf16.gmra.mxu0 %v504
      %v1725 = vpop.f32.mrf.mxu0
      %v1726 = vadd.f32 %v1549, %v1725
      %v1727 = vpop.f32.mrf.mxu0
      %v1728 = vpop.f32.mrf.mxu0
      %v1729 = vadd.f32 %v1552, %v1728
      %v1730 = vpop.f32.mrf.mxu0
      %1731 = vmatprep.mubr.bf16.mxu0 %v508
      %1732 = vmatmul.mubr.bf16.gmra.mxu0 %v506
      %v1733 = vpop.f32.mrf.mxu0
      %v1734 = vadd.f32 %v1557, %v1733
      %v1735 = vpop.f32.mrf.mxu0
      %v1736 = vpop.f32.mrf.mxu0
      %v1737 = vadd.f32 %v1560, %v1736
      %v1738 = vpop.f32.mrf.mxu0
      %1739 = vmatprep.mubr.bf16.mxu0 %v510
      %1740 = vmatmul.mubr.bf16.gmra.mxu0 %v508
      %v1741 = vpop.f32.mrf.mxu0
      %v1742 = vadd.f32 %v1565, %v1741
      %v1743 = vpop.f32.mrf.mxu0
      %v1744 = vpop.f32.mrf.mxu0
      %v1745 = vadd.f32 %v1568, %v1744
      %v1746 = vpop.f32.mrf.mxu0
      %1747 = vmatprep.mubr.bf16.mxu0 %v512
      %1748 = vmatmul.mubr.bf16.gmra.mxu0 %v510
      %v1749 = vpop.f32.mrf.mxu0
      %v1750 = vadd.f32 %v1573, %v1749
      %v1751 = vpop.f32.mrf.mxu0
      %v1752 = vpop.f32.mrf.mxu0
      %v1753 = vadd.f32 %v1576, %v1752
      %v1754 = vpop.f32.mrf.mxu0
      %1755 = vmatprep.mubr.bf16.mxu0 %v514
      %1756 = vmatmul.mubr.bf16.gmra.mxu0 %v512
      %v1757 = vpop.f32.mrf.mxu0
      %v1758 = vadd.f32 %v1581, %v1757
      %v1759 = vpop.f32.mrf.mxu0
      %v1760 = vpop.f32.mrf.mxu0
      %v1761 = vadd.f32 %v1584, %v1760
      %v1762 = vpop.f32.mrf.mxu0
      %1763 = vmatprep.mubr.bf16.mxu0 %v516
      %1764 = vmatmul.mubr.bf16.gmra.mxu0 %v514
      %v1765 = vpop.f32.mrf.mxu0
      %v1766 = vadd.f32 %v1589, %v1765
      %v1767 = vpop.f32.mrf.mxu0
      %v1768 = vpop.f32.mrf.mxu0
      %v1769 = vadd.f32 %v1592, %v1768
      %v1770 = vpop.f32.mrf.mxu0
      %1771 = vmatprep.mubr.bf16.mxu0 %v518
      %1772 = vmatmul.mubr.bf16.gmra.mxu0 %v516
      %v1773 = vpop.f32.mrf.mxu0
      %v1774 = vadd.f32 %v1597, %v1773
      %v1775 = vpop.f32.mrf.mxu0
      %v1776 = vpop.f32.mrf.mxu0
      %v1777 = vadd.f32 %v1600, %v1776
      %v1778 = vpop.f32.mrf.mxu0
      %1779 = vmatprep.mubr.bf16.mxu0 %v520
      %1780 = vmatmul.mubr.bf16.gmra.mxu0 %v518
      %v1781 = vpop.f32.mrf.mxu0
      %v1782 = vadd.f32 %v1605, %v1781
      %v1783 = vpop.f32.mrf.mxu0
      %v1784 = vpop.f32.mrf.mxu0
      %v1785 = vadd.f32 %v1608, %v1784
      %v1786 = vpop.f32.mrf.mxu0
      %1787 = vmatprep.mubr.bf16.mxu0 %v522
      %1788 = vmatmul.mubr.bf16.gmra.mxu0 %v520
      %v1789 = vpop.f32.mrf.mxu0
      %v1790 = vadd.f32 %v1613, %v1789
      %v1791 = vpop.f32.mrf.mxu0
      %v1792 = vpop.f32.mrf.mxu0
      %v1793 = vadd.f32 %v1616, %v1792
      %v1794 = vpop.f32.mrf.mxu0
      %1795 = vmatprep.mubr.bf16.mxu0 %v524
      %1796 = vmatmul.mubr.bf16.gmra.mxu0 %v522
      %v1797 = vpop.f32.mrf.mxu0
      %v1798 = vadd.f32 %v1621, %v1797
      %v1799 = vpop.f32.mrf.mxu0
      %v1800 = vpop.f32.mrf.mxu0
      %v1801 = vadd.f32 %v1624, %v1800
      %v1802 = vpop.f32.mrf.mxu0
      %1803 = vmatprep.mubr.bf16.mxu0 %v526
      %1804 = vmatmul.mubr.bf16.gmra.mxu0 %v524
      %v1805 = vpop.f32.mrf.mxu0
      %v1806 = vadd.f32 %v1629, %v1805
      %v1807 = vpop.f32.mrf.mxu0
      %v1808 = vpop.f32.mrf.mxu0
      %v1809 = vadd.f32 %v1632, %v1808
      %v1810 = vpop.f32.mrf.mxu0
      %1811 = vmatprep.mubr.bf16.mxu0 %v554
      %1812 = vmatmul.mubr.bf16.gmra.mxu0 %v526
      %v1813 = vpop.f32.mrf.mxu0
      %v1814 = vadd.f32 %v1637, %v1813
      %v1815 = vpop.f32.mrf.mxu0
      %v1816 = vpop.f32.mrf.mxu0
      %v1817 = vadd.f32 %v1640, %v1816
      %v1818 = vpop.f32.mrf.mxu0
      %1819 = vmatprep.mubr.bf16.mxu0 %v556
      %1820 = vmatmul.mubr.bf16.gmra.mxu0 %v528
      %v1821 = vpop.f32.mrf.mxu0
      %v1822 = vadd.f32 %v1645, %v1821
      %v1823 = vpop.f32.mrf.mxu0
      %v1824 = vpop.f32.mrf.mxu0
      %v1825 = vadd.f32 %v1648, %v1824
      %v1826 = vpop.f32.mrf.mxu0
      %1827 = vdwg.mxu0
      %1828 = vmatprep.subr.bf16.mxu0 0
      %1829 = vmatpush1.bf16.msra.mxu0 %v1369
      %1830 = vmatprep.subr.bf16.mxu0 0
      %1831 = vmatpush1.bf16.msra.mxu0 %v1368
      %1832 = vmatprep.subr.bf16.mxu0 0
      %1833 = vmatpush1.bf16.msra.mxu0 %v1367
      %1834 = vmatprep.subr.bf16.mxu0 0
      %1835 = vmatpush1.bf16.msra.mxu0 %v1366
      %1836 = vmatprep.subr.bf16.mxu0 0
      %1837 = vmatpush1.bf16.msra.mxu0 %v1365
      %1838 = vmatprep.subr.bf16.mxu0 0
      %1839 = vmatpush1.bf16.msra.mxu0 %v1364
      %1840 = vmatprep.subr.bf16.mxu0 0
      %1841 = vmatpush1.bf16.msra.mxu0 %v1363
      %1842 = vmatprep.subr.bf16.mxu0 0
      %1843 = vmatpush1.bf16.msra.mxu0 %v1362
      %1844 = vmatprep.subr.bf16.mxu0 0
      %1845 = vmatpush2.bf16.msra.mxu0 %v1377
      %1846 = vmatprep.subr.bf16.mxu0 0
      %1847 = vmatpush2.bf16.msra.mxu0 %v1376
      %1848 = vmatprep.subr.bf16.mxu0 0
      %1849 = vmatpush2.bf16.msra.mxu0 %v1375
      %1850 = vmatprep.subr.bf16.mxu0 0
      %1851 = vmatpush2.bf16.msra.mxu0 %v1374
      %1852 = vmatprep.subr.bf16.mxu0 0
      %1853 = vmatpush2.bf16.msra.mxu0 %v1373
      %1854 = vmatprep.subr.bf16.mxu0 0
      %1855 = vmatpush2.bf16.msra.mxu0 %v1372
      %1856 = vmatprep.subr.bf16.mxu0 0
      %1857 = vmatpush2.bf16.msra.mxu0 %v1371
      %1858 = vmatprep.subr.bf16.mxu0 0
      %1859 = vmatpush2.bf16.msra.mxu0 %v1370
      %1860 = vmatprep.mubr.bf16.mxu0 %v666
      %1861 = vmatmul.mubr.bf16.gmra.mxu0 %v566
      %v1862 = vpop.f32.mrf.mxu0
      %v1863 = vadd.f32 %v1686, %v1862
      %v1864 = vpop.f32.mrf.mxu0
      %v1865 = vpop.f32.mrf.mxu0
      %v1866 = vadd.f32 %v1689, %v1865
      %v1867 = vpop.f32.mrf.mxu0
      %1868 = vmatprep.mubr.bf16.mxu0 %v668
      %1869 = vmatmul.mubr.bf16.gmra.mxu0 %v570
      %v1870 = vpop.f32.mrf.mxu0
      %v1871 = vadd.f32 %v1694, %v1870
      %v1872 = vpop.f32.mrf.mxu0
      %v1873 = vpop.f32.mrf.mxu0
      %v1874 = vadd.f32 %v1697, %v1873
      %v1875 = vpop.f32.mrf.mxu0
      %1876 = vmatprep.mubr.bf16.mxu0 %v670
      %1877 = vmatmul.mubr.bf16.gmra.mxu0 %v574
      %v1878 = vpop.f32.mrf.mxu0
      %v1879 = vadd.f32 %v1702, %v1878
      %v1880 = vpop.f32.mrf.mxu0
      %v1881 = vpop.f32.mrf.mxu0
      %v1882 = vadd.f32 %v1705, %v1881
      %v1883 = vpop.f32.mrf.mxu0
      %1884 = vmatprep.mubr.bf16.mxu0 %v672
      %1885 = vmatmul.mubr.bf16.gmra.mxu0 %v578
      %v1886 = vpop.f32.mrf.mxu0
      %v1887 = vadd.f32 %v1710, %v1886
      %v1888 = vpop.f32.mrf.mxu0
      %v1889 = vpop.f32.mrf.mxu0
      %v1890 = vadd.f32 %v1713, %v1889
      %v1891 = vpop.f32.mrf.mxu0
      %1892 = vmatprep.mubr.bf16.mxu0 %v674
      %1893 = vmatmul.mubr.bf16.gmra.mxu0 %v582
      %v1894 = vpop.f32.mrf.mxu0
      %v1895 = vadd.f32 %v1718, %v1894
      %v1896 = vpop.f32.mrf.mxu0
      %v1897 = vpop.f32.mrf.mxu0
      %v1898 = vadd.f32 %v1721, %v1897
      %v1899 = vpop.f32.mrf.mxu0
      %1900 = vmatprep.mubr.bf16.mxu0 %v676
      %1901 = vmatmul.mubr.bf16.gmra.mxu0 %v586
      %v1902 = vpop.f32.mrf.mxu0
      %v1903 = vadd.f32 %v1726, %v1902
      %v1904 = vpop.f32.mrf.mxu0
      %v1905 = vpop.f32.mrf.mxu0
      %v1906 = vadd.f32 %v1729, %v1905
      %v1907 = vpop.f32.mrf.mxu0
      %1908 = vmatprep.mubr.bf16.mxu0 %v678
      %1909 = vmatmul.mubr.bf16.gmra.mxu0 %v590
      %v1910 = vpop.f32.mrf.mxu0
      %v1911 = vadd.f32 %v1734, %v1910
      %v1912 = vpop.f32.mrf.mxu0
      %v1913 = vpop.f32.mrf.mxu0
      %v1914 = vadd.f32 %v1737, %v1913
      %v1915 = vpop.f32.mrf.mxu0
      %1916 = vmatprep.mubr.bf16.mxu0 %v680
      %1917 = vmatmul.mubr.bf16.gmra.mxu0 %v594
      %v1918 = vpop.f32.mrf.mxu0
      %v1919 = vadd.f32 %v1742, %v1918
      %v1920 = vpop.f32.mrf.mxu0
      %v1921 = vpop.f32.mrf.mxu0
      %v1922 = vadd.f32 %v1745, %v1921
      %v1923 = vpop.f32.mrf.mxu0
      %1924 = vmatprep.mubr.bf16.mxu0 %v682
      %1925 = vmatmul.mubr.bf16.gmra.mxu0 %v598
      %v1926 = vpop.f32.mrf.mxu0
      %v1927 = vadd.f32 %v1750, %v1926
      %v1928 = vpop.f32.mrf.mxu0
      %v1929 = vpop.f32.mrf.mxu0
      %v1930 = vadd.f32 %v1753, %v1929
      %v1931 = vpop.f32.mrf.mxu0
      %1932 = vmatprep.mubr.bf16.mxu0 %v684
      %1933 = vmatmul.mubr.bf16.gmra.mxu0 %v602
      %v1934 = vpop.f32.mrf.mxu0
      %v1935 = vadd.f32 %v1758, %v1934
      %v1936 = vpop.f32.mrf.mxu0
      %v1937 = vpop.f32.mrf.mxu0
      %v1938 = vadd.f32 %v1761, %v1937
      %v1939 = vpop.f32.mrf.mxu0
      %1940 = vmatprep.mubr.bf16.mxu0 %v686
      %1941 = vmatmul.mubr.bf16.gmra.mxu0 %v606
      %v1942 = vpop.f32.mrf.mxu0
      %v1943 = vadd.f32 %v1766, %v1942
      %v1944 = vpop.f32.mrf.mxu0
      %v1945 = vpop.f32.mrf.mxu0
      %v1946 = vadd.f32 %v1769, %v1945
      %v1947 = vpop.f32.mrf.mxu0
      %1948 = vmatprep.mubr.bf16.mxu0 %v688
      %1949 = vmatmul.mubr.bf16.gmra.mxu0 %v610
      %v1950 = vpop.f32.mrf.mxu0
      %v1951 = vadd.f32 %v1774, %v1950
      %v1952 = vpop.f32.mrf.mxu0
      %v1953 = vpop.f32.mrf.mxu0
      %v1954 = vadd.f32 %v1777, %v1953
      %v1955 = vpop.f32.mrf.mxu0
      %1956 = vmatprep.mubr.bf16.mxu0 %v690
      %1957 = vmatmul.mubr.bf16.gmra.mxu0 %v614
      %v1958 = vpop.f32.mrf.mxu0
      %v1959 = vadd.f32 %v1782, %v1958
      %v1960 = vpop.f32.mrf.mxu0
      %v1961 = vpop.f32.mrf.mxu0
      %v1962 = vadd.f32 %v1785, %v1961
      %v1963 = vpop.f32.mrf.mxu0
      %1964 = vmatprep.mubr.bf16.mxu0 %v692
      %1965 = vmatmul.mubr.bf16.gmra.mxu0 %v618
      %v1966 = vpop.f32.mrf.mxu0
      %v1967 = vadd.f32 %v1790, %v1966
      %v1968 = vpop.f32.mrf.mxu0
      %v1969 = vpop.f32.mrf.mxu0
      %v1970 = vadd.f32 %v1793, %v1969
      %v1971 = vpop.f32.mrf.mxu0
      %1972 = vmatprep.mubr.bf16.mxu0 %v694
      %1973 = vmatmul.mubr.bf16.gmra.mxu0 %v622
      %v1974 = vpop.f32.mrf.mxu0
      %v1975 = vadd.f32 %v1798, %v1974
      %v1976 = vpop.f32.mrf.mxu0
      %v1977 = vpop.f32.mrf.mxu0
      %v1978 = vadd.f32 %v1801, %v1977
      %v1979 = vpop.f32.mrf.mxu0
      %1980 = vmatprep.mubr.bf16.mxu0 %v696
      %1981 = vmatmul.mubr.bf16.gmra.mxu0 %v626
      %v1982 = vpop.f32.mrf.mxu0
      %v1983 = vadd.f32 %v1806, %v1982
      %v1984 = vpop.f32.mrf.mxu0
      %v1985 = vpop.f32.mrf.mxu0
      %v1986 = vadd.f32 %v1809, %v1985
      %v1987 = vpop.f32.mrf.mxu0
      %1988 = vmatprep.mubr.bf16.mxu0 %v698
      %1989 = vmatmul.mubr.bf16.gmra.mxu0 %v635
      %v1990 = vpop.f32.mrf.mxu0
      %v1991 = vadd.f32 %v1814, %v1990
      %v1992 = vpop.f32.mrf.mxu0
      %v1993 = vpop.f32.mrf.mxu0
      %v1994 = vadd.f32 %v1817, %v1993
      %v1995 = vpop.f32.mrf.mxu0
      %1996 = vmatprep.mubr.bf16.mxu0 %v700
      %1997 = vmatmul.mubr.bf16.gmra.mxu0 %v644
      %v1998 = vpop.f32.mrf.mxu0
      %v1999 = vadd.f32 %v1822, %v1998
      %v2000 = vpop.f32.mrf.mxu0
      %v2001 = vpop.f32.mrf.mxu0
      %v2002 = vadd.f32 %v1825, %v2001
      %v2003 = vpop.f32.mrf.mxu0
      %2004 = vdwg.mxu0
      %2005 = vmatprep.subr.bf16.mxu0 0
      %2006 = vmatpush1.bf16.msra.mxu0 %v1385
      %2007 = vmatprep.subr.bf16.mxu0 0
      %2008 = vmatpush1.bf16.msra.mxu0 %v1384
      %2009 = vmatprep.subr.bf16.mxu0 0
      %2010 = vmatpush1.bf16.msra.mxu0 %v1383
      %2011 = vmatprep.subr.bf16.mxu0 0
      %2012 = vmatpush1.bf16.msra.mxu0 %v1382
      %2013 = vmatprep.subr.bf16.mxu0 0
      %2014 = vmatpush1.bf16.msra.mxu0 %v1381
      %2015 = vmatprep.subr.bf16.mxu0 0
      %2016 = vmatpush1.bf16.msra.mxu0 %v1380
      %2017 = vmatprep.subr.bf16.mxu0 0
      %2018 = vmatpush1.bf16.msra.mxu0 %v1379
      %2019 = vmatprep.subr.bf16.mxu0 0
      %2020 = vmatpush1.bf16.msra.mxu0 %v1378
      %2021 = vmatprep.subr.bf16.mxu0 0
      %2022 = vmatpush2.bf16.msra.mxu0 %v1393
      %2023 = vmatprep.subr.bf16.mxu0 0
      %2024 = vmatpush2.bf16.msra.mxu0 %v1392
      %2025 = vmatprep.subr.bf16.mxu0 0
      %2026 = vmatpush2.bf16.msra.mxu0 %v1391
      %2027 = vmatprep.subr.bf16.mxu0 0
      %2028 = vmatpush2.bf16.msra.mxu0 %v1390
      %2029 = vmatprep.subr.bf16.mxu0 0
      %2030 = vmatpush2.bf16.msra.mxu0 %v1389
      %2031 = vmatprep.subr.bf16.mxu0 0
      %2032 = vmatpush2.bf16.msra.mxu0 %v1388
      %2033 = vmatprep.subr.bf16.mxu0 0
      %2034 = vmatpush2.bf16.msra.mxu0 %v1387
      %2035 = vmatprep.subr.bf16.mxu0 0
      %2036 = vmatpush2.bf16.msra.mxu0 %v1386
      %2037 = vmatprep.mubr.bf16.mxu0 %v738
      %2038 = vmatmul.mubr.bf16.gmra.mxu0 %v668
      %v2039 = vpop.f32.mrf.mxu0
      %v2040 = vadd.f32 %v1863, %v2039
      %v2041 = vpop.f32.mrf.mxu0
      %v2042 = vpop.f32.mrf.mxu0
      %v2043 = vadd.f32 %v1866, %v2042
      %v2044 = vpop.f32.mrf.mxu0
      %2045 = vmatprep.mubr.bf16.mxu0 %v742
      %2046 = vmatmul.mubr.bf16.gmra.mxu0 %v670
      %v2047 = vpop.f32.mrf.mxu0
      %v2048 = vadd.f32 %v1871, %v2047
      %v2049 = vpop.f32.mrf.mxu0
      %v2050 = vpop.f32.mrf.mxu0
      %v2051 = vadd.f32 %v1874, %v2050
      %v2052 = vpop.f32.mrf.mxu0
      %2053 = vmatprep.mubr.bf16.mxu0 %v746
      %2054 = vmatmul.mubr.bf16.gmra.mxu0 %v672
      %v2055 = vpop.f32.mrf.mxu0
      %v2056 = vadd.f32 %v1879, %v2055
      %v2057 = vpop.f32.mrf.mxu0
      %v2058 = vpop.f32.mrf.mxu0
      %v2059 = vadd.f32 %v1882, %v2058
      %v2060 = vpop.f32.mrf.mxu0
      %2061 = vmatprep.mubr.bf16.mxu0 %v750
      %2062 = vmatmul.mubr.bf16.gmra.mxu0 %v674
      %v2063 = vpop.f32.mrf.mxu0
      %v2064 = vadd.f32 %v1887, %v2063
      %v2065 = vpop.f32.mrf.mxu0
      %v2066 = vpop.f32.mrf.mxu0
      %v2067 = vadd.f32 %v1890, %v2066
      %v2068 = vpop.f32.mrf.mxu0
      %2069 = vmatprep.mubr.bf16.mxu0 %v754
      %2070 = vmatmul.mubr.bf16.gmra.mxu0 %v676
      %v2071 = vpop.f32.mrf.mxu0
      %v2072 = vadd.f32 %v1895, %v2071
      %v2073 = vpop.f32.mrf.mxu0
      %v2074 = vpop.f32.mrf.mxu0
      %v2075 = vadd.f32 %v1898, %v2074
      %v2076 = vpop.f32.mrf.mxu0
      %2077 = vmatprep.mubr.bf16.mxu0 %v758
      %2078 = vmatmul.mubr.bf16.gmra.mxu0 %v678
      %v2079 = vpop.f32.mrf.mxu0
      %v2080 = vadd.f32 %v1903, %v2079
      %v2081 = vpop.f32.mrf.mxu0
      %v2082 = vpop.f32.mrf.mxu0
      %v2083 = vadd.f32 %v1906, %v2082
      %v2084 = vpop.f32.mrf.mxu0
      %2085 = vmatprep.mubr.bf16.mxu0 %v762
      %2086 = vmatmul.mubr.bf16.gmra.mxu0 %v680
      %v2087 = vpop.f32.mrf.mxu0
      %v2088 = vadd.f32 %v1911, %v2087
      %v2089 = vpop.f32.mrf.mxu0
      %v2090 = vpop.f32.mrf.mxu0
      %v2091 = vadd.f32 %v1914, %v2090
      %v2092 = vpop.f32.mrf.mxu0
      %2093 = vmatprep.mubr.bf16.mxu0 %v766
      %2094 = vmatmul.mubr.bf16.gmra.mxu0 %v682
      %v2095 = vpop.f32.mrf.mxu0
      %v2096 = vadd.f32 %v1919, %v2095
      %v2097 = vpop.f32.mrf.mxu0
      %v2098 = vpop.f32.mrf.mxu0
      %v2099 = vadd.f32 %v1922, %v2098
      %v2100 = vpop.f32.mrf.mxu0
      %2101 = vmatprep.mubr.bf16.mxu0 %v770
      %2102 = vmatmul.mubr.bf16.gmra.mxu0 %v684
      %v2103 = vpop.f32.mrf.mxu0
      %v2104 = vadd.f32 %v1927, %v2103
      %v2105 = vpop.f32.mrf.mxu0
      %v2106 = vpop.f32.mrf.mxu0
      %v2107 = vadd.f32 %v1930, %v2106
      %v2108 = vpop.f32.mrf.mxu0
      %2109 = vmatprep.mubr.bf16.mxu0 %v774
      %2110 = vmatmul.mubr.bf16.gmra.mxu0 %v686
      %v2111 = vpop.f32.mrf.mxu0
      %v2112 = vadd.f32 %v1935, %v2111
      %v2113 = vpop.f32.mrf.mxu0
      %v2114 = vpop.f32.mrf.mxu0
      %v2115 = vadd.f32 %v1938, %v2114
      %v2116 = vpop.f32.mrf.mxu0
      %2117 = vmatprep.mubr.bf16.mxu0 %v778
      %2118 = vmatmul.mubr.bf16.gmra.mxu0 %v688
      %v2119 = vpop.f32.mrf.mxu0
      %v2120 = vadd.f32 %v1943, %v2119
      %v2121 = vpop.f32.mrf.mxu0
      %v2122 = vpop.f32.mrf.mxu0
      %v2123 = vadd.f32 %v1946, %v2122
      %v2124 = vpop.f32.mrf.mxu0
      %2125 = vmatprep.mubr.bf16.mxu0 %v782
      %2126 = vmatmul.mubr.bf16.gmra.mxu0 %v690
      %v2127 = vpop.f32.mrf.mxu0
      %v2128 = vadd.f32 %v1951, %v2127
      %v2129 = vpop.f32.mrf.mxu0
      %v2130 = vpop.f32.mrf.mxu0
      %v2131 = vadd.f32 %v1954, %v2130
      %v2132 = vpop.f32.mrf.mxu0
      %2133 = vmatprep.mubr.bf16.mxu0 %v786
      %2134 = vmatmul.mubr.bf16.gmra.mxu0 %v692
      %v2135 = vpop.f32.mrf.mxu0
      %v2136 = vadd.f32 %v1959, %v2135
      %v2137 = vpop.f32.mrf.mxu0
      %v2138 = vpop.f32.mrf.mxu0
      %v2139 = vadd.f32 %v1962, %v2138
      %v2140 = vpop.f32.mrf.mxu0
      %2141 = vmatprep.mubr.bf16.mxu0 %v790
      %2142 = vmatmul.mubr.bf16.gmra.mxu0 %v694
      %v2143 = vpop.f32.mrf.mxu0
      %v2144 = vadd.f32 %v1967, %v2143
      %v2145 = vpop.f32.mrf.mxu0
      %v2146 = vpop.f32.mrf.mxu0
      %v2147 = vadd.f32 %v1970, %v2146
      %v2148 = vpop.f32.mrf.mxu0
      %2149 = vmatprep.mubr.bf16.mxu0 %v794
      %2150 = vmatmul.mubr.bf16.gmra.mxu0 %v696
      %v2151 = vpop.f32.mrf.mxu0
      %v2152 = vadd.f32 %v1975, %v2151
      %v2153 = vpop.f32.mrf.mxu0
      %v2154 = vpop.f32.mrf.mxu0
      %v2155 = vadd.f32 %v1978, %v2154
      %v2156 = vpop.f32.mrf.mxu0
      %2157 = vmatprep.mubr.bf16.mxu0 %v798
      %2158 = vmatmul.mubr.bf16.gmra.mxu0 %v698
      %v2159 = vpop.f32.mrf.mxu0
      %v2160 = vadd.f32 %v1983, %v2159
      %v2161 = vpop.f32.mrf.mxu0
      %v2162 = vpop.f32.mrf.mxu0
      %v2163 = vadd.f32 %v1986, %v2162
      %v2164 = vpop.f32.mrf.mxu0
      %2165 = vmatprep.mubr.bf16.mxu0 %v807
      %2166 = vmatmul.mubr.bf16.gmra.mxu0 %v726
      %v2167 = vpop.f32.mrf.mxu0
      %v2168 = vadd.f32 %v1991, %v2167
      %v2169 = vpop.f32.mrf.mxu0
      %v2170 = vpop.f32.mrf.mxu0
      %v2171 = vadd.f32 %v1994, %v2170
      %v2172 = vpop.f32.mrf.mxu0
      %2173 = vmatprep.mubr.bf16.mxu0 %v816
      %2174 = vmatmul.mubr.bf16.gmra.mxu0 %v728
      %v2175 = vpop.f32.mrf.mxu0
      %v2176 = vadd.f32 %v1999, %v2175
      %v2177 = vpop.f32.mrf.mxu0
      %v2178 = vpop.f32.mrf.mxu0
      %v2179 = vadd.f32 %v2002, %v2178
      %v2180 = vpop.f32.mrf.mxu0
      %2181 = vdwg.mxu0
      %2182 = vmatprep.subr.bf16.mxu0 0
      %2183 = vmatpush1.bf16.msra.mxu0 %v1401
      %2184 = vmatprep.subr.bf16.mxu0 0
      %2185 = vmatpush1.bf16.msra.mxu0 %v1400
      %2186 = vmatprep.subr.bf16.mxu0 0
      %2187 = vmatpush1.bf16.msra.mxu0 %v1399
      %2188 = vmatprep.subr.bf16.mxu0 0
      %2189 = vmatpush1.bf16.msra.mxu0 %v1398
      %2190 = vmatprep.subr.bf16.mxu0 0
      %2191 = vmatpush1.bf16.msra.mxu0 %v1397
      %2192 = vmatprep.subr.bf16.mxu0 0
      %2193 = vmatpush1.bf16.msra.mxu0 %v1396
      %2194 = vmatprep.subr.bf16.mxu0 0
      %2195 = vmatpush1.bf16.msra.mxu0 %v1395
      %2196 = vmatprep.subr.bf16.mxu0 0
      %2197 = vmatpush1.bf16.msra.mxu0 %v1394
      %2198 = vmatprep.subr.bf16.mxu0 0
      %2199 = vmatpush2.bf16.msra.mxu0 0
      %2200 = vmatprep.subr.bf16.mxu0 0
      %2201 = vmatpush2.bf16.msra.mxu0 0
      %2202 = vmatprep.subr.bf16.mxu0 0
      %2203 = vmatpush2.bf16.msra.mxu0 0
      %2204 = vmatprep.subr.bf16.mxu0 0
      %2205 = vmatpush2.bf16.msra.mxu0 0
      %2206 = vmatprep.subr.bf16.mxu0 0
      %2207 = vmatpush2.bf16.msra.mxu0 0
      %2208 = vmatprep.subr.bf16.mxu0 0
      %2209 = vmatpush2.bf16.msra.mxu0 0
      %2210 = vmatprep.subr.bf16.mxu0 0
      %2211 = vmatpush2.bf16.msra.mxu0 0
      %2212 = vmatprep.subr.bf16.mxu0 0
      %2213 = vmatpush2.bf16.msra.mxu0 0
      %2214 = vmatprep.mubr.bf16.mxu0 0
      %2215 = vmatmul.mubr.bf16.gmra.mxu0 %v838
      %v2216 = vpop.f32.mrf.mxu0
      %v2217 = vadd.f32 %v2040, %v2216
      %v2218 = vpop.f32.mrf.mxu0
      %v2219 = vpop.f32.mrf.mxu0
      %v2220 = vadd.f32 %v2043, %v2219
      %v2221 = vpop.f32.mrf.mxu0
      %2222 = vmatprep.mubr.bf16.mxu0 0
      %2223 = vmatmul.mubr.bf16.gmra.mxu0 %v840
      %v2224 = vpop.f32.mrf.mxu0
      %v2225 = vadd.f32 %v2048, %v2224
      %v2226 = vpop.f32.mrf.mxu0
      %v2227 = vpop.f32.mrf.mxu0
      %v2228 = vadd.f32 %v2051, %v2227
      %v2229 = vpop.f32.mrf.mxu0
      %2230 = vmatprep.mubr.bf16.mxu0 0
      %2231 = vmatmul.mubr.bf16.gmra.mxu0 %v842
      %v2232 = vpop.f32.mrf.mxu0
      %v2233 = vadd.f32 %v2056, %v2232
      %v2234 = vpop.f32.mrf.mxu0
      %v2235 = vpop.f32.mrf.mxu0
      %v2236 = vadd.f32 %v2059, %v2235
      %v2237 = vpop.f32.mrf.mxu0
      %2238 = vmatprep.mubr.bf16.mxu0 0
      %2239 = vmatmul.mubr.bf16.gmra.mxu0 %v844
      %v2240 = vpop.f32.mrf.mxu0
      %v2241 = vadd.f32 %v2064, %v2240
      %v2242 = vpop.f32.mrf.mxu0
      %v2243 = vpop.f32.mrf.mxu0
      %v2244 = vadd.f32 %v2067, %v2243
      %v2245 = vpop.f32.mrf.mxu0
      %2246 = vmatprep.mubr.bf16.mxu0 0
      %2247 = vmatmul.mubr.bf16.gmra.mxu0 %v846
      %v2248 = vpop.f32.mrf.mxu0
      %v2249 = vadd.f32 %v2072, %v2248
      %v2250 = vpop.f32.mrf.mxu0
      %v2251 = vpop.f32.mrf.mxu0
      %v2252 = vadd.f32 %v2075, %v2251
      %v2253 = vpop.f32.mrf.mxu0
      %2254 = vmatprep.mubr.bf16.mxu0 0
      %2255 = vmatmul.mubr.bf16.gmra.mxu0 %v848
      %v2256 = vpop.f32.mrf.mxu0
      %v2257 = vadd.f32 %v2080, %v2256
      %v2258 = vpop.f32.mrf.mxu0
      %v2259 = vpop.f32.mrf.mxu0
      %v2260 = vadd.f32 %v2083, %v2259
      %v2261 = vpop.f32.mrf.mxu0
      %2262 = vmatprep.mubr.bf16.mxu0 0
      %2263 = vmatmul.mubr.bf16.gmra.mxu0 %v850
      %v2264 = vpop.f32.mrf.mxu0
      %v2265 = vadd.f32 %v2088, %v2264
      %v2266 = vpop.f32.mrf.mxu0
      %v2267 = vpop.f32.mrf.mxu0
      %v2268 = vadd.f32 %v2091, %v2267
      %v2269 = vpop.f32.mrf.mxu0
      %2270 = vmatprep.mubr.bf16.mxu0 0
      %2271 = vmatmul.mubr.bf16.gmra.mxu0 %v852
      %v2272 = vpop.f32.mrf.mxu0
      %v2273 = vadd.f32 %v2096, %v2272
      %v2274 = vpop.f32.mrf.mxu0
      %v2275 = vpop.f32.mrf.mxu0
      %v2276 = vadd.f32 %v2099, %v2275
      %v2277 = vpop.f32.mrf.mxu0
      %2278 = vmatprep.mubr.bf16.mxu0 0
      %2279 = vmatmul.mubr.bf16.gmra.mxu0 %v854
      %v2280 = vpop.f32.mrf.mxu0
      %v2281 = vadd.f32 %v2104, %v2280
      %v2282 = vpop.f32.mrf.mxu0
      %v2283 = vpop.f32.mrf.mxu0
      %v2284 = vadd.f32 %v2107, %v2283
      %v2285 = vpop.f32.mrf.mxu0
      %2286 = vmatprep.mubr.bf16.mxu0 0
      %2287 = vmatmul.mubr.bf16.gmra.mxu0 %v856
      %v2288 = vpop.f32.mrf.mxu0
      %v2289 = vadd.f32 %v2112, %v2288
      %v2290 = vpop.f32.mrf.mxu0
      %v2291 = vpop.f32.mrf.mxu0
      %v2292 = vadd.f32 %v2115, %v2291
      %v2293 = vpop.f32.mrf.mxu0
      %2294 = vmatprep.mubr.bf16.mxu0 0
      %2295 = vmatmul.mubr.bf16.gmra.mxu0 %v858
      %v2296 = vpop.f32.mrf.mxu0
      %v2297 = vadd.f32 %v2120, %v2296
      %v2298 = vpop.f32.mrf.mxu0
      %v2299 = vpop.f32.mrf.mxu0
      %v2300 = vadd.f32 %v2123, %v2299
      %v2301 = vpop.f32.mrf.mxu0
      %2302 = vmatprep.mubr.bf16.mxu0 0
      %2303 = vmatmul.mubr.bf16.gmra.mxu0 %v860
      %v2304 = vpop.f32.mrf.mxu0
      %v2305 = vadd.f32 %v2128, %v2304
      %v2306 = vpop.f32.mrf.mxu0
      %v2307 = vpop.f32.mrf.mxu0
      %v2308 = vadd.f32 %v2131, %v2307
      %v2309 = vpop.f32.mrf.mxu0
      %2310 = vmatprep.mubr.bf16.mxu0 0
      %2311 = vmatmul.mubr.bf16.gmra.mxu0 %v862
      %v2312 = vpop.f32.mrf.mxu0
      %v2313 = vadd.f32 %v2136, %v2312
      %v2314 = vpop.f32.mrf.mxu0
      %v2315 = vpop.f32.mrf.mxu0
      %v2316 = vadd.f32 %v2139, %v2315
      %v2317 = vpop.f32.mrf.mxu0
      %2318 = vmatprep.mubr.bf16.mxu0 0
      %2319 = vmatmul.mubr.bf16.gmra.mxu0 %v864
      %v2320 = vpop.f32.mrf.mxu0
      %v2321 = vadd.f32 %v2144, %v2320
      %v2322 = vpop.f32.mrf.mxu0
      %v2323 = vpop.f32.mrf.mxu0
      %v2324 = vadd.f32 %v2147, %v2323
      %v2325 = vpop.f32.mrf.mxu0
      %2326 = vmatprep.mubr.bf16.mxu0 0
      %2327 = vmatmul.mubr.bf16.gmra.mxu0 %v866
      %v2328 = vpop.f32.mrf.mxu0
      %v2329 = vadd.f32 %v2152, %v2328
      %v2330 = vpop.f32.mrf.mxu0
      %v2331 = vpop.f32.mrf.mxu0
      %v2332 = vadd.f32 %v2155, %v2331
      %v2333 = vpop.f32.mrf.mxu0
      %2334 = vmatprep.mubr.bf16.mxu0 0
      %2335 = vmatmul.mubr.bf16.gmra.mxu0 %v868
      %v2336 = vpop.f32.mrf.mxu0
      %v2337 = vadd.f32 %v2160, %v2336
      %v2338 = vpop.f32.mrf.mxu0
      %v2339 = vpop.f32.mrf.mxu0
      %v2340 = vadd.f32 %v2163, %v2339
      %v2341 = vpop.f32.mrf.mxu0
      %2342 = vmatprep.mubr.bf16.mxu0 0
      %2343 = vmatmul.mubr.bf16.gmra.mxu0 %v870
      %v2344 = vpop.f32.mrf.mxu0
      %v2345 = vadd.f32 %v2168, %v2344
      %v2346 = vpop.f32.mrf.mxu0
      %v2347 = vpop.f32.mrf.mxu0
      %v2348 = vadd.f32 %v2171, %v2347
      %v2349 = vpop.f32.mrf.mxu0
      %2350 = vmatprep.mubr.bf16.mxu0 0
      %2351 = vmatmul.mubr.bf16.gmra.mxu0 %v872
      %v2352 = vpop.f32.mrf.mxu0
      %v2353 = vadd.f32 %v2176, %v2352
      %v2354 = vpop.f32.mrf.mxu0
      %v2355 = vpop.f32.mrf.mxu0
      %v2356 = vadd.f32 %v2179, %v2355
      %v2357 = vpop.f32.mrf.mxu0
      %2358 = vdwg.mxu0
      %v2359 = vmax.f32 %v2217, 0.0
      %v2360 = vmax.f32 %v2220, 0.0
      %v2361 = vmax.f32 %v2225, 0.0
      %v2362 = vmax.f32 %v2228, 0.0
      %v2363 = vmax.f32 %v2233, 0.0
      %v2364 = vmax.f32 %v2236, 0.0
      %v2365 = vmax.f32 %v2241, 0.0
      %v2366 = vmax.f32 %v2244, 0.0
      %v2367 = vmax.f32 %v2249, 0.0
      %v2368 = vmax.f32 %v2252, 0.0
      %v2369 = vmax.f32 %v2257, 0.0
      %v2370 = vmax.f32 %v2260, 0.0
      %v2371 = vmax.f32 %v2265, 0.0
      %v2372 = vmax.f32 %v2268, 0.0
      %v2373 = vmax.f32 %v2273, 0.0
      %v2374 = vmax.f32 %v2276, 0.0
      %v2375 = vmax.f32 %v2281, 0.0
      %v2376 = vmax.f32 %v2284, 0.0
      %v2377 = vmax.f32 %v2289, 0.0
      %v2378 = vmax.f32 %v2292, 0.0
      %v2379 = vmax.f32 %v2297, 0.0
      %v2380 = vmax.f32 %v2300, 0.0
      %v2381 = vmax.f32 %v2305, 0.0
      %v2382 = vmax.f32 %v2308, 0.0
      %v2383 = vmax.f32 %v2313, 0.0
      %v2384 = vmax.f32 %v2316, 0.0
      %v2385 = vmax.f32 %v2321, 0.0
      %v2386 = vmax.f32 %v2324, 0.0
      %v2387 = vmax.f32 %v2329, 0.0
      %v2388 = vmax.f32 %v2332, 0.0
      %v2389 = vmax.f32 %v2337, 0.0
      %v2390 = vmax.f32 %v2340, 0.0
      %v2391 = vmax.f32 %v2345, 0.0
      %v2392 = vmax.f32 %v2348, 0.0
      %v2393 = vmax.f32 %v2353, 0.0
      %v2394 = vmax.f32 %v2356, 0.0
      %v2395 = vpack.c.bf16 %v2360, %v2359
      %v2396 = vpack.c.bf16 %v2362, %v2361
      %v2397 = vpack.c.bf16 %v2364, %v2363
      %v2398 = vpack.c.bf16 %v2366, %v2365
      %v2399 = vpack.c.bf16 %v2368, %v2367
      %v2400 = vpack.c.bf16 %v2370, %v2369
      %v2401 = vpack.c.bf16 %v2372, %v2371
      %v2402 = vpack.c.bf16 %v2374, %v2373
      %v2403 = vpack.c.bf16 %v2376, %v2375
      %v2404 = vpack.c.bf16 %v2378, %v2377
      %v2405 = vpack.c.bf16 %v2380, %v2379
      %v2406 = vpack.c.bf16 %v2382, %v2381
      %v2407 = vpack.c.bf16 %v2384, %v2383
      %v2408 = vpack.c.bf16 %v2386, %v2385
      %v2409 = vpack.c.bf16 %v2388, %v2387
      %v2410 = vpack.c.bf16 %v2390, %v2389
      %v2411 = vpack.c.bf16 %v2392, %v2391
      %v2412 = vpack.c.bf16 %v2394, %v2393
      %v2431 = vunpack.c.l.b16 %v2395
      %v2432 = vunpack.c.h.b16 %v2395
      %v2433 = vunpack.c.l.b16 %v2396
      %v2434 = vunpack.c.h.b16 %v2396
      %v2435 = vunpack.c.l.b16 %v2397
      %v2436 = vunpack.c.h.b16 %v2397
      %v2437 = vunpack.c.l.b16 %v2398
      %v2438 = vunpack.c.h.b16 %v2398
      %v2439 = vunpack.c.l.b16 %v2399
      %v2440 = vunpack.c.h.b16 %v2399
      %v2441 = vunpack.c.l.b16 %v2400
      %v2442 = vunpack.c.h.b16 %v2400
      %v2443 = vunpack.c.l.b16 %v2401
      %v2444 = vunpack.c.h.b16 %v2401
      %v2445 = vunpack.c.l.b16 %v2402
      %v2446 = vunpack.c.h.b16 %v2402
      %v2447 = vunpack.c.l.b16 %v2403
      %v2448 = vunpack.c.h.b16 %v2403
      %v2449 = vunpack.c.l.b16 %v2404
      %v2450 = vunpack.c.h.b16 %v2404
      %v2451 = vunpack.c.l.b16 %v2405
      %v2452 = vunpack.c.h.b16 %v2405
      %v2453 = vunpack.c.l.b16 %v2406
      %v2454 = vunpack.c.h.b16 %v2406
      %v2455 = vunpack.c.l.b16 %v2407
      %v2456 = vunpack.c.h.b16 %v2407
      %v2457 = vunpack.c.l.b16 %v2408
      %v2458 = vunpack.c.h.b16 %v2408
      %v2459 = vunpack.c.l.b16 %v2409
      %v2460 = vunpack.c.h.b16 %v2409
      %v2461 = vunpack.c.l.b16 %v2410
      %v2462 = vunpack.c.h.b16 %v2410
      %v2463 = vunpack.c.l.b16 %v2411
      %v2464 = vunpack.c.h.b16 %v2411
      %v2465 = vunpack.c.l.b16 %v2412
      %v2466 = vunpack.c.h.b16 %v2412
      %v2467 = vpack.c.b16 %v2431, %v2431
      %v2468 = vpack.c.b16 %v2432, %v2432
      %v2469 = vpack.c.b16 %v2433, %v2433
      %v2470 = vpack.c.b16 %v2434, %v2434
      %v2471 = vpack.c.b16 %v2435, %v2435
      %v2472 = vpack.c.b16 %v2436, %v2436
      %v2473 = vpack.c.b16 %v2437, %v2437
      %v2474 = vpack.c.b16 %v2438, %v2438
      %v2475 = vpack.c.b16 %v2439, %v2439
      %v2476 = vpack.c.b16 %v2440, %v2440
      %v2477 = vpack.c.b16 %v2441, %v2441
      %v2478 = vpack.c.b16 %v2442, %v2442
      %v2479 = vpack.c.b16 %v2443, %v2443
      %v2480 = vpack.c.b16 %v2444, %v2444
      %v2481 = vpack.c.b16 %v2445, %v2445
      %v2482 = vpack.c.b16 %v2446, %v2446
      %v2483 = vpack.c.b16 %v2447, %v2447
      %v2484 = vpack.c.b16 %v2448, %v2448
      %v2485 = vpack.c.b16 %v2449, %v2449
      %v2486 = vpack.c.b16 %v2450, %v2450
      %v2487 = vpack.c.b16 %v2451, %v2451
      %v2488 = vpack.c.b16 %v2452, %v2452
      %v2489 = vpack.c.b16 %v2453, %v2453
      %v2490 = vpack.c.b16 %v2454, %v2454
      %v2491 = vpack.c.b16 %v2455, %v2455
      %v2492 = vpack.c.b16 %v2456, %v2456
      %v2493 = vpack.c.b16 %v2457, %v2457
      %v2494 = vpack.c.b16 %v2458, %v2458
      %v2495 = vpack.c.b16 %v2459, %v2459
      %v2496 = vpack.c.b16 %v2460, %v2460
      %v2497 = vpack.c.b16 %v2461, %v2461
      %v2498 = vpack.c.b16 %v2462, %v2462
      %v2499 = vpack.c.b16 %v2463, %v2463
      %v2500 = vpack.c.b16 %v2464, %v2464
      %v2501 = vpack.c.b16 %v2465, %v2465
      %v2502 = vpack.c.b16 %v2466, %v2466
      %2539 = vst [vmem:[%s170] sm:$0xf] %v2467
      %2540 = vst [vmem:[%s170 + $0x4] sm:$0xf] %v2468
      %2541 = vst [vmem:[%s170 + $0x8] sm:$0xf] %v2469
      %2542 = vst [vmem:[%s170 + $0xc] sm:$0xf] %v2470
      %2543 = vst [vmem:[%s170 + $0x10] sm:$0xf] %v2471
      %2544 = vst [vmem:[%s170 + $0x14] sm:$0xf] %v2472
      %2545 = vst [vmem:[%s170 + $0x18] sm:$0xf] %v2473
      %2546 = vst [vmem:[%s170 + $0x1c] sm:$0xf] %v2474
      %2547 = vst [vmem:[%s170 + $0x20] sm:$0xf] %v2475
      %2548 = vst [vmem:[%s170 + $0x24] sm:$0xf] %v2476
      %2549 = vst [vmem:[%s170 + $0x28] sm:$0xf] %v2477
      %2550 = vst [vmem:[%s170 + $0x2c] sm:$0xf] %v2478
      %2551 = vst [vmem:[%s170 + $0x30] sm:$0xf] %v2479
      %2552 = vst [vmem:[%s170 + $0x34] sm:$0xf] %v2480
      %2553 = vst [vmem:[%s170 + $0x38] sm:$0xf] %v2481
      %2554 = vst [vmem:[%s170 + $0x3c] sm:$0xf] %v2482
      %2555 = vst [vmem:[%s170 + $0x40] sm:$0xf] %v2483
      %2556 = vst [vmem:[%s170 + $0x44] sm:$0xf] %v2484
      %2557 = vst [vmem:[%s170 + $0x48] sm:$0xf] %v2485
      %2558 = vst [vmem:[%s170 + $0x4c] sm:$0xf] %v2486
      %2559 = vst [vmem:[%s170 + $0x50] sm:$0xf] %v2487
      %2560 = vst [vmem:[%s170 + $0x54] sm:$0xf] %v2488
      %2561 = vst [vmem:[%s170 + $0x58] sm:$0xf] %v2489
      %2562 = vst [vmem:[%s170 + $0x5c] sm:$0xf] %v2490
      %2563 = vst [vmem:[%s170 + $0x60] sm:$0xf] %v2491
      %2564 = vst [vmem:[%s170 + $0x64] sm:$0xf] %v2492
      %2565 = vst [vmem:[%s170 + $0x68] sm:$0xf] %v2493
      %2566 = vst [vmem:[%s170 + $0x6c] sm:$0xf] %v2494
      %2567 = vst [vmem:[%s170 + $0x70] sm:$0xf] %v2495
      %2568 = vst [vmem:[%s170 + $0x74] sm:$0xf] %v2496
      %2569 = vst [vmem:[%s170 + $0x78] sm:$0xf] %v2497
      %2570 = vst [vmem:[%s170 + $0x7c] sm:$0xf] %v2498
      %2571 = vst [vmem:[%s170 + $0x80] sm:$0xf] %v2499
      %2572 = vst [vmem:[%s170 + $0x84] sm:$0xf] %v2500
      %2573 = vst [vmem:[%s170 + $0x88] sm:$0xf] %v2501
      %2574 = vst [vmem:[%s170 + $0x8c] sm:$0xf] %v2502
      %p2575 = scmp.lt.s32.totalorder %s14, 1
      %s2576 = scalar_select %p2575, %s14, 1
      %s2577 = smul.addr %s2576, 36
      %s2578 = smul.addr %s2577, 4
      %s2579 = scalar_lea.vmem %s3, %s2578
      // Predicated region
      $region33: #{decoder_forward.10} parent=31 // pred_check
        %p2580 = pneg %p100
      $region34: #{decoder_forward.10} parent=31 // pred_check_branch
        %2582 = sbr.rel (%p2580) target = $region36
      $region35: #{decoder_forward.10} parent=31 // pred_region
        _
      $region36: #{decoder_forward.10} parent=31 // pred_fallthru
        _
    $region32: #{decoder_forward.10} parent=5 // pred_fallthru
      _
    %p2583 = scmp.le.s32.totalorder 2, %s9
    // Predicated region
    $region37: #{decoder_forward.10} parent=5 // pred_check
      %p2584 = pneg %p2583
    $region38: #{decoder_forward.10} parent=5 // pred_check_branch
      %2586 = sbr.rel (%p2584) target = $region40
    $region39: #{decoder_forward.10} parent=5 // pred_region
      %s2587 = ssub.s32 %s9, 2
      // Predicated region
      $region41: #{decoder_forward.10} parent=39 // pred_check
        %p2588 = pneg %p106
      $region42: #{decoder_forward.10} parent=39 // pred_check_branch
        %2590 = sbr.rel (%p2588) target = $region44
      $region43: #{decoder_forward.10} parent=39 // pred_region
        %p2591 = scmp.lt.s32.totalorder %s15, 1
        %s2592 = scalar_select %p2591, %s15, 1
        %s2593 = smul.addr %s2592, 36
        %s2594 = smul.addr %s2593, 4
        %s2595 = scalar_lea.vmem %s3, %s2594
      $region44: #{decoder_forward.10} parent=39 // pred_fallthru
        _
    $region40: #{decoder_forward.10} parent=5 // pred_fallthru
      _
  $region6: #{decoder_forward.10} parent=0 // loop_footer
    %s13 = sadd.s32 1, %s9
  $region7: #{decoder_forward.10} parent=0 // loop_footer_branch
    %8 = sbr.rel target = $region3
  $region8: #{decoder_forward.10} parent=0 // loop_exit
    _

// kernel: decoder_forward.11
$region0: #{decoder_forward.11}
  #allocation0 [shape = 'u32[]', space=smem, size = 0x4, offset = 0x4, fixed_abs, tag = 'smem constant byte address 0x4 - core index']
  #allocation1 [shape = 'u32[144,128]{1,0:T(1,128)}', space=vmem, size = 0x12000, scoped, tag = 'internal scratch']
  %s0 = inlined_call_operand.vmem [shape: bf16[2,290,128], index: 0, kind: input, shape index: {}]
  %s1 = inlined_call_operand.vmem [shape: bf16[128,128], index: 1, kind: input, shape index: {}]
  %s2 = inlined_call_operand.vmem [shape: bf16[256,128], index: 2, kind: input, shape index: {}]
  %s3 = inlined_call_operand.vmem [shape: bf16[256,128], index: 3, kind: input, shape index: {}]
  %s4 = inlined_call_operand.vmem [shape: bf16[512,128], index: 4, kind: input, shape index: {}]
  %s5 = inlined_call_operand.vmem [shape: f32[1,128], index: 5, kind: input, shape index: {}]
  %s6 = inlined_call_operand.vmem [shape: f32[2,4,272,128], index: 6, kind: output, shape index: {}]
  %s7 = sld [smem:[#allocation0]]
  $region57: #{decoder_forward.11} parent=0
    _
  %s9 = ssub.s32 1, %s7
  %s10 = scalar_select 0, %s9, %s7
  loop: start=0, step=1, limit=4
  $region2: #{decoder_forward.11} parent=0 // loop_pre_header
    _
  $region3: #{decoder_forward.11} parent=0 // loop_header
    %s12 = sphi 0, %s16
    %p13 = scmp.ge.s32.totalorder %s12, 4
    %s22 = sphi 0, %s24
    %s25 = sphi 0, %s22
    %s26 = sphi 0, %s25
    %s42 = sphi 0, %s26
    %s46 = sphi 0, %s46
    %s48 = sphi 0, %s46
    %s49 = sphi 0, %s48
    %s63 = sphi 0, %s49
    %s67 = sphi 0, %s67
    %s69 = sphi 0, %s67
    %s70 = sphi 0, %s69
    %s84 = sphi 0, %s70
    %s88 = sphi 0, %s88
    %s90 = sphi 0, %s88
    %s91 = sphi 0, %s90
    %s105 = sphi 0, %s91
    %s109 = sphi 0, %s109
    %s111 = sphi 0, %s109
    %s112 = sphi 0, %s111
    %s126 = sphi 0, %s112
    %s130 = sphi 0, %s130
    %s132 = sphi 0, %s130
    %s133 = sphi 0, %s132
    %s147 = sphi 0, %s133
    %s153 = sphi 0, %s155
    %s156 = sphi 0, %s153
    %s157 = sphi 0, %s156
    %s173 = sphi 0, %s157
  $region4: #{decoder_forward.11} parent=0 // loop_header_branch
    %15 = sbr.rel (%p13) target = $region8
  $region5: #{decoder_forward.11} parent=0 // loop_body
    %s17 = ssub.s32 %s12, 1
    %s18 = ssub.s32 %s12, 2
    %s19 = sadd.s32 %s12, 1
    %s20 = ssub.s32 %s12, %s19
    %p21 = scmp.eq.s32.totalorder %s20, 0
    %s23 = sadd.s32 %s22, 1
    %s24 = scalar_select %p21, %s22, %s23
    %p27 = pneg %p21
    %p28 = scmp.eq.s32.totalorder %s12, 1
    %p29 = por %p27, %p28
    %p30 = scmp.ne.s32.totalorder %s22, %s25
    %p31 = scmp.eq.s32.totalorder %s12, 0
    %p32 = por %p30, %p31
    %p33 = scmp.ne.s32.totalorder %s22, %s25
    %p34 = scmp.eq.s32.totalorder %s17, 1
    %p35 = por %p33, %p34
    %p36 = scmp.ne.s32.totalorder %s25, %s26
    %p37 = scmp.eq.s32.totalorder %s17, 0
    %p38 = por %p36, %p37
    %p39 = scmp.ne.s32.totalorder %s25, %s26
    %p40 = scmp.eq.s32.totalorder %s18, 1
    %p41 = por %p39, %p40
    %p43 = scmp.ne.s32.totalorder %s26, %s42
    %p44 = scmp.eq.s32.totalorder %s18, 0
    %p45 = por %p43, %p44
    %s47 = sadd.s32 %s46, 1
    %p50 = scmp.eq.s32.totalorder %s12, 1
    %p51 = scmp.ne.s32.totalorder %s46, %s48
    %p52 = scmp.eq.s32.totalorder %s12, 0
    %p53 = por %p51, %p52
    %p54 = scmp.ne.s32.totalorder %s46, %s48
    %p55 = scmp.eq.s32.totalorder %s17, 1
    %p56 = por %p54, %p55
    %p57 = scmp.ne.s32.totalorder %s48, %s49
    %p58 = scmp.eq.s32.totalorder %s17, 0
    %p59 = por %p57, %p58
    %p60 = scmp.ne.s32.totalorder %s48, %s49
    %p61 = scmp.eq.s32.totalorder %s18, 1
    %p62 = por %p60, %p61
    %p64 = scmp.ne.s32.totalorder %s49, %s63
    %p65 = scmp.eq.s32.totalorder %s18, 0
    %p66 = por %p64, %p65
    %s68 = sadd.s32 %s67, 1
    %p71 = scmp.eq.s32.totalorder %s12, 1
    %p72 = scmp.ne.s32.totalorder %s67, %s69
    %p73 = scmp.eq.s32.totalorder %s12, 0
    %p74 = por %p72, %p73
    %p75 = scmp.ne.s32.totalorder %s67, %s69
    %p76 = scmp.eq.s32.totalorder %s17, 1
    %p77 = por %p75, %p76
    %p78 = scmp.ne.s32.totalorder %s69, %s70
    %p79 = scmp.eq.s32.totalorder %s17, 0
    %p80 = por %p78, %p79
    %p81 = scmp.ne.s32.totalorder %s69, %s70
    %p82 = scmp.eq.s32.totalorder %s18, 1
    %p83 = por %p81, %p82
    %p85 = scmp.ne.s32.totalorder %s70, %s84
    %p86 = scmp.eq.s32.totalorder %s18, 0
    %p87 = por %p85, %p86
    %s89 = sadd.s32 %s88, 1
    %p92 = scmp.eq.s32.totalorder %s12, 1
    %p93 = scmp.ne.s32.totalorder %s88, %s90
    %p94 = scmp.eq.s32.totalorder %s12, 0
    %p95 = por %p93, %p94
    %p96 = scmp.ne.s32.totalorder %s88, %s90
    %p97 = scmp.eq.s32.totalorder %s17, 1
    %p98 = por %p96, %p97
    %p99 = scmp.ne.s32.totalorder %s90, %s91
    %p100 = scmp.eq.s32.totalorder %s17, 0
    %p101 = por %p99, %p100
    %p102 = scmp.ne.s32.totalorder %s90, %s91
    %p103 = scmp.eq.s32.totalorder %s18, 1
    %p104 = por %p102, %p103
    %p106 = scmp.ne.s32.totalorder %s91, %s105
    %p107 = scmp.eq.s32.totalorder %s18, 0
    %p108 = por %p106, %p107
    %s110 = sadd.s32 %s109, 1
    %p113 = scmp.eq.s32.totalorder %s12, 1
    %p114 = scmp.ne.s32.totalorder %s109, %s111
    %p115 = scmp.eq.s32.totalorder %s12, 0
    %p116 = por %p114, %p115
    %p117 = scmp.ne.s32.totalorder %s109, %s111
    %p118 = scmp.eq.s32.totalorder %s17, 1
    %p119 = por %p117, %p118
    %p120 = scmp.ne.s32.totalorder %s111, %s112
    %p121 = scmp.eq.s32.totalorder %s17, 0
    %p122 = por %p120, %p121
    %p123 = scmp.ne.s32.totalorder %s111, %s112
    %p124 = scmp.eq.s32.totalorder %s18, 1
    %p125 = por %p123, %p124
    %p127 = scmp.ne.s32.totalorder %s112, %s126
    %p128 = scmp.eq.s32.totalorder %s18, 0
    %p129 = por %p127, %p128
    %s131 = sadd.s32 %s130, 1
    %p134 = scmp.eq.s32.totalorder %s12, 1
    %p135 = scmp.ne.s32.totalorder %s130, %s132
    %p136 = scmp.eq.s32.totalorder %s12, 0
    %p137 = por %p135, %p136
    %p138 = scmp.ne.s32.totalorder %s130, %s132
    %p139 = scmp.eq.s32.totalorder %s17, 1
    %p140 = por %p138, %p139
    %p141 = scmp.ne.s32.totalorder %s132, %s133
    %p142 = scmp.eq.s32.totalorder %s17, 0
    %p143 = por %p141, %p142
    %p144 = scmp.ne.s32.totalorder %s132, %s133
    %p145 = scmp.eq.s32.totalorder %s18, 1
    %p146 = por %p144, %p145
    %p148 = scmp.ne.s32.totalorder %s133, %s147
    %p149 = scmp.eq.s32.totalorder %s18, 0
    %p150 = por %p148, %p149
    %s151 = ssub.s32 %s12, %s19
    %p152 = scmp.eq.s32.totalorder %s151, 0
    %s154 = sadd.s32 %s153, 1
    %s155 = scalar_select %p152, %s153, %s154
    %p158 = pneg %p152
    %p159 = scmp.eq.s32.totalorder %s12, 1
    %p160 = por %p158, %p159
    %p161 = scmp.ne.s32.totalorder %s153, %s156
    %p162 = scmp.eq.s32.totalorder %s12, 0
    %p163 = por %p161, %p162
    %p164 = scmp.ne.s32.totalorder %s153, %s156
    %p165 = scmp.eq.s32.totalorder %s17, 1
    %p166 = por %p164, %p165
    %p167 = scmp.ne.s32.totalorder %s156, %s157
    %p168 = scmp.eq.s32.totalorder %s17, 0
    %p169 = por %p167, %p168
    %p170 = scmp.ne.s32.totalorder %s156, %s157
    %p171 = scmp.eq.s32.totalorder %s18, 1
    %p172 = por %p170, %p171
    %p174 = scmp.ne.s32.totalorder %s157, %s173
    %p175 = scmp.eq.s32.totalorder %s18, 0
    %p176 = por %p174, %p175
    %p177 = scmp.le.s32.totalorder 1, %s12
    %p178 = scmp.lt.s32.totalorder %s12, 3
    %p179 = pnand %p177, %p178
    %p180 = pneg %p179
    // Predicated region
    $region9: #{decoder_forward.11} parent=5 // pred_check
      _
    $region10: #{decoder_forward.11} parent=5 // pred_check_branch
      %182 = sbr.rel (%p179) target = $region12
    $region11: #{decoder_forward.11} parent=5 // pred_region
      %s183 = ssub.s32 %s12, 1
      // Predicated region
      $region13: #{decoder_forward.11} parent=11 // pred_check
        %p184 = pneg %p59
      $region14: #{decoder_forward.11} parent=11 // pred_check_branch
        %186 = sbr.rel (%p184) target = $region16
      $region15: #{decoder_forward.11} parent=11 // pred_region
        _
      $region16: #{decoder_forward.11} parent=11 // pred_fallthru
        _
      // Predicated region
      $region17: #{decoder_forward.11} parent=11 // pred_check
        %p187 = pneg %p80
      $region18: #{decoder_forward.11} parent=11 // pred_check_branch
        %189 = sbr.rel (%p187) target = $region20
      $region19: #{decoder_forward.11} parent=11 // pred_region
        _
      $region20: #{decoder_forward.11} parent=11 // pred_fallthru
        _
      // Predicated region
      $region21: #{decoder_forward.11} parent=11 // pred_check
        %p190 = pneg %p101
      $region22: #{decoder_forward.11} parent=11 // pred_check_branch
        %192 = sbr.rel (%p190) target = $region24
      $region23: #{decoder_forward.11} parent=11 // pred_region
        _
      $region24: #{decoder_forward.11} parent=11 // pred_fallthru
        _
      // Predicated region
      $region25: #{decoder_forward.11} parent=11 // pred_check
        %p193 = pneg %p122
      $region26: #{decoder_forward.11} parent=11 // pred_check_branch
        %195 = sbr.rel (%p193) target = $region28
      $region27: #{decoder_forward.11} parent=11 // pred_region
        _
      $region28: #{decoder_forward.11} parent=11 // pred_fallthru
        _
      // Predicated region
      $region29: #{decoder_forward.11} parent=11 // pred_check
        %p196 = pneg %p143
      $region30: #{decoder_forward.11} parent=11 // pred_check_branch
        %198 = sbr.rel (%p196) target = $region32
      $region31: #{decoder_forward.11} parent=11 // pred_region
        _
      $region32: #{decoder_forward.11} parent=11 // pred_fallthru
        _
    $region12: #{decoder_forward.11} parent=5 // pred_fallthru
      _
    %p199 = scmp.lt.s32.totalorder %s12, 2
    // Predicated region
    $region33: #{decoder_forward.11} parent=5 // pred_check
      %p200 = pneg %p199
    $region34: #{decoder_forward.11} parent=5 // pred_check_branch
      %202 = sbr.rel (%p200) target = $region36
    $region35: #{decoder_forward.11} parent=5 // pred_region
      // Predicated region
      $region37: #{decoder_forward.11} parent=35 // pred_check
        %p203 = pneg %p32
      $region38: #{decoder_forward.11} parent=35 // pred_check_branch
        %205 = sbr.rel (%p203) target = $region40
      $region39: #{decoder_forward.11} parent=35 // pred_region
        %p206 = scmp.lt.s32.totalorder %s12, 1
        %s207 = scalar_select %p206, %s12, 1
        %s208 = smul.addr %s207, 37
        %s209 = smul.addr %s208, 4
        %s210 = scalar_lea.vmem %s0, %s209
      $region40: #{decoder_forward.11} parent=35 // pred_fallthru
        _
    $region36: #{decoder_forward.11} parent=5 // pred_fallthru
      _
    %p211 = scmp.le.s32.totalorder 1, %s12
    %p212 = scmp.lt.s32.totalorder %s12, 3
    %p213 = pnand %p211, %p212
    %p214 = pneg %p213
    // Predicated region
    $region41: #{decoder_forward.11} parent=5 // pred_check
      _
    $region42: #{decoder_forward.11} parent=5 // pred_check_branch
      %216 = sbr.rel (%p213) target = $region44
    $region43: #{decoder_forward.11} parent=5 // pred_region
      %s217 = ssub.s32 %s12, 1
      %p218 = scmp.lt.s32.totalorder %s17, 1
      %s219 = scalar_select %p218, %s17, 1
      %s220 = smul.addr %s219, 37
      %s221 = smul.addr %s220, 4
      %s222 = scalar_lea.vmem %s0, %s221
      %p223 = pneg %p38
      %p224 = pneg %p35
      %p225 = pneg %p59
      %p226 = pneg %p56
      %p227 = pneg %p80
      %p228 = pneg %p77
      %p229 = pneg %p101
      %p230 = pneg %p98
      %p231 = pneg %p122
      %p232 = pneg %p119
      %p233 = pneg %p143
      %p234 = pneg %p140
      %p235 = pneg %p169
      %p236 = pneg %p166
      %p237 = scmp.lt.s32.totalorder %s17, 1
      %s238 = scalar_select %p237, %s17, 1
      %s239 = smul.addr %s238, 136
      %s240 = smul.addr %s239, 8
      %s241 = scalar_lea.vmem %s6, %s240
      %p242 = scmp.lt.s32.totalorder %s17, 1
      %s243 = scalar_select %p242, %s17, 1
      %s244 = smul.addr %s243, 37
      %s245 = smul.addr %s244, 4
      %s246 = scalar_lea.vmem %s0, %s245
      %p247 = scmp.lt.s32.totalorder %s17, 1
      %s248 = scalar_select %p247, %s17, 1
      %s249 = smul.addr %s248, 136
      %s250 = smul.addr %s249, 8
      %s251 = scalar_lea.vmem %s6, %s250
      %v253 = vld [vmem:[%s246] sm:$0xf]
      %v254 = vld [vmem:[%s246 + $0x4] sm:$0xf]
      %v255 = vld [vmem:[%s246 + $0x8] sm:$0xf]
      %v256 = vld [vmem:[%s246 + $0xc] sm:$0xf]
      %v257 = vld [vmem:[%s246 + $0x10] sm:$0xf]
      %v258 = vld [vmem:[%s246 + $0x14] sm:$0xf]
      %v259 = vld [vmem:[%s246 + $0x18] sm:$0xf]
      %v260 = vld [vmem:[%s246 + $0x1c] sm:$0xf]
      %v261 = vld [vmem:[%s246 + $0x20] sm:$0xf]
      %v262 = vld [vmem:[%s246 + $0x24] sm:$0xf]
      %v263 = vld [vmem:[%s246 + $0x28] sm:$0xf]
      %v264 = vld [vmem:[%s246 + $0x2c] sm:$0xf]
      %v265 = vld [vmem:[%s246 + $0x30] sm:$0xf]
      %v266 = vld [vmem:[%s246 + $0x34] sm:$0xf]
      %v267 = vld [vmem:[%s246 + $0x38] sm:$0xf]
      %v268 = vld [vmem:[%s246 + $0x3c] sm:$0xf]
      %v269 = vld [vmem:[%s246 + $0x40] sm:$0xf]
      %v270 = vld [vmem:[%s246 + $0x44] sm:$0xf]
      %v271 = vld [vmem:[%s246 + $0x48] sm:$0xf]
      %v272 = vld [vmem:[%s246 + $0x4c] sm:$0xf]
      %v273 = vld [vmem:[%s246 + $0x50] sm:$0xf]
      %v274 = vld [vmem:[%s246 + $0x54] sm:$0xf]
      %v275 = vld [vmem:[%s246 + $0x58] sm:$0xf]
      %v276 = vld [vmem:[%s246 + $0x5c] sm:$0xf]
      %v277 = vld [vmem:[%s246 + $0x60] sm:$0xf]
      %v278 = vld [vmem:[%s246 + $0x64] sm:$0xf]
      %v279 = vld [vmem:[%s246 + $0x68] sm:$0xf]
      %v280 = vld [vmem:[%s246 + $0x6c] sm:$0xf]
      %v281 = vld [vmem:[%s246 + $0x70] sm:$0xf]
      %v282 = vld [vmem:[%s246 + $0x74] sm:$0xf]
      %v283 = vld [vmem:[%s246 + $0x78] sm:$0xf]
      %v284 = vld [vmem:[%s246 + $0x7c] sm:$0xf]
      %v285 = vld [vmem:[%s246 + $0x80] sm:$0xf]
      %v286 = vld [vmem:[%s246 + $0x84] sm:$0xf]
      %v287 = vld [vmem:[%s246 + $0x88] sm:$0xf]
      %v288 = vld [vmem:[%s246 + $0x8c] sm:$0xf]
      %v289 = vld [vmem:[%s246 + $0x90] sm:$0x1]
      %v290 = vld [vmem:[%s5] sm:$0x1]
      %v291 = vld [vmem:[%s1] sm:$0xf]
      %v292 = vld [vmem:[%s1 + $0x4] sm:$0xf]
      %v293 = vld [vmem:[%s1 + $0x8] sm:$0xf]
      %v294 = vld [vmem:[%s1 + $0xc] sm:$0xf]
      %v295 = vld [vmem:[%s1 + $0x10] sm:$0xf]
      %v296 = vld [vmem:[%s1 + $0x14] sm:$0xf]
      %v297 = vld [vmem:[%s1 + $0x18] sm:$0xf]
      %v298 = vld [vmem:[%s1 + $0x1c] sm:$0xf]
      %v299 = vld [vmem:[%s1 + $0x20] sm:$0xf]
      %v300 = vld [vmem:[%s1 + $0x24] sm:$0xf]
      %v301 = vld [vmem:[%s1 + $0x28] sm:$0xf]
      %v302 = vld [vmem:[%s1 + $0x2c] sm:$0xf]
      %v303 = vld [vmem:[%s1 + $0x30] sm:$0xf]
      %v304 = vld [vmem:[%s1 + $0x34] sm:$0xf]
      %v305 = vld [vmem:[%s1 + $0x38] sm:$0xf]
      %v306 = vld [vmem:[%s1 + $0x3c] sm:$0xf]
      %v308 = vlaneseq
      %v309 = vshrl.u32 %v308, 7
      %v310 = vsub.s32 0, %v309
      %v311 = vrot.slane %v290, %v310
      %v347 = vunpack.c.l.b16 %v253
      %v348 = vunpack.c.l.b16 %v254
      %v349 = vunpack.c.l.b16 %v255
      %v350 = vunpack.c.l.b16 %v256
      %v351 = vunpack.c.l.b16 %v257
      %v352 = vunpack.c.l.b16 %v258
      %v353 = vunpack.c.l.b16 %v259
      %v354 = vunpack.c.l.b16 %v260
      %v355 = vunpack.c.l.b16 %v261
      %v356 = vunpack.c.l.b16 %v262
      %v357 = vunpack.c.l.b16 %v263
      %v358 = vunpack.c.l.b16 %v264
      %v359 = vunpack.c.l.b16 %v265
      %v360 = vunpack.c.l.b16 %v266
      %v361 = vunpack.c.l.b16 %v267
      %v362 = vunpack.c.l.b16 %v268
      %v363 = vunpack.c.l.b16 %v269
      %v364 = vunpack.c.l.b16 %v270
      %v365 = vunpack.c.l.b16 %v271
      %v366 = vunpack.c.l.b16 %v272
      %v367 = vunpack.c.l.b16 %v273
      %v368 = vunpack.c.l.b16 %v274
      %v369 = vunpack.c.l.b16 %v275
      %v370 = vunpack.c.l.b16 %v276
      %v371 = vunpack.c.l.b16 %v277
      %v372 = vunpack.c.l.b16 %v278
      %v373 = vunpack.c.l.b16 %v279
      %v374 = vunpack.c.l.b16 %v280
      %v375 = vunpack.c.l.b16 %v281
      %v376 = vunpack.c.l.b16 %v282
      %v377 = vunpack.c.l.b16 %v283
      %v378 = vunpack.c.l.b16 %v284
      %v379 = vunpack.c.l.b16 %v285
      %v380 = vunpack.c.l.b16 %v286
      %v381 = vpack.c.b16 %v348, %v347
      %v382 = vpack.c.b16 %v350, %v349
      %v383 = vpack.c.b16 %v352, %v351
      %v384 = vpack.c.b16 %v354, %v353
      %v385 = vpack.c.b16 %v356, %v355
      %v386 = vpack.c.b16 %v358, %v357
      %v387 = vpack.c.b16 %v360, %v359
      %v388 = vpack.c.b16 %v362, %v361
      %v389 = vpack.c.b16 %v364, %v363
      %v390 = vpack.c.b16 %v366, %v365
      %v391 = vpack.c.b16 %v368, %v367
      %v392 = vpack.c.b16 %v370, %v369
      %v393 = vpack.c.b16 %v372, %v371
      %v394 = vpack.c.b16 %v374, %v373
      %v395 = vpack.c.b16 %v376, %v375
      %v396 = vpack.c.b16 %v378, %v377
      %v397 = vpack.c.b16 %v380, %v379
      %v431 = vunpack.c.l.b16 %v291
      %v432 = vunpack.c.l.b16 %v292
      %v433 = vunpack.c.l.b16 %v293
      %v434 = vunpack.c.l.b16 %v294
      %v435 = vunpack.c.l.b16 %v295
      %v436 = vunpack.c.l.b16 %v296
      %v437 = vunpack.c.l.b16 %v297
      %v438 = vunpack.c.l.b16 %v298
      %v439 = vunpack.c.l.b16 %v299
      %v440 = vunpack.c.l.b16 %v300
      %v441 = vunpack.c.l.b16 %v301
      %v442 = vunpack.c.l.b16 %v302
      %v443 = vunpack.c.l.b16 %v303
      %v444 = vunpack.c.l.b16 %v304
      %v445 = vunpack.c.l.b16 %v305
      %v446 = vunpack.c.l.b16 %v306
      %v447 = vpack.c.b16 %v432, %v431
      %v448 = vpack.c.b16 %v434, %v433
      %v449 = vpack.c.b16 %v436, %v435
      %v450 = vpack.c.b16 %v438, %v437
      %v451 = vpack.c.b16 %v440, %v439
      %v452 = vpack.c.b16 %v442, %v441
      %v453 = vpack.c.b16 %v444, %v443
      %v454 = vpack.c.b16 %v446, %v445
      %463 = vmatprep.subr.bf16.mxu0 0
      %464 = vmatpush1.bf16.msra.mxu0 %v454
      %465 = vmatprep.subr.bf16.mxu0 0
      %466 = vmatpush1.bf16.msra.mxu0 %v453
      %467 = vmatprep.subr.bf16.mxu0 0
      %468 = vmatpush1.bf16.msra.mxu0 %v452
      %469 = vmatprep.subr.bf16.mxu0 0
      %470 = vmatpush1.bf16.msra.mxu0 %v451
      %471 = vmatprep.subr.bf16.mxu0 0
      %472 = vmatpush1.bf16.msra.mxu0 %v450
      %473 = vmatprep.subr.bf16.mxu0 0
      %474 = vmatpush1.bf16.msra.mxu0 %v449
      %475 = vmatprep.subr.bf16.mxu0 0
      %476 = vmatpush1.bf16.msra.mxu0 %v448
      %477 = vmatprep.subr.bf16.mxu0 0
      %478 = vmatpush1.bf16.msra.mxu0 %v447
      %479 = vmatprep.subr.bf16.mxu0 0
      %480 = vmatpush2.bf16.msra.mxu0 0
      %481 = vmatprep.subr.bf16.mxu0 0
      %482 = vmatpush2.bf16.msra.mxu0 0
      %483 = vmatprep.subr.bf16.mxu0 0
      %484 = vmatpush2.bf16.msra.mxu0 0
      %485 = vmatprep.subr.bf16.mxu0 0
      %486 = vmatpush2.bf16.msra.mxu0 0
      %487 = vmatprep.subr.bf16.mxu0 0
      %488 = vmatpush2.bf16.msra.mxu0 0
      %489 = vmatprep.subr.bf16.mxu0 0
      %490 = vmatpush2.bf16.msra.mxu0 0
      %491 = vmatprep.subr.bf16.mxu0 0
      %492 = vmatpush2.bf16.msra.mxu0 0
      %493 = vmatprep.subr.bf16.mxu0 0
      %494 = vmatpush2.bf16.msra.mxu0 0
      %495 = vmatprep.mubr.bf16.mxu0 0
      %496 = vmatmul.mubr.bf16.gmra.mxu0 %v381
      %v497 = vpop.f32.mrf.mxu0
      %v498 = vadd.f32 %v311, %v497
      %v499 = vpop.f32.mrf.mxu0
      %v500 = vpop.f32.mrf.mxu0
      %v501 = vadd.f32 %v311, %v500
      %v502 = vpop.f32.mrf.mxu0
      %503 = vmatprep.mubr.bf16.mxu0 0
      %504 = vmatmul.mubr.bf16.gmra.mxu0 %v382
      %v505 = vpop.f32.mrf.mxu0
      %v506 = vadd.f32 %v311, %v505
      %v507 = vpop.f32.mrf.mxu0
      %v508 = vpop.f32.mrf.mxu0
      %v509 = vadd.f32 %v311, %v508
      %v510 = vpop.f32.mrf.mxu0
      %511 = vmatprep.mubr.bf16.mxu0 0
      %512 = vmatmul.mubr.bf16.gmra.mxu0 %v383
      %v513 = vpop.f32.mrf.mxu0
      %v514 = vadd.f32 %v311, %v513
      %v515 = vpop.f32.mrf.mxu0
      %v516 = vpop.f32.mrf.mxu0
      %v517 = vadd.f32 %v311, %v516
      %v518 = vpop.f32.mrf.mxu0
      %519 = vmatprep.mubr.bf16.mxu0 0
      %520 = vmatmul.mubr.bf16.gmra.mxu0 %v384
      %v521 = vpop.f32.mrf.mxu0
      %v522 = vadd.f32 %v311, %v521
      %v523 = vpop.f32.mrf.mxu0
      %v524 = vpop.f32.mrf.mxu0
      %v525 = vadd.f32 %v311, %v524
      %v526 = vpop.f32.mrf.mxu0
      %527 = vmatprep.mubr.bf16.mxu0 0
      %528 = vmatmul.mubr.bf16.gmra.mxu0 %v385
      %v529 = vpop.f32.mrf.mxu0
      %v530 = vadd.f32 %v311, %v529
      %v531 = vpop.f32.mrf.mxu0
      %v532 = vpop.f32.mrf.mxu0
      %v533 = vadd.f32 %v311, %v532
      %v534 = vpop.f32.mrf.mxu0
      %535 = vmatprep.mubr.bf16.mxu0 0
      %536 = vmatmul.mubr.bf16.gmra.mxu0 %v386
      %v537 = vpop.f32.mrf.mxu0
      %v538 = vadd.f32 %v311, %v537
      %v539 = vpop.f32.mrf.mxu0
      %v540 = vpop.f32.mrf.mxu0
      %v541 = vadd.f32 %v311, %v540
      %v542 = vpop.f32.mrf.mxu0
      %543 = vmatprep.mubr.bf16.mxu0 0
      %544 = vmatmul.mubr.bf16.gmra.mxu0 %v387
      %v545 = vpop.f32.mrf.mxu0
      %v546 = vadd.f32 %v311, %v545
      %v547 = vpop.f32.mrf.mxu0
      %v548 = vpop.f32.mrf.mxu0
      %v549 = vadd.f32 %v311, %v548
      %v550 = vpop.f32.mrf.mxu0
      %551 = vmatprep.mubr.bf16.mxu0 0
      %552 = vmatmul.mubr.bf16.gmra.mxu0 %v388
      %v553 = vpop.f32.mrf.mxu0
      %v554 = vadd.f32 %v311, %v553
      %v555 = vpop.f32.mrf.mxu0
      %v556 = vpop.f32.mrf.mxu0
      %v557 = vadd.f32 %v311, %v556
      %v558 = vpop.f32.mrf.mxu0
      %559 = vmatprep.mubr.bf16.mxu0 0
      %560 = vmatmul.mubr.bf16.gmra.mxu0 %v389
      %v561 = vpop.f32.mrf.mxu0
      %v562 = vadd.f32 %v311, %v561
      %v563 = vpop.f32.mrf.mxu0
      %v564 = vpop.f32.mrf.mxu0
      %v565 = vadd.f32 %v311, %v564
      %v566 = vpop.f32.mrf.mxu0
      %567 = vmatprep.mubr.bf16.mxu0 0
      %568 = vmatmul.mubr.bf16.gmra.mxu0 %v390
      %v569 = vpop.f32.mrf.mxu0
      %v570 = vadd.f32 %v311, %v569
      %v571 = vpop.f32.mrf.mxu0
      %v572 = vpop.f32.mrf.mxu0
      %v573 = vadd.f32 %v311, %v572
      %v574 = vpop.f32.mrf.mxu0
      %575 = vmatprep.mubr.bf16.mxu0 0
      %576 = vmatmul.mubr.bf16.gmra.mxu0 %v391
      %v577 = vpop.f32.mrf.mxu0
      %v578 = vadd.f32 %v311, %v577
      %v579 = vpop.f32.mrf.mxu0
      %v580 = vpop.f32.mrf.mxu0
      %v581 = vadd.f32 %v311, %v580
      %v582 = vpop.f32.mrf.mxu0
      %583 = vmatprep.mubr.bf16.mxu0 0
      %584 = vmatmul.mubr.bf16.gmra.mxu0 %v392
      %v585 = vpop.f32.mrf.mxu0
      %v586 = vadd.f32 %v311, %v585
      %v587 = vpop.f32.mrf.mxu0
      %v588 = vpop.f32.mrf.mxu0
      %v589 = vadd.f32 %v311, %v588
      %v590 = vpop.f32.mrf.mxu0
      %591 = vmatprep.mubr.bf16.mxu0 0
      %592 = vmatmul.mubr.bf16.gmra.mxu0 %v393
      %v593 = vpop.f32.mrf.mxu0
      %v594 = vadd.f32 %v311, %v593
      %v595 = vpop.f32.mrf.mxu0
      %v596 = vpop.f32.mrf.mxu0
      %v597 = vadd.f32 %v311, %v596
      %v598 = vpop.f32.mrf.mxu0
      %599 = vmatprep.mubr.bf16.mxu0 0
      %600 = vmatmul.mubr.bf16.gmra.mxu0 %v394
      %v601 = vpop.f32.mrf.mxu0
      %v602 = vadd.f32 %v311, %v601
      %v603 = vpop.f32.mrf.mxu0
      %v604 = vpop.f32.mrf.mxu0
      %v605 = vadd.f32 %v311, %v604
      %v606 = vpop.f32.mrf.mxu0
      %607 = vmatprep.mubr.bf16.mxu0 0
      %608 = vmatmul.mubr.bf16.gmra.mxu0 %v395
      %v609 = vpop.f32.mrf.mxu0
      %v610 = vadd.f32 %v311, %v609
      %v611 = vpop.f32.mrf.mxu0
      %v612 = vpop.f32.mrf.mxu0
      %v613 = vadd.f32 %v311, %v612
      %v614 = vpop.f32.mrf.mxu0
      %615 = vmatprep.mubr.bf16.mxu0 0
      %616 = vmatmul.mubr.bf16.gmra.mxu0 %v396
      %v617 = vpop.f32.mrf.mxu0
      %v618 = vadd.f32 %v311, %v617
      %v619 = vpop.f32.mrf.mxu0
      %v620 = vpop.f32.mrf.mxu0
      %v621 = vadd.f32 %v311, %v620
      %v622 = vpop.f32.mrf.mxu0
      %623 = vmatprep.mubr.bf16.mxu0 0
      %624 = vmatmul.mubr.bf16.gmra.mxu0 %v397
      %v625 = vpop.f32.mrf.mxu0
      %v626 = vadd.f32 %v311, %v625
      %v627 = vpop.f32.mrf.mxu0
      %v628 = vpop.f32.mrf.mxu0
      %v629 = vadd.f32 %v311, %v628
      %v630 = vpop.f32.mrf.mxu0
      %631 = vdwg.mxu0
      %v632 = vxor.u32 %v498, 2147483648
      %v633 = vxor.u32 %v501, 2147483648
      %v634 = vxor.u32 %v506, 2147483648
      %v635 = vxor.u32 %v509, 2147483648
      %v636 = vxor.u32 %v514, 2147483648
      %v637 = vxor.u32 %v517, 2147483648
      %v638 = vxor.u32 %v522, 2147483648
      %v639 = vxor.u32 %v525, 2147483648
      %v640 = vxor.u32 %v530, 2147483648
      %v641 = vxor.u32 %v533, 2147483648
      %v642 = vxor.u32 %v538, 2147483648
      %v643 = vxor.u32 %v541, 2147483648
      %v644 = vxor.u32 %v546, 2147483648
      %v645 = vxor.u32 %v549, 2147483648
      %v646 = vxor.u32 %v554, 2147483648
      %v647 = vxor.u32 %v557, 2147483648
      %v648 = vxor.u32 %v562, 2147483648
      %v649 = vxor.u32 %v565, 2147483648
      %v650 = vxor.u32 %v570, 2147483648
      %v651 = vxor.u32 %v573, 2147483648
      %v652 = vxor.u32 %v578, 2147483648
      %v653 = vxor.u32 %v581, 2147483648
      %v654 = vxor.u32 %v586, 2147483648
      %v655 = vxor.u32 %v589, 2147483648
      %v656 = vxor.u32 %v594, 2147483648
      %v657 = vxor.u32 %v597, 2147483648
      %v658 = vxor.u32 %v602, 2147483648
      %v659 = vxor.u32 %v605, 2147483648
      %v660 = vxor.u32 %v610, 2147483648
      %v661 = vxor.u32 %v613, 2147483648
      %v662 = vxor.u32 %v618, 2147483648
      %v663 = vxor.u32 %v621, 2147483648
      %v664 = vxor.u32 %v626, 2147483648
      %v665 = vxor.u32 %v629, 2147483648
      %v666 = vmul.f32 %v632, 1.442695
      %v667 = vpow.pop %v666
      %v668 = vmul.f32 %v633, 1.442695
      %v669 = vpow.pop %v668
      %v670 = vmul.f32 %v634, 1.442695
      %v671 = vpow.pop %v670
      %v672 = vmul.f32 %v635, 1.442695
      %v673 = vpow.pop %v672
      %v674 = vmul.f32 %v636, 1.442695
      %v675 = vpow.pop %v674
      %v676 = vmul.f32 %v637, 1.442695
      %v677 = vpow.pop %v676
      %v678 = vmul.f32 %v638, 1.442695
      %v679 = vpow.pop %v678
      %v680 = vmul.f32 %v639, 1.442695
      %v681 = vpow.pop %v680
      %v682 = vmul.f32 %v640, 1.442695
      %v683 = vpow.pop %v682
      %v684 = vmul.f32 %v641, 1.442695
      %v685 = vpow.pop %v684
      %v686 = vmul.f32 %v642, 1.442695
      %v687 = vpow.pop %v686
      %v688 = vmul.f32 %v643, 1.442695
      %v689 = vpow.pop %v688
      %v690 = vmul.f32 %v644, 1.442695
      %v691 = vpow.pop %v690
      %v692 = vmul.f32 %v645, 1.442695
      %v693 = vpow.pop %v692
      %v694 = vmul.f32 %v646, 1.442695
      %v695 = vpow.pop %v694
      %v696 = vmul.f32 %v647, 1.442695
      %v697 = vpow.pop %v696
      %v698 = vmul.f32 %v648, 1.442695
      %v699 = vpow.pop %v698
      %v700 = vmul.f32 %v649, 1.442695
      %v701 = vpow.pop %v700
      %v702 = vmul.f32 %v650, 1.442695
      %v703 = vpow.pop %v702
      %v704 = vmul.f32 %v651, 1.442695
      %v705 = vpow.pop %v704
      %v706 = vmul.f32 %v652, 1.442695
      %v707 = vpow.pop %v706
      %v708 = vmul.f32 %v653, 1.442695
      %v709 = vpow.pop %v708
      %v710 = vmul.f32 %v654, 1.442695
      %v711 = vpow.pop %v710
      %v712 = vmul.f32 %v655, 1.442695
      %v713 = vpow.pop %v712
      %v714 = vmul.f32 %v656, 1.442695
      %v715 = vpow.pop %v714
      %v716 = vmul.f32 %v657, 1.442695
      %v717 = vpow.pop %v716
      %v718 = vmul.f32 %v658, 1.442695
      %v719 = vpow.pop %v718
      %v720 = vmul.f32 %v659, 1.442695
      %v721 = vpow.pop %v720
      %v722 = vmul.f32 %v660, 1.442695
      %v723 = vpow.pop %v722
      %v724 = vmul.f32 %v661, 1.442695
      %v725 = vpow.pop %v724
      %v726 = vmul.f32 %v662, 1.442695
      %v727 = vpow.pop %v726
      %v728 = vmul.f32 %v663, 1.442695
      %v729 = vpow.pop %v728
      %v730 = vmul.f32 %v664, 1.442695
      %v731 = vpow.pop %v730
      %v732 = vmul.f32 %v665, 1.442695
      %v733 = vpow.pop %v732
      %v734 = vadd.f32 %v667, 1.0
      %v735 = vadd.f32 %v669, 1.0
      %v736 = vadd.f32 %v671, 1.0
      %v737 = vadd.f32 %v673, 1.0
      %v738 = vadd.f32 %v675, 1.0
      %v739 = vadd.f32 %v677, 1.0
      %v740 = vadd.f32 %v679, 1.0
      %v741 = vadd.f32 %v681, 1.0
      %v742 = vadd.f32 %v683, 1.0
      %v743 = vadd.f32 %v685, 1.0
      %v744 = vadd.f32 %v687, 1.0
      %v745 = vadd.f32 %v689, 1.0
      %v746 = vadd.f32 %v691, 1.0
      %v747 = vadd.f32 %v693, 1.0
      %v748 = vadd.f32 %v695, 1.0
      %v749 = vadd.f32 %v697, 1.0
      %v750 = vadd.f32 %v699, 1.0
      %v751 = vadd.f32 %v701, 1.0
      %v752 = vadd.f32 %v703, 1.0
      %v753 = vadd.f32 %v705, 1.0
      %v754 = vadd.f32 %v707, 1.0
      %v755 = vadd.f32 %v709, 1.0
      %v756 = vadd.f32 %v711, 1.0
      %v757 = vadd.f32 %v713, 1.0
      %v758 = vadd.f32 %v715, 1.0
      %v759 = vadd.f32 %v717, 1.0
      %v760 = vadd.f32 %v719, 1.0
      %v761 = vadd.f32 %v721, 1.0
      %v762 = vadd.f32 %v723, 1.0
      %v763 = vadd.f32 %v725, 1.0
      %v764 = vadd.f32 %v727, 1.0
      %v765 = vadd.f32 %v729, 1.0
      %v766 = vadd.f32 %v731, 1.0
      %v767 = vadd.f32 %v733, 1.0
      %v768 = vrcp.pop %v734
      %v769 = vmul.f32 1.0, %v768
      %v770 = vrcp.pop %v735
      %v771 = vmul.f32 1.0, %v770
      %v772 = vrcp.pop %v736
      %v773 = vmul.f32 1.0, %v772
      %v774 = vrcp.pop %v737
      %v775 = vmul.f32 1.0, %v774
      %v776 = vrcp.pop %v738
      %v777 = vmul.f32 1.0, %v776
      %v778 = vrcp.pop %v739
      %v779 = vmul.f32 1.0, %v778
      %v780 = vrcp.pop %v740
      %v781 = vmul.f32 1.0, %v780
      %v782 = vrcp.pop %v741
      %v783 = vmul.f32 1.0, %v782
      %v784 = vrcp.pop %v742
      %v785 = vmul.f32 1.0, %v784
      %v786 = vrcp.pop %v743
      %v787 = vmul.f32 1.0, %v786
      %v788 = vrcp.pop %v744
      %v789 = vmul.f32 1.0, %v788
      %v790 = vrcp.pop %v745
      %v791 = vmul.f32 1.0, %v790
      %v792 = vrcp.pop %v746
      %v793 = vmul.f32 1.0, %v792
      %v794 = vrcp.pop %v747
      %v795 = vmul.f32 1.0, %v794
      %v796 = vrcp.pop %v748
      %v797 = vmul.f32 1.0, %v796
      %v798 = vrcp.pop %v749
      %v799 = vmul.f32 1.0, %v798
      %v800 = vrcp.pop %v750
      %v801 = vmul.f32 1.0, %v800
      %v802 = vrcp.pop %v751
      %v803 = vmul.f32 1.0, %v802
      %v804 = vrcp.pop %v752
      %v805 = vmul.f32 1.0, %v804
      %v806 = vrcp.pop %v753
      %v807 = vmul.f32 1.0, %v806
      %v808 = vrcp.pop %v754
      %v809 = vmul.f32 1.0, %v808
      %v810 = vrcp.pop %v755
      %v811 = vmul.f32 1.0, %v810
      %v812 = vrcp.pop %v756
      %v813 = vmul.f32 1.0, %v812
      %v814 = vrcp.pop %v757
      %v815 = vmul.f32 1.0, %v814
      %v816 = vrcp.pop %v758
      %v817 = vmul.f32 1.0, %v816
      %v818 = vrcp.pop %v759
      %v819 = vmul.f32 1.0, %v818
      %v820 = vrcp.pop %v760
      %v821 = vmul.f32 1.0, %v820
      %v822 = vrcp.pop %v761
      %v823 = vmul.f32 1.0, %v822
      %v824 = vrcp.pop %v762
      %v825 = vmul.f32 1.0, %v824
      %v826 = vrcp.pop %v763
      %v827 = vmul.f32 1.0, %v826
      %v828 = vrcp.pop %v764
      %v829 = vmul.f32 1.0, %v828
      %v830 = vrcp.pop %v765
      %v831 = vmul.f32 1.0, %v830
      %v832 = vrcp.pop %v766
      %v833 = vmul.f32 1.0, %v832
      %v834 = vrcp.pop %v767
      %v835 = vmul.f32 1.0, %v834
      %v837 = vunpack.c.l.b16 %v287
      %v838 = vpack.c.b16 %v837, %v837
      %vm839 = vsmask.f32 7424
      %v841 = vshrl.u32 %v381, 16
      %v843 = vshll.u32 %v381, 16
      %v845 = vrot.slane %v843, 1
      %v846 = vor.u32 %v841, %v845
      %v848 = vshll.u32 %v382, 16
      %v850 = vrot.slane %v848, 1
      %v851 = vsel %vm839, %v846, %v850
      %v852 = vshrl.u32 %v382, 16
      %v854 = vor.u32 %v852, %v850
      %v856 = vshll.u32 %v383, 16
      %v858 = vrot.slane %v856, 1
      %v859 = vsel %vm839, %v854, %v858
      %v860 = vshrl.u32 %v383, 16
      %v862 = vor.u32 %v860, %v858
      %v864 = vshll.u32 %v384, 16
      %v866 = vrot.slane %v864, 1
      %v867 = vsel %vm839, %v862, %v866
      %v868 = vshrl.u32 %v384, 16
      %v870 = vor.u32 %v868, %v866
      %v872 = vshll.u32 %v385, 16
      %v874 = vrot.slane %v872, 1
      %v875 = vsel %vm839, %v870, %v874
      %v876 = vshrl.u32 %v385, 16
      %v878 = vor.u32 %v876, %v874
      %v880 = vshll.u32 %v386, 16
      %v882 = vrot.slane %v880, 1
      %v883 = vsel %vm839, %v878, %v882
      %v884 = vshrl.u32 %v386, 16
      %v886 = vor.u32 %v884, %v882
      %v888 = vshll.u32 %v387, 16
      %v890 = vrot.slane %v888, 1
      %v891 = vsel %vm839, %v886, %v890
      %v892 = vshrl.u32 %v387, 16
      %v894 = vor.u32 %v892, %v890
      %v896 = vshll.u32 %v388, 16
      %v898 = vrot.slane %v896, 1
      %v899 = vsel %vm839, %v894, %v898
      %v900 = vshrl.u32 %v388, 16
      %v902 = vor.u32 %v900, %v898
      %v904 = vshll.u32 %v389, 16
      %v906 = vrot.slane %v904, 1
      %v907 = vsel %vm839, %v902, %v906
      %v908 = vshrl.u32 %v389, 16
      %v910 = vor.u32 %v908, %v906
      %v912 = vshll.u32 %v390, 16
      %v914 = vrot.slane %v912, 1
      %v915 = vsel %vm839, %v910, %v914
      %v916 = vshrl.u32 %v390, 16
      %v918 = vor.u32 %v916, %v914
      %v920 = vshll.u32 %v391, 16
      %v922 = vrot.slane %v920, 1
      %v923 = vsel %vm839, %v918, %v922
      %v924 = vshrl.u32 %v391, 16
      %v926 = vor.u32 %v924, %v922
      %v928 = vshll.u32 %v392, 16
      %v930 = vrot.slane %v928, 1
      %v931 = vsel %vm839, %v926, %v930
      %v932 = vshrl.u32 %v392, 16
      %v934 = vor.u32 %v932, %v930
      %v936 = vshll.u32 %v393, 16
      %v938 = vrot.slane %v936, 1
      %v939 = vsel %vm839, %v934, %v938
      %v940 = vshrl.u32 %v393, 16
      %v942 = vor.u32 %v940, %v938
      %v944 = vshll.u32 %v394, 16
      %v946 = vrot.slane %v944, 1
      %v947 = vsel %vm839, %v942, %v946
      %v948 = vshrl.u32 %v394, 16
      %v950 = vor.u32 %v948, %v946
      %v952 = vshll.u32 %v395, 16
      %v954 = vrot.slane %v952, 1
      %v955 = vsel %vm839, %v950, %v954
      %v956 = vshrl.u32 %v395, 16
      %v958 = vor.u32 %v956, %v954
      %v960 = vshll.u32 %v396, 16
      %v962 = vrot.slane %v960, 1
      %v963 = vsel %vm839, %v958, %v962
      %v964 = vshrl.u32 %v396, 16
      %v966 = vor.u32 %v964, %v962
      %v968 = vshll.u32 %v397, 16
      %v970 = vrot.slane %v968, 1
      %v971 = vsel %vm839, %v966, %v970
      %v972 = vshrl.u32 %v397, 16
      %v974 = vor.u32 %v972, %v970
      %v976 = vshll.u32 %v838, 16
      %v978 = vrot.slane %v976, 1
      %v979 = vsel %vm839, %v974, %v978
      %v997 = vld [vmem:[%s2] sm:$0xf]
      %v998 = vld [vmem:[%s2 + $0x4] sm:$0xf]
      %v999 = vld [vmem:[%s2 + $0x8] sm:$0xf]
      %v1000 = vld [vmem:[%s2 + $0xc] sm:$0xf]
      %v1001 = vld [vmem:[%s2 + $0x10] sm:$0xf]
      %v1002 = vld [vmem:[%s2 + $0x14] sm:$0xf]
      %v1003 = vld [vmem:[%s2 + $0x18] sm:$0xf]
      %v1004 = vld [vmem:[%s2 + $0x1c] sm:$0xf]
      %v1005 = vld [vmem:[%s2 + $0x20] sm:$0xf]
      %v1006 = vld [vmem:[%s2 + $0x24] sm:$0xf]
      %v1007 = vld [vmem:[%s2 + $0x28] sm:$0xf]
      %v1008 = vld [vmem:[%s2 + $0x2c] sm:$0xf]
      %v1009 = vld [vmem:[%s2 + $0x30] sm:$0xf]
      %v1010 = vld [vmem:[%s2 + $0x34] sm:$0xf]
      %v1011 = vld [vmem:[%s2 + $0x38] sm:$0xf]
      %v1012 = vld [vmem:[%s2 + $0x3c] sm:$0xf]
      %v1013 = vld [vmem:[%s2 + $0x40] sm:$0xf]
      %v1014 = vld [vmem:[%s2 + $0x44] sm:$0xf]
      %v1015 = vld [vmem:[%s2 + $0x48] sm:$0xf]
      %v1016 = vld [vmem:[%s2 + $0x4c] sm:$0xf]
      %v1017 = vld [vmem:[%s2 + $0x50] sm:$0xf]
      %v1018 = vld [vmem:[%s2 + $0x54] sm:$0xf]
      %v1019 = vld [vmem:[%s2 + $0x58] sm:$0xf]
      %v1020 = vld [vmem:[%s2 + $0x5c] sm:$0xf]
      %v1021 = vld [vmem:[%s2 + $0x60] sm:$0xf]
      %v1022 = vld [vmem:[%s2 + $0x64] sm:$0xf]
      %v1023 = vld [vmem:[%s2 + $0x68] sm:$0xf]
      %v1024 = vld [vmem:[%s2 + $0x6c] sm:$0xf]
      %v1025 = vld [vmem:[%s2 + $0x70] sm:$0xf]
      %v1026 = vld [vmem:[%s2 + $0x74] sm:$0xf]
      %v1027 = vld [vmem:[%s2 + $0x78] sm:$0xf]
      %v1028 = vld [vmem:[%s2 + $0x7c] sm:$0xf]
      %v1061 = vunpack.c.l.b16 %v997
      %v1062 = vunpack.c.l.b16 %v998
      %v1063 = vunpack.c.l.b16 %v999
      %v1064 = vunpack.c.l.b16 %v1000
      %v1065 = vunpack.c.l.b16 %v1001
      %v1066 = vunpack.c.l.b16 %v1002
      %v1067 = vunpack.c.l.b16 %v1003
      %v1068 = vunpack.c.l.b16 %v1004
      %v1069 = vunpack.c.l.b16 %v1005
      %v1070 = vunpack.c.l.b16 %v1006
      %v1071 = vunpack.c.l.b16 %v1007
      %v1072 = vunpack.c.l.b16 %v1008
      %v1073 = vunpack.c.l.b16 %v1009
      %v1074 = vunpack.c.l.b16 %v1010
      %v1075 = vunpack.c.l.b16 %v1011
      %v1076 = vunpack.c.l.b16 %v1012
      %v1077 = vunpack.c.l.b16 %v1013
      %v1078 = vunpack.c.l.b16 %v1014
      %v1079 = vunpack.c.l.b16 %v1015
      %v1080 = vunpack.c.l.b16 %v1016
      %v1081 = vunpack.c.l.b16 %v1017
      %v1082 = vunpack.c.l.b16 %v1018
      %v1083 = vunpack.c.l.b16 %v1019
      %v1084 = vunpack.c.l.b16 %v1020
      %v1085 = vunpack.c.l.b16 %v1021
      %v1086 = vunpack.c.l.b16 %v1022
      %v1087 = vunpack.c.l.b16 %v1023
      %v1088 = vunpack.c.l.b16 %v1024
      %v1089 = vunpack.c.l.b16 %v1025
      %v1090 = vunpack.c.l.b16 %v1026
      %v1091 = vunpack.c.l.b16 %v1027
      %v1092 = vunpack.c.l.b16 %v1028
      %v1093 = vpack.c.b16 %v1062, %v1061
      %v1094 = vpack.c.b16 %v1064, %v1063
      %v1095 = vpack.c.b16 %v1066, %v1065
      %v1096 = vpack.c.b16 %v1068, %v1067
      %v1097 = vpack.c.b16 %v1070, %v1069
      %v1098 = vpack.c.b16 %v1072, %v1071
      %v1099 = vpack.c.b16 %v1074, %v1073
      %v1100 = vpack.c.b16 %v1076, %v1075
      %v1101 = vpack.c.b16 %v1078, %v1077
      %v1102 = vpack.c.b16 %v1080, %v1079
      %v1103 = vpack.c.b16 %v1082, %v1081
      %v1104 = vpack.c.b16 %v1084, %v1083
      %v1105 = vpack.c.b16 %v1086, %v1085
      %v1106 = vpack.c.b16 %v1088, %v1087
      %v1107 = vpack.c.b16 %v1090, %v1089
      %v1108 = vpack.c.b16 %v1092, %v1091
      %1125 = vmatprep.subr.bf16.mxu0 0
      %1126 = vmatpush1.bf16.msra.mxu0 %v1100
      %1127 = vmatprep.subr.bf16.mxu0 0
      %1128 = vmatpush1.bf16.msra.mxu0 %v1099
      %1129 = vmatprep.subr.bf16.mxu0 0
      %1130 = vmatpush1.bf16.msra.mxu0 %v1098
      %1131 = vmatprep.subr.bf16.mxu0 0
      %1132 = vmatpush1.bf16.msra.mxu0 %v1097
      %1133 = vmatprep.subr.bf16.mxu0 0
      %1134 = vmatpush1.bf16.msra.mxu0 %v1096
      %1135 = vmatprep.subr.bf16.mxu0 0
      %1136 = vmatpush1.bf16.msra.mxu0 %v1095
      %1137 = vmatprep.subr.bf16.mxu0 0
      %1138 = vmatpush1.bf16.msra.mxu0 %v1094
      %1139 = vmatprep.subr.bf16.mxu0 0
      %1140 = vmatpush1.bf16.msra.mxu0 %v1093
      %1141 = vmatprep.subr.bf16.mxu0 0
      %1142 = vmatpush2.bf16.msra.mxu0 %v1108
      %1143 = vmatprep.subr.bf16.mxu0 0
      %1144 = vmatpush2.bf16.msra.mxu0 %v1107
      %1145 = vmatprep.subr.bf16.mxu0 0
      %1146 = vmatpush2.bf16.msra.mxu0 %v1106
      %1147 = vmatprep.subr.bf16.mxu0 0
      %1148 = vmatpush2.bf16.msra.mxu0 %v1105
      %1149 = vmatprep.subr.bf16.mxu0 0
      %1150 = vmatpush2.bf16.msra.mxu0 %v1104
      %1151 = vmatprep.subr.bf16.mxu0 0
      %1152 = vmatpush2.bf16.msra.mxu0 %v1103
      %1153 = vmatprep.subr.bf16.mxu0 0
      %1154 = vmatpush2.bf16.msra.mxu0 %v1102
      %1155 = vmatprep.subr.bf16.mxu0 0
      %1156 = vmatpush2.bf16.msra.mxu0 %v1101
      %1157 = vmatprep.mubr.bf16.mxu0 %v851
      %1158 = vmatmul.mubr.bf16.gmra.mxu0 %v381
      %v1159 = vpop.f32.mrf.mxu0
      %v1160 = vadd.f32 %v311, %v1159
      %v1161 = vpop.f32.mrf.mxu0
      %v1162 = vpop.f32.mrf.mxu0
      %v1163 = vadd.f32 %v311, %v1162
      %v1164 = vpop.f32.mrf.mxu0
      %1165 = vmatprep.mubr.bf16.mxu0 %v859
      %1166 = vmatmul.mubr.bf16.gmra.mxu0 %v382
      %v1167 = vpop.f32.mrf.mxu0
      %v1168 = vadd.f32 %v311, %v1167
      %v1169 = vpop.f32.mrf.mxu0
      %v1170 = vpop.f32.mrf.mxu0
      %v1171 = vadd.f32 %v311, %v1170
      %v1172 = vpop.f32.mrf.mxu0
      %1173 = vmatprep.mubr.bf16.mxu0 %v867
      %1174 = vmatmul.mubr.bf16.gmra.mxu0 %v383
      %v1175 = vpop.f32.mrf.mxu0
      %v1176 = vadd.f32 %v311, %v1175
      %v1177 = vpop.f32.mrf.mxu0
      %v1178 = vpop.f32.mrf.mxu0
      %v1179 = vadd.f32 %v311, %v1178
      %v1180 = vpop.f32.mrf.mxu0
      %1181 = vmatprep.mubr.bf16.mxu0 %v875
      %1182 = vmatmul.mubr.bf16.gmra.mxu0 %v384
      %v1183 = vpop.f32.mrf.mxu0
      %v1184 = vadd.f32 %v311, %v1183
      %v1185 = vpop.f32.mrf.mxu0
      %v1186 = vpop.f32.mrf.mxu0
      %v1187 = vadd.f32 %v311, %v1186
      %v1188 = vpop.f32.mrf.mxu0
      %1189 = vmatprep.mubr.bf16.mxu0 %v883
      %1190 = vmatmul.mubr.bf16.gmra.mxu0 %v385
      %v1191 = vpop.f32.mrf.mxu0
      %v1192 = vadd.f32 %v311, %v1191
      %v1193 = vpop.f32.mrf.mxu0
      %v1194 = vpop.f32.mrf.mxu0
      %v1195 = vadd.f32 %v311, %v1194
      %v1196 = vpop.f32.mrf.mxu0
      %1197 = vmatprep.mubr.bf16.mxu0 %v891
      %1198 = vmatmul.mubr.bf16.gmra.mxu0 %v386
      %v1199 = vpop.f32.mrf.mxu0
      %v1200 = vadd.f32 %v311, %v1199
      %v1201 = vpop.f32.mrf.mxu0
      %v1202 = vpop.f32.mrf.mxu0
      %v1203 = vadd.f32 %v311, %v1202
      %v1204 = vpop.f32.mrf.mxu0
      %1205 = vmatprep.mubr.bf16.mxu0 %v899
      %1206 = vmatmul.mubr.bf16.gmra.mxu0 %v387
      %v1207 = vpop.f32.mrf.mxu0
      %v1208 = vadd.f32 %v311, %v1207
      %v1209 = vpop.f32.mrf.mxu0
      %v1210 = vpop.f32.mrf.mxu0
      %v1211 = vadd.f32 %v311, %v1210
      %v1212 = vpop.f32.mrf.mxu0
      %1213 = vmatprep.mubr.bf16.mxu0 %v907
      %1214 = vmatmul.mubr.bf16.gmra.mxu0 %v388
      %v1215 = vpop.f32.mrf.mxu0
      %v1216 = vadd.f32 %v311, %v1215
      %v1217 = vpop.f32.mrf.mxu0
      %v1218 = vpop.f32.mrf.mxu0
      %v1219 = vadd.f32 %v311, %v1218
      %v1220 = vpop.f32.mrf.mxu0
      %1221 = vmatprep.mubr.bf16.mxu0 %v915
      %1222 = vmatmul.mubr.bf16.gmra.mxu0 %v389
      %v1223 = vpop.f32.mrf.mxu0
      %v1224 = vadd.f32 %v311, %v1223
      %v1225 = vpop.f32.mrf.mxu0
      %v1226 = vpop.f32.mrf.mxu0
      %v1227 = vadd.f32 %v311, %v1226
      %v1228 = vpop.f32.mrf.mxu0
      %1229 = vmatprep.mubr.bf16.mxu0 %v923
      %1230 = vmatmul.mubr.bf16.gmra.mxu0 %v390
      %v1231 = vpop.f32.mrf.mxu0
      %v1232 = vadd.f32 %v311, %v1231
      %v1233 = vpop.f32.mrf.mxu0
      %v1234 = vpop.f32.mrf.mxu0
      %v1235 = vadd.f32 %v311, %v1234
      %v1236 = vpop.f32.mrf.mxu0
      %1237 = vmatprep.mubr.bf16.mxu0 %v931
      %1238 = vmatmul.mubr.bf16.gmra.mxu0 %v391
      %v1239 = vpop.f32.mrf.mxu0
      %v1240 = vadd.f32 %v311, %v1239
      %v1241 = vpop.f32.mrf.mxu0
      %v1242 = vpop.f32.mrf.mxu0
      %v1243 = vadd.f32 %v311, %v1242
      %v1244 = vpop.f32.mrf.mxu0
      %1245 = vmatprep.mubr.bf16.mxu0 %v939
      %1246 = vmatmul.mubr.bf16.gmra.mxu0 %v392
      %v1247 = vpop.f32.mrf.mxu0
      %v1248 = vadd.f32 %v311, %v1247
      %v1249 = vpop.f32.mrf.mxu0
      %v1250 = vpop.f32.mrf.mxu0
      %v1251 = vadd.f32 %v311, %v1250
      %v1252 = vpop.f32.mrf.mxu0
      %1253 = vmatprep.mubr.bf16.mxu0 %v947
      %1254 = vmatmul.mubr.bf16.gmra.mxu0 %v393
      %v1255 = vpop.f32.mrf.mxu0
      %v1256 = vadd.f32 %v311, %v1255
      %v1257 = vpop.f32.mrf.mxu0
      %v1258 = vpop.f32.mrf.mxu0
      %v1259 = vadd.f32 %v311, %v1258
      %v1260 = vpop.f32.mrf.mxu0
      %1261 = vmatprep.mubr.bf16.mxu0 %v955
      %1262 = vmatmul.mubr.bf16.gmra.mxu0 %v394
      %v1263 = vpop.f32.mrf.mxu0
      %v1264 = vadd.f32 %v311, %v1263
      %v1265 = vpop.f32.mrf.mxu0
      %v1266 = vpop.f32.mrf.mxu0
      %v1267 = vadd.f32 %v311, %v1266
      %v1268 = vpop.f32.mrf.mxu0
      %1269 = vmatprep.mubr.bf16.mxu0 %v963
      %1270 = vmatmul.mubr.bf16.gmra.mxu0 %v395
      %v1271 = vpop.f32.mrf.mxu0
      %v1272 = vadd.f32 %v311, %v1271
      %v1273 = vpop.f32.mrf.mxu0
      %v1274 = vpop.f32.mrf.mxu0
      %v1275 = vadd.f32 %v311, %v1274
      %v1276 = vpop.f32.mrf.mxu0
      %1277 = vmatprep.mubr.bf16.mxu0 %v971
      %1278 = vmatmul.mubr.bf16.gmra.mxu0 %v396
      %v1279 = vpop.f32.mrf.mxu0
      %v1280 = vadd.f32 %v311, %v1279
      %v1281 = vpop.f32.mrf.mxu0
      %v1282 = vpop.f32.mrf.mxu0
      %v1283 = vadd.f32 %v311, %v1282
      %v1284 = vpop.f32.mrf.mxu0
      %1285 = vmatprep.mubr.bf16.mxu0 %v979
      %1286 = vmatmul.mubr.bf16.gmra.mxu0 %v397
      %v1287 = vpop.f32.mrf.mxu0
      %v1288 = vadd.f32 %v311, %v1287
      %v1289 = vpop.f32.mrf.mxu0
      %v1290 = vpop.f32.mrf.mxu0
      %v1291 = vadd.f32 %v311, %v1290
      %v1292 = vpop.f32.mrf.mxu0
      %1293 = vdwg.mxu0
      %v1294 = vxor.u32 %v1160, 2147483648
      %v1295 = vxor.u32 %v1163, 2147483648
      %v1296 = vxor.u32 %v1168, 2147483648
      %v1297 = vxor.u32 %v1171, 2147483648
      %v1298 = vxor.u32 %v1176, 2147483648
      %v1299 = vxor.u32 %v1179, 2147483648
      %v1300 = vxor.u32 %v1184, 2147483648
      %v1301 = vxor.u32 %v1187, 2147483648
      %v1302 = vxor.u32 %v1192, 2147483648
      %v1303 = vxor.u32 %v1195, 2147483648
      %v1304 = vxor.u32 %v1200, 2147483648
      %v1305 = vxor.u32 %v1203, 2147483648
      %v1306 = vxor.u32 %v1208, 2147483648
      %v1307 = vxor.u32 %v1211, 2147483648
      %v1308 = vxor.u32 %v1216, 2147483648
      %v1309 = vxor.u32 %v1219, 2147483648
      %v1310 = vxor.u32 %v1224, 2147483648
      %v1311 = vxor.u32 %v1227, 2147483648
      %v1312 = vxor.u32 %v1232, 2147483648
      %v1313 = vxor.u32 %v1235, 2147483648
      %v1314 = vxor.u32 %v1240, 2147483648
      %v1315 = vxor.u32 %v1243, 2147483648
      %v1316 = vxor.u32 %v1248, 2147483648
      %v1317 = vxor.u32 %v1251, 2147483648
      %v1318 = vxor.u32 %v1256, 2147483648
      %v1319 = vxor.u32 %v1259, 2147483648
      %v1320 = vxor.u32 %v1264, 2147483648
      %v1321 = vxor.u32 %v1267, 2147483648
      %v1322 = vxor.u32 %v1272, 2147483648
      %v1323 = vxor.u32 %v1275, 2147483648
      %v1324 = vxor.u32 %v1280, 2147483648
      %v1325 = vxor.u32 %v1283, 2147483648
      %v1326 = vxor.u32 %v1288, 2147483648
      %v1327 = vxor.u32 %v1291, 2147483648
      %v1328 = vmul.f32 %v1294, 1.442695
      %v1329 = vpow.pop %v1328
      %v1330 = vmul.f32 %v1295, 1.442695
      %v1331 = vpow.pop %v1330
      %v1332 = vmul.f32 %v1296, 1.442695
      %v1333 = vpow.pop %v1332
      %v1334 = vmul.f32 %v1297, 1.442695
      %v1335 = vpow.pop %v1334
      %v1336 = vmul.f32 %v1298, 1.442695
      %v1337 = vpow.pop %v1336
      %v1338 = vmul.f32 %v1299, 1.442695
      %v1339 = vpow.pop %v1338
      %v1340 = vmul.f32 %v1300, 1.442695
      %v1341 = vpow.pop %v1340
      %v1342 = vmul.f32 %v1301, 1.442695
      %v1343 = vpow.pop %v1342
      %v1344 = vmul.f32 %v1302, 1.442695
      %v1345 = vpow.pop %v1344
      %v1346 = vmul.f32 %v1303, 1.442695
      %v1347 = vpow.pop %v1346
      %v1348 = vmul.f32 %v1304, 1.442695
      %v1349 = vpow.pop %v1348
      %v1350 = vmul.f32 %v1305, 1.442695
      %v1351 = vpow.pop %v1350
      %v1352 = vmul.f32 %v1306, 1.442695
      %v1353 = vpow.pop %v1352
      %v1354 = vmul.f32 %v1307, 1.442695
      %v1355 = vpow.pop %v1354
      %v1356 = vmul.f32 %v1308, 1.442695
      %v1357 = vpow.pop %v1356
      %v1358 = vmul.f32 %v1309, 1.442695
      %v1359 = vpow.pop %v1358
      %v1360 = vmul.f32 %v1310, 1.442695
      %v1361 = vpow.pop %v1360
      %v1362 = vmul.f32 %v1311, 1.442695
      %v1363 = vpow.pop %v1362
      %v1364 = vmul.f32 %v1312, 1.442695
      %v1365 = vpow.pop %v1364
      %v1366 = vmul.f32 %v1313, 1.442695
      %v1367 = vpow.pop %v1366
      %v1368 = vmul.f32 %v1314, 1.442695
      %v1369 = vpow.pop %v1368
      %v1370 = vmul.f32 %v1315, 1.442695
      %v1371 = vpow.pop %v1370
      %v1372 = vmul.f32 %v1316, 1.442695
      %v1373 = vpow.pop %v1372
      %v1374 = vmul.f32 %v1317, 1.442695
      %v1375 = vpow.pop %v1374
      %v1376 = vmul.f32 %v1318, 1.442695
      %v1377 = vpow.pop %v1376
      %v1378 = vmul.f32 %v1319, 1.442695
      %v1379 = vpow.pop %v1378
      %v1380 = vmul.f32 %v1320, 1.442695
      %v1381 = vpow.pop %v1380
      %v1382 = vmul.f32 %v1321, 1.442695
      %v1383 = vpow.pop %v1382
      %v1384 = vmul.f32 %v1322, 1.442695
      %v1385 = vpow.pop %v1384
      %v1386 = vmul.f32 %v1323, 1.442695
      %v1387 = vpow.pop %v1386
      %v1388 = vmul.f32 %v1324, 1.442695
      %v1389 = vpow.pop %v1388
      %v1390 = vmul.f32 %v1325, 1.442695
      %v1391 = vpow.pop %v1390
      %v1392 = vmul.f32 %v1326, 1.442695
      %v1393 = vpow.pop %v1392
      %v1394 = vmul.f32 %v1327, 1.442695
      %v1395 = vpow.pop %v1394
      %v1396 = vadd.f32 %v1329, 1.0
      %v1397 = vadd.f32 %v1331, 1.0
      %v1398 = vadd.f32 %v1333, 1.0
      %v1399 = vadd.f32 %v1335, 1.0
      %v1400 = vadd.f32 %v1337, 1.0
      %v1401 = vadd.f32 %v1339, 1.0
      %v1402 = vadd.f32 %v1341, 1.0
      %v1403 = vadd.f32 %v1343, 1.0
      %v1404 = vadd.f32 %v1345, 1.0
      %v1405 = vadd.f32 %v1347, 1.0
      %v1406 = vadd.f32 %v1349, 1.0
      %v1407 = vadd.f32 %v1351, 1.0
      %v1408 = vadd.f32 %v1353, 1.0
      %v1409 = vadd.f32 %v1355, 1.0
      %v1410 = vadd.f32 %v1357, 1.0
      %v1411 = vadd.f32 %v1359, 1.0
      %v1412 = vadd.f32 %v1361, 1.0
      %v1413 = vadd.f32 %v1363, 1.0
      %v1414 = vadd.f32 %v1365, 1.0
      %v1415 = vadd.f32 %v1367, 1.0
      %v1416 = vadd.f32 %v1369, 1.0
      %v1417 = vadd.f32 %v1371, 1.0
      %v1418 = vadd.f32 %v1373, 1.0
      %v1419 = vadd.f32 %v1375, 1.0
      %v1420 = vadd.f32 %v1377, 1.0
      %v1421 = vadd.f32 %v1379, 1.0
      %v1422 = vadd.f32 %v1381, 1.0
      %v1423 = vadd.f32 %v1383, 1.0
      %v1424 = vadd.f32 %v1385, 1.0
      %v1425 = vadd.f32 %v1387, 1.0
      %v1426 = vadd.f32 %v1389, 1.0
      %v1427 = vadd.f32 %v1391, 1.0
      %v1428 = vadd.f32 %v1393, 1.0
      %v1429 = vadd.f32 %v1395, 1.0
      %v1430 = vrcp.pop %v1396
      %v1431 = vmul.f32 1.0, %v1430
      %v1432 = vrcp.pop %v1397
      %v1433 = vmul.f32 1.0, %v1432
      %v1434 = vrcp.pop %v1398
      %v1435 = vmul.f32 1.0, %v1434
      %v1436 = vrcp.pop %v1399
      %v1437 = vmul.f32 1.0, %v1436
      %v1438 = vrcp.pop %v1400
      %v1439 = vmul.f32 1.0, %v1438
      %v1440 = vrcp.pop %v1401
      %v1441 = vmul.f32 1.0, %v1440
      %v1442 = vrcp.pop %v1402
      %v1443 = vmul.f32 1.0, %v1442
      %v1444 = vrcp.pop %v1403
      %v1445 = vmul.f32 1.0, %v1444
      %v1446 = vrcp.pop %v1404
      %v1447 = vmul.f32 1.0, %v1446
      %v1448 = vrcp.pop %v1405
      %v1449 = vmul.f32 1.0, %v1448
      %v1450 = vrcp.pop %v1406
      %v1451 = vmul.f32 1.0, %v1450
      %v1452 = vrcp.pop %v1407
      %v1453 = vmul.f32 1.0, %v1452
      %v1454 = vrcp.pop %v1408
      %v1455 = vmul.f32 1.0, %v1454
      %v1456 = vrcp.pop %v1409
      %v1457 = vmul.f32 1.0, %v1456
      %v1458 = vrcp.pop %v1410
      %v1459 = vmul.f32 1.0, %v1458
      %v1460 = vrcp.pop %v1411
      %v1461 = vmul.f32 1.0, %v1460
      %v1462 = vrcp.pop %v1412
      %v1463 = vmul.f32 1.0, %v1462
      %v1464 = vrcp.pop %v1413
      %v1465 = vmul.f32 1.0, %v1464
      %v1466 = vrcp.pop %v1414
      %v1467 = vmul.f32 1.0, %v1466
      %v1468 = vrcp.pop %v1415
      %v1469 = vmul.f32 1.0, %v1468
      %v1470 = vrcp.pop %v1416
      %v1471 = vmul.f32 1.0, %v1470
      %v1472 = vrcp.pop %v1417
      %v1473 = vmul.f32 1.0, %v1472
      %v1474 = vrcp.pop %v1418
      %v1475 = vmul.f32 1.0, %v1474
      %v1476 = vrcp.pop %v1419
      %v1477 = vmul.f32 1.0, %v1476
      %v1478 = vrcp.pop %v1420
      %v1479 = vmul.f32 1.0, %v1478
      %v1480 = vrcp.pop %v1421
      %v1481 = vmul.f32 1.0, %v1480
      %v1482 = vrcp.pop %v1422
      %v1483 = vmul.f32 1.0, %v1482
      %v1484 = vrcp.pop %v1423
      %v1485 = vmul.f32 1.0, %v1484
      %v1486 = vrcp.pop %v1424
      %v1487 = vmul.f32 1.0, %v1486
      %v1488 = vrcp.pop %v1425
      %v1489 = vmul.f32 1.0, %v1488
      %v1490 = vrcp.pop %v1426
      %v1491 = vmul.f32 1.0, %v1490
      %v1492 = vrcp.pop %v1427
      %v1493 = vmul.f32 1.0, %v1492
      %v1494 = vrcp.pop %v1428
      %v1495 = vmul.f32 1.0, %v1494
      %v1496 = vrcp.pop %v1429
      %v1497 = vmul.f32 1.0, %v1496
      %v1500 = vunpack.c.l.b16 %v288
      %v1501 = vunpack.c.l.b16 %v289
      %v1502 = vpack.c.b16 %v1500, %v837
      %v1503 = vpack.c.b16 %v1501, %v1501
      %v1505 = vshll.u32 %v1502, 16
      %v1507 = vrot.slane %v1505, 1
      %v1508 = vsel %vm839, %v974, %v1507
      %v1509 = vshrl.u32 %v1502, 16
      %v1511 = vor.u32 %v1509, %v1507
      %v1513 = vshll.u32 %v1503, 16
      %v1515 = vrot.slane %v1513, 1
      %v1516 = vsel %vm839, %v1511, %v1515
      %v1519 = vld [vmem:[%s3] sm:$0xf]
      %v1520 = vld [vmem:[%s3 + $0x4] sm:$0xf]
      %v1521 = vld [vmem:[%s3 + $0x8] sm:$0xf]
      %v1522 = vld [vmem:[%s3 + $0xc] sm:$0xf]
      %v1523 = vld [vmem:[%s3 + $0x10] sm:$0xf]
      %v1524 = vld [vmem:[%s3 + $0x14] sm:$0xf]
      %v1525 = vld [vmem:[%s3 + $0x18] sm:$0xf]
      %v1526 = vld [vmem:[%s3 + $0x1c] sm:$0xf]
      %v1527 = vld [vmem:[%s3 + $0x20] sm:$0xf]
      %v1528 = vld [vmem:[%s3 + $0x24] sm:$0xf]
      %v1529 = vld [vmem:[%s3 + $0x28] sm:$0xf]
      %v1530 = vld [vmem:[%s3 + $0x2c] sm:$0xf]
      %v1531 = vld [vmem:[%s3 + $0x30] sm:$0xf]
      %v1532 = vld [vmem:[%s3 + $0x34] sm:$0xf]
      %v1533 = vld [vmem:[%s3 + $0x38] sm:$0xf]
      %v1534 = vld [vmem:[%s3 + $0x3c] sm:$0xf]
      %v1535 = vld [vmem:[%s3 + $0x40] sm:$0xf]
      %v1536 = vld [vmem:[%s3 + $0x44] sm:$0xf]
      %v1537 = vld [vmem:[%s3 + $0x48] sm:$0xf]
      %v1538 = vld [vmem:[%s3 + $0x4c] sm:$0xf]
      %v1539 = vld [vmem:[%s3 + $0x50] sm:$0xf]
      %v1540 = vld [vmem:[%s3 + $0x54] sm:$0xf]
      %v1541 = vld [vmem:[%s3 + $0x58] sm:$0xf]
      %v1542 = vld [vmem:[%s3 + $0x5c] sm:$0xf]
      %v1543 = vld [vmem:[%s3 + $0x60] sm:$0xf]
      %v1544 = vld [vmem:[%s3 + $0x64] sm:$0xf]
      %v1545 = vld [vmem:[%s3 + $0x68] sm:$0xf]
      %v1546 = vld [vmem:[%s3 + $0x6c] sm:$0xf]
      %v1547 = vld [vmem:[%s3 + $0x70] sm:$0xf]
      %v1548 = vld [vmem:[%s3 + $0x74] sm:$0xf]
      %v1549 = vld [vmem:[%s3 + $0x78] sm:$0xf]
      %v1550 = vld [vmem:[%s3 + $0x7c] sm:$0xf]
      %v1583 = vunpack.c.l.b16 %v1519
      %v1584 = vunpack.c.l.b16 %v1520
      %v1585 = vunpack.c.l.b16 %v1521
      %v1586 = vunpack.c.l.b16 %v1522
      %v1587 = vunpack.c.l.b16 %v1523
      %v1588 = vunpack.c.l.b16 %v1524
      %v1589 = vunpack.c.l.b16 %v1525
      %v1590 = vunpack.c.l.b16 %v1526
      %v1591 = vunpack.c.l.b16 %v1527
      %v1592 = vunpack.c.l.b16 %v1528
      %v1593 = vunpack.c.l.b16 %v1529
      %v1594 = vunpack.c.l.b16 %v1530
      %v1595 = vunpack.c.l.b16 %v1531
      %v1596 = vunpack.c.l.b16 %v1532
      %v1597 = vunpack.c.l.b16 %v1533
      %v1598 = vunpack.c.l.b16 %v1534
      %v1599 = vunpack.c.l.b16 %v1535
      %v1600 = vunpack.c.l.b16 %v1536
      %v1601 = vunpack.c.l.b16 %v1537
      %v1602 = vunpack.c.l.b16 %v1538
      %v1603 = vunpack.c.l.b16 %v1539
      %v1604 = vunpack.c.l.b16 %v1540
      %v1605 = vunpack.c.l.b16 %v1541
      %v1606 = vunpack.c.l.b16 %v1542
      %v1607 = vunpack.c.l.b16 %v1543
      %v1608 = vunpack.c.l.b16 %v1544
      %v1609 = vunpack.c.l.b16 %v1545
      %v1610 = vunpack.c.l.b16 %v1546
      %v1611 = vunpack.c.l.b16 %v1547
      %v1612 = vunpack.c.l.b16 %v1548
      %v1613 = vunpack.c.l.b16 %v1549
      %v1614 = vunpack.c.l.b16 %v1550
      %v1615 = vpack.c.b16 %v1584, %v1583
      %v1616 = vpack.c.b16 %v1586, %v1585
      %v1617 = vpack.c.b16 %v1588, %v1587
      %v1618 = vpack.c.b16 %v1590, %v1589
      %v1619 = vpack.c.b16 %v1592, %v1591
      %v1620 = vpack.c.b16 %v1594, %v1593
      %v1621 = vpack.c.b16 %v1596, %v1595
      %v1622 = vpack.c.b16 %v1598, %v1597
      %v1623 = vpack.c.b16 %v1600, %v1599
      %v1624 = vpack.c.b16 %v1602, %v1601
      %v1625 = vpack.c.b16 %v1604, %v1603
      %v1626 = vpack.c.b16 %v1606, %v1605
      %v1627 = vpack.c.b16 %v1608, %v1607
      %v1628 = vpack.c.b16 %v1610, %v1609
      %v1629 = vpack.c.b16 %v1612, %v1611
      %v1630 = vpack.c.b16 %v1614, %v1613
      %1647 = vmatprep.subr.bf16.mxu0 0
      %1648 = vmatpush1.bf16.msra.mxu0 %v1622
      %1649 = vmatprep.subr.bf16.mxu0 0
      %1650 = vmatpush1.bf16.msra.mxu0 %v1621
      %1651 = vmatprep.subr.bf16.mxu0 0
      %1652 = vmatpush1.bf16.msra.mxu0 %v1620
      %1653 = vmatprep.subr.bf16.mxu0 0
      %1654 = vmatpush1.bf16.msra.mxu0 %v1619
      %1655 = vmatprep.subr.bf16.mxu0 0
      %1656 = vmatpush1.bf16.msra.mxu0 %v1618
      %1657 = vmatprep.subr.bf16.mxu0 0
      %1658 = vmatpush1.bf16.msra.mxu0 %v1617
      %1659 = vmatprep.subr.bf16.mxu0 0
      %1660 = vmatpush1.bf16.msra.mxu0 %v1616
      %1661 = vmatprep.subr.bf16.mxu0 0
      %1662 = vmatpush1.bf16.msra.mxu0 %v1615
      %1663 = vmatprep.subr.bf16.mxu0 0
      %1664 = vmatpush2.bf16.msra.mxu0 %v1630
      %1665 = vmatprep.subr.bf16.mxu0 0
      %1666 = vmatpush2.bf16.msra.mxu0 %v1629
      %1667 = vmatprep.subr.bf16.mxu0 0
      %1668 = vmatpush2.bf16.msra.mxu0 %v1628
      %1669 = vmatprep.subr.bf16.mxu0 0
      %1670 = vmatpush2.bf16.msra.mxu0 %v1627
      %1671 = vmatprep.subr.bf16.mxu0 0
      %1672 = vmatpush2.bf16.msra.mxu0 %v1626
      %1673 = vmatprep.subr.bf16.mxu0 0
      %1674 = vmatpush2.bf16.msra.mxu0 %v1625
      %1675 = vmatprep.subr.bf16.mxu0 0
      %1676 = vmatpush2.bf16.msra.mxu0 %v1624
      %1677 = vmatprep.subr.bf16.mxu0 0
      %1678 = vmatpush2.bf16.msra.mxu0 %v1623
      %1679 = vmatprep.mubr.bf16.mxu0 %v859
      %1680 = vmatmul.mubr.bf16.gmra.mxu0 %v381
      %v1681 = vpop.f32.mrf.mxu0
      %v1682 = vadd.f32 %v311, %v1681
      %v1683 = vpop.f32.mrf.mxu0
      %v1684 = vpop.f32.mrf.mxu0
      %v1685 = vadd.f32 %v311, %v1684
      %v1686 = vpop.f32.mrf.mxu0
      %1687 = vmatprep.mubr.bf16.mxu0 %v867
      %1688 = vmatmul.mubr.bf16.gmra.mxu0 %v382
      %v1689 = vpop.f32.mrf.mxu0
      %v1690 = vadd.f32 %v311, %v1689
      %v1691 = vpop.f32.mrf.mxu0
      %v1692 = vpop.f32.mrf.mxu0
      %v1693 = vadd.f32 %v311, %v1692
      %v1694 = vpop.f32.mrf.mxu0
      %1695 = vmatprep.mubr.bf16.mxu0 %v875
      %1696 = vmatmul.mubr.bf16.gmra.mxu0 %v383
      %v1697 = vpop.f32.mrf.mxu0
      %v1698 = vadd.f32 %v311, %v1697
      %v1699 = vpop.f32.mrf.mxu0
      %v1700 = vpop.f32.mrf.mxu0
      %v1701 = vadd.f32 %v311, %v1700
      %v1702 = vpop.f32.mrf.mxu0
      %1703 = vmatprep.mubr.bf16.mxu0 %v883
      %1704 = vmatmul.mubr.bf16.gmra.mxu0 %v384
      %v1705 = vpop.f32.mrf.mxu0
      %v1706 = vadd.f32 %v311, %v1705
      %v1707 = vpop.f32.mrf.mxu0
      %v1708 = vpop.f32.mrf.mxu0
      %v1709 = vadd.f32 %v311, %v1708
      %v1710 = vpop.f32.mrf.mxu0
      %1711 = vmatprep.mubr.bf16.mxu0 %v891
      %1712 = vmatmul.mubr.bf16.gmra.mxu0 %v385
      %v1713 = vpop.f32.mrf.mxu0
      %v1714 = vadd.f32 %v311, %v1713
      %v1715 = vpop.f32.mrf.mxu0
      %v1716 = vpop.f32.mrf.mxu0
      %v1717 = vadd.f32 %v311, %v1716
      %v1718 = vpop.f32.mrf.mxu0
      %1719 = vmatprep.mubr.bf16.mxu0 %v899
      %1720 = vmatmul.mubr.bf16.gmra.mxu0 %v386
      %v1721 = vpop.f32.mrf.mxu0
      %v1722 = vadd.f32 %v311, %v1721
      %v1723 = vpop.f32.mrf.mxu0
      %v1724 = vpop.f32.mrf.mxu0
      %v1725 = vadd.f32 %v311, %v1724
      %v1726 = vpop.f32.mrf.mxu0
      %1727 = vmatprep.mubr.bf16.mxu0 %v907
      %1728 = vmatmul.mubr.bf16.gmra.mxu0 %v387
      %v1729 = vpop.f32.mrf.mxu0
      %v1730 = vadd.f32 %v311, %v1729
      %v1731 = vpop.f32.mrf.mxu0
      %v1732 = vpop.f32.mrf.mxu0
      %v1733 = vadd.f32 %v311, %v1732
      %v1734 = vpop.f32.mrf.mxu0
      %1735 = vmatprep.mubr.bf16.mxu0 %v915
      %1736 = vmatmul.mubr.bf16.gmra.mxu0 %v388
      %v1737 = vpop.f32.mrf.mxu0
      %v1738 = vadd.f32 %v311, %v1737
      %v1739 = vpop.f32.mrf.mxu0
      %v1740 = vpop.f32.mrf.mxu0
      %v1741 = vadd.f32 %v311, %v1740
      %v1742 = vpop.f32.mrf.mxu0
      %1743 = vmatprep.mubr.bf16.mxu0 %v923
      %1744 = vmatmul.mubr.bf16.gmra.mxu0 %v389
      %v1745 = vpop.f32.mrf.mxu0
      %v1746 = vadd.f32 %v311, %v1745
      %v1747 = vpop.f32.mrf.mxu0
      %v1748 = vpop.f32.mrf.mxu0
      %v1749 = vadd.f32 %v311, %v1748
      %v1750 = vpop.f32.mrf.mxu0
      %1751 = vmatprep.mubr.bf16.mxu0 %v931
      %1752 = vmatmul.mubr.bf16.gmra.mxu0 %v390
      %v1753 = vpop.f32.mrf.mxu0
      %v1754 = vadd.f32 %v311, %v1753
      %v1755 = vpop.f32.mrf.mxu0
      %v1756 = vpop.f32.mrf.mxu0
      %v1757 = vadd.f32 %v311, %v1756
      %v1758 = vpop.f32.mrf.mxu0
      %1759 = vmatprep.mubr.bf16.mxu0 %v939
      %1760 = vmatmul.mubr.bf16.gmra.mxu0 %v391
      %v1761 = vpop.f32.mrf.mxu0
      %v1762 = vadd.f32 %v311, %v1761
      %v1763 = vpop.f32.mrf.mxu0
      %v1764 = vpop.f32.mrf.mxu0
      %v1765 = vadd.f32 %v311, %v1764
      %v1766 = vpop.f32.mrf.mxu0
      %1767 = vmatprep.mubr.bf16.mxu0 %v947
      %1768 = vmatmul.mubr.bf16.gmra.mxu0 %v392
      %v1769 = vpop.f32.mrf.mxu0
      %v1770 = vadd.f32 %v311, %v1769
      %v1771 = vpop.f32.mrf.mxu0
      %v1772 = vpop.f32.mrf.mxu0
      %v1773 = vadd.f32 %v311, %v1772
      %v1774 = vpop.f32.mrf.mxu0
      %1775 = vmatprep.mubr.bf16.mxu0 %v955
      %1776 = vmatmul.mubr.bf16.gmra.mxu0 %v393
      %v1777 = vpop.f32.mrf.mxu0
      %v1778 = vadd.f32 %v311, %v1777
      %v1779 = vpop.f32.mrf.mxu0
      %v1780 = vpop.f32.mrf.mxu0
      %v1781 = vadd.f32 %v311, %v1780
      %v1782 = vpop.f32.mrf.mxu0
      %1783 = vmatprep.mubr.bf16.mxu0 %v963
      %1784 = vmatmul.mubr.bf16.gmra.mxu0 %v394
      %v1785 = vpop.f32.mrf.mxu0
      %v1786 = vadd.f32 %v311, %v1785
      %v1787 = vpop.f32.mrf.mxu0
      %v1788 = vpop.f32.mrf.mxu0
      %v1789 = vadd.f32 %v311, %v1788
      %v1790 = vpop.f32.mrf.mxu0
      %1791 = vmatprep.mubr.bf16.mxu0 %v971
      %1792 = vmatmul.mubr.bf16.gmra.mxu0 %v395
      %v1793 = vpop.f32.mrf.mxu0
      %v1794 = vadd.f32 %v311, %v1793
      %v1795 = vpop.f32.mrf.mxu0
      %v1796 = vpop.f32.mrf.mxu0
      %v1797 = vadd.f32 %v311, %v1796
      %v1798 = vpop.f32.mrf.mxu0
      %1799 = vmatprep.mubr.bf16.mxu0 %v1508
      %1800 = vmatmul.mubr.bf16.gmra.mxu0 %v396
      %v1801 = vpop.f32.mrf.mxu0
      %v1802 = vadd.f32 %v311, %v1801
      %v1803 = vpop.f32.mrf.mxu0
      %v1804 = vpop.f32.mrf.mxu0
      %v1805 = vadd.f32 %v311, %v1804
      %v1806 = vpop.f32.mrf.mxu0
      %1807 = vmatprep.mubr.bf16.mxu0 %v1516
      %1808 = vmatmul.mubr.bf16.gmra.mxu0 %v397
      %v1809 = vpop.f32.mrf.mxu0
      %v1810 = vadd.f32 %v311, %v1809
      %v1811 = vpop.f32.mrf.mxu0
      %v1812 = vpop.f32.mrf.mxu0
      %v1813 = vadd.f32 %v311, %v1812
      %v1814 = vpop.f32.mrf.mxu0
      %1815 = vdwg.mxu0
      %v1816 = vxor.u32 %v1682, 2147483648
      %v1817 = vxor.u32 %v1685, 2147483648
      %v1818 = vxor.u32 %v1690, 2147483648
      %v1819 = vxor.u32 %v1693, 2147483648
      %v1820 = vxor.u32 %v1698, 2147483648
      %v1821 = vxor.u32 %v1701, 2147483648
      %v1822 = vxor.u32 %v1706, 2147483648
      %v1823 = vxor.u32 %v1709, 2147483648
      %v1824 = vxor.u32 %v1714, 2147483648
      %v1825 = vxor.u32 %v1717, 2147483648
      %v1826 = vxor.u32 %v1722, 2147483648
      %v1827 = vxor.u32 %v1725, 2147483648
      %v1828 = vxor.u32 %v1730, 2147483648
      %v1829 = vxor.u32 %v1733, 2147483648
      %v1830 = vxor.u32 %v1738, 2147483648
      %v1831 = vxor.u32 %v1741, 2147483648
      %v1832 = vxor.u32 %v1746, 2147483648
      %v1833 = vxor.u32 %v1749, 2147483648
      %v1834 = vxor.u32 %v1754, 2147483648
      %v1835 = vxor.u32 %v1757, 2147483648
      %v1836 = vxor.u32 %v1762, 2147483648
      %v1837 = vxor.u32 %v1765, 2147483648
      %v1838 = vxor.u32 %v1770, 2147483648
      %v1839 = vxor.u32 %v1773, 2147483648
      %v1840 = vxor.u32 %v1778, 2147483648
      %v1841 = vxor.u32 %v1781, 2147483648
      %v1842 = vxor.u32 %v1786, 2147483648
      %v1843 = vxor.u32 %v1789, 2147483648
      %v1844 = vxor.u32 %v1794, 2147483648
      %v1845 = vxor.u32 %v1797, 2147483648
      %v1846 = vxor.u32 %v1802, 2147483648
      %v1847 = vxor.u32 %v1805, 2147483648
      %v1848 = vxor.u32 %v1810, 2147483648
      %v1849 = vxor.u32 %v1813, 2147483648
      %v1850 = vmul.f32 %v1816, 1.442695
      %v1851 = vpow.pop %v1850
      %v1852 = vmul.f32 %v1817, 1.442695
      %v1853 = vpow.pop %v1852
      %v1854 = vmul.f32 %v1818, 1.442695
      %v1855 = vpow.pop %v1854
      %v1856 = vmul.f32 %v1819, 1.442695
      %v1857 = vpow.pop %v1856
      %v1858 = vmul.f32 %v1820, 1.442695
      %v1859 = vpow.pop %v1858
      %v1860 = vmul.f32 %v1821, 1.442695
      %v1861 = vpow.pop %v1860
      %v1862 = vmul.f32 %v1822, 1.442695
      %v1863 = vpow.pop %v1862
      %v1864 = vmul.f32 %v1823, 1.442695
      %v1865 = vpow.pop %v1864
      %v1866 = vmul.f32 %v1824, 1.442695
      %v1867 = vpow.pop %v1866
      %v1868 = vmul.f32 %v1825, 1.442695
      %v1869 = vpow.pop %v1868
      %v1870 = vmul.f32 %v1826, 1.442695
      %v1871 = vpow.pop %v1870
      %v1872 = vmul.f32 %v1827, 1.442695
      %v1873 = vpow.pop %v1872
      %v1874 = vmul.f32 %v1828, 1.442695
      %v1875 = vpow.pop %v1874
      %v1876 = vmul.f32 %v1829, 1.442695
      %v1877 = vpow.pop %v1876
      %v1878 = vmul.f32 %v1830, 1.442695
      %v1879 = vpow.pop %v1878
      %v1880 = vmul.f32 %v1831, 1.442695
      %v1881 = vpow.pop %v1880
      %v1882 = vmul.f32 %v1832, 1.442695
      %v1883 = vpow.pop %v1882
      %v1884 = vmul.f32 %v1833, 1.442695
      %v1885 = vpow.pop %v1884
      %v1886 = vmul.f32 %v1834, 1.442695
      %v1887 = vpow.pop %v1886
      %v1888 = vmul.f32 %v1835, 1.442695
      %v1889 = vpow.pop %v1888
      %v1890 = vmul.f32 %v1836, 1.442695
      %v1891 = vpow.pop %v1890
      %v1892 = vmul.f32 %v1837, 1.442695
      %v1893 = vpow.pop %v1892
      %v1894 = vmul.f32 %v1838, 1.442695
      %v1895 = vpow.pop %v1894
      %v1896 = vmul.f32 %v1839, 1.442695
      %v1897 = vpow.pop %v1896
      %v1898 = vmul.f32 %v1840, 1.442695
      %v1899 = vpow.pop %v1898
      %v1900 = vmul.f32 %v1841, 1.442695
      %v1901 = vpow.pop %v1900
      %v1902 = vmul.f32 %v1842, 1.442695
      %v1903 = vpow.pop %v1902
      %v1904 = vmul.f32 %v1843, 1.442695
      %v1905 = vpow.pop %v1904
      %v1906 = vmul.f32 %v1844, 1.442695
      %v1907 = vpow.pop %v1906
      %v1908 = vmul.f32 %v1845, 1.442695
      %v1909 = vpow.pop %v1908
      %v1910 = vmul.f32 %v1846, 1.442695
      %v1911 = vpow.pop %v1910
      %v1912 = vmul.f32 %v1847, 1.442695
      %v1913 = vpow.pop %v1912
      %v1914 = vmul.f32 %v1848, 1.442695
      %v1915 = vpow.pop %v1914
      %v1916 = vmul.f32 %v1849, 1.442695
      %v1917 = vpow.pop %v1916
      %v1918 = vadd.f32 %v1851, 1.0
      %v1919 = vadd.f32 %v1853, 1.0
      %v1920 = vadd.f32 %v1855, 1.0
      %v1921 = vadd.f32 %v1857, 1.0
      %v1922 = vadd.f32 %v1859, 1.0
      %v1923 = vadd.f32 %v1861, 1.0
      %v1924 = vadd.f32 %v1863, 1.0
      %v1925 = vadd.f32 %v1865, 1.0
      %v1926 = vadd.f32 %v1867, 1.0
      %v1927 = vadd.f32 %v1869, 1.0
      %v1928 = vadd.f32 %v1871, 1.0
      %v1929 = vadd.f32 %v1873, 1.0
      %v1930 = vadd.f32 %v1875, 1.0
      %v1931 = vadd.f32 %v1877, 1.0
      %v1932 = vadd.f32 %v1879, 1.0
      %v1933 = vadd.f32 %v1881, 1.0
      %v1934 = vadd.f32 %v1883, 1.0
      %v1935 = vadd.f32 %v1885, 1.0
      %v1936 = vadd.f32 %v1887, 1.0
      %v1937 = vadd.f32 %v1889, 1.0
      %v1938 = vadd.f32 %v1891, 1.0
      %v1939 = vadd.f32 %v1893, 1.0
      %v1940 = vadd.f32 %v1895, 1.0
      %v1941 = vadd.f32 %v1897, 1.0
      %v1942 = vadd.f32 %v1899, 1.0
      %v1943 = vadd.f32 %v1901, 1.0
      %v1944 = vadd.f32 %v1903, 1.0
      %v1945 = vadd.f32 %v1905, 1.0
      %v1946 = vadd.f32 %v1907, 1.0
      %v1947 = vadd.f32 %v1909, 1.0
      %v1948 = vadd.f32 %v1911, 1.0
      %v1949 = vadd.f32 %v1913, 1.0
      %v1950 = vadd.f32 %v1915, 1.0
      %v1951 = vadd.f32 %v1917, 1.0
      %v1952 = vrcp.pop %v1918
      %v1953 = vmul.f32 1.0, %v1952
      %v1954 = vrcp.pop %v1919
      %v1955 = vmul.f32 1.0, %v1954
      %v1956 = vrcp.pop %v1920
      %v1957 = vmul.f32 1.0, %v1956
      %v1958 = vrcp.pop %v1921
      %v1959 = vmul.f32 1.0, %v1958
      %v1960 = vrcp.pop %v1922
      %v1961 = vmul.f32 1.0, %v1960
      %v1962 = vrcp.pop %v1923
      %v1963 = vmul.f32 1.0, %v1962
      %v1964 = vrcp.pop %v1924
      %v1965 = vmul.f32 1.0, %v1964
      %v1966 = vrcp.pop %v1925
      %v1967 = vmul.f32 1.0, %v1966
      %v1968 = vrcp.pop %v1926
      %v1969 = vmul.f32 1.0, %v1968
      %v1970 = vrcp.pop %v1927
      %v1971 = vmul.f32 1.0, %v1970
      %v1972 = vrcp.pop %v1928
      %v1973 = vmul.f32 1.0, %v1972
      %v1974 = vrcp.pop %v1929
      %v1975 = vmul.f32 1.0, %v1974
      %v1976 = vrcp.pop %v1930
      %v1977 = vmul.f32 1.0, %v1976
      %v1978 = vrcp.pop %v1931
      %v1979 = vmul.f32 1.0, %v1978
      %v1980 = vrcp.pop %v1932
      %v1981 = vmul.f32 1.0, %v1980
      %v1982 = vrcp.pop %v1933
      %v1983 = vmul.f32 1.0, %v1982
      %v1984 = vrcp.pop %v1934
      %v1985 = vmul.f32 1.0, %v1984
      %v1986 = vrcp.pop %v1935
      %v1987 = vmul.f32 1.0, %v1986
      %v1988 = vrcp.pop %v1936
      %v1989 = vmul.f32 1.0, %v1988
      %v1990 = vrcp.pop %v1937
      %v1991 = vmul.f32 1.0, %v1990
      %v1992 = vrcp.pop %v1938
      %v1993 = vmul.f32 1.0, %v1992
      %v1994 = vrcp.pop %v1939
      %v1995 = vmul.f32 1.0, %v1994
      %v1996 = vrcp.pop %v1940
      %v1997 = vmul.f32 1.0, %v1996
      %v1998 = vrcp.pop %v1941
      %v1999 = vmul.f32 1.0, %v1998
      %v2000 = vrcp.pop %v1942
      %v2001 = vmul.f32 1.0, %v2000
      %v2002 = vrcp.pop %v1943
      %v2003 = vmul.f32 1.0, %v2002
      %v2004 = vrcp.pop %v1944
      %v2005 = vmul.f32 1.0, %v2004
      %v2006 = vrcp.pop %v1945
      %v2007 = vmul.f32 1.0, %v2006
      %v2008 = vrcp.pop %v1946
      %v2009 = vmul.f32 1.0, %v2008
      %v2010 = vrcp.pop %v1947
      %v2011 = vmul.f32 1.0, %v2010
      %v2012 = vrcp.pop %v1948
      %v2013 = vmul.f32 1.0, %v2012
      %v2014 = vrcp.pop %v1949
      %v2015 = vmul.f32 1.0, %v2014
      %v2016 = vrcp.pop %v1950
      %v2017 = vmul.f32 1.0, %v2016
      %v2018 = vrcp.pop %v1951
      %v2019 = vmul.f32 1.0, %v2018
      %vm2020 = vcmask 1046528
      %v2021 = vrot.slane %v382, 1
      %v2022 = vrot.slane %v383, 1
      %v2023 = vsel %vm2020, %v2021, %v2022
      %v2024 = vrot.slane %v384, 1
      %v2025 = vsel %vm2020, %v2022, %v2024
      %v2026 = vrot.slane %v385, 1
      %v2027 = vsel %vm2020, %v2024, %v2026
      %v2028 = vrot.slane %v386, 1
      %v2029 = vsel %vm2020, %v2026, %v2028
      %v2030 = vrot.slane %v387, 1
      %v2031 = vsel %vm2020, %v2028, %v2030
      %v2032 = vrot.slane %v388, 1
      %v2033 = vsel %vm2020, %v2030, %v2032
      %v2034 = vrot.slane %v389, 1
      %v2035 = vsel %vm2020, %v2032, %v2034
      %v2036 = vrot.slane %v390, 1
      %v2037 = vsel %vm2020, %v2034, %v2036
      %v2038 = vrot.slane %v391, 1
      %v2039 = vsel %vm2020, %v2036, %v2038
      %v2040 = vrot.slane %v392, 1
      %v2041 = vsel %vm2020, %v2038, %v2040
      %v2042 = vrot.slane %v393, 1
      %v2043 = vsel %vm2020, %v2040, %v2042
      %v2044 = vrot.slane %v394, 1
      %v2045 = vsel %vm2020, %v2042, %v2044
      %v2046 = vrot.slane %v395, 1
      %v2047 = vsel %vm2020, %v2044, %v2046
      %v2048 = vrot.slane %v396, 1
      %v2049 = vsel %vm2020, %v2046, %v2048
      %v2050 = vrot.slane %v397, 1
      %v2051 = vsel %vm2020, %v2048, %v2050
      %v2052 = vrot.slane %v1502, 1
      %v2053 = vsel %vm2020, %v2050, %v2052
      %v2054 = vrot.slane %v1503, 1
      %v2055 = vsel %vm2020, %v2052, %v2054
      %v2073 = vld [vmem:[%s4] sm:$0xf]
      %v2074 = vld [vmem:[%s4 + $0x4] sm:$0xf]
      %v2075 = vld [vmem:[%s4 + $0x8] sm:$0xf]
      %v2076 = vld [vmem:[%s4 + $0xc] sm:$0xf]
      %v2077 = vld [vmem:[%s4 + $0x10] sm:$0xf]
      %v2078 = vld [vmem:[%s4 + $0x14] sm:$0xf]
      %v2079 = vld [vmem:[%s4 + $0x18] sm:$0xf]
      %v2080 = vld [vmem:[%s4 + $0x1c] sm:$0xf]
      %v2081 = vld [vmem:[%s4 + $0x20] sm:$0xf]
      %v2082 = vld [vmem:[%s4 + $0x24] sm:$0xf]
      %v2083 = vld [vmem:[%s4 + $0x28] sm:$0xf]
      %v2084 = vld [vmem:[%s4 + $0x2c] sm:$0xf]
      %v2085 = vld [vmem:[%s4 + $0x30] sm:$0xf]
      %v2086 = vld [vmem:[%s4 + $0x34] sm:$0xf]
      %v2087 = vld [vmem:[%s4 + $0x38] sm:$0xf]
      %v2088 = vld [vmem:[%s4 + $0x3c] sm:$0xf]
      %v2089 = vld [vmem:[%s4 + $0x40] sm:$0xf]
      %v2090 = vld [vmem:[%s4 + $0x44] sm:$0xf]
      %v2091 = vld [vmem:[%s4 + $0x48] sm:$0xf]
      %v2092 = vld [vmem:[%s4 + $0x4c] sm:$0xf]
      %v2093 = vld [vmem:[%s4 + $0x50] sm:$0xf]
      %v2094 = vld [vmem:[%s4 + $0x54] sm:$0xf]
      %v2095 = vld [vmem:[%s4 + $0x58] sm:$0xf]
      %v2096 = vld [vmem:[%s4 + $0x5c] sm:$0xf]
      %v2097 = vld [vmem:[%s4 + $0x60] sm:$0xf]
      %v2098 = vld [vmem:[%s4 + $0x64] sm:$0xf]
      %v2099 = vld [vmem:[%s4 + $0x68] sm:$0xf]
      %v2100 = vld [vmem:[%s4 + $0x6c] sm:$0xf]
      %v2101 = vld [vmem:[%s4 + $0x70] sm:$0xf]
      %v2102 = vld [vmem:[%s4 + $0x74] sm:$0xf]
      %v2103 = vld [vmem:[%s4 + $0x78] sm:$0xf]
      %v2104 = vld [vmem:[%s4 + $0x7c] sm:$0xf]
      %v2105 = vld [vmem:[%s4 + $0x80] sm:$0xf]
      %v2106 = vld [vmem:[%s4 + $0x84] sm:$0xf]
      %v2107 = vld [vmem:[%s4 + $0x88] sm:$0xf]
      %v2108 = vld [vmem:[%s4 + $0x8c] sm:$0xf]
      %v2109 = vld [vmem:[%s4 + $0x90] sm:$0xf]
      %v2110 = vld [vmem:[%s4 + $0x94] sm:$0xf]
      %v2111 = vld [vmem:[%s4 + $0x98] sm:$0xf]
      %v2112 = vld [vmem:[%s4 + $0x9c] sm:$0xf]
      %v2113 = vld [vmem:[%s4 + $0xa0] sm:$0xf]
      %v2114 = vld [vmem:[%s4 + $0xa4] sm:$0xf]
      %v2115 = vld [vmem:[%s4 + $0xa8] sm:$0xf]
      %v2116 = vld [vmem:[%s4 + $0xac] sm:$0xf]
      %v2117 = vld [vmem:[%s4 + $0xb0] sm:$0xf]
      %v2118 = vld [vmem:[%s4 + $0xb4] sm:$0xf]
      %v2119 = vld [vmem:[%s4 + $0xb8] sm:$0xf]
      %v2120 = vld [vmem:[%s4 + $0xbc] sm:$0xf]
      %v2121 = vld [vmem:[%s4 + $0xc0] sm:$0xf]
      %v2122 = vld [vmem:[%s4 + $0xc4] sm:$0xf]
      %v2123 = vld [vmem:[%s4 + $0xc8] sm:$0xf]
      %v2124 = vld [vmem:[%s4 + $0xcc] sm:$0xf]
      %v2125 = vld [vmem:[%s4 + $0xd0] sm:$0xf]
      %v2126 = vld [vmem:[%s4 + $0xd4] sm:$0xf]
      %v2127 = vld [vmem:[%s4 + $0xd8] sm:$0xf]
      %v2128 = vld [vmem:[%s4 + $0xdc] sm:$0xf]
      %v2129 = vld [vmem:[%s4 + $0xe0] sm:$0xf]
      %v2130 = vld [vmem:[%s4 + $0xe4] sm:$0xf]
      %v2131 = vld [vmem:[%s4 + $0xe8] sm:$0xf]
      %v2132 = vld [vmem:[%s4 + $0xec] sm:$0xf]
      %v2133 = vld [vmem:[%s4 + $0xf0] sm:$0xf]
      %v2134 = vld [vmem:[%s4 + $0xf4] sm:$0xf]
      %v2135 = vld [vmem:[%s4 + $0xf8] sm:$0xf]
      %v2136 = vld [vmem:[%s4 + $0xfc] sm:$0xf]
      %v2201 = vunpack.c.l.b16 %v2073
      %v2202 = vunpack.c.l.b16 %v2074
      %v2203 = vunpack.c.l.b16 %v2075
      %v2204 = vunpack.c.l.b16 %v2076
      %v2205 = vunpack.c.l.b16 %v2077
      %v2206 = vunpack.c.l.b16 %v2078
      %v2207 = vunpack.c.l.b16 %v2079
      %v2208 = vunpack.c.l.b16 %v2080
      %v2209 = vunpack.c.l.b16 %v2081
      %v2210 = vunpack.c.l.b16 %v2082
      %v2211 = vunpack.c.l.b16 %v2083
      %v2212 = vunpack.c.l.b16 %v2084
      %v2213 = vunpack.c.l.b16 %v2085
      %v2214 = vunpack.c.l.b16 %v2086
      %v2215 = vunpack.c.l.b16 %v2087
      %v2216 = vunpack.c.l.b16 %v2088
      %v2217 = vunpack.c.l.b16 %v2089
      %v2218 = vunpack.c.l.b16 %v2090
      %v2219 = vunpack.c.l.b16 %v2091
      %v2220 = vunpack.c.l.b16 %v2092
      %v2221 = vunpack.c.l.b16 %v2093
      %v2222 = vunpack.c.l.b16 %v2094
      %v2223 = vunpack.c.l.b16 %v2095
      %v2224 = vunpack.c.l.b16 %v2096
      %v2225 = vunpack.c.l.b16 %v2097
      %v2226 = vunpack.c.l.b16 %v2098
      %v2227 = vunpack.c.l.b16 %v2099
      %v2228 = vunpack.c.l.b16 %v2100
      %v2229 = vunpack.c.l.b16 %v2101
      %v2230 = vunpack.c.l.b16 %v2102
      %v2231 = vunpack.c.l.b16 %v2103
      %v2232 = vunpack.c.l.b16 %v2104
      %v2233 = vunpack.c.l.b16 %v2105
      %v2234 = vunpack.c.l.b16 %v2106
      %v2235 = vunpack.c.l.b16 %v2107
      %v2236 = vunpack.c.l.b16 %v2108
      %v2237 = vunpack.c.l.b16 %v2109
      %v2238 = vunpack.c.l.b16 %v2110
      %v2239 = vunpack.c.l.b16 %v2111
      %v2240 = vunpack.c.l.b16 %v2112
      %v2241 = vunpack.c.l.b16 %v2113
      %v2242 = vunpack.c.l.b16 %v2114
      %v2243 = vunpack.c.l.b16 %v2115
      %v2244 = vunpack.c.l.b16 %v2116
      %v2245 = vunpack.c.l.b16 %v2117
      %v2246 = vunpack.c.l.b16 %v2118
      %v2247 = vunpack.c.l.b16 %v2119
      %v2248 = vunpack.c.l.b16 %v2120
      %v2249 = vunpack.c.l.b16 %v2121
      %v2250 = vunpack.c.l.b16 %v2122
      %v2251 = vunpack.c.l.b16 %v2123
      %v2252 = vunpack.c.l.b16 %v2124
      %v2253 = vunpack.c.l.b16 %v2125
      %v2254 = vunpack.c.l.b16 %v2126
      %v2255 = vunpack.c.l.b16 %v2127
      %v2256 = vunpack.c.l.b16 %v2128
      %v2257 = vunpack.c.l.b16 %v2129
      %v2258 = vunpack.c.l.b16 %v2130
      %v2259 = vunpack.c.l.b16 %v2131
      %v2260 = vunpack.c.l.b16 %v2132
      %v2261 = vunpack.c.l.b16 %v2133
      %v2262 = vunpack.c.l.b16 %v2134
      %v2263 = vunpack.c.l.b16 %v2135
      %v2264 = vunpack.c.l.b16 %v2136
      %v2265 = vpack.c.b16 %v2202, %v2201
      %v2266 = vpack.c.b16 %v2204, %v2203
      %v2267 = vpack.c.b16 %v2206, %v2205
      %v2268 = vpack.c.b16 %v2208, %v2207
      %v2269 = vpack.c.b16 %v2210, %v2209
      %v2270 = vpack.c.b16 %v2212, %v2211
      %v2271 = vpack.c.b16 %v2214, %v2213
      %v2272 = vpack.c.b16 %v2216, %v2215
      %v2273 = vpack.c.b16 %v2218, %v2217
      %v2274 = vpack.c.b16 %v2220, %v2219
      %v2275 = vpack.c.b16 %v2222, %v2221
      %v2276 = vpack.c.b16 %v2224, %v2223
      %v2277 = vpack.c.b16 %v2226, %v2225
      %v2278 = vpack.c.b16 %v2228, %v2227
      %v2279 = vpack.c.b16 %v2230, %v2229
      %v2280 = vpack.c.b16 %v2232, %v2231
      %v2281 = vpack.c.b16 %v2234, %v2233
      %v2282 = vpack.c.b16 %v2236, %v2235
      %v2283 = vpack.c.b16 %v2238, %v2237
      %v2284 = vpack.c.b16 %v2240, %v2239
      %v2285 = vpack.c.b16 %v2242, %v2241
      %v2286 = vpack.c.b16 %v2244, %v2243
      %v2287 = vpack.c.b16 %v2246, %v2245
      %v2288 = vpack.c.b16 %v2248, %v2247
      %v2289 = vpack.c.b16 %v2250, %v2249
      %v2290 = vpack.c.b16 %v2252, %v2251
      %v2291 = vpack.c.b16 %v2254, %v2253
      %v2292 = vpack.c.b16 %v2256, %v2255
      %v2293 = vpack.c.b16 %v2258, %v2257
      %v2294 = vpack.c.b16 %v2260, %v2259
      %v2295 = vpack.c.b16 %v2262, %v2261
      %v2296 = vpack.c.b16 %v2264, %v2263
      %2329 = vmatprep.subr.bf16.mxu0 0
      %2330 = vmatpush1.bf16.msra.mxu0 %v2272
      %2331 = vmatprep.subr.bf16.mxu0 0
      %2332 = vmatpush1.bf16.msra.mxu0 %v2271
      %2333 = vmatprep.subr.bf16.mxu0 0
      %2334 = vmatpush1.bf16.msra.mxu0 %v2270
      %2335 = vmatprep.subr.bf16.mxu0 0
      %2336 = vmatpush1.bf16.msra.mxu0 %v2269
      %2337 = vmatprep.subr.bf16.mxu0 0
      %2338 = vmatpush1.bf16.msra.mxu0 %v2268
      %2339 = vmatprep.subr.bf16.mxu0 0
      %2340 = vmatpush1.bf16.msra.mxu0 %v2267
      %2341 = vmatprep.subr.bf16.mxu0 0
      %2342 = vmatpush1.bf16.msra.mxu0 %v2266
      %2343 = vmatprep.subr.bf16.mxu0 0
      %2344 = vmatpush1.bf16.msra.mxu0 %v2265
      %2345 = vmatprep.subr.bf16.mxu0 0
      %2346 = vmatpush2.bf16.msra.mxu0 %v2280
      %2347 = vmatprep.subr.bf16.mxu0 0
      %2348 = vmatpush2.bf16.msra.mxu0 %v2279
      %2349 = vmatprep.subr.bf16.mxu0 0
      %2350 = vmatpush2.bf16.msra.mxu0 %v2278
      %2351 = vmatprep.subr.bf16.mxu0 0
      %2352 = vmatpush2.bf16.msra.mxu0 %v2277
      %2353 = vmatprep.subr.bf16.mxu0 0
      %2354 = vmatpush2.bf16.msra.mxu0 %v2276
      %2355 = vmatprep.subr.bf16.mxu0 0
      %2356 = vmatpush2.bf16.msra.mxu0 %v2275
      %2357 = vmatprep.subr.bf16.mxu0 0
      %2358 = vmatpush2.bf16.msra.mxu0 %v2274
      %2359 = vmatprep.subr.bf16.mxu0 0
      %2360 = vmatpush2.bf16.msra.mxu0 %v2273
      %2361 = vmatprep.mubr.bf16.mxu0 %v851
      %2362 = vmatmul.mubr.bf16.gmra.mxu0 %v381
      %v2363 = vpop.f32.mrf.mxu0
      %v2364 = vadd.f32 %v311, %v2363
      %v2365 = vpop.f32.mrf.mxu0
      %v2366 = vpop.f32.mrf.mxu0
      %v2367 = vadd.f32 %v311, %v2366
      %v2368 = vpop.f32.mrf.mxu0
      %2369 = vmatprep.mubr.bf16.mxu0 %v859
      %2370 = vmatmul.mubr.bf16.gmra.mxu0 %v382
      %v2371 = vpop.f32.mrf.mxu0
      %v2372 = vadd.f32 %v311, %v2371
      %v2373 = vpop.f32.mrf.mxu0
      %v2374 = vpop.f32.mrf.mxu0
      %v2375 = vadd.f32 %v311, %v2374
      %v2376 = vpop.f32.mrf.mxu0
      %2377 = vmatprep.mubr.bf16.mxu0 %v867
      %2378 = vmatmul.mubr.bf16.gmra.mxu0 %v383
      %v2379 = vpop.f32.mrf.mxu0
      %v2380 = vadd.f32 %v311, %v2379
      %v2381 = vpop.f32.mrf.mxu0
      %v2382 = vpop.f32.mrf.mxu0
      %v2383 = vadd.f32 %v311, %v2382
      %v2384 = vpop.f32.mrf.mxu0
      %2385 = vmatprep.mubr.bf16.mxu0 %v875
      %2386 = vmatmul.mubr.bf16.gmra.mxu0 %v384
      %v2387 = vpop.f32.mrf.mxu0
      %v2388 = vadd.f32 %v311, %v2387
      %v2389 = vpop.f32.mrf.mxu0
      %v2390 = vpop.f32.mrf.mxu0
      %v2391 = vadd.f32 %v311, %v2390
      %v2392 = vpop.f32.mrf.mxu0
      %2393 = vmatprep.mubr.bf16.mxu0 %v883
      %2394 = vmatmul.mubr.bf16.gmra.mxu0 %v385
      %v2395 = vpop.f32.mrf.mxu0
      %v2396 = vadd.f32 %v311, %v2395
      %v2397 = vpop.f32.mrf.mxu0
      %v2398 = vpop.f32.mrf.mxu0
      %v2399 = vadd.f32 %v311, %v2398
      %v2400 = vpop.f32.mrf.mxu0
      %2401 = vmatprep.mubr.bf16.mxu0 %v891
      %2402 = vmatmul.mubr.bf16.gmra.mxu0 %v386
      %v2403 = vpop.f32.mrf.mxu0
      %v2404 = vadd.f32 %v311, %v2403
      %v2405 = vpop.f32.mrf.mxu0
      %v2406 = vpop.f32.mrf.mxu0
      %v2407 = vadd.f32 %v311, %v2406
      %v2408 = vpop.f32.mrf.mxu0
      %2409 = vmatprep.mubr.bf16.mxu0 %v899
      %2410 = vmatmul.mubr.bf16.gmra.mxu0 %v387
      %v2411 = vpop.f32.mrf.mxu0
      %v2412 = vadd.f32 %v311, %v2411
      %v2413 = vpop.f32.mrf.mxu0
      %v2414 = vpop.f32.mrf.mxu0
      %v2415 = vadd.f32 %v311, %v2414
      %v2416 = vpop.f32.mrf.mxu0
      %2417 = vmatprep.mubr.bf16.mxu0 %v907
      %2418 = vmatmul.mubr.bf16.gmra.mxu0 %v388
      %v2419 = vpop.f32.mrf.mxu0
      %v2420 = vadd.f32 %v311, %v2419
      %v2421 = vpop.f32.mrf.mxu0
      %v2422 = vpop.f32.mrf.mxu0
      %v2423 = vadd.f32 %v311, %v2422
      %v2424 = vpop.f32.mrf.mxu0
      %2425 = vmatprep.mubr.bf16.mxu0 %v915
      %2426 = vmatmul.mubr.bf16.gmra.mxu0 %v389
      %v2427 = vpop.f32.mrf.mxu0
      %v2428 = vadd.f32 %v311, %v2427
      %v2429 = vpop.f32.mrf.mxu0
      %v2430 = vpop.f32.mrf.mxu0
      %v2431 = vadd.f32 %v311, %v2430
      %v2432 = vpop.f32.mrf.mxu0
      %2433 = vmatprep.mubr.bf16.mxu0 %v923
      %2434 = vmatmul.mubr.bf16.gmra.mxu0 %v390
      %v2435 = vpop.f32.mrf.mxu0
      %v2436 = vadd.f32 %v311, %v2435
      %v2437 = vpop.f32.mrf.mxu0
      %v2438 = vpop.f32.mrf.mxu0
      %v2439 = vadd.f32 %v311, %v2438
      %v2440 = vpop.f32.mrf.mxu0
      %2441 = vmatprep.mubr.bf16.mxu0 %v931
      %2442 = vmatmul.mubr.bf16.gmra.mxu0 %v391
      %v2443 = vpop.f32.mrf.mxu0
      %v2444 = vadd.f32 %v311, %v2443
      %v2445 = vpop.f32.mrf.mxu0
      %v2446 = vpop.f32.mrf.mxu0
      %v2447 = vadd.f32 %v311, %v2446
      %v2448 = vpop.f32.mrf.mxu0
      %2449 = vmatprep.mubr.bf16.mxu0 %v939
      %2450 = vmatmul.mubr.bf16.gmra.mxu0 %v392
      %v2451 = vpop.f32.mrf.mxu0
      %v2452 = vadd.f32 %v311, %v2451
      %v2453 = vpop.f32.mrf.mxu0
      %v2454 = vpop.f32.mrf.mxu0
      %v2455 = vadd.f32 %v311, %v2454
      %v2456 = vpop.f32.mrf.mxu0
      %2457 = vmatprep.mubr.bf16.mxu0 %v947
      %2458 = vmatmul.mubr.bf16.gmra.mxu0 %v393
      %v2459 = vpop.f32.mrf.mxu0
      %v2460 = vadd.f32 %v311, %v2459
      %v2461 = vpop.f32.mrf.mxu0
      %v2462 = vpop.f32.mrf.mxu0
      %v2463 = vadd.f32 %v311, %v2462
      %v2464 = vpop.f32.mrf.mxu0
      %2465 = vmatprep.mubr.bf16.mxu0 %v955
      %2466 = vmatmul.mubr.bf16.gmra.mxu0 %v394
      %v2467 = vpop.f32.mrf.mxu0
      %v2468 = vadd.f32 %v311, %v2467
      %v2469 = vpop.f32.mrf.mxu0
      %v2470 = vpop.f32.mrf.mxu0
      %v2471 = vadd.f32 %v311, %v2470
      %v2472 = vpop.f32.mrf.mxu0
      %2473 = vmatprep.mubr.bf16.mxu0 %v963
      %2474 = vmatmul.mubr.bf16.gmra.mxu0 %v395
      %v2475 = vpop.f32.mrf.mxu0
      %v2476 = vadd.f32 %v311, %v2475
      %v2477 = vpop.f32.mrf.mxu0
      %v2478 = vpop.f32.mrf.mxu0
      %v2479 = vadd.f32 %v311, %v2478
      %v2480 = vpop.f32.mrf.mxu0
      %2481 = vmatprep.mubr.bf16.mxu0 %v971
      %2482 = vmatmul.mubr.bf16.gmra.mxu0 %v396
      %v2483 = vpop.f32.mrf.mxu0
      %v2484 = vadd.f32 %v311, %v2483
      %v2485 = vpop.f32.mrf.mxu0
      %v2486 = vpop.f32.mrf.mxu0
      %v2487 = vadd.f32 %v311, %v2486
      %v2488 = vpop.f32.mrf.mxu0
      %2489 = vmatprep.mubr.bf16.mxu0 %v979
      %2490 = vmatmul.mubr.bf16.gmra.mxu0 %v397
      %v2491 = vpop.f32.mrf.mxu0
      %v2492 = vadd.f32 %v311, %v2491
      %v2493 = vpop.f32.mrf.mxu0
      %v2494 = vpop.f32.mrf.mxu0
      %v2495 = vadd.f32 %v311, %v2494
      %v2496 = vpop.f32.mrf.mxu0
      %2497 = vdwg.mxu0
      %2498 = vmatprep.subr.bf16.mxu0 0
      %2499 = vmatpush1.bf16.msra.mxu0 %v2288
      %2500 = vmatprep.subr.bf16.mxu0 0
      %2501 = vmatpush1.bf16.msra.mxu0 %v2287
      %2502 = vmatprep.subr.bf16.mxu0 0
      %2503 = vmatpush1.bf16.msra.mxu0 %v2286
      %2504 = vmatprep.subr.bf16.mxu0 0
      %2505 = vmatpush1.bf16.msra.mxu0 %v2285
      %2506 = vmatprep.subr.bf16.mxu0 0
      %2507 = vmatpush1.bf16.msra.mxu0 %v2284
      %2508 = vmatprep.subr.bf16.mxu0 0
      %2509 = vmatpush1.bf16.msra.mxu0 %v2283
      %2510 = vmatprep.subr.bf16.mxu0 0
      %2511 = vmatpush1.bf16.msra.mxu0 %v2282
      %2512 = vmatprep.subr.bf16.mxu0 0
      %2513 = vmatpush1.bf16.msra.mxu0 %v2281
      %2514 = vmatprep.subr.bf16.mxu0 0
      %2515 = vmatpush2.bf16.msra.mxu0 %v2296
      %2516 = vmatprep.subr.bf16.mxu0 0
      %2517 = vmatpush2.bf16.msra.mxu0 %v2295
      %2518 = vmatprep.subr.bf16.mxu0 0
      %2519 = vmatpush2.bf16.msra.mxu0 %v2294
      %2520 = vmatprep.subr.bf16.mxu0 0
      %2521 = vmatpush2.bf16.msra.mxu0 %v2293
      %2522 = vmatprep.subr.bf16.mxu0 0
      %2523 = vmatpush2.bf16.msra.mxu0 %v2292
      %2524 = vmatprep.subr.bf16.mxu0 0
      %2525 = vmatpush2.bf16.msra.mxu0 %v2291
      %2526 = vmatprep.subr.bf16.mxu0 0
      %2527 = vmatpush2.bf16.msra.mxu0 %v2290
      %2528 = vmatprep.subr.bf16.mxu0 0
      %2529 = vmatpush2.bf16.msra.mxu0 %v2289
      %2530 = vmatprep.mubr.bf16.mxu0 %v2023
      %2531 = vmatmul.mubr.bf16.gmra.mxu0 %v859
      %v2532 = vpop.f32.mrf.mxu0
      %v2533 = vadd.f32 %v2364, %v2532
      %v2534 = vpop.f32.mrf.mxu0
      %v2535 = vpop.f32.mrf.mxu0
      %v2536 = vadd.f32 %v2367, %v2535
      %v2537 = vpop.f32.mrf.mxu0
      %2538 = vmatprep.mubr.bf16.mxu0 %v2025
      %2539 = vmatmul.mubr.bf16.gmra.mxu0 %v867
      %v2540 = vpop.f32.mrf.mxu0
      %v2541 = vadd.f32 %v2372, %v2540
      %v2542 = vpop.f32.mrf.mxu0
      %v2543 = vpop.f32.mrf.mxu0
      %v2544 = vadd.f32 %v2375, %v2543
      %v2545 = vpop.f32.mrf.mxu0
      %2546 = vmatprep.mubr.bf16.mxu0 %v2027
      %2547 = vmatmul.mubr.bf16.gmra.mxu0 %v875
      %v2548 = vpop.f32.mrf.mxu0
      %v2549 = vadd.f32 %v2380, %v2548
      %v2550 = vpop.f32.mrf.mxu0
      %v2551 = vpop.f32.mrf.mxu0
      %v2552 = vadd.f32 %v2383, %v2551
      %v2553 = vpop.f32.mrf.mxu0
      %2554 = vmatprep.mubr.bf16.mxu0 %v2029
      %2555 = vmatmul.mubr.bf16.gmra.mxu0 %v883
      %v2556 = vpop.f32.mrf.mxu0
      %v2557 = vadd.f32 %v2388, %v2556
      %v2558 = vpop.f32.mrf.mxu0
      %v2559 = vpop.f32.mrf.mxu0
      %v2560 = vadd.f32 %v2391, %v2559
      %v2561 = vpop.f32.mrf.mxu0
      %2562 = vmatprep.mubr.bf16.mxu0 %v2031
      %2563 = vmatmul.mubr.bf16.gmra.mxu0 %v891
      %v2564 = vpop.f32.mrf.mxu0
      %v2565 = vadd.f32 %v2396, %v2564
      %v2566 = vpop.f32.mrf.mxu0
      %v2567 = vpop.f32.mrf.mxu0
      %v2568 = vadd.f32 %v2399, %v2567
      %v2569 = vpop.f32.mrf.mxu0
      %2570 = vmatprep.mubr.bf16.mxu0 %v2033
      %2571 = vmatmul.mubr.bf16.gmra.mxu0 %v899
      %v2572 = vpop.f32.mrf.mxu0
      %v2573 = vadd.f32 %v2404, %v2572
      %v2574 = vpop.f32.mrf.mxu0
      %v2575 = vpop.f32.mrf.mxu0
      %v2576 = vadd.f32 %v2407, %v2575
      %v2577 = vpop.f32.mrf.mxu0
      %2578 = vmatprep.mubr.bf16.mxu0 %v2035
      %2579 = vmatmul.mubr.bf16.gmra.mxu0 %v907
      %v2580 = vpop.f32.mrf.mxu0
      %v2581 = vadd.f32 %v2412, %v2580
      %v2582 = vpop.f32.mrf.mxu0
      %v2583 = vpop.f32.mrf.mxu0
      %v2584 = vadd.f32 %v2415, %v2583
      %v2585 = vpop.f32.mrf.mxu0
      %2586 = vmatprep.mubr.bf16.mxu0 %v2037
      %2587 = vmatmul.mubr.bf16.gmra.mxu0 %v915
      %v2588 = vpop.f32.mrf.mxu0
      %v2589 = vadd.f32 %v2420, %v2588
      %v2590 = vpop.f32.mrf.mxu0
      %v2591 = vpop.f32.mrf.mxu0
      %v2592 = vadd.f32 %v2423, %v2591
      %v2593 = vpop.f32.mrf.mxu0
      %2594 = vmatprep.mubr.bf16.mxu0 %v2039
      %2595 = vmatmul.mubr.bf16.gmra.mxu0 %v923
      %v2596 = vpop.f32.mrf.mxu0
      %v2597 = vadd.f32 %v2428, %v2596
      %v2598 = vpop.f32.mrf.mxu0
      %v2599 = vpop.f32.mrf.mxu0
      %v2600 = vadd.f32 %v2431, %v2599
      %v2601 = vpop.f32.mrf.mxu0
      %2602 = vmatprep.mubr.bf16.mxu0 %v2041
      %2603 = vmatmul.mubr.bf16.gmra.mxu0 %v931
      %v2604 = vpop.f32.mrf.mxu0
      %v2605 = vadd.f32 %v2436, %v2604
      %v2606 = vpop.f32.mrf.mxu0
      %v2607 = vpop.f32.mrf.mxu0
      %v2608 = vadd.f32 %v2439, %v2607
      %v2609 = vpop.f32.mrf.mxu0
      %2610 = vmatprep.mubr.bf16.mxu0 %v2043
      %2611 = vmatmul.mubr.bf16.gmra.mxu0 %v939
      %v2612 = vpop.f32.mrf.mxu0
      %v2613 = vadd.f32 %v2444, %v2612
      %v2614 = vpop.f32.mrf.mxu0
      %v2615 = vpop.f32.mrf.mxu0
      %v2616 = vadd.f32 %v2447, %v2615
      %v2617 = vpop.f32.mrf.mxu0
      %2618 = vmatprep.mubr.bf16.mxu0 %v2045
      %2619 = vmatmul.mubr.bf16.gmra.mxu0 %v947
      %v2620 = vpop.f32.mrf.mxu0
      %v2621 = vadd.f32 %v2452, %v2620
      %v2622 = vpop.f32.mrf.mxu0
      %v2623 = vpop.f32.mrf.mxu0
      %v2624 = vadd.f32 %v2455, %v2623
      %v2625 = vpop.f32.mrf.mxu0
      %2626 = vmatprep.mubr.bf16.mxu0 %v2047
      %2627 = vmatmul.mubr.bf16.gmra.mxu0 %v955
      %v2628 = vpop.f32.mrf.mxu0
      %v2629 = vadd.f32 %v2460, %v2628
      %v2630 = vpop.f32.mrf.mxu0
      %v2631 = vpop.f32.mrf.mxu0
      %v2632 = vadd.f32 %v2463, %v2631
      %v2633 = vpop.f32.mrf.mxu0
      %2634 = vmatprep.mubr.bf16.mxu0 %v2049
      %2635 = vmatmul.mubr.bf16.gmra.mxu0 %v963
      %v2636 = vpop.f32.mrf.mxu0
      %v2637 = vadd.f32 %v2468, %v2636
      %v2638 = vpop.f32.mrf.mxu0
      %v2639 = vpop.f32.mrf.mxu0
      %v2640 = vadd.f32 %v2471, %v2639
      %v2641 = vpop.f32.mrf.mxu0
      %2642 = vmatprep.mubr.bf16.mxu0 %v2051
      %2643 = vmatmul.mubr.bf16.gmra.mxu0 %v971
      %v2644 = vpop.f32.mrf.mxu0
      %v2645 = vadd.f32 %v2476, %v2644
      %v2646 = vpop.f32.mrf.mxu0
      %v2647 = vpop.f32.mrf.mxu0
      %v2648 = vadd.f32 %v2479, %v2647
      %v2649 = vpop.f32.mrf.mxu0
      %2650 = vmatprep.mubr.bf16.mxu0 %v2053
      %2651 = vmatmul.mubr.bf16.gmra.mxu0 %v1508
      %v2652 = vpop.f32.mrf.mxu0
      %v2653 = vadd.f32 %v2484, %v2652
      %v2654 = vpop.f32.mrf.mxu0
      %v2655 = vpop.f32.mrf.mxu0
      %v2656 = vadd.f32 %v2487, %v2655
      %v2657 = vpop.f32.mrf.mxu0
      %2658 = vmatprep.mubr.bf16.mxu0 %v2055
      %2659 = vmatmul.mubr.bf16.gmra.mxu0 %v1516
      %v2660 = vpop.f32.mrf.mxu0
      %v2661 = vadd.f32 %v2492, %v2660
      %v2662 = vpop.f32.mrf.mxu0
      %v2663 = vpop.f32.mrf.mxu0
      %v2664 = vadd.f32 %v2495, %v2663
      %v2665 = vpop.f32.mrf.mxu0
      %2666 = vdwg.mxu0
      %v2667 = vxor.u32 %v2533, 2147483648
      %v2668 = vxor.u32 %v2536, 2147483648
      %v2669 = vxor.u32 %v2541, 2147483648
      %v2670 = vxor.u32 %v2544, 2147483648
      %v2671 = vxor.u32 %v2549, 2147483648
      %v2672 = vxor.u32 %v2552, 2147483648
      %v2673 = vxor.u32 %v2557, 2147483648
      %v2674 = vxor.u32 %v2560, 2147483648
      %v2675 = vxor.u32 %v2565, 2147483648
      %v2676 = vxor.u32 %v2568, 2147483648
      %v2677 = vxor.u32 %v2573, 2147483648
      %v2678 = vxor.u32 %v2576, 2147483648
      %v2679 = vxor.u32 %v2581, 2147483648
      %v2680 = vxor.u32 %v2584, 2147483648
      %v2681 = vxor.u32 %v2589, 2147483648
      %v2682 = vxor.u32 %v2592, 2147483648
      %v2683 = vxor.u32 %v2597, 2147483648
      %v2684 = vxor.u32 %v2600, 2147483648
      %v2685 = vxor.u32 %v2605, 2147483648
      %v2686 = vxor.u32 %v2608, 2147483648
      %v2687 = vxor.u32 %v2613, 2147483648
      %v2688 = vxor.u32 %v2616, 2147483648
      %v2689 = vxor.u32 %v2621, 2147483648
      %v2690 = vxor.u32 %v2624, 2147483648
      %v2691 = vxor.u32 %v2629, 2147483648
      %v2692 = vxor.u32 %v2632, 2147483648
      %v2693 = vxor.u32 %v2637, 2147483648
      %v2694 = vxor.u32 %v2640, 2147483648
      %v2695 = vxor.u32 %v2645, 2147483648
      %v2696 = vxor.u32 %v2648, 2147483648
      %v2697 = vxor.u32 %v2653, 2147483648
      %v2698 = vxor.u32 %v2656, 2147483648
      %v2699 = vxor.u32 %v2661, 2147483648
      %v2700 = vxor.u32 %v2664, 2147483648
      %v2701 = vmul.f32 %v2667, 1.442695
      %v2702 = vpow.pop %v2701
      %v2703 = vmul.f32 %v2668, 1.442695
      %v2704 = vpow.pop %v2703
      %v2705 = vmul.f32 %v2669, 1.442695
      %v2706 = vpow.pop %v2705
      %v2707 = vmul.f32 %v2670, 1.442695
      %v2708 = vpow.pop %v2707
      %v2709 = vmul.f32 %v2671, 1.442695
      %v2710 = vpow.pop %v2709
      %v2711 = vmul.f32 %v2672, 1.442695
      %v2712 = vpow.pop %v2711
      %v2713 = vmul.f32 %v2673, 1.442695
      %v2714 = vpow.pop %v2713
      %v2715 = vmul.f32 %v2674, 1.442695
      %v2716 = vpow.pop %v2715
      %v2717 = vmul.f32 %v2675, 1.442695
      %v2718 = vpow.pop %v2717
      %v2719 = vmul.f32 %v2676, 1.442695
      %v2720 = vpow.pop %v2719
      %v2721 = vmul.f32 %v2677, 1.442695
      %v2722 = vpow.pop %v2721
      %v2723 = vmul.f32 %v2678, 1.442695
      %v2724 = vpow.pop %v2723
      %v2725 = vmul.f32 %v2679, 1.442695
      %v2726 = vpow.pop %v2725
      %v2727 = vmul.f32 %v2680, 1.442695
      %v2728 = vpow.pop %v2727
      %v2729 = vmul.f32 %v2681, 1.442695
      %v2730 = vpow.pop %v2729
      %v2731 = vmul.f32 %v2682, 1.442695
      %v2732 = vpow.pop %v2731
      %v2733 = vmul.f32 %v2683, 1.442695
      %v2734 = vpow.pop %v2733
      %v2735 = vmul.f32 %v2684, 1.442695
      %v2736 = vpow.pop %v2735
      %v2737 = vmul.f32 %v2685, 1.442695
      %v2738 = vpow.pop %v2737
      %v2739 = vmul.f32 %v2686, 1.442695
      %v2740 = vpow.pop %v2739
      %v2741 = vmul.f32 %v2687, 1.442695
      %v2742 = vpow.pop %v2741
      %v2743 = vmul.f32 %v2688, 1.442695
      %v2744 = vpow.pop %v2743
      %v2745 = vmul.f32 %v2689, 1.442695
      %v2746 = vpow.pop %v2745
      %v2747 = vmul.f32 %v2690, 1.442695
      %v2748 = vpow.pop %v2747
      %v2749 = vmul.f32 %v2691, 1.442695
      %v2750 = vpow.pop %v2749
      %v2751 = vmul.f32 %v2692, 1.442695
      %v2752 = vpow.pop %v2751
      %v2753 = vmul.f32 %v2693, 1.442695
      %v2754 = vpow.pop %v2753
      %v2755 = vmul.f32 %v2694, 1.442695
      %v2756 = vpow.pop %v2755
      %v2757 = vmul.f32 %v2695, 1.442695
      %v2758 = vpow.pop %v2757
      %v2759 = vmul.f32 %v2696, 1.442695
      %v2760 = vpow.pop %v2759
      %v2761 = vmul.f32 %v2697, 1.442695
      %v2762 = vpow.pop %v2761
      %v2763 = vmul.f32 %v2698, 1.442695
      %v2764 = vpow.pop %v2763
      %v2765 = vmul.f32 %v2699, 1.442695
      %v2766 = vpow.pop %v2765
      %v2767 = vmul.f32 %v2700, 1.442695
      %v2768 = vpow.pop %v2767
      %v2769 = vadd.f32 %v2702, 1.0
      %v2770 = vadd.f32 %v2704, 1.0
      %v2771 = vadd.f32 %v2706, 1.0
      %v2772 = vadd.f32 %v2708, 1.0
      %v2773 = vadd.f32 %v2710, 1.0
      %v2774 = vadd.f32 %v2712, 1.0
      %v2775 = vadd.f32 %v2714, 1.0
      %v2776 = vadd.f32 %v2716, 1.0
      %v2777 = vadd.f32 %v2718, 1.0
      %v2778 = vadd.f32 %v2720, 1.0
      %v2779 = vadd.f32 %v2722, 1.0
      %v2780 = vadd.f32 %v2724, 1.0
      %v2781 = vadd.f32 %v2726, 1.0
      %v2782 = vadd.f32 %v2728, 1.0
      %v2783 = vadd.f32 %v2730, 1.0
      %v2784 = vadd.f32 %v2732, 1.0
      %v2785 = vadd.f32 %v2734, 1.0
      %v2786 = vadd.f32 %v2736, 1.0
      %v2787 = vadd.f32 %v2738, 1.0
      %v2788 = vadd.f32 %v2740, 1.0
      %v2789 = vadd.f32 %v2742, 1.0
      %v2790 = vadd.f32 %v2744, 1.0
      %v2791 = vadd.f32 %v2746, 1.0
      %v2792 = vadd.f32 %v2748, 1.0
      %v2793 = vadd.f32 %v2750, 1.0
      %v2794 = vadd.f32 %v2752, 1.0
      %v2795 = vadd.f32 %v2754, 1.0
      %v2796 = vadd.f32 %v2756, 1.0
      %v2797 = vadd.f32 %v2758, 1.0
      %v2798 = vadd.f32 %v2760, 1.0
      %v2799 = vadd.f32 %v2762, 1.0
      %v2800 = vadd.f32 %v2764, 1.0
      %v2801 = vadd.f32 %v2766, 1.0
      %v2802 = vadd.f32 %v2768, 1.0
      %v2803 = vrcp.pop %v2769
      %v2804 = vmul.f32 1.0, %v2803
      %v2805 = vrcp.pop %v2770
      %v2806 = vmul.f32 1.0, %v2805
      %v2807 = vrcp.pop %v2771
      %v2808 = vmul.f32 1.0, %v2807
      %v2809 = vrcp.pop %v2772
      %v2810 = vmul.f32 1.0, %v2809
      %v2811 = vrcp.pop %v2773
      %v2812 = vmul.f32 1.0, %v2811
      %v2813 = vrcp.pop %v2774
      %v2814 = vmul.f32 1.0, %v2813
      %v2815 = vrcp.pop %v2775
      %v2816 = vmul.f32 1.0, %v2815
      %v2817 = vrcp.pop %v2776
      %v2818 = vmul.f32 1.0, %v2817
      %v2819 = vrcp.pop %v2777
      %v2820 = vmul.f32 1.0, %v2819
      %v2821 = vrcp.pop %v2778
      %v2822 = vmul.f32 1.0, %v2821
      %v2823 = vrcp.pop %v2779
      %v2824 = vmul.f32 1.0, %v2823
      %v2825 = vrcp.pop %v2780
      %v2826 = vmul.f32 1.0, %v2825
      %v2827 = vrcp.pop %v2781
      %v2828 = vmul.f32 1.0, %v2827
      %v2829 = vrcp.pop %v2782
      %v2830 = vmul.f32 1.0, %v2829
      %v2831 = vrcp.pop %v2783
      %v2832 = vmul.f32 1.0, %v2831
      %v2833 = vrcp.pop %v2784
      %v2834 = vmul.f32 1.0, %v2833
      %v2835 = vrcp.pop %v2785
      %v2836 = vmul.f32 1.0, %v2835
      %v2837 = vrcp.pop %v2786
      %v2838 = vmul.f32 1.0, %v2837
      %v2839 = vrcp.pop %v2787
      %v2840 = vmul.f32 1.0, %v2839
      %v2841 = vrcp.pop %v2788
      %v2842 = vmul.f32 1.0, %v2841
      %v2843 = vrcp.pop %v2789
      %v2844 = vmul.f32 1.0, %v2843
      %v2845 = vrcp.pop %v2790
      %v2846 = vmul.f32 1.0, %v2845
      %v2847 = vrcp.pop %v2791
      %v2848 = vmul.f32 1.0, %v2847
      %v2849 = vrcp.pop %v2792
      %v2850 = vmul.f32 1.0, %v2849
      %v2851 = vrcp.pop %v2793
      %v2852 = vmul.f32 1.0, %v2851
      %v2853 = vrcp.pop %v2794
      %v2854 = vmul.f32 1.0, %v2853
      %v2855 = vrcp.pop %v2795
      %v2856 = vmul.f32 1.0, %v2855
      %v2857 = vrcp.pop %v2796
      %v2858 = vmul.f32 1.0, %v2857
      %v2859 = vrcp.pop %v2797
      %v2860 = vmul.f32 1.0, %v2859
      %v2861 = vrcp.pop %v2798
      %v2862 = vmul.f32 1.0, %v2861
      %v2863 = vrcp.pop %v2799
      %v2864 = vmul.f32 1.0, %v2863
      %v2865 = vrcp.pop %v2800
      %v2866 = vmul.f32 1.0, %v2865
      %v2867 = vrcp.pop %v2801
      %v2868 = vmul.f32 1.0, %v2867
      %v2869 = vrcp.pop %v2802
      %v2870 = vmul.f32 1.0, %v2869
      %2871 = vst [vmem:[%s251] sm:$0xff] %v769
      %2872 = vst [vmem:[%s251 + $0x8] sm:$0xff] %v771
      %2873 = vst [vmem:[%s251 + $0x10] sm:$0xff] %v773
      %2874 = vst [vmem:[%s251 + $0x18] sm:$0xff] %v775
      %2875 = vst [vmem:[%s251 + $0x20] sm:$0xff] %v777
      %2876 = vst [vmem:[%s251 + $0x28] sm:$0xff] %v779
      %2877 = vst [vmem:[%s251 + $0x30] sm:$0xff] %v781
      %2878 = vst [vmem:[%s251 + $0x38] sm:$0xff] %v783
      %2879 = vst [vmem:[%s251 + $0x40] sm:$0xff] %v785
      %2880 = vst [vmem:[%s251 + $0x48] sm:$0xff] %v787
      %2881 = vst [vmem:[%s251 + $0x50] sm:$0xff] %v789
      %2882 = vst [vmem:[%s251 + $0x58] sm:$0xff] %v791
      %2883 = vst [vmem:[%s251 + $0x60] sm:$0xff] %v793
      %2884 = vst [vmem:[%s251 + $0x68] sm:$0xff] %v795
      %2885 = vst [vmem:[%s251 + $0x70] sm:$0xff] %v797
      %2886 = vst [vmem:[%s251 + $0x78] sm:$0xff] %v799
      %2887 = vst [vmem:[%s251 + $0x80] sm:$0xff] %v801
      %2888 = vst [vmem:[%s251 + $0x88] sm:$0xff] %v803
      %2889 = vst [vmem:[%s251 + $0x90] sm:$0xff] %v805
      %2890 = vst [vmem:[%s251 + $0x98] sm:$0xff] %v807
      %2891 = vst [vmem:[%s251 + $0xa0] sm:$0xff] %v809
      %2892 = vst [vmem:[%s251 + $0xa8] sm:$0xff] %v811
      %2893 = vst [vmem:[%s251 + $0xb0] sm:$0xff] %v813
      %2894 = vst [vmem:[%s251 + $0xb8] sm:$0xff] %v815
      %2895 = vst [vmem:[%s251 + $0xc0] sm:$0xff] %v817
      %2896 = vst [vmem:[%s251 + $0xc8] sm:$0xff] %v819
      %2897 = vst [vmem:[%s251 + $0xd0] sm:$0xff] %v821
      %2898 = vst [vmem:[%s251 + $0xd8] sm:$0xff] %v823
      %2899 = vst [vmem:[%s251 + $0xe0] sm:$0xff] %v825
      %2900 = vst [vmem:[%s251 + $0xe8] sm:$0xff] %v827
      %2901 = vst [vmem:[%s251 + $0xf0] sm:$0xff] %v829
      %2902 = vst [vmem:[%s251 + $0xf8] sm:$0xff] %v831
      %2903 = vst [vmem:[%s251 + $0x100] sm:$0xff] %v833
      %2904 = vst [vmem:[%s251 + $0x108] sm:$0xff] %v835
      %s2905 = scalar_lea.vmem %s251, 272
      %2906 = vst [vmem:[%s2905] sm:$0xff] %v1431
      %2907 = vst [vmem:[%s2905 + $0x8] sm:$0xff] %v1433
      %2908 = vst [vmem:[%s2905 + $0x10] sm:$0xff] %v1435
      %2909 = vst [vmem:[%s2905 + $0x18] sm:$0xff] %v1437
      %2910 = vst [vmem:[%s2905 + $0x20] sm:$0xff] %v1439
      %2911 = vst [vmem:[%s2905 + $0x28] sm:$0xff] %v1441
      %2912 = vst [vmem:[%s2905 + $0x30] sm:$0xff] %v1443
      %2913 = vst [vmem:[%s2905 + $0x38] sm:$0xff] %v1445
      %2914 = vst [vmem:[%s2905 + $0x40] sm:$0xff] %v1447
      %2915 = vst [vmem:[%s2905 + $0x48] sm:$0xff] %v1449
      %2916 = vst [vmem:[%s2905 + $0x50] sm:$0xff] %v1451
      %2917 = vst [vmem:[%s2905 + $0x58] sm:$0xff] %v1453
      %2918 = vst [vmem:[%s2905 + $0x60] sm:$0xff] %v1455
      %2919 = vst [vmem:[%s2905 + $0x68] sm:$0xff] %v1457
      %2920 = vst [vmem:[%s2905 + $0x70] sm:$0xff] %v1459
      %2921 = vst [vmem:[%s2905 + $0x78] sm:$0xff] %v1461
      %2922 = vst [vmem:[%s2905 + $0x80] sm:$0xff] %v1463
      %2923 = vst [vmem:[%s2905 + $0x88] sm:$0xff] %v1465
      %2924 = vst [vmem:[%s2905 + $0x90] sm:$0xff] %v1467
      %2925 = vst [vmem:[%s2905 + $0x98] sm:$0xff] %v1469
      %2926 = vst [vmem:[%s2905 + $0xa0] sm:$0xff] %v1471
      %2927 = vst [vmem:[%s2905 + $0xa8] sm:$0xff] %v1473
      %2928 = vst [vmem:[%s2905 + $0xb0] sm:$0xff] %v1475
      %2929 = vst [vmem:[%s2905 + $0xb8] sm:$0xff] %v1477
      %2930 = vst [vmem:[%s2905 + $0xc0] sm:$0xff] %v1479
      %2931 = vst [vmem:[%s2905 + $0xc8] sm:$0xff] %v1481
      %2932 = vst [vmem:[%s2905 + $0xd0] sm:$0xff] %v1483
      %2933 = vst [vmem:[%s2905 + $0xd8] sm:$0xff] %v1485
      %2934 = vst [vmem:[%s2905 + $0xe0] sm:$0xff] %v1487
      %2935 = vst [vmem:[%s2905 + $0xe8] sm:$0xff] %v1489
      %2936 = vst [vmem:[%s2905 + $0xf0] sm:$0xff] %v1491
      %2937 = vst [vmem:[%s2905 + $0xf8] sm:$0xff] %v1493
      %2938 = vst [vmem:[%s2905 + $0x100] sm:$0xff] %v1495
      %2939 = vst [vmem:[%s2905 + $0x108] sm:$0xff] %v1497
      %s2940 = scalar_lea.vmem %s251, 544
      %2941 = vst [vmem:[%s2940] sm:$0xff] %v1953
      %2942 = vst [vmem:[%s2940 + $0x8] sm:$0xff] %v1955
      %2943 = vst [vmem:[%s2940 + $0x10] sm:$0xff] %v1957
      %2944 = vst [vmem:[%s2940 + $0x18] sm:$0xff] %v1959
      %2945 = vst [vmem:[%s2940 + $0x20] sm:$0xff] %v1961
      %2946 = vst [vmem:[%s2940 + $0x28] sm:$0xff] %v1963
      %2947 = vst [vmem:[%s2940 + $0x30] sm:$0xff] %v1965
      %2948 = vst [vmem:[%s2940 + $0x38] sm:$0xff] %v1967
      %2949 = vst [vmem:[%s2940 + $0x40] sm:$0xff] %v1969
      %2950 = vst [vmem:[%s2940 + $0x48] sm:$0xff] %v1971
      %2951 = vst [vmem:[%s2940 + $0x50] sm:$0xff] %v1973
      %2952 = vst [vmem:[%s2940 + $0x58] sm:$0xff] %v1975
      %2953 = vst [vmem:[%s2940 + $0x60] sm:$0xff] %v1977
      %2954 = vst [vmem:[%s2940 + $0x68] sm:$0xff] %v1979
      %2955 = vst [vmem:[%s2940 + $0x70] sm:$0xff] %v1981
      %2956 = vst [vmem:[%s2940 + $0x78] sm:$0xff] %v1983
      %2957 = vst [vmem:[%s2940 + $0x80] sm:$0xff] %v1985
      %2958 = vst [vmem:[%s2940 + $0x88] sm:$0xff] %v1987
      %2959 = vst [vmem:[%s2940 + $0x90] sm:$0xff] %v1989
      %2960 = vst [vmem:[%s2940 + $0x98] sm:$0xff] %v1991
      %2961 = vst [vmem:[%s2940 + $0xa0] sm:$0xff] %v1993
      %2962 = vst [vmem:[%s2940 + $0xa8] sm:$0xff] %v1995
      %2963 = vst [vmem:[%s2940 + $0xb0] sm:$0xff] %v1997
      %2964 = vst [vmem:[%s2940 + $0xb8] sm:$0xff] %v1999
      %2965 = vst [vmem:[%s2940 + $0xc0] sm:$0xff] %v2001
      %2966 = vst [vmem:[%s2940 + $0xc8] sm:$0xff] %v2003
      %2967 = vst [vmem:[%s2940 + $0xd0] sm:$0xff] %v2005
      %2968 = vst [vmem:[%s2940 + $0xd8] sm:$0xff] %v2007
      %2969 = vst [vmem:[%s2940 + $0xe0] sm:$0xff] %v2009
      %2970 = vst [vmem:[%s2940 + $0xe8] sm:$0xff] %v2011
      %2971 = vst [vmem:[%s2940 + $0xf0] sm:$0xff] %v2013
      %2972 = vst [vmem:[%s2940 + $0xf8] sm:$0xff] %v2015
      %2973 = vst [vmem:[%s2940 + $0x100] sm:$0xff] %v2017
      %2974 = vst [vmem:[%s2940 + $0x108] sm:$0xff] %v2019
      %s2975 = scalar_lea.vmem %s251, 816
      %2976 = vst [vmem:[%s2975] sm:$0xff] %v2804
      %2977 = vst [vmem:[%s2975 + $0x8] sm:$0xff] %v2806
      %2978 = vst [vmem:[%s2975 + $0x10] sm:$0xff] %v2808
      %2979 = vst [vmem:[%s2975 + $0x18] sm:$0xff] %v2810
      %2980 = vst [vmem:[%s2975 + $0x20] sm:$0xff] %v2812
      %2981 = vst [vmem:[%s2975 + $0x28] sm:$0xff] %v2814
      %2982 = vst [vmem:[%s2975 + $0x30] sm:$0xff] %v2816
      %2983 = vst [vmem:[%s2975 + $0x38] sm:$0xff] %v2818
      %2984 = vst [vmem:[%s2975 + $0x40] sm:$0xff] %v2820
      %2985 = vst [vmem:[%s2975 + $0x48] sm:$0xff] %v2822
      %2986 = vst [vmem:[%s2975 + $0x50] sm:$0xff] %v2824
      %2987 = vst [vmem:[%s2975 + $0x58] sm:$0xff] %v2826
      %2988 = vst [vmem:[%s2975 + $0x60] sm:$0xff] %v2828
      %2989 = vst [vmem:[%s2975 + $0x68] sm:$0xff] %v2830
      %2990 = vst [vmem:[%s2975 + $0x70] sm:$0xff] %v2832
      %2991 = vst [vmem:[%s2975 + $0x78] sm:$0xff] %v2834
      %2992 = vst [vmem:[%s2975 + $0x80] sm:$0xff] %v2836
      %2993 = vst [vmem:[%s2975 + $0x88] sm:$0xff] %v2838
      %2994 = vst [vmem:[%s2975 + $0x90] sm:$0xff] %v2840
      %2995 = vst [vmem:[%s2975 + $0x98] sm:$0xff] %v2842
      %2996 = vst [vmem:[%s2975 + $0xa0] sm:$0xff] %v2844
      %2997 = vst [vmem:[%s2975 + $0xa8] sm:$0xff] %v2846
      %2998 = vst [vmem:[%s2975 + $0xb0] sm:$0xff] %v2848
      %2999 = vst [vmem:[%s2975 + $0xb8] sm:$0xff] %v2850
      %3000 = vst [vmem:[%s2975 + $0xc0] sm:$0xff] %v2852
      %3001 = vst [vmem:[%s2975 + $0xc8] sm:$0xff] %v2854
      %3002 = vst [vmem:[%s2975 + $0xd0] sm:$0xff] %v2856
      %3003 = vst [vmem:[%s2975 + $0xd8] sm:$0xff] %v2858
      %3004 = vst [vmem:[%s2975 + $0xe0] sm:$0xff] %v2860
      %3005 = vst [vmem:[%s2975 + $0xe8] sm:$0xff] %v2862
      %3006 = vst [vmem:[%s2975 + $0xf0] sm:$0xff] %v2864
      %3007 = vst [vmem:[%s2975 + $0xf8] sm:$0xff] %v2866
      %3008 = vst [vmem:[%s2975 + $0x100] sm:$0xff] %v2868
      %3009 = vst [vmem:[%s2975 + $0x108] sm:$0xff] %v2870
      %p3010 = scmp.lt.s32.totalorder %s17, 1
      %s3011 = scalar_select %p3010, %s17, 1
      %s3012 = smul.addr %s3011, 136
      %s3013 = smul.addr %s3012, 8
      %s3014 = scalar_lea.vmem %s6, %s3013
      // Predicated region
      $region45: #{decoder_forward.11} parent=43 // pred_check
        %p3015 = pneg %p166
      $region46: #{decoder_forward.11} parent=43 // pred_check_branch
        %3017 = sbr.rel (%p3015) target = $region48
      $region47: #{decoder_forward.11} parent=43 // pred_region
        _
      $region48: #{decoder_forward.11} parent=43 // pred_fallthru
        _
    $region44: #{decoder_forward.11} parent=5 // pred_fallthru
      _
    %p3018 = scmp.le.s32.totalorder 2, %s12
    // Predicated region
    $region49: #{decoder_forward.11} parent=5 // pred_check
      %p3019 = pneg %p3018
    $region50: #{decoder_forward.11} parent=5 // pred_check_branch
      %3021 = sbr.rel (%p3019) target = $region52
    $region51: #{decoder_forward.11} parent=5 // pred_region
      %s3022 = ssub.s32 %s12, 2
      // Predicated region
      $region53: #{decoder_forward.11} parent=51 // pred_check
        %p3023 = pneg %p172
      $region54: #{decoder_forward.11} parent=51 // pred_check_branch
        %3025 = sbr.rel (%p3023) target = $region56
      $region55: #{decoder_forward.11} parent=51 // pred_region
        %p3026 = scmp.lt.s32.totalorder %s18, 1
        %s3027 = scalar_select %p3026, %s18, 1
        %s3028 = smul.addr %s3027, 136
        %s3029 = smul.addr %s3028, 8
        %s3030 = scalar_lea.vmem %s6, %s3029
      $region56: #{decoder_forward.11} parent=51 // pred_fallthru
        _
    $region52: #{decoder_forward.11} parent=5 // pred_fallthru
      _
  $region6: #{decoder_forward.11} parent=0 // loop_footer
    %s16 = sadd.s32 1, %s12
  $region7: #{decoder_forward.11} parent=0 // loop_footer_branch
    %11 = sbr.rel target = $region3
  $region8: #{decoder_forward.11} parent=0 // loop_exit
    _

</llo_original>
